<compile_context>
chip_gen: v7x
topology: tpu7x:2x2x1
jax: 0.10.0
libtpu: 0.0.40
codegen_flags: <defaults>
</compile_context>

<pallas_src>
import functools

import jax
import jax.numpy as jnp
from jax import lax
from jax.experimental import pallas as pl

# ---------------- configuration (small shapes, consistent with the module) -------------
B = 2                    # batch
H = W = 8                # spatial resolution  (input_resolution = (8, 8))
DIM = 32                 # channels
NUM_HEADS = 4
HEAD_DIM = DIM // NUM_HEADS
WS = 8                   # window_size (== min(input_resolution))
KPOS = WS // 2 * 2 + 1   # depthwise pos-conv kernel size (9)
PAD = WS // 2            # pos-conv padding (4)
N = H * W                # tokens per image (single 8x8 window)
BN = B * N               # folded batch*tokens = 128 rows
MLP_HIDDEN = int(DIM * 4.0)
EPS = 1e-5               # LayerNorm eps (PyTorch default)
SCALE = HEAD_DIM ** -0.5
INV_SQRT2 = 0.7071067811865476


# ------------------------------------ kernel -------------------------------------------
def swin_block_kernel(x1_ref, rel_ref,
                      n1w_ref, n1b_ref, qkv_w_ref, qkv_b_ref,
                      proj_w_ref, proj_b_ref, n2w_ref, n2b_ref,
                      fc1w_ref, fc1b_ref, fc2w_ref, fc2b_ref,
                      out_ref):
    x1 = x1_ref[...]        # (BN, C) f32 : tokens + depthwise pos-conv residual
    rel = rel_ref[...]      # (HEAD_DIM, N, N) f32 : combined v2 rel-pos table (lane = keys)

    def layernorm(v, w, bvec):
        mu = jnp.mean(v, axis=-1, keepdims=True)
        var = jnp.mean((v - mu) ** 2, axis=-1, keepdims=True)
        return (v - mu) * lax.rsqrt(var + EPS) * w + bvec

    shortcut = x1
    y = layernorm(x1, n1w_ref[0], n1b_ref[0])

    # ---- QKV projection on the full (B*N, C) slab (bf16 operands, f32 accumulation) ----
    qkv = jnp.dot(y.astype(jnp.bfloat16), qkv_w_ref[...],
                  preferred_element_type=jnp.float32) + qkv_b_ref[0]      # (BN, 3C) f32

    # ---- build head-batched q/k/v and the rel-pos bias -------------------------------
    q_list, k_list, v_list, bias_list = [], [], [], []
    for b in range(B):
        r0, r1 = b * N, (b + 1) * N
        for h in range(NUM_HEADS):
            lo = h * HEAD_DIM
            qh = qkv[r0:r1, lo:lo + HEAD_DIM]                       # (N, hd), unscaled
            kh = qkv[r0:r1, DIM + lo:DIM + lo + HEAD_DIM]
            vh = qkv[r0:r1, 2 * DIM + lo:2 * DIM + lo + HEAD_DIM]
            q_list.append(qh)
            k_list.append(kh)
            v_list.append(vh)
            # rpe v2: bias[i, j] = sum_c q[i, c] * rel[c, i, j]
            # (unscaled q, matching calc_rel_pos_spatial in the reference)
            bias = qh[:, 0:1] * rel[0]
            for c in range(1, HEAD_DIM):
                bias = bias + qh[:, c:c + 1] * rel[c]
            bias_list.append(bias)                                   # (N, N)

    q_bh = jnp.stack(q_list, axis=0)        # (B*H_heads, N, hd)
    k_bh = jnp.stack(k_list, axis=0)
    v_bh = jnp.stack(v_list, axis=0)
    bias_bh = jnp.stack(bias_list, axis=0)  # (B*H_heads, N, N)

    # ---- head-batched attention: scores = (q*scale) @ k^T + bias ----------------------
    s = lax.dot_general((q_bh * SCALE).astype(jnp.bfloat16),
                        k_bh.astype(jnp.bfloat16),
                        (((2,), (2,)), ((0,), (0,))),
                        preferred_element_type=jnp.float32)          # (BH, N, N)
    s = s + bias_bh

    m = jnp.max(s, axis=-1, keepdims=True)
    p = jnp.exp(s - m)
    a = p * pl.reciprocal(jnp.sum(p, axis=-1, keepdims=True), approx=True)

    o_bh = lax.dot_general(a.astype(jnp.bfloat16),
                           v_bh.astype(jnp.bfloat16),
                           (((2,), (1,)), ((0,), (0,))),
                           preferred_element_type=jnp.float32)       # (BH, N, hd)

    # ---- merge heads back to one (B*N, C) slab (head-major channel order) -------------
    per_batch = []
    for b in range(B):
        per_batch.append(jnp.concatenate(
            [o_bh[b * NUM_HEADS + h] for h in range(NUM_HEADS)], axis=-1))   # (N, C)
    attn_cat = jnp.concatenate(per_batch, axis=0)                            # (BN, C)

    attn_out = jnp.dot(attn_cat.astype(jnp.bfloat16), proj_w_ref[...],
                       preferred_element_type=jnp.float32) + proj_b_ref[0]

    # ---- residual + MLP (exact GELU, as nn.GELU default) ------------------------------
    x2 = shortcut + attn_out
    y2 = layernorm(x2, n2w_ref[0], n2b_ref[0])
    h1 = jnp.dot(y2.astype(jnp.bfloat16), fc1w_ref[...],
                 preferred_element_type=jnp.float32) + fc1b_ref[0]
    h1 = 0.5 * h1 * (1.0 + lax.erf(h1 * INV_SQRT2))
    mlp_out = jnp.dot(h1.astype(jnp.bfloat16), fc2w_ref[...],
                      preferred_element_type=jnp.float32) + fc2b_ref[0]

    out_ref[...] = x2 + mlp_out


# ------------------------------------ wrapper -------------------------------------------
@jax.jit
def swin_block_forward(x, params):
    """x: (B, N, C) float32 tokens (row-major over (H, W))."""
    x = x.astype(jnp.float32)
    x_img = x.reshape(B, H, W, DIM)

    # -- depthwise 9x9 "pos" conv + residual, hoisted out of the kernel (NHWC) ----------
    conv_w = params['pos_w'].reshape(KPOS, KPOS, 1, DIM)     # HWIO, depthwise
    pos = lax.conv_general_dilated(
        x_img, conv_w, window_strides=(1, 1),
        padding=((PAD, PAD), (PAD, PAD)),
        dimension_numbers=('NHWC', 'HWIO', 'NHWC'),
        feature_group_count=DIM) + params['pos_b'][0]
    x1 = (x_img + pos).reshape(BN, DIM)                      # (B*N, C) slab

    # -- combined v2 relative-position table, permuted so the key axis is minor ---------
    idx = jnp.arange(WS)
    dist = idx[:, None] - idx[None, :] + (WS - 1)            # (ws, ws) in [0, 2ws-2]
    Rh = params['rel_pos_h'][dist]                           # (ws, ws, hd): [ri, rj, c]
    Rw = params['rel_pos_w'][dist]                           # (ws, ws, hd): [wi, wj, c]
    rel_full = (Rh[:, None, :, None, :] + Rw[None, :, None, :, :]).reshape(N, N, HEAD_DIM)
    rel_cm = jnp.transpose(rel_full, (2, 0, 1)).astype(jnp.float32)   # (hd, N, N)

    bf16 = jnp.bfloat16
    out_flat = pl.pallas_call(
        swin_block_kernel,
        out_shape=jax.ShapeDtypeStruct((BN, DIM), jnp.float32),
    )(x1, rel_cm,
      params['n1_w'], params['n1_b'],
      params['qkv_w'].astype(bf16), params['qkv_b'],
      params['proj_w'].astype(bf16), params['proj_b'],
      params['n2_w'], params['n2_b'],
      params['fc1_w'].astype(bf16), params['fc1_b'],
      params['fc2_w'].astype(bf16), params['fc2_b'])

    return out_flat.reshape(B, N, DIM)


def init_params(key):
    ks = jax.random.split(key, 13)

    def nrm(k, shape, std=0.02):
        return std * jax.random.normal(k, shape, jnp.float32)

    return {
        # depthwise pos conv: torch weight (C,1,K,K) -> stored (K,K,C)
        'pos_w': nrm(ks[0], (KPOS, KPOS, DIM), std=0.1),
        'pos_b': nrm(ks[1], (1, DIM), std=0.1),
        'n1_w': jnp.ones((1, DIM), jnp.float32),
        'n1_b': jnp.zeros((1, DIM), jnp.float32),
        # linear weights stored transposed: y = x @ W
        'qkv_w': nrm(ks[2], (DIM, 3 * DIM), std=0.1),
        'qkv_b': nrm(ks[3], (1, 3 * DIM), std=0.1),
        'rel_pos_h': nrm(ks[4], (2 * WS - 1, HEAD_DIM)),     # trunc_normal(std=0.02) analogue
        'rel_pos_w': nrm(ks[5], (2 * WS - 1, HEAD_DIM)),
        'proj_w': nrm(ks[6], (DIM, DIM), std=0.1),
        'proj_b': nrm(ks[7], (1, DIM), std=0.1),
        'n2_w': jnp.ones((1, DIM), jnp.float32),
        'n2_b': jnp.zeros((1, DIM), jnp.float32),
        'fc1_w': nrm(ks[8], (DIM, MLP_HIDDEN), std=0.1),
        'fc1_b': nrm(ks[9], (1, MLP_HIDDEN), std=0.1),
        'fc2_w': nrm(ks[10], (MLP_HIDDEN, DIM), std=0.1),
        'fc2_b': nrm(ks[11], (1, DIM), std=0.1),
    }


if __name__ == "__main__":
    key = jax.random.PRNGKey(0)
    pkey, xkey = jax.random.split(key)
    params = init_params(pkey)
    x = jax.random.normal(xkey, (B, N, DIM), jnp.float32)   # (B, H*W, C) tokens

    out = swin_block_forward(x, params)
    jax.block_until_ready(out)
    assert out.shape == (B, N, DIM)
    assert jnp.all(jnp.isfinite(out))
    print("KERNEL_OK")
</pallas_src>

<mosaic_0001>
module attributes {stable_mosaic.version = 11 : i64} {
  func.func @swin_block_kernel(%arg0: memref<128x32xf32, #tpu.memory_space<vmem>>, %arg1: memref<8x64x64xf32, #tpu.memory_space<vmem>>, %arg2: memref<1x32xf32, #tpu.memory_space<vmem>>, %arg3: memref<1x32xf32, #tpu.memory_space<vmem>>, %arg4: memref<32x96xbf16, #tpu.memory_space<vmem>>, %arg5: memref<1x96xf32, #tpu.memory_space<vmem>>, %arg6: memref<32x32xbf16, #tpu.memory_space<vmem>>, %arg7: memref<1x32xf32, #tpu.memory_space<vmem>>, %arg8: memref<1x32xf32, #tpu.memory_space<vmem>>, %arg9: memref<1x32xf32, #tpu.memory_space<vmem>>, %arg10: memref<32x128xbf16, #tpu.memory_space<vmem>>, %arg11: memref<1x128xf32, #tpu.memory_space<vmem>>, %arg12: memref<128x32xbf16, #tpu.memory_space<vmem>>, %arg13: memref<1x32xf32, #tpu.memory_space<vmem>>, %arg14: memref<128x32xf32, #tpu.memory_space<vmem>>) attributes {dimension_semantics = [], scalar_prefetch = 0 : i64, scratch_operands = 0 : i64, tpu.core_type = #tpu.core_type<tc>} {
    %c0 = arith.constant 0 : index
    %c0_0 = arith.constant 0 : index
    %0 = vector.load %arg0[%c0, %c0_0] : memref<128x32xf32, #tpu.memory_space<vmem>>, vector<128x32xf32>
    %c0_1 = arith.constant 0 : index
    %c0_2 = arith.constant 0 : index
    %c0_3 = arith.constant 0 : index
    %1 = vector.load %arg1[%c0_1, %c0_2, %c0_3] : memref<8x64x64xf32, #tpu.memory_space<vmem>>, vector<8x64x64xf32>
    %c0_4 = arith.constant 0 : index
    %c0_5 = arith.constant 0 : index
    %2 = vector.load %arg2[%c0_4, %c0_5] : memref<1x32xf32, #tpu.memory_space<vmem>>, vector<1x32xf32>
    %3 = vector.shape_cast %2 : vector<1x32xf32> to vector<32xf32>
    %c0_6 = arith.constant 0 : index
    %c0_7 = arith.constant 0 : index
    %4 = vector.load %arg3[%c0_6, %c0_7] : memref<1x32xf32, #tpu.memory_space<vmem>>, vector<1x32xf32>
    %5 = vector.shape_cast %4 : vector<1x32xf32> to vector<32xf32>
    %cst = arith.constant dense<0.000000e+00> : vector<128xf32>
    %6 = vector.multi_reduction <add>, %0, %cst [1] : vector<128x32xf32> to vector<128xf32>
    %7 = vector.shape_cast %6 : vector<128xf32> to vector<128x1xf32>
    %cst_8 = arith.constant 3.200000e+01 : f32
    %8 = vector.broadcast %cst_8 : f32 to vector<128x1xf32>
    %9 = arith.divf %7, %8 : vector<128x1xf32>
    %10 = vector.broadcast %9 : vector<128x1xf32> to vector<128x32xf32>
    %11 = arith.subf %0, %10 : vector<128x32xf32>
    %12 = arith.mulf %11, %11 : vector<128x32xf32>
    %cst_9 = arith.constant dense<0.000000e+00> : vector<128xf32>
    %13 = vector.multi_reduction <add>, %12, %cst_9 [1] : vector<128x32xf32> to vector<128xf32>
    %14 = vector.shape_cast %13 : vector<128xf32> to vector<128x1xf32>
    %cst_10 = arith.constant 3.200000e+01 : f32
    %15 = vector.broadcast %cst_10 : f32 to vector<128x1xf32>
    %16 = arith.divf %14, %15 : vector<128x1xf32>
    %17 = vector.broadcast %9 : vector<128x1xf32> to vector<128x32xf32>
    %18 = arith.subf %0, %17 : vector<128x32xf32>
    %cst_11 = arith.constant 9.99999974E-6 : f32
    %19 = vector.broadcast %cst_11 : f32 to vector<128x1xf32>
    %20 = arith.addf %16, %19 : vector<128x1xf32>
    %21 = math.rsqrt %20 : vector<128x1xf32>
    %22 = vector.broadcast %21 : vector<128x1xf32> to vector<128x32xf32>
    %23 = arith.mulf %18, %22 : vector<128x32xf32>
    %24 = vector.shape_cast %3 : vector<32xf32> to vector<1x32xf32>
    %25 = vector.broadcast %24 : vector<1x32xf32> to vector<128x32xf32>
    %26 = arith.mulf %23, %25 : vector<128x32xf32>
    %27 = vector.shape_cast %5 : vector<32xf32> to vector<1x32xf32>
    %28 = vector.broadcast %27 : vector<1x32xf32> to vector<128x32xf32>
    %29 = arith.addf %26, %28 : vector<128x32xf32>
    %30 = arith.truncf %29 : vector<128x32xf32> to vector<128x32xbf16>
    %c0_12 = arith.constant 0 : index
    %c0_13 = arith.constant 0 : index
    %31 = vector.load %arg4[%c0_12, %c0_13] : memref<32x96xbf16, #tpu.memory_space<vmem>>, vector<32x96xbf16>
    %cst_14 = arith.constant dense<0.000000e+00> : vector<128x96xf32>
    %32 = tpu.matmul %30, %31, %cst_14 {dimension_numbers = #tpu.dot_dimension_numbers<[1], [0], [0], [1], [0, 0, 1, 1], [], []>} : vector<128x32xbf16>, vector<32x96xbf16>, vector<128x96xf32> -> vector<128x96xf32>
    %c0_15 = arith.constant 0 : index
    %c0_16 = arith.constant 0 : index
    %33 = vector.load %arg5[%c0_15, %c0_16] : memref<1x96xf32, #tpu.memory_space<vmem>>, vector<1x96xf32>
    %34 = vector.shape_cast %33 : vector<1x96xf32> to vector<96xf32>
    %35 = vector.shape_cast %34 : vector<96xf32> to vector<1x96xf32>
    %36 = vector.broadcast %35 : vector<1x96xf32> to vector<128x96xf32>
    %37 = arith.addf %32, %36 : vector<128x96xf32>
    %38 = vector.extract_strided_slice %37 {offsets = [0, 0], sizes = [64, 8], strides = [1, 1]} : vector<128x96xf32> to vector<64x8xf32>
    %39 = vector.extract_strided_slice %37 {offsets = [0, 32], sizes = [64, 8], strides = [1, 1]} : vector<128x96xf32> to vector<64x8xf32>
    %40 = vector.extract_strided_slice %37 {offsets = [0, 64], sizes = [64, 8], strides = [1, 1]} : vector<128x96xf32> to vector<64x8xf32>
    %41 = vector.extract_strided_slice %38 {offsets = [0, 0], sizes = [64, 1], strides = [1, 1]} : vector<64x8xf32> to vector<64x1xf32>
    %42 = vector.extract_strided_slice %1 {offsets = [0, 0, 0], sizes = [1, 64, 64], strides = [1, 1, 1]} : vector<8x64x64xf32> to vector<1x64x64xf32>
    %43 = vector.shape_cast %42 : vector<1x64x64xf32> to vector<64x64xf32>
    %44 = vector.broadcast %41 : vector<64x1xf32> to vector<64x64xf32>
    %45 = arith.mulf %44, %43 : vector<64x64xf32>
    %46 = vector.extract_strided_slice %38 {offsets = [0, 1], sizes = [64, 1], strides = [1, 1]} : vector<64x8xf32> to vector<64x1xf32>
    %47 = vector.extract_strided_slice %1 {offsets = [1, 0, 0], sizes = [1, 64, 64], strides = [1, 1, 1]} : vector<8x64x64xf32> to vector<1x64x64xf32>
    %48 = vector.shape_cast %47 : vector<1x64x64xf32> to vector<64x64xf32>
    %49 = vector.broadcast %46 : vector<64x1xf32> to vector<64x64xf32>
    %50 = arith.mulf %49, %48 : vector<64x64xf32>
    %51 = arith.addf %45, %50 : vector<64x64xf32>
    %52 = vector.extract_strided_slice %38 {offsets = [0, 2], sizes = [64, 1], strides = [1, 1]} : vector<64x8xf32> to vector<64x1xf32>
    %53 = vector.extract_strided_slice %1 {offsets = [2, 0, 0], sizes = [1, 64, 64], strides = [1, 1, 1]} : vector<8x64x64xf32> to vector<1x64x64xf32>
    %54 = vector.shape_cast %53 : vector<1x64x64xf32> to vector<64x64xf32>
    %55 = vector.broadcast %52 : vector<64x1xf32> to vector<64x64xf32>
    %56 = arith.mulf %55, %54 : vector<64x64xf32>
    %57 = arith.addf %51, %56 : vector<64x64xf32>
    %58 = vector.extract_strided_slice %38 {offsets = [0, 3], sizes = [64, 1], strides = [1, 1]} : vector<64x8xf32> to vector<64x1xf32>
    %59 = vector.extract_strided_slice %1 {offsets = [3, 0, 0], sizes = [1, 64, 64], strides = [1, 1, 1]} : vector<8x64x64xf32> to vector<1x64x64xf32>
    %60 = vector.shape_cast %59 : vector<1x64x64xf32> to vector<64x64xf32>
    %61 = vector.broadcast %58 : vector<64x1xf32> to vector<64x64xf32>
    %62 = arith.mulf %61, %60 : vector<64x64xf32>
    %63 = arith.addf %57, %62 : vector<64x64xf32>
    %64 = vector.extract_strided_slice %38 {offsets = [0, 4], sizes = [64, 1], strides = [1, 1]} : vector<64x8xf32> to vector<64x1xf32>
    %65 = vector.extract_strided_slice %1 {offsets = [4, 0, 0], sizes = [1, 64, 64], strides = [1, 1, 1]} : vector<8x64x64xf32> to vector<1x64x64xf32>
    %66 = vector.shape_cast %65 : vector<1x64x64xf32> to vector<64x64xf32>
    %67 = vector.broadcast %64 : vector<64x1xf32> to vector<64x64xf32>
    %68 = arith.mulf %67, %66 : vector<64x64xf32>
    %69 = arith.addf %63, %68 : vector<64x64xf32>
    %70 = vector.extract_strided_slice %38 {offsets = [0, 5], sizes = [64, 1], strides = [1, 1]} : vector<64x8xf32> to vector<64x1xf32>
    %71 = vector.extract_strided_slice %1 {offsets = [5, 0, 0], sizes = [1, 64, 64], strides = [1, 1, 1]} : vector<8x64x64xf32> to vector<1x64x64xf32>
    %72 = vector.shape_cast %71 : vector<1x64x64xf32> to vector<64x64xf32>
    %73 = vector.broadcast %70 : vector<64x1xf32> to vector<64x64xf32>
    %74 = arith.mulf %73, %72 : vector<64x64xf32>
    %75 = arith.addf %69, %74 : vector<64x64xf32>
    %76 = vector.extract_strided_slice %38 {offsets = [0, 6], sizes = [64, 1], strides = [1, 1]} : vector<64x8xf32> to vector<64x1xf32>
    %77 = vector.extract_strided_slice %1 {offsets = [6, 0, 0], sizes = [1, 64, 64], strides = [1, 1, 1]} : vector<8x64x64xf32> to vector<1x64x64xf32>
    %78 = vector.shape_cast %77 : vector<1x64x64xf32> to vector<64x64xf32>
    %79 = vector.broadcast %76 : vector<64x1xf32> to vector<64x64xf32>
    %80 = arith.mulf %79, %78 : vector<64x64xf32>
    %81 = arith.addf %75, %80 : vector<64x64xf32>
    %82 = vector.extract_strided_slice %38 {offsets = [0, 7], sizes = [64, 1], strides = [1, 1]} : vector<64x8xf32> to vector<64x1xf32>
    %83 = vector.extract_strided_slice %1 {offsets = [7, 0, 0], sizes = [1, 64, 64], strides = [1, 1, 1]} : vector<8x64x64xf32> to vector<1x64x64xf32>
    %84 = vector.shape_cast %83 : vector<1x64x64xf32> to vector<64x64xf32>
    %85 = vector.broadcast %82 : vector<64x1xf32> to vector<64x64xf32>
    %86 = arith.mulf %85, %84 : vector<64x64xf32>
    %87 = arith.addf %81, %86 : vector<64x64xf32>
    %88 = vector.extract_strided_slice %37 {offsets = [0, 8], sizes = [64, 8], strides = [1, 1]} : vector<128x96xf32> to vector<64x8xf32>
    %89 = vector.extract_strided_slice %37 {offsets = [0, 40], sizes = [64, 8], strides = [1, 1]} : vector<128x96xf32> to vector<64x8xf32>
    %90 = vector.extract_strided_slice %37 {offsets = [0, 72], sizes = [64, 8], strides = [1, 1]} : vector<128x96xf32> to vector<64x8xf32>
    %91 = vector.extract_strided_slice %88 {offsets = [0, 0], sizes = [64, 1], strides = [1, 1]} : vector<64x8xf32> to vector<64x1xf32>
    %92 = vector.extract_strided_slice %1 {offsets = [0, 0, 0], sizes = [1, 64, 64], strides = [1, 1, 1]} : vector<8x64x64xf32> to vector<1x64x64xf32>
    %93 = vector.shape_cast %92 : vector<1x64x64xf32> to vector<64x64xf32>
    %94 = vector.broadcast %91 : vector<64x1xf32> to vector<64x64xf32>
    %95 = arith.mulf %94, %93 : vector<64x64xf32>
    %96 = vector.extract_strided_slice %88 {offsets = [0, 1], sizes = [64, 1], strides = [1, 1]} : vector<64x8xf32> to vector<64x1xf32>
    %97 = vector.extract_strided_slice %1 {offsets = [1, 0, 0], sizes = [1, 64, 64], strides = [1, 1, 1]} : vector<8x64x64xf32> to vector<1x64x64xf32>
    %98 = vector.shape_cast %97 : vector<1x64x64xf32> to vector<64x64xf32>
    %99 = vector.broadcast %96 : vector<64x1xf32> to vector<64x64xf32>
    %100 = arith.mulf %99, %98 : vector<64x64xf32>
    %101 = arith.addf %95, %100 : vector<64x64xf32>
    %102 = vector.extract_strided_slice %88 {offsets = [0, 2], sizes = [64, 1], strides = [1, 1]} : vector<64x8xf32> to vector<64x1xf32>
    %103 = vector.extract_strided_slice %1 {offsets = [2, 0, 0], sizes = [1, 64, 64], strides = [1, 1, 1]} : vector<8x64x64xf32> to vector<1x64x64xf32>
    %104 = vector.shape_cast %103 : vector<1x64x64xf32> to vector<64x64xf32>
    %105 = vector.broadcast %102 : vector<64x1xf32> to vector<64x64xf32>
    %106 = arith.mulf %105, %104 : vector<64x64xf32>
    %107 = arith.addf %101, %106 : vector<64x64xf32>
    %108 = vector.extract_strided_slice %88 {offsets = [0, 3], sizes = [64, 1], strides = [1, 1]} : vector<64x8xf32> to vector<64x1xf32>
    %109 = vector.extract_strided_slice %1 {offsets = [3, 0, 0], sizes = [1, 64, 64], strides = [1, 1, 1]} : vector<8x64x64xf32> to vector<1x64x64xf32>
    %110 = vector.shape_cast %109 : vector<1x64x64xf32> to vector<64x64xf32>
    %111 = vector.broadcast %108 : vector<64x1xf32> to vector<64x64xf32>
    %112 = arith.mulf %111, %110 : vector<64x64xf32>
    %113 = arith.addf %107, %112 : vector<64x64xf32>
    %114 = vector.extract_strided_slice %88 {offsets = [0, 4], sizes = [64, 1], strides = [1, 1]} : vector<64x8xf32> to vector<64x1xf32>
    %115 = vector.extract_strided_slice %1 {offsets = [4, 0, 0], sizes = [1, 64, 64], strides = [1, 1, 1]} : vector<8x64x64xf32> to vector<1x64x64xf32>
    %116 = vector.shape_cast %115 : vector<1x64x64xf32> to vector<64x64xf32>
    %117 = vector.broadcast %114 : vector<64x1xf32> to vector<64x64xf32>
    %118 = arith.mulf %117, %116 : vector<64x64xf32>
    %119 = arith.addf %113, %118 : vector<64x64xf32>
    %120 = vector.extract_strided_slice %88 {offsets = [0, 5], sizes = [64, 1], strides = [1, 1]} : vector<64x8xf32> to vector<64x1xf32>
    %121 = vector.extract_strided_slice %1 {offsets = [5, 0, 0], sizes = [1, 64, 64], strides = [1, 1, 1]} : vector<8x64x64xf32> to vector<1x64x64xf32>
    %122 = vector.shape_cast %121 : vector<1x64x64xf32> to vector<64x64xf32>
    %123 = vector.broadcast %120 : vector<64x1xf32> to vector<64x64xf32>
    %124 = arith.mulf %123, %122 : vector<64x64xf32>
    %125 = arith.addf %119, %124 : vector<64x64xf32>
    %126 = vector.extract_strided_slice %88 {offsets = [0, 6], sizes = [64, 1], strides = [1, 1]} : vector<64x8xf32> to vector<64x1xf32>
    %127 = vector.extract_strided_slice %1 {offsets = [6, 0, 0], sizes = [1, 64, 64], strides = [1, 1, 1]} : vector<8x64x64xf32> to vector<1x64x64xf32>
    %128 = vector.shape_cast %127 : vector<1x64x64xf32> to vector<64x64xf32>
    %129 = vector.broadcast %126 : vector<64x1xf32> to vector<64x64xf32>
    %130 = arith.mulf %129, %128 : vector<64x64xf32>
    %131 = arith.addf %125, %130 : vector<64x64xf32>
    %132 = vector.extract_strided_slice %88 {offsets = [0, 7], sizes = [64, 1], strides = [1, 1]} : vector<64x8xf32> to vector<64x1xf32>
    %133 = vector.extract_strided_slice %1 {offsets = [7, 0, 0], sizes = [1, 64, 64], strides = [1, 1, 1]} : vector<8x64x64xf32> to vector<1x64x64xf32>
    %134 = vector.shape_cast %133 : vector<1x64x64xf32> to vector<64x64xf32>
    %135 = vector.broadcast %132 : vector<64x1xf32> to vector<64x64xf32>
    %136 = arith.mulf %135, %134 : vector<64x64xf32>
    %137 = arith.addf %131, %136 : vector<64x64xf32>
    %138 = vector.extract_strided_slice %37 {offsets = [0, 16], sizes = [64, 8], strides = [1, 1]} : vector<128x96xf32> to vector<64x8xf32>
    %139 = vector.extract_strided_slice %37 {offsets = [0, 48], sizes = [64, 8], strides = [1, 1]} : vector<128x96xf32> to vector<64x8xf32>
    %140 = vector.extract_strided_slice %37 {offsets = [0, 80], sizes = [64, 8], strides = [1, 1]} : vector<128x96xf32> to vector<64x8xf32>
    %141 = vector.extract_strided_slice %138 {offsets = [0, 0], sizes = [64, 1], strides = [1, 1]} : vector<64x8xf32> to vector<64x1xf32>
    %142 = vector.extract_strided_slice %1 {offsets = [0, 0, 0], sizes = [1, 64, 64], strides = [1, 1, 1]} : vector<8x64x64xf32> to vector<1x64x64xf32>
    %143 = vector.shape_cast %142 : vector<1x64x64xf32> to vector<64x64xf32>
    %144 = vector.broadcast %141 : vector<64x1xf32> to vector<64x64xf32>
    %145 = arith.mulf %144, %143 : vector<64x64xf32>
    %146 = vector.extract_strided_slice %138 {offsets = [0, 1], sizes = [64, 1], strides = [1, 1]} : vector<64x8xf32> to vector<64x1xf32>
    %147 = vector.extract_strided_slice %1 {offsets = [1, 0, 0], sizes = [1, 64, 64], strides = [1, 1, 1]} : vector<8x64x64xf32> to vector<1x64x64xf32>
    %148 = vector.shape_cast %147 : vector<1x64x64xf32> to vector<64x64xf32>
    %149 = vector.broadcast %146 : vector<64x1xf32> to vector<64x64xf32>
    %150 = arith.mulf %149, %148 : vector<64x64xf32>
    %151 = arith.addf %145, %150 : vector<64x64xf32>
    %152 = vector.extract_strided_slice %138 {offsets = [0, 2], sizes = [64, 1], strides = [1, 1]} : vector<64x8xf32> to vector<64x1xf32>
    %153 = vector.extract_strided_slice %1 {offsets = [2, 0, 0], sizes = [1, 64, 64], strides = [1, 1, 1]} : vector<8x64x64xf32> to vector<1x64x64xf32>
    %154 = vector.shape_cast %153 : vector<1x64x64xf32> to vector<64x64xf32>
    %155 = vector.broadcast %152 : vector<64x1xf32> to vector<64x64xf32>
    %156 = arith.mulf %155, %154 : vector<64x64xf32>
    %157 = arith.addf %151, %156 : vector<64x64xf32>
    %158 = vector.extract_strided_slice %138 {offsets = [0, 3], sizes = [64, 1], strides = [1, 1]} : vector<64x8xf32> to vector<64x1xf32>
    %159 = vector.extract_strided_slice %1 {offsets = [3, 0, 0], sizes = [1, 64, 64], strides = [1, 1, 1]} : vector<8x64x64xf32> to vector<1x64x64xf32>
    %160 = vector.shape_cast %159 : vector<1x64x64xf32> to vector<64x64xf32>
    %161 = vector.broadcast %158 : vector<64x1xf32> to vector<64x64xf32>
    %162 = arith.mulf %161, %160 : vector<64x64xf32>
    %163 = arith.addf %157, %162 : vector<64x64xf32>
    %164 = vector.extract_strided_slice %138 {offsets = [0, 4], sizes = [64, 1], strides = [1, 1]} : vector<64x8xf32> to vector<64x1xf32>
    %165 = vector.extract_strided_slice %1 {offsets = [4, 0, 0], sizes = [1, 64, 64], strides = [1, 1, 1]} : vector<8x64x64xf32> to vector<1x64x64xf32>
    %166 = vector.shape_cast %165 : vector<1x64x64xf32> to vector<64x64xf32>
    %167 = vector.broadcast %164 : vector<64x1xf32> to vector<64x64xf32>
    %168 = arith.mulf %167, %166 : vector<64x64xf32>
    %169 = arith.addf %163, %168 : vector<64x64xf32>
    %170 = vector.extract_strided_slice %138 {offsets = [0, 5], sizes = [64, 1], strides = [1, 1]} : vector<64x8xf32> to vector<64x1xf32>
    %171 = vector.extract_strided_slice %1 {offsets = [5, 0, 0], sizes = [1, 64, 64], strides = [1, 1, 1]} : vector<8x64x64xf32> to vector<1x64x64xf32>
    %172 = vector.shape_cast %171 : vector<1x64x64xf32> to vector<64x64xf32>
    %173 = vector.broadcast %170 : vector<64x1xf32> to vector<64x64xf32>
    %174 = arith.mulf %173, %172 : vector<64x64xf32>
    %175 = arith.addf %169, %174 : vector<64x64xf32>
    %176 = vector.extract_strided_slice %138 {offsets = [0, 6], sizes = [64, 1], strides = [1, 1]} : vector<64x8xf32> to vector<64x1xf32>
    %177 = vector.extract_strided_slice %1 {offsets = [6, 0, 0], sizes = [1, 64, 64], strides = [1, 1, 1]} : vector<8x64x64xf32> to vector<1x64x64xf32>
    %178 = vector.shape_cast %177 : vector<1x64x64xf32> to vector<64x64xf32>
    %179 = vector.broadcast %176 : vector<64x1xf32> to vector<64x64xf32>
    %180 = arith.mulf %179, %178 : vector<64x64xf32>
    %181 = arith.addf %175, %180 : vector<64x64xf32>
    %182 = vector.extract_strided_slice %138 {offsets = [0, 7], sizes = [64, 1], strides = [1, 1]} : vector<64x8xf32> to vector<64x1xf32>
    %183 = vector.extract_strided_slice %1 {offsets = [7, 0, 0], sizes = [1, 64, 64], strides = [1, 1, 1]} : vector<8x64x64xf32> to vector<1x64x64xf32>
    %184 = vector.shape_cast %183 : vector<1x64x64xf32> to vector<64x64xf32>
    %185 = vector.broadcast %182 : vector<64x1xf32> to vector<64x64xf32>
    %186 = arith.mulf %185, %184 : vector<64x64xf32>
    %187 = arith.addf %181, %186 : vector<64x64xf32>
    %188 = vector.extract_strided_slice %37 {offsets = [0, 24], sizes = [64, 8], strides = [1, 1]} : vector<128x96xf32> to vector<64x8xf32>
    %189 = vector.extract_strided_slice %37 {offsets = [0, 56], sizes = [64, 8], strides = [1, 1]} : vector<128x96xf32> to vector<64x8xf32>
    %190 = vector.extract_strided_slice %37 {offsets = [0, 88], sizes = [64, 8], strides = [1, 1]} : vector<128x96xf32> to vector<64x8xf32>
    %191 = vector.extract_strided_slice %188 {offsets = [0, 0], sizes = [64, 1], strides = [1, 1]} : vector<64x8xf32> to vector<64x1xf32>
    %192 = vector.extract_strided_slice %1 {offsets = [0, 0, 0], sizes = [1, 64, 64], strides = [1, 1, 1]} : vector<8x64x64xf32> to vector<1x64x64xf32>
    %193 = vector.shape_cast %192 : vector<1x64x64xf32> to vector<64x64xf32>
    %194 = vector.broadcast %191 : vector<64x1xf32> to vector<64x64xf32>
    %195 = arith.mulf %194, %193 : vector<64x64xf32>
    %196 = vector.extract_strided_slice %188 {offsets = [0, 1], sizes = [64, 1], strides = [1, 1]} : vector<64x8xf32> to vector<64x1xf32>
    %197 = vector.extract_strided_slice %1 {offsets = [1, 0, 0], sizes = [1, 64, 64], strides = [1, 1, 1]} : vector<8x64x64xf32> to vector<1x64x64xf32>
    %198 = vector.shape_cast %197 : vector<1x64x64xf32> to vector<64x64xf32>
    %199 = vector.broadcast %196 : vector<64x1xf32> to vector<64x64xf32>
    %200 = arith.mulf %199, %198 : vector<64x64xf32>
    %201 = arith.addf %195, %200 : vector<64x64xf32>
    %202 = vector.extract_strided_slice %188 {offsets = [0, 2], sizes = [64, 1], strides = [1, 1]} : vector<64x8xf32> to vector<64x1xf32>
    %203 = vector.extract_strided_slice %1 {offsets = [2, 0, 0], sizes = [1, 64, 64], strides = [1, 1, 1]} : vector<8x64x64xf32> to vector<1x64x64xf32>
    %204 = vector.shape_cast %203 : vector<1x64x64xf32> to vector<64x64xf32>
    %205 = vector.broadcast %202 : vector<64x1xf32> to vector<64x64xf32>
    %206 = arith.mulf %205, %204 : vector<64x64xf32>
    %207 = arith.addf %201, %206 : vector<64x64xf32>
    %208 = vector.extract_strided_slice %188 {offsets = [0, 3], sizes = [64, 1], strides = [1, 1]} : vector<64x8xf32> to vector<64x1xf32>
    %209 = vector.extract_strided_slice %1 {offsets = [3, 0, 0], sizes = [1, 64, 64], strides = [1, 1, 1]} : vector<8x64x64xf32> to vector<1x64x64xf32>
    %210 = vector.shape_cast %209 : vector<1x64x64xf32> to vector<64x64xf32>
    %211 = vector.broadcast %208 : vector<64x1xf32> to vector<64x64xf32>
    %212 = arith.mulf %211, %210 : vector<64x64xf32>
    %213 = arith.addf %207, %212 : vector<64x64xf32>
    %214 = vector.extract_strided_slice %188 {offsets = [0, 4], sizes = [64, 1], strides = [1, 1]} : vector<64x8xf32> to vector<64x1xf32>
    %215 = vector.extract_strided_slice %1 {offsets = [4, 0, 0], sizes = [1, 64, 64], strides = [1, 1, 1]} : vector<8x64x64xf32> to vector<1x64x64xf32>
    %216 = vector.shape_cast %215 : vector<1x64x64xf32> to vector<64x64xf32>
    %217 = vector.broadcast %214 : vector<64x1xf32> to vector<64x64xf32>
    %218 = arith.mulf %217, %216 : vector<64x64xf32>
    %219 = arith.addf %213, %218 : vector<64x64xf32>
    %220 = vector.extract_strided_slice %188 {offsets = [0, 5], sizes = [64, 1], strides = [1, 1]} : vector<64x8xf32> to vector<64x1xf32>
    %221 = vector.extract_strided_slice %1 {offsets = [5, 0, 0], sizes = [1, 64, 64], strides = [1, 1, 1]} : vector<8x64x64xf32> to vector<1x64x64xf32>
    %222 = vector.shape_cast %221 : vector<1x64x64xf32> to vector<64x64xf32>
    %223 = vector.broadcast %220 : vector<64x1xf32> to vector<64x64xf32>
    %224 = arith.mulf %223, %222 : vector<64x64xf32>
    %225 = arith.addf %219, %224 : vector<64x64xf32>
    %226 = vector.extract_strided_slice %188 {offsets = [0, 6], sizes = [64, 1], strides = [1, 1]} : vector<64x8xf32> to vector<64x1xf32>
    %227 = vector.extract_strided_slice %1 {offsets = [6, 0, 0], sizes = [1, 64, 64], strides = [1, 1, 1]} : vector<8x64x64xf32> to vector<1x64x64xf32>
    %228 = vector.shape_cast %227 : vector<1x64x64xf32> to vector<64x64xf32>
    %229 = vector.broadcast %226 : vector<64x1xf32> to vector<64x64xf32>
    %230 = arith.mulf %229, %228 : vector<64x64xf32>
    %231 = arith.addf %225, %230 : vector<64x64xf32>
    %232 = vector.extract_strided_slice %188 {offsets = [0, 7], sizes = [64, 1], strides = [1, 1]} : vector<64x8xf32> to vector<64x1xf32>
    %233 = vector.extract_strided_slice %1 {offsets = [7, 0, 0], sizes = [1, 64, 64], strides = [1, 1, 1]} : vector<8x64x64xf32> to vector<1x64x64xf32>
    %234 = vector.shape_cast %233 : vector<1x64x64xf32> to vector<64x64xf32>
    %235 = vector.broadcast %232 : vector<64x1xf32> to vector<64x64xf32>
    %236 = arith.mulf %235, %234 : vector<64x64xf32>
    %237 = arith.addf %231, %236 : vector<64x64xf32>
    %238 = vector.extract_strided_slice %37 {offsets = [64, 0], sizes = [64, 8], strides = [1, 1]} : vector<128x96xf32> to vector<64x8xf32>
    %239 = vector.extract_strided_slice %37 {offsets = [64, 32], sizes = [64, 8], strides = [1, 1]} : vector<128x96xf32> to vector<64x8xf32>
    %240 = vector.extract_strided_slice %37 {offsets = [64, 64], sizes = [64, 8], strides = [1, 1]} : vector<128x96xf32> to vector<64x8xf32>
    %241 = vector.extract_strided_slice %238 {offsets = [0, 0], sizes = [64, 1], strides = [1, 1]} : vector<64x8xf32> to vector<64x1xf32>
    %242 = vector.extract_strided_slice %1 {offsets = [0, 0, 0], sizes = [1, 64, 64], strides = [1, 1, 1]} : vector<8x64x64xf32> to vector<1x64x64xf32>
    %243 = vector.shape_cast %242 : vector<1x64x64xf32> to vector<64x64xf32>
    %244 = vector.broadcast %241 : vector<64x1xf32> to vector<64x64xf32>
    %245 = arith.mulf %244, %243 : vector<64x64xf32>
    %246 = vector.extract_strided_slice %238 {offsets = [0, 1], sizes = [64, 1], strides = [1, 1]} : vector<64x8xf32> to vector<64x1xf32>
    %247 = vector.extract_strided_slice %1 {offsets = [1, 0, 0], sizes = [1, 64, 64], strides = [1, 1, 1]} : vector<8x64x64xf32> to vector<1x64x64xf32>
    %248 = vector.shape_cast %247 : vector<1x64x64xf32> to vector<64x64xf32>
    %249 = vector.broadcast %246 : vector<64x1xf32> to vector<64x64xf32>
    %250 = arith.mulf %249, %248 : vector<64x64xf32>
    %251 = arith.addf %245, %250 : vector<64x64xf32>
    %252 = vector.extract_strided_slice %238 {offsets = [0, 2], sizes = [64, 1], strides = [1, 1]} : vector<64x8xf32> to vector<64x1xf32>
    %253 = vector.extract_strided_slice %1 {offsets = [2, 0, 0], sizes = [1, 64, 64], strides = [1, 1, 1]} : vector<8x64x64xf32> to vector<1x64x64xf32>
    %254 = vector.shape_cast %253 : vector<1x64x64xf32> to vector<64x64xf32>
    %255 = vector.broadcast %252 : vector<64x1xf32> to vector<64x64xf32>
    %256 = arith.mulf %255, %254 : vector<64x64xf32>
    %257 = arith.addf %251, %256 : vector<64x64xf32>
    %258 = vector.extract_strided_slice %238 {offsets = [0, 3], sizes = [64, 1], strides = [1, 1]} : vector<64x8xf32> to vector<64x1xf32>
    %259 = vector.extract_strided_slice %1 {offsets = [3, 0, 0], sizes = [1, 64, 64], strides = [1, 1, 1]} : vector<8x64x64xf32> to vector<1x64x64xf32>
    %260 = vector.shape_cast %259 : vector<1x64x64xf32> to vector<64x64xf32>
    %261 = vector.broadcast %258 : vector<64x1xf32> to vector<64x64xf32>
    %262 = arith.mulf %261, %260 : vector<64x64xf32>
    %263 = arith.addf %257, %262 : vector<64x64xf32>
    %264 = vector.extract_strided_slice %238 {offsets = [0, 4], sizes = [64, 1], strides = [1, 1]} : vector<64x8xf32> to vector<64x1xf32>
    %265 = vector.extract_strided_slice %1 {offsets = [4, 0, 0], sizes = [1, 64, 64], strides = [1, 1, 1]} : vector<8x64x64xf32> to vector<1x64x64xf32>
    %266 = vector.shape_cast %265 : vector<1x64x64xf32> to vector<64x64xf32>
    %267 = vector.broadcast %264 : vector<64x1xf32> to vector<64x64xf32>
    %268 = arith.mulf %267, %266 : vector<64x64xf32>
    %269 = arith.addf %263, %268 : vector<64x64xf32>
    %270 = vector.extract_strided_slice %238 {offsets = [0, 5], sizes = [64, 1], strides = [1, 1]} : vector<64x8xf32> to vector<64x1xf32>
    %271 = vector.extract_strided_slice %1 {offsets = [5, 0, 0], sizes = [1, 64, 64], strides = [1, 1, 1]} : vector<8x64x64xf32> to vector<1x64x64xf32>
    %272 = vector.shape_cast %271 : vector<1x64x64xf32> to vector<64x64xf32>
    %273 = vector.broadcast %270 : vector<64x1xf32> to vector<64x64xf32>
    %274 = arith.mulf %273, %272 : vector<64x64xf32>
    %275 = arith.addf %269, %274 : vector<64x64xf32>
    %276 = vector.extract_strided_slice %238 {offsets = [0, 6], sizes = [64, 1], strides = [1, 1]} : vector<64x8xf32> to vector<64x1xf32>
    %277 = vector.extract_strided_slice %1 {offsets = [6, 0, 0], sizes = [1, 64, 64], strides = [1, 1, 1]} : vector<8x64x64xf32> to vector<1x64x64xf32>
    %278 = vector.shape_cast %277 : vector<1x64x64xf32> to vector<64x64xf32>
    %279 = vector.broadcast %276 : vector<64x1xf32> to vector<64x64xf32>
    %280 = arith.mulf %279, %278 : vector<64x64xf32>
    %281 = arith.addf %275, %280 : vector<64x64xf32>
    %282 = vector.extract_strided_slice %238 {offsets = [0, 7], sizes = [64, 1], strides = [1, 1]} : vector<64x8xf32> to vector<64x1xf32>
    %283 = vector.extract_strided_slice %1 {offsets = [7, 0, 0], sizes = [1, 64, 64], strides = [1, 1, 1]} : vector<8x64x64xf32> to vector<1x64x64xf32>
    %284 = vector.shape_cast %283 : vector<1x64x64xf32> to vector<64x64xf32>
    %285 = vector.broadcast %282 : vector<64x1xf32> to vector<64x64xf32>
    %286 = arith.mulf %285, %284 : vector<64x64xf32>
    %287 = arith.addf %281, %286 : vector<64x64xf32>
    %288 = vector.extract_strided_slice %37 {offsets = [64, 8], sizes = [64, 8], strides = [1, 1]} : vector<128x96xf32> to vector<64x8xf32>
    %289 = vector.extract_strided_slice %37 {offsets = [64, 40], sizes = [64, 8], strides = [1, 1]} : vector<128x96xf32> to vector<64x8xf32>
    %290 = vector.extract_strided_slice %37 {offsets = [64, 72], sizes = [64, 8], strides = [1, 1]} : vector<128x96xf32> to vector<64x8xf32>
    %291 = vector.extract_strided_slice %288 {offsets = [0, 0], sizes = [64, 1], strides = [1, 1]} : vector<64x8xf32> to vector<64x1xf32>
    %292 = vector.extract_strided_slice %1 {offsets = [0, 0, 0], sizes = [1, 64, 64], strides = [1, 1, 1]} : vector<8x64x64xf32> to vector<1x64x64xf32>
    %293 = vector.shape_cast %292 : vector<1x64x64xf32> to vector<64x64xf32>
    %294 = vector.broadcast %291 : vector<64x1xf32> to vector<64x64xf32>
    %295 = arith.mulf %294, %293 : vector<64x64xf32>
    %296 = vector.extract_strided_slice %288 {offsets = [0, 1], sizes = [64, 1], strides = [1, 1]} : vector<64x8xf32> to vector<64x1xf32>
    %297 = vector.extract_strided_slice %1 {offsets = [1, 0, 0], sizes = [1, 64, 64], strides = [1, 1, 1]} : vector<8x64x64xf32> to vector<1x64x64xf32>
    %298 = vector.shape_cast %297 : vector<1x64x64xf32> to vector<64x64xf32>
    %299 = vector.broadcast %296 : vector<64x1xf32> to vector<64x64xf32>
    %300 = arith.mulf %299, %298 : vector<64x64xf32>
    %301 = arith.addf %295, %300 : vector<64x64xf32>
    %302 = vector.extract_strided_slice %288 {offsets = [0, 2], sizes = [64, 1], strides = [1, 1]} : vector<64x8xf32> to vector<64x1xf32>
    %303 = vector.extract_strided_slice %1 {offsets = [2, 0, 0], sizes = [1, 64, 64], strides = [1, 1, 1]} : vector<8x64x64xf32> to vector<1x64x64xf32>
    %304 = vector.shape_cast %303 : vector<1x64x64xf32> to vector<64x64xf32>
    %305 = vector.broadcast %302 : vector<64x1xf32> to vector<64x64xf32>
    %306 = arith.mulf %305, %304 : vector<64x64xf32>
    %307 = arith.addf %301, %306 : vector<64x64xf32>
    %308 = vector.extract_strided_slice %288 {offsets = [0, 3], sizes = [64, 1], strides = [1, 1]} : vector<64x8xf32> to vector<64x1xf32>
    %309 = vector.extract_strided_slice %1 {offsets = [3, 0, 0], sizes = [1, 64, 64], strides = [1, 1, 1]} : vector<8x64x64xf32> to vector<1x64x64xf32>
    %310 = vector.shape_cast %309 : vector<1x64x64xf32> to vector<64x64xf32>
    %311 = vector.broadcast %308 : vector<64x1xf32> to vector<64x64xf32>
    %312 = arith.mulf %311, %310 : vector<64x64xf32>
    %313 = arith.addf %307, %312 : vector<64x64xf32>
    %314 = vector.extract_strided_slice %288 {offsets = [0, 4], sizes = [64, 1], strides = [1, 1]} : vector<64x8xf32> to vector<64x1xf32>
    %315 = vector.extract_strided_slice %1 {offsets = [4, 0, 0], sizes = [1, 64, 64], strides = [1, 1, 1]} : vector<8x64x64xf32> to vector<1x64x64xf32>
    %316 = vector.shape_cast %315 : vector<1x64x64xf32> to vector<64x64xf32>
    %317 = vector.broadcast %314 : vector<64x1xf32> to vector<64x64xf32>
    %318 = arith.mulf %317, %316 : vector<64x64xf32>
    %319 = arith.addf %313, %318 : vector<64x64xf32>
    %320 = vector.extract_strided_slice %288 {offsets = [0, 5], sizes = [64, 1], strides = [1, 1]} : vector<64x8xf32> to vector<64x1xf32>
    %321 = vector.extract_strided_slice %1 {offsets = [5, 0, 0], sizes = [1, 64, 64], strides = [1, 1, 1]} : vector<8x64x64xf32> to vector<1x64x64xf32>
    %322 = vector.shape_cast %321 : vector<1x64x64xf32> to vector<64x64xf32>
    %323 = vector.broadcast %320 : vector<64x1xf32> to vector<64x64xf32>
    %324 = arith.mulf %323, %322 : vector<64x64xf32>
    %325 = arith.addf %319, %324 : vector<64x64xf32>
    %326 = vector.extract_strided_slice %288 {offsets = [0, 6], sizes = [64, 1], strides = [1, 1]} : vector<64x8xf32> to vector<64x1xf32>
    %327 = vector.extract_strided_slice %1 {offsets = [6, 0, 0], sizes = [1, 64, 64], strides = [1, 1, 1]} : vector<8x64x64xf32> to vector<1x64x64xf32>
    %328 = vector.shape_cast %327 : vector<1x64x64xf32> to vector<64x64xf32>
    %329 = vector.broadcast %326 : vector<64x1xf32> to vector<64x64xf32>
    %330 = arith.mulf %329, %328 : vector<64x64xf32>
    %331 = arith.addf %325, %330 : vector<64x64xf32>
    %332 = vector.extract_strided_slice %288 {offsets = [0, 7], sizes = [64, 1], strides = [1, 1]} : vector<64x8xf32> to vector<64x1xf32>
    %333 = vector.extract_strided_slice %1 {offsets = [7, 0, 0], sizes = [1, 64, 64], strides = [1, 1, 1]} : vector<8x64x64xf32> to vector<1x64x64xf32>
    %334 = vector.shape_cast %333 : vector<1x64x64xf32> to vector<64x64xf32>
    %335 = vector.broadcast %332 : vector<64x1xf32> to vector<64x64xf32>
    %336 = arith.mulf %335, %334 : vector<64x64xf32>
    %337 = arith.addf %331, %336 : vector<64x64xf32>
    %338 = vector.extract_strided_slice %37 {offsets = [64, 16], sizes = [64, 8], strides = [1, 1]} : vector<128x96xf32> to vector<64x8xf32>
    %339 = vector.extract_strided_slice %37 {offsets = [64, 48], sizes = [64, 8], strides = [1, 1]} : vector<128x96xf32> to vector<64x8xf32>
    %340 = vector.extract_strided_slice %37 {offsets = [64, 80], sizes = [64, 8], strides = [1, 1]} : vector<128x96xf32> to vector<64x8xf32>
    %341 = vector.extract_strided_slice %338 {offsets = [0, 0], sizes = [64, 1], strides = [1, 1]} : vector<64x8xf32> to vector<64x1xf32>
    %342 = vector.extract_strided_slice %1 {offsets = [0, 0, 0], sizes = [1, 64, 64], strides = [1, 1, 1]} : vector<8x64x64xf32> to vector<1x64x64xf32>
    %343 = vector.shape_cast %342 : vector<1x64x64xf32> to vector<64x64xf32>
    %344 = vector.broadcast %341 : vector<64x1xf32> to vector<64x64xf32>
    %345 = arith.mulf %344, %343 : vector<64x64xf32>
    %346 = vector.extract_strided_slice %338 {offsets = [0, 1], sizes = [64, 1], strides = [1, 1]} : vector<64x8xf32> to vector<64x1xf32>
    %347 = vector.extract_strided_slice %1 {offsets = [1, 0, 0], sizes = [1, 64, 64], strides = [1, 1, 1]} : vector<8x64x64xf32> to vector<1x64x64xf32>
    %348 = vector.shape_cast %347 : vector<1x64x64xf32> to vector<64x64xf32>
    %349 = vector.broadcast %346 : vector<64x1xf32> to vector<64x64xf32>
    %350 = arith.mulf %349, %348 : vector<64x64xf32>
    %351 = arith.addf %345, %350 : vector<64x64xf32>
    %352 = vector.extract_strided_slice %338 {offsets = [0, 2], sizes = [64, 1], strides = [1, 1]} : vector<64x8xf32> to vector<64x1xf32>
    %353 = vector.extract_strided_slice %1 {offsets = [2, 0, 0], sizes = [1, 64, 64], strides = [1, 1, 1]} : vector<8x64x64xf32> to vector<1x64x64xf32>
    %354 = vector.shape_cast %353 : vector<1x64x64xf32> to vector<64x64xf32>
    %355 = vector.broadcast %352 : vector<64x1xf32> to vector<64x64xf32>
    %356 = arith.mulf %355, %354 : vector<64x64xf32>
    %357 = arith.addf %351, %356 : vector<64x64xf32>
    %358 = vector.extract_strided_slice %338 {offsets = [0, 3], sizes = [64, 1], strides = [1, 1]} : vector<64x8xf32> to vector<64x1xf32>
    %359 = vector.extract_strided_slice %1 {offsets = [3, 0, 0], sizes = [1, 64, 64], strides = [1, 1, 1]} : vector<8x64x64xf32> to vector<1x64x64xf32>
    %360 = vector.shape_cast %359 : vector<1x64x64xf32> to vector<64x64xf32>
    %361 = vector.broadcast %358 : vector<64x1xf32> to vector<64x64xf32>
    %362 = arith.mulf %361, %360 : vector<64x64xf32>
    %363 = arith.addf %357, %362 : vector<64x64xf32>
    %364 = vector.extract_strided_slice %338 {offsets = [0, 4], sizes = [64, 1], strides = [1, 1]} : vector<64x8xf32> to vector<64x1xf32>
    %365 = vector.extract_strided_slice %1 {offsets = [4, 0, 0], sizes = [1, 64, 64], strides = [1, 1, 1]} : vector<8x64x64xf32> to vector<1x64x64xf32>
    %366 = vector.shape_cast %365 : vector<1x64x64xf32> to vector<64x64xf32>
    %367 = vector.broadcast %364 : vector<64x1xf32> to vector<64x64xf32>
    %368 = arith.mulf %367, %366 : vector<64x64xf32>
    %369 = arith.addf %363, %368 : vector<64x64xf32>
    %370 = vector.extract_strided_slice %338 {offsets = [0, 5], sizes = [64, 1], strides = [1, 1]} : vector<64x8xf32> to vector<64x1xf32>
    %371 = vector.extract_strided_slice %1 {offsets = [5, 0, 0], sizes = [1, 64, 64], strides = [1, 1, 1]} : vector<8x64x64xf32> to vector<1x64x64xf32>
    %372 = vector.shape_cast %371 : vector<1x64x64xf32> to vector<64x64xf32>
    %373 = vector.broadcast %370 : vector<64x1xf32> to vector<64x64xf32>
    %374 = arith.mulf %373, %372 : vector<64x64xf32>
    %375 = arith.addf %369, %374 : vector<64x64xf32>
    %376 = vector.extract_strided_slice %338 {offsets = [0, 6], sizes = [64, 1], strides = [1, 1]} : vector<64x8xf32> to vector<64x1xf32>
    %377 = vector.extract_strided_slice %1 {offsets = [6, 0, 0], sizes = [1, 64, 64], strides = [1, 1, 1]} : vector<8x64x64xf32> to vector<1x64x64xf32>
    %378 = vector.shape_cast %377 : vector<1x64x64xf32> to vector<64x64xf32>
    %379 = vector.broadcast %376 : vector<64x1xf32> to vector<64x64xf32>
    %380 = arith.mulf %379, %378 : vector<64x64xf32>
    %381 = arith.addf %375, %380 : vector<64x64xf32>
    %382 = vector.extract_strided_slice %338 {offsets = [0, 7], sizes = [64, 1], strides = [1, 1]} : vector<64x8xf32> to vector<64x1xf32>
    %383 = vector.extract_strided_slice %1 {offsets = [7, 0, 0], sizes = [1, 64, 64], strides = [1, 1, 1]} : vector<8x64x64xf32> to vector<1x64x64xf32>
    %384 = vector.shape_cast %383 : vector<1x64x64xf32> to vector<64x64xf32>
    %385 = vector.broadcast %382 : vector<64x1xf32> to vector<64x64xf32>
    %386 = arith.mulf %385, %384 : vector<64x64xf32>
    %387 = arith.addf %381, %386 : vector<64x64xf32>
    %388 = vector.extract_strided_slice %37 {offsets = [64, 24], sizes = [64, 8], strides = [1, 1]} : vector<128x96xf32> to vector<64x8xf32>
    %389 = vector.extract_strided_slice %37 {offsets = [64, 56], sizes = [64, 8], strides = [1, 1]} : vector<128x96xf32> to vector<64x8xf32>
    %390 = vector.extract_strided_slice %37 {offsets = [64, 88], sizes = [64, 8], strides = [1, 1]} : vector<128x96xf32> to vector<64x8xf32>
    %391 = vector.extract_strided_slice %388 {offsets = [0, 0], sizes = [64, 1], strides = [1, 1]} : vector<64x8xf32> to vector<64x1xf32>
    %392 = vector.extract_strided_slice %1 {offsets = [0, 0, 0], sizes = [1, 64, 64], strides = [1, 1, 1]} : vector<8x64x64xf32> to vector<1x64x64xf32>
    %393 = vector.shape_cast %392 : vector<1x64x64xf32> to vector<64x64xf32>
    %394 = vector.broadcast %391 : vector<64x1xf32> to vector<64x64xf32>
    %395 = arith.mulf %394, %393 : vector<64x64xf32>
    %396 = vector.extract_strided_slice %388 {offsets = [0, 1], sizes = [64, 1], strides = [1, 1]} : vector<64x8xf32> to vector<64x1xf32>
    %397 = vector.extract_strided_slice %1 {offsets = [1, 0, 0], sizes = [1, 64, 64], strides = [1, 1, 1]} : vector<8x64x64xf32> to vector<1x64x64xf32>
    %398 = vector.shape_cast %397 : vector<1x64x64xf32> to vector<64x64xf32>
    %399 = vector.broadcast %396 : vector<64x1xf32> to vector<64x64xf32>
    %400 = arith.mulf %399, %398 : vector<64x64xf32>
    %401 = arith.addf %395, %400 : vector<64x64xf32>
    %402 = vector.extract_strided_slice %388 {offsets = [0, 2], sizes = [64, 1], strides = [1, 1]} : vector<64x8xf32> to vector<64x1xf32>
    %403 = vector.extract_strided_slice %1 {offsets = [2, 0, 0], sizes = [1, 64, 64], strides = [1, 1, 1]} : vector<8x64x64xf32> to vector<1x64x64xf32>
    %404 = vector.shape_cast %403 : vector<1x64x64xf32> to vector<64x64xf32>
    %405 = vector.broadcast %402 : vector<64x1xf32> to vector<64x64xf32>
    %406 = arith.mulf %405, %404 : vector<64x64xf32>
    %407 = arith.addf %401, %406 : vector<64x64xf32>
    %408 = vector.extract_strided_slice %388 {offsets = [0, 3], sizes = [64, 1], strides = [1, 1]} : vector<64x8xf32> to vector<64x1xf32>
    %409 = vector.extract_strided_slice %1 {offsets = [3, 0, 0], sizes = [1, 64, 64], strides = [1, 1, 1]} : vector<8x64x64xf32> to vector<1x64x64xf32>
    %410 = vector.shape_cast %409 : vector<1x64x64xf32> to vector<64x64xf32>
    %411 = vector.broadcast %408 : vector<64x1xf32> to vector<64x64xf32>
    %412 = arith.mulf %411, %410 : vector<64x64xf32>
    %413 = arith.addf %407, %412 : vector<64x64xf32>
    %414 = vector.extract_strided_slice %388 {offsets = [0, 4], sizes = [64, 1], strides = [1, 1]} : vector<64x8xf32> to vector<64x1xf32>
    %415 = vector.extract_strided_slice %1 {offsets = [4, 0, 0], sizes = [1, 64, 64], strides = [1, 1, 1]} : vector<8x64x64xf32> to vector<1x64x64xf32>
    %416 = vector.shape_cast %415 : vector<1x64x64xf32> to vector<64x64xf32>
    %417 = vector.broadcast %414 : vector<64x1xf32> to vector<64x64xf32>
    %418 = arith.mulf %417, %416 : vector<64x64xf32>
    %419 = arith.addf %413, %418 : vector<64x64xf32>
    %420 = vector.extract_strided_slice %388 {offsets = [0, 5], sizes = [64, 1], strides = [1, 1]} : vector<64x8xf32> to vector<64x1xf32>
    %421 = vector.extract_strided_slice %1 {offsets = [5, 0, 0], sizes = [1, 64, 64], strides = [1, 1, 1]} : vector<8x64x64xf32> to vector<1x64x64xf32>
    %422 = vector.shape_cast %421 : vector<1x64x64xf32> to vector<64x64xf32>
    %423 = vector.broadcast %420 : vector<64x1xf32> to vector<64x64xf32>
    %424 = arith.mulf %423, %422 : vector<64x64xf32>
    %425 = arith.addf %419, %424 : vector<64x64xf32>
    %426 = vector.extract_strided_slice %388 {offsets = [0, 6], sizes = [64, 1], strides = [1, 1]} : vector<64x8xf32> to vector<64x1xf32>
    %427 = vector.extract_strided_slice %1 {offsets = [6, 0, 0], sizes = [1, 64, 64], strides = [1, 1, 1]} : vector<8x64x64xf32> to vector<1x64x64xf32>
    %428 = vector.shape_cast %427 : vector<1x64x64xf32> to vector<64x64xf32>
    %429 = vector.broadcast %426 : vector<64x1xf32> to vector<64x64xf32>
    %430 = arith.mulf %429, %428 : vector<64x64xf32>
    %431 = arith.addf %425, %430 : vector<64x64xf32>
    %432 = vector.extract_strided_slice %388 {offsets = [0, 7], sizes = [64, 1], strides = [1, 1]} : vector<64x8xf32> to vector<64x1xf32>
    %433 = vector.extract_strided_slice %1 {offsets = [7, 0, 0], sizes = [1, 64, 64], strides = [1, 1, 1]} : vector<8x64x64xf32> to vector<1x64x64xf32>
    %434 = vector.shape_cast %433 : vector<1x64x64xf32> to vector<64x64xf32>
    %435 = vector.broadcast %432 : vector<64x1xf32> to vector<64x64xf32>
    %436 = arith.mulf %435, %434 : vector<64x64xf32>
    %437 = arith.addf %431, %436 : vector<64x64xf32>
    %438 = vector.shape_cast %38 : vector<64x8xf32> to vector<1x64x8xf32>
    %439 = vector.shape_cast %88 : vector<64x8xf32> to vector<1x64x8xf32>
    %440 = vector.shape_cast %138 : vector<64x8xf32> to vector<1x64x8xf32>
    %441 = vector.shape_cast %188 : vector<64x8xf32> to vector<1x64x8xf32>
    %442 = vector.shape_cast %238 : vector<64x8xf32> to vector<1x64x8xf32>
    %443 = vector.shape_cast %288 : vector<64x8xf32> to vector<1x64x8xf32>
    %444 = vector.shape_cast %338 : vector<64x8xf32> to vector<1x64x8xf32>
    %445 = vector.shape_cast %388 : vector<64x8xf32> to vector<1x64x8xf32>
    %446 = tpu.concatenate %438, %439, %440, %441, %442, %443, %444, %445 in 0 : vector<1x64x8xf32>, vector<1x64x8xf32>, vector<1x64x8xf32>, vector<1x64x8xf32>, vector<1x64x8xf32>, vector<1x64x8xf32>, vector<1x64x8xf32>, vector<1x64x8xf32> -> vector<8x64x8xf32>
    %447 = vector.shape_cast %39 : vector<64x8xf32> to vector<1x64x8xf32>
    %448 = vector.shape_cast %89 : vector<64x8xf32> to vector<1x64x8xf32>
    %449 = vector.shape_cast %139 : vector<64x8xf32> to vector<1x64x8xf32>
    %450 = vector.shape_cast %189 : vector<64x8xf32> to vector<1x64x8xf32>
    %451 = vector.shape_cast %239 : vector<64x8xf32> to vector<1x64x8xf32>
    %452 = vector.shape_cast %289 : vector<64x8xf32> to vector<1x64x8xf32>
    %453 = vector.shape_cast %339 : vector<64x8xf32> to vector<1x64x8xf32>
    %454 = vector.shape_cast %389 : vector<64x8xf32> to vector<1x64x8xf32>
    %455 = tpu.concatenate %447, %448, %449, %450, %451, %452, %453, %454 in 0 : vector<1x64x8xf32>, vector<1x64x8xf32>, vector<1x64x8xf32>, vector<1x64x8xf32>, vector<1x64x8xf32>, vector<1x64x8xf32>, vector<1x64x8xf32>, vector<1x64x8xf32> -> vector<8x64x8xf32>
    %456 = vector.shape_cast %40 : vector<64x8xf32> to vector<1x64x8xf32>
    %457 = vector.shape_cast %90 : vector<64x8xf32> to vector<1x64x8xf32>
    %458 = vector.shape_cast %140 : vector<64x8xf32> to vector<1x64x8xf32>
    %459 = vector.shape_cast %190 : vector<64x8xf32> to vector<1x64x8xf32>
    %460 = vector.shape_cast %240 : vector<64x8xf32> to vector<1x64x8xf32>
    %461 = vector.shape_cast %290 : vector<64x8xf32> to vector<1x64x8xf32>
    %462 = vector.shape_cast %340 : vector<64x8xf32> to vector<1x64x8xf32>
    %463 = vector.shape_cast %390 : vector<64x8xf32> to vector<1x64x8xf32>
    %464 = tpu.concatenate %456, %457, %458, %459, %460, %461, %462, %463 in 0 : vector<1x64x8xf32>, vector<1x64x8xf32>, vector<1x64x8xf32>, vector<1x64x8xf32>, vector<1x64x8xf32>, vector<1x64x8xf32>, vector<1x64x8xf32>, vector<1x64x8xf32> -> vector<8x64x8xf32>
    %465 = vector.shape_cast %87 : vector<64x64xf32> to vector<1x64x64xf32>
    %466 = vector.shape_cast %137 : vector<64x64xf32> to vector<1x64x64xf32>
    %467 = vector.shape_cast %187 : vector<64x64xf32> to vector<1x64x64xf32>
    %468 = vector.shape_cast %237 : vector<64x64xf32> to vector<1x64x64xf32>
    %469 = vector.shape_cast %287 : vector<64x64xf32> to vector<1x64x64xf32>
    %470 = vector.shape_cast %337 : vector<64x64xf32> to vector<1x64x64xf32>
    %471 = vector.shape_cast %387 : vector<64x64xf32> to vector<1x64x64xf32>
    %472 = vector.shape_cast %437 : vector<64x64xf32> to vector<1x64x64xf32>
    %473 = tpu.concatenate %465, %466, %467, %468, %469, %470, %471, %472 in 0 : vector<1x64x64xf32>, vector<1x64x64xf32>, vector<1x64x64xf32>, vector<1x64x64xf32>, vector<1x64x64xf32>, vector<1x64x64xf32>, vector<1x64x64xf32>, vector<1x64x64xf32> -> vector<8x64x64xf32>
    %cst_17 = arith.constant 0.353553385 : f32
    %474 = vector.broadcast %cst_17 : f32 to vector<8x64x8xf32>
    %475 = arith.mulf %446, %474 : vector<8x64x8xf32>
    %476 = arith.truncf %475 : vector<8x64x8xf32> to vector<8x64x8xbf16>
    %477 = arith.truncf %455 : vector<8x64x8xf32> to vector<8x64x8xbf16>
    %cst_18 = arith.constant dense<0.000000e+00> : vector<8x64x64xf32>
    %478 = tpu.matmul %476, %477, %cst_18 {dimension_numbers = #tpu.dot_dimension_numbers<[2], [2], [1], [1], [0, 0, 0, 1, 1, 1], [0], [0]>} : vector<8x64x8xbf16>, vector<8x64x8xbf16>, vector<8x64x64xf32> -> vector<8x64x64xf32>
    %479 = arith.addf %478, %473 : vector<8x64x64xf32>
    %cst_19 = arith.constant dense<0xFF800000> : vector<8x64xf32>
    %480 = vector.multi_reduction <maximumf>, %479, %cst_19 [2] : vector<8x64x64xf32> to vector<8x64xf32>
    %481 = vector.shape_cast %480 : vector<8x64xf32> to vector<8x64x1xf32>
    %482 = vector.broadcast %481 : vector<8x64x1xf32> to vector<8x64x64xf32>
    %483 = arith.subf %479, %482 : vector<8x64x64xf32>
    %484 = math.exp %483 : vector<8x64x64xf32>
    %cst_20 = arith.constant dense<0.000000e+00> : vector<8x64xf32>
    %485 = vector.multi_reduction <add>, %484, %cst_20 [2] : vector<8x64x64xf32> to vector<8x64xf32>
    %486 = vector.shape_cast %485 : vector<8x64xf32> to vector<8x64x1xf32>
    %487 = tpu.reciprocal %486 {approx = true} : vector<8x64x1xf32> -> vector<8x64x1xf32>
    %488 = vector.broadcast %487 : vector<8x64x1xf32> to vector<8x64x64xf32>
    %489 = arith.mulf %484, %488 : vector<8x64x64xf32>
    %490 = arith.truncf %489 : vector<8x64x64xf32> to vector<8x64x64xbf16>
    %491 = arith.truncf %464 : vector<8x64x8xf32> to vector<8x64x8xbf16>
    %cst_21 = arith.constant dense<0.000000e+00> : vector<8x64x8xf32>
    %492 = tpu.matmul %490, %491, %cst_21 {dimension_numbers = #tpu.dot_dimension_numbers<[2], [1], [1], [2], [0, 0, 0, 1, 1, 2], [0], [0]>} : vector<8x64x64xbf16>, vector<8x64x8xbf16>, vector<8x64x8xf32> -> vector<8x64x8xf32>
    %493 = vector.extract_strided_slice %492 {offsets = [0, 0, 0], sizes = [1, 64, 8], strides = [1, 1, 1]} : vector<8x64x8xf32> to vector<1x64x8xf32>
    %494 = vector.shape_cast %493 : vector<1x64x8xf32> to vector<64x8xf32>
    %495 = vector.extract_strided_slice %492 {offsets = [1, 0, 0], sizes = [1, 64, 8], strides = [1, 1, 1]} : vector<8x64x8xf32> to vector<1x64x8xf32>
    %496 = vector.shape_cast %495 : vector<1x64x8xf32> to vector<64x8xf32>
    %497 = vector.extract_strided_slice %492 {offsets = [2, 0, 0], sizes = [1, 64, 8], strides = [1, 1, 1]} : vector<8x64x8xf32> to vector<1x64x8xf32>
    %498 = vector.shape_cast %497 : vector<1x64x8xf32> to vector<64x8xf32>
    %499 = vector.extract_strided_slice %492 {offsets = [3, 0, 0], sizes = [1, 64, 8], strides = [1, 1, 1]} : vector<8x64x8xf32> to vector<1x64x8xf32>
    %500 = vector.shape_cast %499 : vector<1x64x8xf32> to vector<64x8xf32>
    %501 = tpu.concatenate %494, %496, %498, %500 in 1 : vector<64x8xf32>, vector<64x8xf32>, vector<64x8xf32>, vector<64x8xf32> -> vector<64x32xf32>
    %502 = vector.extract_strided_slice %492 {offsets = [4, 0, 0], sizes = [1, 64, 8], strides = [1, 1, 1]} : vector<8x64x8xf32> to vector<1x64x8xf32>
    %503 = vector.shape_cast %502 : vector<1x64x8xf32> to vector<64x8xf32>
    %504 = vector.extract_strided_slice %492 {offsets = [5, 0, 0], sizes = [1, 64, 8], strides = [1, 1, 1]} : vector<8x64x8xf32> to vector<1x64x8xf32>
    %505 = vector.shape_cast %504 : vector<1x64x8xf32> to vector<64x8xf32>
    %506 = vector.extract_strided_slice %492 {offsets = [6, 0, 0], sizes = [1, 64, 8], strides = [1, 1, 1]} : vector<8x64x8xf32> to vector<1x64x8xf32>
    %507 = vector.shape_cast %506 : vector<1x64x8xf32> to vector<64x8xf32>
    %508 = vector.extract_strided_slice %492 {offsets = [7, 0, 0], sizes = [1, 64, 8], strides = [1, 1, 1]} : vector<8x64x8xf32> to vector<1x64x8xf32>
    %509 = vector.shape_cast %508 : vector<1x64x8xf32> to vector<64x8xf32>
    %510 = tpu.concatenate %503, %505, %507, %509 in 1 : vector<64x8xf32>, vector<64x8xf32>, vector<64x8xf32>, vector<64x8xf32> -> vector<64x32xf32>
    %511 = tpu.concatenate %501, %510 in 0 : vector<64x32xf32>, vector<64x32xf32> -> vector<128x32xf32>
    %512 = arith.truncf %511 : vector<128x32xf32> to vector<128x32xbf16>
    %c0_22 = arith.constant 0 : index
    %c0_23 = arith.constant 0 : index
    %513 = vector.load %arg6[%c0_22, %c0_23] : memref<32x32xbf16, #tpu.memory_space<vmem>>, vector<32x32xbf16>
    %cst_24 = arith.constant dense<0.000000e+00> : vector<128x32xf32>
    %514 = tpu.matmul %512, %513, %cst_24 {dimension_numbers = #tpu.dot_dimension_numbers<[1], [0], [0], [1], [0, 0, 1, 1], [], []>} : vector<128x32xbf16>, vector<32x32xbf16>, vector<128x32xf32> -> vector<128x32xf32>
    %c0_25 = arith.constant 0 : index
    %c0_26 = arith.constant 0 : index
    %515 = vector.load %arg7[%c0_25, %c0_26] : memref<1x32xf32, #tpu.memory_space<vmem>>, vector<1x32xf32>
    %516 = vector.shape_cast %515 : vector<1x32xf32> to vector<32xf32>
    %517 = vector.shape_cast %516 : vector<32xf32> to vector<1x32xf32>
    %518 = vector.broadcast %517 : vector<1x32xf32> to vector<128x32xf32>
    %519 = arith.addf %514, %518 : vector<128x32xf32>
    %520 = arith.addf %0, %519 : vector<128x32xf32>
    %c0_27 = arith.constant 0 : index
    %c0_28 = arith.constant 0 : index
    %521 = vector.load %arg8[%c0_27, %c0_28] : memref<1x32xf32, #tpu.memory_space<vmem>>, vector<1x32xf32>
    %522 = vector.shape_cast %521 : vector<1x32xf32> to vector<32xf32>
    %c0_29 = arith.constant 0 : index
    %c0_30 = arith.constant 0 : index
    %523 = vector.load %arg9[%c0_29, %c0_30] : memref<1x32xf32, #tpu.memory_space<vmem>>, vector<1x32xf32>
    %524 = vector.shape_cast %523 : vector<1x32xf32> to vector<32xf32>
    %cst_31 = arith.constant dense<0.000000e+00> : vector<128xf32>
    %525 = vector.multi_reduction <add>, %520, %cst_31 [1] : vector<128x32xf32> to vector<128xf32>
    %526 = vector.shape_cast %525 : vector<128xf32> to vector<128x1xf32>
    %cst_32 = arith.constant 3.200000e+01 : f32
    %527 = vector.broadcast %cst_32 : f32 to vector<128x1xf32>
    %528 = arith.divf %526, %527 : vector<128x1xf32>
    %529 = vector.broadcast %528 : vector<128x1xf32> to vector<128x32xf32>
    %530 = arith.subf %520, %529 : vector<128x32xf32>
    %531 = arith.mulf %530, %530 : vector<128x32xf32>
    %cst_33 = arith.constant dense<0.000000e+00> : vector<128xf32>
    %532 = vector.multi_reduction <add>, %531, %cst_33 [1] : vector<128x32xf32> to vector<128xf32>
    %533 = vector.shape_cast %532 : vector<128xf32> to vector<128x1xf32>
    %cst_34 = arith.constant 3.200000e+01 : f32
    %534 = vector.broadcast %cst_34 : f32 to vector<128x1xf32>
    %535 = arith.divf %533, %534 : vector<128x1xf32>
    %536 = vector.broadcast %528 : vector<128x1xf32> to vector<128x32xf32>
    %537 = arith.subf %520, %536 : vector<128x32xf32>
    %cst_35 = arith.constant 9.99999974E-6 : f32
    %538 = vector.broadcast %cst_35 : f32 to vector<128x1xf32>
    %539 = arith.addf %535, %538 : vector<128x1xf32>
    %540 = math.rsqrt %539 : vector<128x1xf32>
    %541 = vector.broadcast %540 : vector<128x1xf32> to vector<128x32xf32>
    %542 = arith.mulf %537, %541 : vector<128x32xf32>
    %543 = vector.shape_cast %522 : vector<32xf32> to vector<1x32xf32>
    %544 = vector.broadcast %543 : vector<1x32xf32> to vector<128x32xf32>
    %545 = arith.mulf %542, %544 : vector<128x32xf32>
    %546 = vector.shape_cast %524 : vector<32xf32> to vector<1x32xf32>
    %547 = vector.broadcast %546 : vector<1x32xf32> to vector<128x32xf32>
    %548 = arith.addf %545, %547 : vector<128x32xf32>
    %549 = arith.truncf %548 : vector<128x32xf32> to vector<128x32xbf16>
    %c0_36 = arith.constant 0 : index
    %c0_37 = arith.constant 0 : index
    %550 = vector.load %arg10[%c0_36, %c0_37] : memref<32x128xbf16, #tpu.memory_space<vmem>>, vector<32x128xbf16>
    %cst_38 = arith.constant dense<0.000000e+00> : vector<128x128xf32>
    %551 = tpu.matmul %549, %550, %cst_38 {dimension_numbers = #tpu.dot_dimension_numbers<[1], [0], [0], [1], [0, 0, 1, 1], [], []>} : vector<128x32xbf16>, vector<32x128xbf16>, vector<128x128xf32> -> vector<128x128xf32>
    %c0_39 = arith.constant 0 : index
    %c0_40 = arith.constant 0 : index
    %552 = vector.load %arg11[%c0_39, %c0_40] : memref<1x128xf32, #tpu.memory_space<vmem>>, vector<1x128xf32>
    %553 = vector.shape_cast %552 : vector<1x128xf32> to vector<128xf32>
    %554 = vector.shape_cast %553 : vector<128xf32> to vector<1x128xf32>
    %555 = vector.broadcast %554 : vector<1x128xf32> to vector<128x128xf32>
    %556 = arith.addf %551, %555 : vector<128x128xf32>
    %cst_41 = arith.constant 5.000000e-01 : f32
    %557 = vector.broadcast %cst_41 : f32 to vector<128x128xf32>
    %558 = arith.mulf %557, %556 : vector<128x128xf32>
    %cst_42 = arith.constant 0.707106769 : f32
    %559 = vector.broadcast %cst_42 : f32 to vector<128x128xf32>
    %560 = arith.mulf %556, %559 : vector<128x128xf32>
    %561 = math.erf %560 : vector<128x128xf32>
    %cst_43 = arith.constant 1.000000e+00 : f32
    %562 = vector.broadcast %cst_43 : f32 to vector<128x128xf32>
    %563 = arith.addf %562, %561 : vector<128x128xf32>
    %564 = arith.mulf %558, %563 : vector<128x128xf32>
    %565 = arith.truncf %564 : vector<128x128xf32> to vector<128x128xbf16>
    %c0_44 = arith.constant 0 : index
    %c0_45 = arith.constant 0 : index
    %566 = vector.load %arg12[%c0_44, %c0_45] : memref<128x32xbf16, #tpu.memory_space<vmem>>, vector<128x32xbf16>
    %cst_46 = arith.constant dense<0.000000e+00> : vector<128x32xf32>
    %567 = tpu.matmul %565, %566, %cst_46 {dimension_numbers = #tpu.dot_dimension_numbers<[1], [0], [0], [1], [0, 0, 1, 1], [], []>} : vector<128x128xbf16>, vector<128x32xbf16>, vector<128x32xf32> -> vector<128x32xf32>
    %c0_47 = arith.constant 0 : index
    %c0_48 = arith.constant 0 : index
    %568 = vector.load %arg13[%c0_47, %c0_48] : memref<1x32xf32, #tpu.memory_space<vmem>>, vector<1x32xf32>
    %569 = vector.shape_cast %568 : vector<1x32xf32> to vector<32xf32>
    %570 = vector.shape_cast %569 : vector<32xf32> to vector<1x32xf32>
    %571 = vector.broadcast %570 : vector<1x32xf32> to vector<128x32xf32>
    %572 = arith.addf %567, %571 : vector<128x32xf32>
    %573 = arith.addf %520, %572 : vector<128x32xf32>
    %c0_49 = arith.constant 0 : index
    %c0_50 = arith.constant 0 : index
    %574 = vector.load %arg14[%c0_49, %c0_50] : memref<128x32xf32, #tpu.memory_space<vmem>>, vector<128x32xf32>
    tpu.vector_store %arg14[%c0_49, %c0_50], %573 {strides = array<i32>} : memref<128x32xf32, #tpu.memory_space<vmem>>, vector<128x32xf32>,
    return
  }
}

</mosaic_0001>

<llo_original>
// kernel: swin_block_forward.1
$region0: #{swin_block_forward.1}
  #allocation0 [shape = 'u32[]', space=smem, size = 0x4, offset = 0x4, fixed_abs, tag = 'smem constant byte address 0x4 - core index']
  #allocation1 [shape = 'u32[144,128]{1,0:T(1,128)}', space=vmem, size = 0x12000, scoped, tag = 'internal scratch']
  %s0 = inlined_call_operand.vmem [shape: f32[128,32], index: 0, kind: input, shape index: {}]
  %s1 = inlined_call_operand.vmem [shape: f32[8,64,64], index: 1, kind: input, shape index: {}]
  %s2 = inlined_call_operand.vmem [shape: f32[1,32], index: 2, kind: input, shape index: {}]
  %s3 = inlined_call_operand.vmem [shape: f32[1,32], index: 3, kind: input, shape index: {}]
  %s4 = inlined_call_operand.vmem [shape: bf16[32,96], index: 4, kind: input, shape index: {}]
  %s5 = inlined_call_operand.vmem [shape: f32[1,96], index: 5, kind: input, shape index: {}]
  %s6 = inlined_call_operand.vmem [shape: bf16[32,32], index: 6, kind: input, shape index: {}]
  %s7 = inlined_call_operand.vmem [shape: f32[1,32], index: 7, kind: input, shape index: {}]
  %s8 = inlined_call_operand.vmem [shape: f32[1,32], index: 8, kind: input, shape index: {}]
  %s9 = inlined_call_operand.vmem [shape: f32[1,32], index: 9, kind: input, shape index: {}]
  %s10 = inlined_call_operand.vmem [shape: bf16[32,128], index: 10, kind: input, shape index: {}]
  %s11 = inlined_call_operand.vmem [shape: f32[1,128], index: 11, kind: input, shape index: {}]
  %s12 = inlined_call_operand.vmem [shape: bf16[128,32], index: 12, kind: input, shape index: {}]
  %s13 = inlined_call_operand.vmem [shape: f32[1,32], index: 13, kind: input, shape index: {}]
  %s14 = inlined_call_operand.vmem [shape: f32[128,32], index: 14, kind: output, shape index: {}]
  %s15 = sld [smem:[#allocation0]]
  $region66: #{swin_block_forward.1} parent=0
    _
  %s17 = ssub.s32 1, %s15
  %s18 = scalar_select 0, %s17, %s15
  // Predicated region
  $region2: #{swin_block_forward.1} parent=0 // pred_check
    _
  $region3: #{swin_block_forward.1} parent=0 // pred_check_branch
    %20 = sbr.rel (0) target = $region5
  $region4: #{swin_block_forward.1} parent=0 // pred_region
    _
  $region5: #{swin_block_forward.1} parent=0 // pred_fallthru
    _
  // Predicated region
  $region6: #{swin_block_forward.1} parent=0 // pred_check
    _
  $region7: #{swin_block_forward.1} parent=0 // pred_check_branch
    %22 = sbr.rel (0) target = $region9
  $region8: #{swin_block_forward.1} parent=0 // pred_region
    _
  $region9: #{swin_block_forward.1} parent=0 // pred_fallthru
    _
  // Predicated region
  $region10: #{swin_block_forward.1} parent=0 // pred_check
    _
  $region11: #{swin_block_forward.1} parent=0 // pred_check_branch
    %24 = sbr.rel (0) target = $region13
  $region12: #{swin_block_forward.1} parent=0 // pred_region
    _
  $region13: #{swin_block_forward.1} parent=0 // pred_fallthru
    _
  // Predicated region
  $region14: #{swin_block_forward.1} parent=0 // pred_check
    _
  $region15: #{swin_block_forward.1} parent=0 // pred_check_branch
    %26 = sbr.rel (0) target = $region17
  $region16: #{swin_block_forward.1} parent=0 // pred_region
    _
  $region17: #{swin_block_forward.1} parent=0 // pred_fallthru
    _
  // Predicated region
  $region18: #{swin_block_forward.1} parent=0 // pred_check
    _
  $region19: #{swin_block_forward.1} parent=0 // pred_check_branch
    %28 = sbr.rel (0) target = $region21
  $region20: #{swin_block_forward.1} parent=0 // pred_region
    _
  $region21: #{swin_block_forward.1} parent=0 // pred_fallthru
    _
  // Predicated region
  $region22: #{swin_block_forward.1} parent=0 // pred_check
    _
  $region23: #{swin_block_forward.1} parent=0 // pred_check_branch
    %30 = sbr.rel (0) target = $region25
  $region24: #{swin_block_forward.1} parent=0 // pred_region
    _
  $region25: #{swin_block_forward.1} parent=0 // pred_fallthru
    _
  // Predicated region
  $region26: #{swin_block_forward.1} parent=0 // pred_check
    _
  $region27: #{swin_block_forward.1} parent=0 // pred_check_branch
    %32 = sbr.rel (0) target = $region29
  $region28: #{swin_block_forward.1} parent=0 // pred_region
    _
  $region29: #{swin_block_forward.1} parent=0 // pred_fallthru
    _
  // Predicated region
  $region30: #{swin_block_forward.1} parent=0 // pred_check
    _
  $region31: #{swin_block_forward.1} parent=0 // pred_check_branch
    %34 = sbr.rel (0) target = $region33
  $region32: #{swin_block_forward.1} parent=0 // pred_region
    _
  $region33: #{swin_block_forward.1} parent=0 // pred_fallthru
    _
  // Predicated region
  $region34: #{swin_block_forward.1} parent=0 // pred_check
    _
  $region35: #{swin_block_forward.1} parent=0 // pred_check_branch
    %36 = sbr.rel (0) target = $region37
  $region36: #{swin_block_forward.1} parent=0 // pred_region
    _
  $region37: #{swin_block_forward.1} parent=0 // pred_fallthru
    _
  // Predicated region
  $region38: #{swin_block_forward.1} parent=0 // pred_check
    _
  $region39: #{swin_block_forward.1} parent=0 // pred_check_branch
    %38 = sbr.rel (0) target = $region41
  $region40: #{swin_block_forward.1} parent=0 // pred_region
    _
  $region41: #{swin_block_forward.1} parent=0 // pred_fallthru
    _
  // Predicated region
  $region42: #{swin_block_forward.1} parent=0 // pred_check
    _
  $region43: #{swin_block_forward.1} parent=0 // pred_check_branch
    %40 = sbr.rel (0) target = $region45
  $region44: #{swin_block_forward.1} parent=0 // pred_region
    _
  $region45: #{swin_block_forward.1} parent=0 // pred_fallthru
    _
  // Predicated region
  $region46: #{swin_block_forward.1} parent=0 // pred_check
    _
  $region47: #{swin_block_forward.1} parent=0 // pred_check_branch
    %42 = sbr.rel (0) target = $region49
  $region48: #{swin_block_forward.1} parent=0 // pred_region
    _
  $region49: #{swin_block_forward.1} parent=0 // pred_fallthru
    _
  // Predicated region
  $region50: #{swin_block_forward.1} parent=0 // pred_check
    _
  $region51: #{swin_block_forward.1} parent=0 // pred_check_branch
    %44 = sbr.rel (0) target = $region53
  $region52: #{swin_block_forward.1} parent=0 // pred_region
    _
  $region53: #{swin_block_forward.1} parent=0 // pred_fallthru
    _
  // Predicated region
  $region54: #{swin_block_forward.1} parent=0 // pred_check
    _
  $region55: #{swin_block_forward.1} parent=0 // pred_check_branch
    %46 = sbr.rel (0) target = $region57
  $region56: #{swin_block_forward.1} parent=0 // pred_region
    _
  $region57: #{swin_block_forward.1} parent=0 // pred_fallthru
    _
  %v48 = vld [vmem:[%s0] sm:$0xff]
  %v49 = vld [vmem:[%s0 + $0x8] sm:$0xff]
  %v50 = vld [vmem:[%s0 + $0x10] sm:$0xff]
  %v51 = vld [vmem:[%s0 + $0x18] sm:$0xff]
  %v52 = vld [vmem:[%s0 + $0x20] sm:$0xff]
  %v53 = vld [vmem:[%s0 + $0x28] sm:$0xff]
  %v54 = vld [vmem:[%s0 + $0x30] sm:$0xff]
  %v55 = vld [vmem:[%s0 + $0x38] sm:$0xff]
  %v56 = vld [vmem:[%s0 + $0x40] sm:$0xff]
  %v57 = vld [vmem:[%s0 + $0x48] sm:$0xff]
  %v58 = vld [vmem:[%s0 + $0x50] sm:$0xff]
  %v59 = vld [vmem:[%s0 + $0x58] sm:$0xff]
  %v60 = vld [vmem:[%s0 + $0x60] sm:$0xff]
  %v61 = vld [vmem:[%s0 + $0x68] sm:$0xff]
  %v62 = vld [vmem:[%s0 + $0x70] sm:$0xff]
  %v63 = vld [vmem:[%s0 + $0x78] sm:$0xff]
  %v64 = vld [vmem:[%s1] sm:$0xff]
  %v65 = vld [vmem:[%s1 + $0x8] sm:$0xff]
  %v66 = vld [vmem:[%s1 + $0x10] sm:$0xff]
  %v67 = vld [vmem:[%s1 + $0x18] sm:$0xff]
  %v68 = vld [vmem:[%s1 + $0x20] sm:$0xff]
  %v69 = vld [vmem:[%s1 + $0x28] sm:$0xff]
  %v70 = vld [vmem:[%s1 + $0x30] sm:$0xff]
  %v71 = vld [vmem:[%s1 + $0x38] sm:$0xff]
  %v72 = vld [vmem:[%s1 + $0x40] sm:$0xff]
  %v73 = vld [vmem:[%s1 + $0x48] sm:$0xff]
  %v74 = vld [vmem:[%s1 + $0x50] sm:$0xff]
  %v75 = vld [vmem:[%s1 + $0x58] sm:$0xff]
  %v76 = vld [vmem:[%s1 + $0x60] sm:$0xff]
  %v77 = vld [vmem:[%s1 + $0x68] sm:$0xff]
  %v78 = vld [vmem:[%s1 + $0x70] sm:$0xff]
  %v79 = vld [vmem:[%s1 + $0x78] sm:$0xff]
  %v80 = vld [vmem:[%s1 + $0x80] sm:$0xff]
  %v81 = vld [vmem:[%s1 + $0x88] sm:$0xff]
  %v82 = vld [vmem:[%s1 + $0x90] sm:$0xff]
  %v83 = vld [vmem:[%s1 + $0x98] sm:$0xff]
  %v84 = vld [vmem:[%s1 + $0xa0] sm:$0xff]
  %v85 = vld [vmem:[%s1 + $0xa8] sm:$0xff]
  %v86 = vld [vmem:[%s1 + $0xb0] sm:$0xff]
  %v87 = vld [vmem:[%s1 + $0xb8] sm:$0xff]
  %v88 = vld [vmem:[%s1 + $0xc0] sm:$0xff]
  %v89 = vld [vmem:[%s1 + $0xc8] sm:$0xff]
  %v90 = vld [vmem:[%s1 + $0xd0] sm:$0xff]
  %v91 = vld [vmem:[%s1 + $0xd8] sm:$0xff]
  %v92 = vld [vmem:[%s1 + $0xe0] sm:$0xff]
  %v93 = vld [vmem:[%s1 + $0xe8] sm:$0xff]
  %v94 = vld [vmem:[%s1 + $0xf0] sm:$0xff]
  %v95 = vld [vmem:[%s1 + $0xf8] sm:$0xff]
  %v96 = vld [vmem:[%s1 + $0x100] sm:$0xff]
  %v97 = vld [vmem:[%s1 + $0x108] sm:$0xff]
  %v98 = vld [vmem:[%s1 + $0x110] sm:$0xff]
  %v99 = vld [vmem:[%s1 + $0x118] sm:$0xff]
  %v100 = vld [vmem:[%s1 + $0x120] sm:$0xff]
  %v101 = vld [vmem:[%s1 + $0x128] sm:$0xff]
  %v102 = vld [vmem:[%s1 + $0x130] sm:$0xff]
  %v103 = vld [vmem:[%s1 + $0x138] sm:$0xff]
  %v104 = vld [vmem:[%s1 + $0x140] sm:$0xff]
  %v105 = vld [vmem:[%s1 + $0x148] sm:$0xff]
  %v106 = vld [vmem:[%s1 + $0x150] sm:$0xff]
  %v107 = vld [vmem:[%s1 + $0x158] sm:$0xff]
  %v108 = vld [vmem:[%s1 + $0x160] sm:$0xff]
  %v109 = vld [vmem:[%s1 + $0x168] sm:$0xff]
  %v110 = vld [vmem:[%s1 + $0x170] sm:$0xff]
  %v111 = vld [vmem:[%s1 + $0x178] sm:$0xff]
  %v112 = vld [vmem:[%s1 + $0x180] sm:$0xff]
  %v113 = vld [vmem:[%s1 + $0x188] sm:$0xff]
  %v114 = vld [vmem:[%s1 + $0x190] sm:$0xff]
  %v115 = vld [vmem:[%s1 + $0x198] sm:$0xff]
  %v116 = vld [vmem:[%s1 + $0x1a0] sm:$0xff]
  %v117 = vld [vmem:[%s1 + $0x1a8] sm:$0xff]
  %v118 = vld [vmem:[%s1 + $0x1b0] sm:$0xff]
  %v119 = vld [vmem:[%s1 + $0x1b8] sm:$0xff]
  %v120 = vld [vmem:[%s1 + $0x1c0] sm:$0xff]
  %v121 = vld [vmem:[%s1 + $0x1c8] sm:$0xff]
  %v122 = vld [vmem:[%s1 + $0x1d0] sm:$0xff]
  %v123 = vld [vmem:[%s1 + $0x1d8] sm:$0xff]
  %v124 = vld [vmem:[%s1 + $0x1e0] sm:$0xff]
  %v125 = vld [vmem:[%s1 + $0x1e8] sm:$0xff]
  %v126 = vld [vmem:[%s1 + $0x1f0] sm:$0xff]
  %v127 = vld [vmem:[%s1 + $0x1f8] sm:$0xff]
  %v128 = vld [vmem:[%s2] sm:$0x1]
  %v129 = vld [vmem:[%s3] sm:$0x1]
  %vm130 = vcmask 261120
  %v131 = vsel %vm130, %v48, 0.0
  %132 = vadd.xlane.f32.xlu0 %v131
  %v133 = vpop.xlane.xlu0 %132
  %v134 = vsel %vm130, %v49, 0.0
  %135 = vadd.xlane.f32.xlu0 %v134
  %v136 = vpop.xlane.xlu0 %135
  %v137 = vsel %vm130, %v50, 0.0
  %138 = vadd.xlane.f32.xlu0 %v137
  %v139 = vpop.xlane.xlu0 %138
  %v140 = vsel %vm130, %v51, 0.0
  %141 = vadd.xlane.f32.xlu0 %v140
  %v142 = vpop.xlane.xlu0 %141
  %v143 = vsel %vm130, %v52, 0.0
  %144 = vadd.xlane.f32.xlu0 %v143
  %v145 = vpop.xlane.xlu0 %144
  %v146 = vsel %vm130, %v53, 0.0
  %147 = vadd.xlane.f32.xlu0 %v146
  %v148 = vpop.xlane.xlu0 %147
  %v149 = vsel %vm130, %v54, 0.0
  %150 = vadd.xlane.f32.xlu0 %v149
  %v151 = vpop.xlane.xlu0 %150
  %v152 = vsel %vm130, %v55, 0.0
  %153 = vadd.xlane.f32.xlu0 %v152
  %v154 = vpop.xlane.xlu0 %153
  %v155 = vsel %vm130, %v56, 0.0
  %156 = vadd.xlane.f32.xlu0 %v155
  %v157 = vpop.xlane.xlu0 %156
  %v158 = vsel %vm130, %v57, 0.0
  %159 = vadd.xlane.f32.xlu0 %v158
  %v160 = vpop.xlane.xlu0 %159
  %v161 = vsel %vm130, %v58, 0.0
  %162 = vadd.xlane.f32.xlu0 %v161
  %v163 = vpop.xlane.xlu0 %162
  %v164 = vsel %vm130, %v59, 0.0
  %165 = vadd.xlane.f32.xlu0 %v164
  %v166 = vpop.xlane.xlu0 %165
  %v167 = vsel %vm130, %v60, 0.0
  %168 = vadd.xlane.f32.xlu0 %v167
  %v169 = vpop.xlane.xlu0 %168
  %v170 = vsel %vm130, %v61, 0.0
  %171 = vadd.xlane.f32.xlu0 %v170
  %v172 = vpop.xlane.xlu0 %171
  %v173 = vsel %vm130, %v62, 0.0
  %174 = vadd.xlane.f32.xlu0 %v173
  %v175 = vpop.xlane.xlu0 %174
  %v176 = vsel %vm130, %v63, 0.0
  %177 = vadd.xlane.f32.xlu0 %v176
  %v178 = vpop.xlane.xlu0 %177
  %v179 = vrcp.pop 32.0
  %v180 = vmul.f32 %v133, %v179
  %v181 = vmul.f32 %v136, %v179
  %v182 = vmul.f32 %v139, %v179
  %v183 = vmul.f32 %v142, %v179
  %v184 = vmul.f32 %v145, %v179
  %v185 = vmul.f32 %v148, %v179
  %v186 = vmul.f32 %v151, %v179
  %v187 = vmul.f32 %v154, %v179
  %v188 = vmul.f32 %v157, %v179
  %v189 = vmul.f32 %v160, %v179
  %v190 = vmul.f32 %v163, %v179
  %v191 = vmul.f32 %v166, %v179
  %v192 = vmul.f32 %v169, %v179
  %v193 = vmul.f32 %v172, %v179
  %v194 = vmul.f32 %v175, %v179
  %v195 = vmul.f32 %v178, %v179
  %v196 = vsub.f32 %v48, %v180
  %v197 = vsub.f32 %v49, %v181
  %v198 = vsub.f32 %v50, %v182
  %v199 = vsub.f32 %v51, %v183
  %v200 = vsub.f32 %v52, %v184
  %v201 = vsub.f32 %v53, %v185
  %v202 = vsub.f32 %v54, %v186
  %v203 = vsub.f32 %v55, %v187
  %v204 = vsub.f32 %v56, %v188
  %v205 = vsub.f32 %v57, %v189
  %v206 = vsub.f32 %v58, %v190
  %v207 = vsub.f32 %v59, %v191
  %v208 = vsub.f32 %v60, %v192
  %v209 = vsub.f32 %v61, %v193
  %v210 = vsub.f32 %v62, %v194
  %v211 = vsub.f32 %v63, %v195
  %v212 = vmul.f32 %v196, %v196
  %v213 = vmul.f32 %v197, %v197
  %v214 = vmul.f32 %v198, %v198
  %v215 = vmul.f32 %v199, %v199
  %v216 = vmul.f32 %v200, %v200
  %v217 = vmul.f32 %v201, %v201
  %v218 = vmul.f32 %v202, %v202
  %v219 = vmul.f32 %v203, %v203
  %v220 = vmul.f32 %v204, %v204
  %v221 = vmul.f32 %v205, %v205
  %v222 = vmul.f32 %v206, %v206
  %v223 = vmul.f32 %v207, %v207
  %v224 = vmul.f32 %v208, %v208
  %v225 = vmul.f32 %v209, %v209
  %v226 = vmul.f32 %v210, %v210
  %v227 = vmul.f32 %v211, %v211
  %v228 = vsel %vm130, %v212, 0.0
  %229 = vadd.xlane.f32.xlu0 %v228
  %v230 = vpop.xlane.xlu0 %229
  %v231 = vsel %vm130, %v213, 0.0
  %232 = vadd.xlane.f32.xlu0 %v231
  %v233 = vpop.xlane.xlu0 %232
  %v234 = vsel %vm130, %v214, 0.0
  %235 = vadd.xlane.f32.xlu0 %v234
  %v236 = vpop.xlane.xlu0 %235
  %v237 = vsel %vm130, %v215, 0.0
  %238 = vadd.xlane.f32.xlu0 %v237
  %v239 = vpop.xlane.xlu0 %238
  %v240 = vsel %vm130, %v216, 0.0
  %241 = vadd.xlane.f32.xlu0 %v240
  %v242 = vpop.xlane.xlu0 %241
  %v243 = vsel %vm130, %v217, 0.0
  %244 = vadd.xlane.f32.xlu0 %v243
  %v245 = vpop.xlane.xlu0 %244
  %v246 = vsel %vm130, %v218, 0.0
  %247 = vadd.xlane.f32.xlu0 %v246
  %v248 = vpop.xlane.xlu0 %247
  %v249 = vsel %vm130, %v219, 0.0
  %250 = vadd.xlane.f32.xlu0 %v249
  %v251 = vpop.xlane.xlu0 %250
  %v252 = vsel %vm130, %v220, 0.0
  %253 = vadd.xlane.f32.xlu0 %v252
  %v254 = vpop.xlane.xlu0 %253
  %v255 = vsel %vm130, %v221, 0.0
  %256 = vadd.xlane.f32.xlu0 %v255
  %v257 = vpop.xlane.xlu0 %256
  %v258 = vsel %vm130, %v222, 0.0
  %259 = vadd.xlane.f32.xlu0 %v258
  %v260 = vpop.xlane.xlu0 %259
  %v261 = vsel %vm130, %v223, 0.0
  %262 = vadd.xlane.f32.xlu0 %v261
  %v263 = vpop.xlane.xlu0 %262
  %v264 = vsel %vm130, %v224, 0.0
  %265 = vadd.xlane.f32.xlu0 %v264
  %v266 = vpop.xlane.xlu0 %265
  %v267 = vsel %vm130, %v225, 0.0
  %268 = vadd.xlane.f32.xlu0 %v267
  %v269 = vpop.xlane.xlu0 %268
  %v270 = vsel %vm130, %v226, 0.0
  %271 = vadd.xlane.f32.xlu0 %v270
  %v272 = vpop.xlane.xlu0 %271
  %v273 = vsel %vm130, %v227, 0.0
  %274 = vadd.xlane.f32.xlu0 %v273
  %v275 = vpop.xlane.xlu0 %274
  %v276 = vmul.f32 %v230, %v179
  %v277 = vmul.f32 %v233, %v179
  %v278 = vmul.f32 %v236, %v179
  %v279 = vmul.f32 %v239, %v179
  %v280 = vmul.f32 %v242, %v179
  %v281 = vmul.f32 %v245, %v179
  %v282 = vmul.f32 %v248, %v179
  %v283 = vmul.f32 %v251, %v179
  %v284 = vmul.f32 %v254, %v179
  %v285 = vmul.f32 %v257, %v179
  %v286 = vmul.f32 %v260, %v179
  %v287 = vmul.f32 %v263, %v179
  %v288 = vmul.f32 %v266, %v179
  %v289 = vmul.f32 %v269, %v179
  %v290 = vmul.f32 %v272, %v179
  %v291 = vmul.f32 %v275, %v179
  %v292 = vadd.f32 %v276, 1e-05
  %v293 = vadd.f32 %v277, 1e-05
  %v294 = vadd.f32 %v278, 1e-05
  %v295 = vadd.f32 %v279, 1e-05
  %v296 = vadd.f32 %v280, 1e-05
  %v297 = vadd.f32 %v281, 1e-05
  %v298 = vadd.f32 %v282, 1e-05
  %v299 = vadd.f32 %v283, 1e-05
  %v300 = vadd.f32 %v284, 1e-05
  %v301 = vadd.f32 %v285, 1e-05
  %v302 = vadd.f32 %v286, 1e-05
  %v303 = vadd.f32 %v287, 1e-05
  %v304 = vadd.f32 %v288, 1e-05
  %v305 = vadd.f32 %v289, 1e-05
  %v306 = vadd.f32 %v290, 1e-05
  %v307 = vadd.f32 %v291, 1e-05
  %v308 = vrsqrt.pop %v292
  %v309 = vrsqrt.pop %v293
  %v310 = vrsqrt.pop %v294
  %v311 = vrsqrt.pop %v295
  %v312 = vrsqrt.pop %v296
  %v313 = vrsqrt.pop %v297
  %v314 = vrsqrt.pop %v298
  %v315 = vrsqrt.pop %v299
  %v316 = vrsqrt.pop %v300
  %v317 = vrsqrt.pop %v301
  %v318 = vrsqrt.pop %v302
  %v319 = vrsqrt.pop %v303
  %v320 = vrsqrt.pop %v304
  %v321 = vrsqrt.pop %v305
  %v322 = vrsqrt.pop %v306
  %v323 = vrsqrt.pop %v307
  %v324 = vmul.f32 %v196, %v308
  %v325 = vmul.f32 %v197, %v309
  %v326 = vmul.f32 %v198, %v310
  %v327 = vmul.f32 %v199, %v311
  %v328 = vmul.f32 %v200, %v312
  %v329 = vmul.f32 %v201, %v313
  %v330 = vmul.f32 %v202, %v314
  %v331 = vmul.f32 %v203, %v315
  %v332 = vmul.f32 %v204, %v316
  %v333 = vmul.f32 %v205, %v317
  %v334 = vmul.f32 %v206, %v318
  %v335 = vmul.f32 %v207, %v319
  %v336 = vmul.f32 %v208, %v320
  %v337 = vmul.f32 %v209, %v321
  %v338 = vmul.f32 %v210, %v322
  %v339 = vmul.f32 %v211, %v323
  %v341 = vlaneseq
  %v342 = vshrl.u32 %v341, 7
  %v343 = vsub.s32 0, %v342
  %v344 = vrot.slane %v128, %v343
  %v346 = vmul.f32 %v324, %v344
  %v347 = vmul.f32 %v325, %v344
  %v348 = vmul.f32 %v326, %v344
  %v349 = vmul.f32 %v327, %v344
  %v350 = vmul.f32 %v328, %v344
  %v351 = vmul.f32 %v329, %v344
  %v352 = vmul.f32 %v330, %v344
  %v353 = vmul.f32 %v331, %v344
  %v354 = vmul.f32 %v332, %v344
  %v355 = vmul.f32 %v333, %v344
  %v356 = vmul.f32 %v334, %v344
  %v357 = vmul.f32 %v335, %v344
  %v358 = vmul.f32 %v336, %v344
  %v359 = vmul.f32 %v337, %v344
  %v360 = vmul.f32 %v338, %v344
  %v361 = vmul.f32 %v339, %v344
  %v363 = vlaneseq
  %v364 = vshrl.u32 %v363, 7
  %v365 = vsub.s32 0, %v364
  %v366 = vrot.slane %v129, %v365
  %v368 = vadd.f32 %v346, %v366
  %v369 = vadd.f32 %v347, %v366
  %v370 = vadd.f32 %v348, %v366
  %v371 = vadd.f32 %v349, %v366
  %v372 = vadd.f32 %v350, %v366
  %v373 = vadd.f32 %v351, %v366
  %v374 = vadd.f32 %v352, %v366
  %v375 = vadd.f32 %v353, %v366
  %v376 = vadd.f32 %v354, %v366
  %v377 = vadd.f32 %v355, %v366
  %v378 = vadd.f32 %v356, %v366
  %v379 = vadd.f32 %v357, %v366
  %v380 = vadd.f32 %v358, %v366
  %v381 = vadd.f32 %v359, %v366
  %v382 = vadd.f32 %v360, %v366
  %v383 = vadd.f32 %v361, %v366
  %v384 = vpack.c.bf16 %v369, %v368
  %v385 = vpack.c.bf16 %v371, %v370
  %v386 = vpack.c.bf16 %v373, %v372
  %v387 = vpack.c.bf16 %v375, %v374
  %v388 = vpack.c.bf16 %v377, %v376
  %v389 = vpack.c.bf16 %v379, %v378
  %v390 = vpack.c.bf16 %v381, %v380
  %v391 = vpack.c.bf16 %v383, %v382
  %v392 = vld [vmem:[%s4] sm:$0xf]
  %v393 = vld [vmem:[%s4 + $0x4] sm:$0xf]
  %v394 = vld [vmem:[%s4 + $0x8] sm:$0xf]
  %v395 = vld [vmem:[%s4 + $0xc] sm:$0xf]
  %v396 = vld [vmem:[%s5] sm:$0x1]
  %v398 = vlaneseq
  %v399 = vshrl.u32 %v398, 7
  %v400 = vsub.s32 0, %v399
  %v401 = vrot.slane %v396, %v400
  %v407 = vunpack.c.l.b16 %v392
  %v408 = vunpack.c.l.b16 %v393
  %v409 = vunpack.c.l.b16 %v394
  %v410 = vunpack.c.l.b16 %v395
  %v411 = vpack.c.b16 %v408, %v407
  %v412 = vpack.c.b16 %v410, %v409
  %v416 = vsel %vm130, %v384, 0
  %v419 = vsel %vm130, %v385, 0
  %v422 = vsel %vm130, %v386, 0
  %v425 = vsel %vm130, %v387, 0
  %v428 = vsel %vm130, %v388, 0
  %v431 = vsel %vm130, %v389, 0
  %v434 = vsel %vm130, %v390, 0
  %v437 = vsel %vm130, %v391, 0
  %439 = vmatprep.subr.bf16.mxu0 0
  %440 = vmatpush1.bf16.msra.mxu0 %v411
  %441 = vmatprep.subr.bf16.mxu0 0
  %442 = vmatpush1.bf16.msra.mxu0 %v412
  %443 = vmatprep.subr.bf16.mxu0 0
  %444 = vmatpush1.bf16.msra.mxu0 0
  %445 = vmatprep.subr.bf16.mxu0 0
  %446 = vmatpush1.bf16.msra.mxu0 0
  %447 = vmatprep.subr.bf16.mxu0 0
  %448 = vmatpush1.bf16.msra.mxu0 0
  %449 = vmatprep.subr.bf16.mxu0 0
  %450 = vmatpush1.bf16.msra.mxu0 0
  %451 = vmatprep.subr.bf16.mxu0 0
  %452 = vmatpush1.bf16.msra.mxu0 0
  %453 = vmatprep.subr.bf16.mxu0 0
  %454 = vmatpush1.bf16.msra.mxu0 0
  %455 = vmatprep.subr.bf16.mxu0 0
  %456 = vmatpush1.bf16.msra.mxu0 0
  %457 = vmatprep.subr.bf16.mxu0 0
  %458 = vmatpush1.bf16.msra.mxu0 0
  %459 = vmatprep.subr.bf16.mxu0 0
  %460 = vmatpush1.bf16.msra.mxu0 0
  %461 = vmatprep.subr.bf16.mxu0 0
  %462 = vmatpush1.bf16.msra.mxu0 0
  %463 = vmatprep.subr.bf16.mxu0 0
  %464 = vmatpush1.bf16.msra.mxu0 0
  %465 = vmatprep.subr.bf16.mxu0 0
  %466 = vmatpush1.bf16.msra.mxu0 0
  %467 = vmatprep.subr.bf16.mxu0 0
  %468 = vmatpush1.bf16.msra.mxu0 0
  %469 = vmatprep.subr.bf16.mxu0 0
  %470 = vmatpush1.bf16.msra.mxu0 0
  %471 = vmatprep.mubr.bf16.mxu0 0
  %472 = vmatmul.mubr.bf16.gmra.mrb[0].mxu0 %v416
  %v473 = vpop.f32.mrb[0].mxu0
  %v474 = vadd.f32 %v401, %v473
  %v475 = vpop.f32.mrb[0].mxu0
  %v476 = vpop.f32.mrb[0].mxu0
  %v477 = vadd.f32 %v401, %v476
  %v478 = vpop.f32.mrb[0].mxu0
  %479 = vmatprep.mubr.bf16.mxu0 0
  %480 = vmatmul.mubr.bf16.gmra.mrb[0].mxu0 %v419
  %v481 = vpop.f32.mrb[0].mxu0
  %v482 = vadd.f32 %v401, %v481
  %v483 = vpop.f32.mrb[0].mxu0
  %v484 = vpop.f32.mrb[0].mxu0
  %v485 = vadd.f32 %v401, %v484
  %v486 = vpop.f32.mrb[0].mxu0
  %487 = vmatprep.mubr.bf16.mxu0 0
  %488 = vmatmul.mubr.bf16.gmra.mrb[0].mxu0 %v422
  %v489 = vpop.f32.mrb[0].mxu0
  %v490 = vadd.f32 %v401, %v489
  %v491 = vpop.f32.mrb[0].mxu0
  %v492 = vpop.f32.mrb[0].mxu0
  %v493 = vadd.f32 %v401, %v492
  %v494 = vpop.f32.mrb[0].mxu0
  %495 = vmatprep.mubr.bf16.mxu0 0
  %496 = vmatmul.mubr.bf16.gmra.mrb[0].mxu0 %v425
  %v497 = vpop.f32.mrb[0].mxu0
  %v498 = vadd.f32 %v401, %v497
  %v499 = vpop.f32.mrb[0].mxu0
  %v500 = vpop.f32.mrb[0].mxu0
  %v501 = vadd.f32 %v401, %v500
  %v502 = vpop.f32.mrb[0].mxu0
  %503 = vmatprep.mubr.bf16.mxu0 0
  %504 = vmatmul.mubr.bf16.gmra.mrb[0].mxu0 %v428
  %v505 = vpop.f32.mrb[0].mxu0
  %v506 = vadd.f32 %v401, %v505
  %v507 = vpop.f32.mrb[0].mxu0
  %v508 = vpop.f32.mrb[0].mxu0
  %v509 = vadd.f32 %v401, %v508
  %v510 = vpop.f32.mrb[0].mxu0
  %511 = vmatprep.mubr.bf16.mxu0 0
  %512 = vmatmul.mubr.bf16.gmra.mrb[0].mxu0 %v431
  %v513 = vpop.f32.mrb[0].mxu0
  %v514 = vadd.f32 %v401, %v513
  %v515 = vpop.f32.mrb[0].mxu0
  %v516 = vpop.f32.mrb[0].mxu0
  %v517 = vadd.f32 %v401, %v516
  %v518 = vpop.f32.mrb[0].mxu0
  %519 = vmatprep.mubr.bf16.mxu0 0
  %520 = vmatmul.mubr.bf16.gmra.mrb[0].mxu0 %v434
  %v521 = vpop.f32.mrb[0].mxu0
  %v522 = vadd.f32 %v401, %v521
  %v523 = vpop.f32.mrb[0].mxu0
  %v524 = vpop.f32.mrb[0].mxu0
  %v525 = vadd.f32 %v401, %v524
  %v526 = vpop.f32.mrb[0].mxu0
  %527 = vmatprep.mubr.bf16.mxu0 0
  %528 = vmatmul.mubr.bf16.gmra.mrb[0].mxu0 %v437
  %v529 = vpop.f32.mrb[0].mxu0
  %v530 = vadd.f32 %v401, %v529
  %v531 = vpop.f32.mrb[0].mxu0
  %v532 = vpop.f32.mrb[0].mxu0
  %v533 = vadd.f32 %v401, %v532
  %v534 = vpop.f32.mrb[0].mxu0
  %535 = vdwg.mxu0
  %537 = vset.pattern.permute.xlu0 0
  %538 = vperm.xlu0 %537, %v474
  %v539 = vpop.permute.xlu0 %538
  %542 = vset.pattern.permute.xlu0 0
  %543 = vperm.xlu0 %542, %v477
  %v544 = vpop.permute.xlu0 %543
  %547 = vset.pattern.permute.xlu0 0
  %548 = vperm.xlu0 %547, %v482
  %v549 = vpop.permute.xlu0 %548
  %552 = vset.pattern.permute.xlu0 0
  %553 = vperm.xlu0 %552, %v485
  %v554 = vpop.permute.xlu0 %553
  %557 = vset.pattern.permute.xlu0 0
  %558 = vperm.xlu0 %557, %v490
  %v559 = vpop.permute.xlu0 %558
  %562 = vset.pattern.permute.xlu0 0
  %563 = vperm.xlu0 %562, %v493
  %v564 = vpop.permute.xlu0 %563
  %567 = vset.pattern.permute.xlu0 0
  %568 = vperm.xlu0 %567, %v498
  %v569 = vpop.permute.xlu0 %568
  %572 = vset.pattern.permute.xlu0 0
  %573 = vperm.xlu0 %572, %v501
  %v574 = vpop.permute.xlu0 %573
  %v576 = vmul.f32 %v539, %v64
  %v577 = vmul.f32 %v544, %v65
  %v578 = vmul.f32 %v549, %v66
  %v579 = vmul.f32 %v554, %v67
  %v580 = vmul.f32 %v559, %v68
  %v581 = vmul.f32 %v564, %v69
  %v582 = vmul.f32 %v569, %v70
  %v583 = vmul.f32 %v574, %v71
  %584 = vset.pattern.permute.xlu0 1
  %585 = vperm.xlu0 %584, %v474
  %v586 = vpop.permute.xlu0 %585
  %588 = vset.pattern.permute.xlu0 1
  %589 = vperm.xlu0 %588, %v477
  %v590 = vpop.permute.xlu0 %589
  %592 = vset.pattern.permute.xlu0 1
  %593 = vperm.xlu0 %592, %v482
  %v594 = vpop.permute.xlu0 %593
  %596 = vset.pattern.permute.xlu0 1
  %597 = vperm.xlu0 %596, %v485
  %v598 = vpop.permute.xlu0 %597
  %600 = vset.pattern.permute.xlu0 1
  %601 = vperm.xlu0 %600, %v490
  %v602 = vpop.permute.xlu0 %601
  %604 = vset.pattern.permute.xlu0 1
  %605 = vperm.xlu0 %604, %v493
  %v606 = vpop.permute.xlu0 %605
  %608 = vset.pattern.permute.xlu0 1
  %609 = vperm.xlu0 %608, %v498
  %v610 = vpop.permute.xlu0 %609
  %612 = vset.pattern.permute.xlu0 1
  %613 = vperm.xlu0 %612, %v501
  %v614 = vpop.permute.xlu0 %613
  %v616 = vmul.f32 %v586, %v72
  %v617 = vmul.f32 %v590, %v73
  %v618 = vmul.f32 %v594, %v74
  %v619 = vmul.f32 %v598, %v75
  %v620 = vmul.f32 %v602, %v76
  %v621 = vmul.f32 %v606, %v77
  %v622 = vmul.f32 %v610, %v78
  %v623 = vmul.f32 %v614, %v79
  %v624 = vadd.f32 %v576, %v616
  %v625 = vadd.f32 %v577, %v617
  %v626 = vadd.f32 %v578, %v618
  %v627 = vadd.f32 %v579, %v619
  %v628 = vadd.f32 %v580, %v620
  %v629 = vadd.f32 %v581, %v621
  %v630 = vadd.f32 %v582, %v622
  %v631 = vadd.f32 %v583, %v623
  %632 = vset.pattern.permute.xlu0 2
  %633 = vperm.xlu0 %632, %v474
  %v634 = vpop.permute.xlu0 %633
  %636 = vset.pattern.permute.xlu0 2
  %637 = vperm.xlu0 %636, %v477
  %v638 = vpop.permute.xlu0 %637
  %640 = vset.pattern.permute.xlu0 2
  %641 = vperm.xlu0 %640, %v482
  %v642 = vpop.permute.xlu0 %641
  %644 = vset.pattern.permute.xlu0 2
  %645 = vperm.xlu0 %644, %v485
  %v646 = vpop.permute.xlu0 %645
  %648 = vset.pattern.permute.xlu0 2
  %649 = vperm.xlu0 %648, %v490
  %v650 = vpop.permute.xlu0 %649
  %652 = vset.pattern.permute.xlu0 2
  %653 = vperm.xlu0 %652, %v493
  %v654 = vpop.permute.xlu0 %653
  %656 = vset.pattern.permute.xlu0 2
  %657 = vperm.xlu0 %656, %v498
  %v658 = vpop.permute.xlu0 %657
  %660 = vset.pattern.permute.xlu0 2
  %661 = vperm.xlu0 %660, %v501
  %v662 = vpop.permute.xlu0 %661
  %v664 = vmul.f32 %v634, %v80
  %v665 = vmul.f32 %v638, %v81
  %v666 = vmul.f32 %v642, %v82
  %v667 = vmul.f32 %v646, %v83
  %v668 = vmul.f32 %v650, %v84
  %v669 = vmul.f32 %v654, %v85
  %v670 = vmul.f32 %v658, %v86
  %v671 = vmul.f32 %v662, %v87
  %v672 = vadd.f32 %v624, %v664
  %v673 = vadd.f32 %v625, %v665
  %v674 = vadd.f32 %v626, %v666
  %v675 = vadd.f32 %v627, %v667
  %v676 = vadd.f32 %v628, %v668
  %v677 = vadd.f32 %v629, %v669
  %v678 = vadd.f32 %v630, %v670
  %v679 = vadd.f32 %v631, %v671
  %680 = vset.pattern.permute.xlu0 3
  %681 = vperm.xlu0 %680, %v474
  %v682 = vpop.permute.xlu0 %681
  %684 = vset.pattern.permute.xlu0 3
  %685 = vperm.xlu0 %684, %v477
  %v686 = vpop.permute.xlu0 %685
  %688 = vset.pattern.permute.xlu0 3
  %689 = vperm.xlu0 %688, %v482
  %v690 = vpop.permute.xlu0 %689
  %692 = vset.pattern.permute.xlu0 3
  %693 = vperm.xlu0 %692, %v485
  %v694 = vpop.permute.xlu0 %693
  %696 = vset.pattern.permute.xlu0 3
  %697 = vperm.xlu0 %696, %v490
  %v698 = vpop.permute.xlu0 %697
  %700 = vset.pattern.permute.xlu0 3
  %701 = vperm.xlu0 %700, %v493
  %v702 = vpop.permute.xlu0 %701
  %704 = vset.pattern.permute.xlu0 3
  %705 = vperm.xlu0 %704, %v498
  %v706 = vpop.permute.xlu0 %705
  %708 = vset.pattern.permute.xlu0 3
  %709 = vperm.xlu0 %708, %v501
  %v710 = vpop.permute.xlu0 %709
  %v712 = vmul.f32 %v682, %v88
  %v713 = vmul.f32 %v686, %v89
  %v714 = vmul.f32 %v690, %v90
  %v715 = vmul.f32 %v694, %v91
  %v716 = vmul.f32 %v698, %v92
  %v717 = vmul.f32 %v702, %v93
  %v718 = vmul.f32 %v706, %v94
  %v719 = vmul.f32 %v710, %v95
  %v720 = vadd.f32 %v672, %v712
  %v721 = vadd.f32 %v673, %v713
  %v722 = vadd.f32 %v674, %v714
  %v723 = vadd.f32 %v675, %v715
  %v724 = vadd.f32 %v676, %v716
  %v725 = vadd.f32 %v677, %v717
  %v726 = vadd.f32 %v678, %v718
  %v727 = vadd.f32 %v679, %v719
  %728 = vset.pattern.permute.xlu0 4
  %729 = vperm.xlu0 %728, %v474
  %v730 = vpop.permute.xlu0 %729
  %732 = vset.pattern.permute.xlu0 4
  %733 = vperm.xlu0 %732, %v477
  %v734 = vpop.permute.xlu0 %733
  %736 = vset.pattern.permute.xlu0 4
  %737 = vperm.xlu0 %736, %v482
  %v738 = vpop.permute.xlu0 %737
  %740 = vset.pattern.permute.xlu0 4
  %741 = vperm.xlu0 %740, %v485
  %v742 = vpop.permute.xlu0 %741
  %744 = vset.pattern.permute.xlu0 4
  %745 = vperm.xlu0 %744, %v490
  %v746 = vpop.permute.xlu0 %745
  %748 = vset.pattern.permute.xlu0 4
  %749 = vperm.xlu0 %748, %v493
  %v750 = vpop.permute.xlu0 %749
  %752 = vset.pattern.permute.xlu0 4
  %753 = vperm.xlu0 %752, %v498
  %v754 = vpop.permute.xlu0 %753
  %756 = vset.pattern.permute.xlu0 4
  %757 = vperm.xlu0 %756, %v501
  %v758 = vpop.permute.xlu0 %757
  %v760 = vmul.f32 %v730, %v96
  %v761 = vmul.f32 %v734, %v97
  %v762 = vmul.f32 %v738, %v98
  %v763 = vmul.f32 %v742, %v99
  %v764 = vmul.f32 %v746, %v100
  %v765 = vmul.f32 %v750, %v101
  %v766 = vmul.f32 %v754, %v102
  %v767 = vmul.f32 %v758, %v103
  %v768 = vadd.f32 %v720, %v760
  %v769 = vadd.f32 %v721, %v761
  %v770 = vadd.f32 %v722, %v762
  %v771 = vadd.f32 %v723, %v763
  %v772 = vadd.f32 %v724, %v764
  %v773 = vadd.f32 %v725, %v765
  %v774 = vadd.f32 %v726, %v766
  %v775 = vadd.f32 %v727, %v767
  %776 = vset.pattern.permute.xlu0 5
  %777 = vperm.xlu0 %776, %v474
  %v778 = vpop.permute.xlu0 %777
  %780 = vset.pattern.permute.xlu0 5
  %781 = vperm.xlu0 %780, %v477
  %v782 = vpop.permute.xlu0 %781
  %784 = vset.pattern.permute.xlu0 5
  %785 = vperm.xlu0 %784, %v482
  %v786 = vpop.permute.xlu0 %785
  %788 = vset.pattern.permute.xlu0 5
  %789 = vperm.xlu0 %788, %v485
  %v790 = vpop.permute.xlu0 %789
  %792 = vset.pattern.permute.xlu0 5
  %793 = vperm.xlu0 %792, %v490
  %v794 = vpop.permute.xlu0 %793
  %796 = vset.pattern.permute.xlu0 5
  %797 = vperm.xlu0 %796, %v493
  %v798 = vpop.permute.xlu0 %797
  %800 = vset.pattern.permute.xlu0 5
  %801 = vperm.xlu0 %800, %v498
  %v802 = vpop.permute.xlu0 %801
  %804 = vset.pattern.permute.xlu0 5
  %805 = vperm.xlu0 %804, %v501
  %v806 = vpop.permute.xlu0 %805
  %v808 = vmul.f32 %v778, %v104
  %v809 = vmul.f32 %v782, %v105
  %v810 = vmul.f32 %v786, %v106
  %v811 = vmul.f32 %v790, %v107
  %v812 = vmul.f32 %v794, %v108
  %v813 = vmul.f32 %v798, %v109
  %v814 = vmul.f32 %v802, %v110
  %v815 = vmul.f32 %v806, %v111
  %v816 = vadd.f32 %v768, %v808
  %v817 = vadd.f32 %v769, %v809
  %v818 = vadd.f32 %v770, %v810
  %v819 = vadd.f32 %v771, %v811
  %v820 = vadd.f32 %v772, %v812
  %v821 = vadd.f32 %v773, %v813
  %v822 = vadd.f32 %v774, %v814
  %v823 = vadd.f32 %v775, %v815
  %824 = vset.pattern.permute.xlu0 6
  %825 = vperm.xlu0 %824, %v474
  %v826 = vpop.permute.xlu0 %825
  %828 = vset.pattern.permute.xlu0 6
  %829 = vperm.xlu0 %828, %v477
  %v830 = vpop.permute.xlu0 %829
  %832 = vset.pattern.permute.xlu0 6
  %833 = vperm.xlu0 %832, %v482
  %v834 = vpop.permute.xlu0 %833
  %836 = vset.pattern.permute.xlu0 6
  %837 = vperm.xlu0 %836, %v485
  %v838 = vpop.permute.xlu0 %837
  %840 = vset.pattern.permute.xlu0 6
  %841 = vperm.xlu0 %840, %v490
  %v842 = vpop.permute.xlu0 %841
  %844 = vset.pattern.permute.xlu0 6
  %845 = vperm.xlu0 %844, %v493
  %v846 = vpop.permute.xlu0 %845
  %848 = vset.pattern.permute.xlu0 6
  %849 = vperm.xlu0 %848, %v498
  %v850 = vpop.permute.xlu0 %849
  %852 = vset.pattern.permute.xlu0 6
  %853 = vperm.xlu0 %852, %v501
  %v854 = vpop.permute.xlu0 %853
  %v856 = vmul.f32 %v826, %v112
  %v857 = vmul.f32 %v830, %v113
  %v858 = vmul.f32 %v834, %v114
  %v859 = vmul.f32 %v838, %v115
  %v860 = vmul.f32 %v842, %v116
  %v861 = vmul.f32 %v846, %v117
  %v862 = vmul.f32 %v850, %v118
  %v863 = vmul.f32 %v854, %v119
  %v864 = vadd.f32 %v816, %v856
  %v865 = vadd.f32 %v817, %v857
  %v866 = vadd.f32 %v818, %v858
  %v867 = vadd.f32 %v819, %v859
  %v868 = vadd.f32 %v820, %v860
  %v869 = vadd.f32 %v821, %v861
  %v870 = vadd.f32 %v822, %v862
  %v871 = vadd.f32 %v823, %v863
  %872 = vset.pattern.permute.xlu0 7
  %873 = vperm.xlu0 %872, %v474
  %v874 = vpop.permute.xlu0 %873
  %876 = vset.pattern.permute.xlu0 7
  %877 = vperm.xlu0 %876, %v477
  %v878 = vpop.permute.xlu0 %877
  %880 = vset.pattern.permute.xlu0 7
  %881 = vperm.xlu0 %880, %v482
  %v882 = vpop.permute.xlu0 %881
  %884 = vset.pattern.permute.xlu0 7
  %885 = vperm.xlu0 %884, %v485
  %v886 = vpop.permute.xlu0 %885
  %888 = vset.pattern.permute.xlu0 7
  %889 = vperm.xlu0 %888, %v490
  %v890 = vpop.permute.xlu0 %889
  %892 = vset.pattern.permute.xlu0 7
  %893 = vperm.xlu0 %892, %v493
  %v894 = vpop.permute.xlu0 %893
  %896 = vset.pattern.permute.xlu0 7
  %897 = vperm.xlu0 %896, %v498
  %v898 = vpop.permute.xlu0 %897
  %900 = vset.pattern.permute.xlu0 7
  %901 = vperm.xlu0 %900, %v501
  %v902 = vpop.permute.xlu0 %901
  %v904 = vmul.f32 %v874, %v120
  %v905 = vmul.f32 %v878, %v121
  %v906 = vmul.f32 %v882, %v122
  %v907 = vmul.f32 %v886, %v123
  %v908 = vmul.f32 %v890, %v124
  %v909 = vmul.f32 %v894, %v125
  %v910 = vmul.f32 %v898, %v126
  %v911 = vmul.f32 %v902, %v127
  %v912 = vadd.f32 %v864, %v904
  %v913 = vadd.f32 %v865, %v905
  %v914 = vadd.f32 %v866, %v906
  %v915 = vadd.f32 %v867, %v907
  %v916 = vadd.f32 %v868, %v908
  %v917 = vadd.f32 %v869, %v909
  %v918 = vadd.f32 %v870, %v910
  %v919 = vadd.f32 %v871, %v911
  %920 = vset.pattern.permute.xlu0 8
  %921 = vperm.xlu0 %920, %v474
  %v922 = vpop.permute.xlu0 %921
  %924 = vset.pattern.permute.xlu0 8
  %925 = vperm.xlu0 %924, %v477
  %v926 = vpop.permute.xlu0 %925
  %928 = vset.pattern.permute.xlu0 8
  %929 = vperm.xlu0 %928, %v482
  %v930 = vpop.permute.xlu0 %929
  %932 = vset.pattern.permute.xlu0 8
  %933 = vperm.xlu0 %932, %v485
  %v934 = vpop.permute.xlu0 %933
  %936 = vset.pattern.permute.xlu0 8
  %937 = vperm.xlu0 %936, %v490
  %v938 = vpop.permute.xlu0 %937
  %940 = vset.pattern.permute.xlu0 8
  %941 = vperm.xlu0 %940, %v493
  %v942 = vpop.permute.xlu0 %941
  %944 = vset.pattern.permute.xlu0 8
  %945 = vperm.xlu0 %944, %v498
  %v946 = vpop.permute.xlu0 %945
  %948 = vset.pattern.permute.xlu0 8
  %949 = vperm.xlu0 %948, %v501
  %v950 = vpop.permute.xlu0 %949
  %v952 = vmul.f32 %v922, %v64
  %v953 = vmul.f32 %v926, %v65
  %v954 = vmul.f32 %v930, %v66
  %v955 = vmul.f32 %v934, %v67
  %v956 = vmul.f32 %v938, %v68
  %v957 = vmul.f32 %v942, %v69
  %v958 = vmul.f32 %v946, %v70
  %v959 = vmul.f32 %v950, %v71
  %960 = vset.pattern.permute.xlu0 9
  %961 = vperm.xlu0 %960, %v474
  %v962 = vpop.permute.xlu0 %961
  %964 = vset.pattern.permute.xlu0 9
  %965 = vperm.xlu0 %964, %v477
  %v966 = vpop.permute.xlu0 %965
  %968 = vset.pattern.permute.xlu0 9
  %969 = vperm.xlu0 %968, %v482
  %v970 = vpop.permute.xlu0 %969
  %972 = vset.pattern.permute.xlu0 9
  %973 = vperm.xlu0 %972, %v485
  %v974 = vpop.permute.xlu0 %973
  %976 = vset.pattern.permute.xlu0 9
  %977 = vperm.xlu0 %976, %v490
  %v978 = vpop.permute.xlu0 %977
  %980 = vset.pattern.permute.xlu0 9
  %981 = vperm.xlu0 %980, %v493
  %v982 = vpop.permute.xlu0 %981
  %984 = vset.pattern.permute.xlu0 9
  %985 = vperm.xlu0 %984, %v498
  %v986 = vpop.permute.xlu0 %985
  %988 = vset.pattern.permute.xlu0 9
  %989 = vperm.xlu0 %988, %v501
  %v990 = vpop.permute.xlu0 %989
  %v992 = vmul.f32 %v962, %v72
  %v993 = vmul.f32 %v966, %v73
  %v994 = vmul.f32 %v970, %v74
  %v995 = vmul.f32 %v974, %v75
  %v996 = vmul.f32 %v978, %v76
  %v997 = vmul.f32 %v982, %v77
  %v998 = vmul.f32 %v986, %v78
  %v999 = vmul.f32 %v990, %v79
  %v1000 = vadd.f32 %v952, %v992
  %v1001 = vadd.f32 %v953, %v993
  %v1002 = vadd.f32 %v954, %v994
  %v1003 = vadd.f32 %v955, %v995
  %v1004 = vadd.f32 %v956, %v996
  %v1005 = vadd.f32 %v957, %v997
  %v1006 = vadd.f32 %v958, %v998
  %v1007 = vadd.f32 %v959, %v999
  %1008 = vset.pattern.permute.xlu0 10
  %1009 = vperm.xlu0 %1008, %v474
  %v1010 = vpop.permute.xlu0 %1009
  %1012 = vset.pattern.permute.xlu0 10
  %1013 = vperm.xlu0 %1012, %v477
  %v1014 = vpop.permute.xlu0 %1013
  %1016 = vset.pattern.permute.xlu0 10
  %1017 = vperm.xlu0 %1016, %v482
  %v1018 = vpop.permute.xlu0 %1017
  %1020 = vset.pattern.permute.xlu0 10
  %1021 = vperm.xlu0 %1020, %v485
  %v1022 = vpop.permute.xlu0 %1021
  %1024 = vset.pattern.permute.xlu0 10
  %1025 = vperm.xlu0 %1024, %v490
  %v1026 = vpop.permute.xlu0 %1025
  %1028 = vset.pattern.permute.xlu0 10
  %1029 = vperm.xlu0 %1028, %v493
  %v1030 = vpop.permute.xlu0 %1029
  %1032 = vset.pattern.permute.xlu0 10
  %1033 = vperm.xlu0 %1032, %v498
  %v1034 = vpop.permute.xlu0 %1033
  %1036 = vset.pattern.permute.xlu0 10
  %1037 = vperm.xlu0 %1036, %v501
  %v1038 = vpop.permute.xlu0 %1037
  %v1040 = vmul.f32 %v1010, %v80
  %v1041 = vmul.f32 %v1014, %v81
  %v1042 = vmul.f32 %v1018, %v82
  %v1043 = vmul.f32 %v1022, %v83
  %v1044 = vmul.f32 %v1026, %v84
  %v1045 = vmul.f32 %v1030, %v85
  %v1046 = vmul.f32 %v1034, %v86
  %v1047 = vmul.f32 %v1038, %v87
  %v1048 = vadd.f32 %v1000, %v1040
  %v1049 = vadd.f32 %v1001, %v1041
  %v1050 = vadd.f32 %v1002, %v1042
  %v1051 = vadd.f32 %v1003, %v1043
  %v1052 = vadd.f32 %v1004, %v1044
  %v1053 = vadd.f32 %v1005, %v1045
  %v1054 = vadd.f32 %v1006, %v1046
  %v1055 = vadd.f32 %v1007, %v1047
  %1056 = vset.pattern.permute.xlu0 11
  %1057 = vperm.xlu0 %1056, %v474
  %v1058 = vpop.permute.xlu0 %1057
  %1060 = vset.pattern.permute.xlu0 11
  %1061 = vperm.xlu0 %1060, %v477
  %v1062 = vpop.permute.xlu0 %1061
  %1064 = vset.pattern.permute.xlu0 11
  %1065 = vperm.xlu0 %1064, %v482
  %v1066 = vpop.permute.xlu0 %1065
  %1068 = vset.pattern.permute.xlu0 11
  %1069 = vperm.xlu0 %1068, %v485
  %v1070 = vpop.permute.xlu0 %1069
  %1072 = vset.pattern.permute.xlu0 11
  %1073 = vperm.xlu0 %1072, %v490
  %v1074 = vpop.permute.xlu0 %1073
  %1076 = vset.pattern.permute.xlu0 11
  %1077 = vperm.xlu0 %1076, %v493
  %v1078 = vpop.permute.xlu0 %1077
  %1080 = vset.pattern.permute.xlu0 11
  %1081 = vperm.xlu0 %1080, %v498
  %v1082 = vpop.permute.xlu0 %1081
  %1084 = vset.pattern.permute.xlu0 11
  %1085 = vperm.xlu0 %1084, %v501
  %v1086 = vpop.permute.xlu0 %1085
  %v1088 = vmul.f32 %v1058, %v88
  %v1089 = vmul.f32 %v1062, %v89
  %v1090 = vmul.f32 %v1066, %v90
  %v1091 = vmul.f32 %v1070, %v91
  %v1092 = vmul.f32 %v1074, %v92
  %v1093 = vmul.f32 %v1078, %v93
  %v1094 = vmul.f32 %v1082, %v94
  %v1095 = vmul.f32 %v1086, %v95
  %v1096 = vadd.f32 %v1048, %v1088
  %v1097 = vadd.f32 %v1049, %v1089
  %v1098 = vadd.f32 %v1050, %v1090
  %v1099 = vadd.f32 %v1051, %v1091
  %v1100 = vadd.f32 %v1052, %v1092
  %v1101 = vadd.f32 %v1053, %v1093
  %v1102 = vadd.f32 %v1054, %v1094
  %v1103 = vadd.f32 %v1055, %v1095
  %1104 = vset.pattern.permute.xlu0 12
  %1105 = vperm.xlu0 %1104, %v474
  %v1106 = vpop.permute.xlu0 %1105
  %1108 = vset.pattern.permute.xlu0 12
  %1109 = vperm.xlu0 %1108, %v477
  %v1110 = vpop.permute.xlu0 %1109
  %1112 = vset.pattern.permute.xlu0 12
  %1113 = vperm.xlu0 %1112, %v482
  %v1114 = vpop.permute.xlu0 %1113
  %1116 = vset.pattern.permute.xlu0 12
  %1117 = vperm.xlu0 %1116, %v485
  %v1118 = vpop.permute.xlu0 %1117
  %1120 = vset.pattern.permute.xlu0 12
  %1121 = vperm.xlu0 %1120, %v490
  %v1122 = vpop.permute.xlu0 %1121
  %1124 = vset.pattern.permute.xlu0 12
  %1125 = vperm.xlu0 %1124, %v493
  %v1126 = vpop.permute.xlu0 %1125
  %1128 = vset.pattern.permute.xlu0 12
  %1129 = vperm.xlu0 %1128, %v498
  %v1130 = vpop.permute.xlu0 %1129
  %1132 = vset.pattern.permute.xlu0 12
  %1133 = vperm.xlu0 %1132, %v501
  %v1134 = vpop.permute.xlu0 %1133
  %v1136 = vmul.f32 %v1106, %v96
  %v1137 = vmul.f32 %v1110, %v97
  %v1138 = vmul.f32 %v1114, %v98
  %v1139 = vmul.f32 %v1118, %v99
  %v1140 = vmul.f32 %v1122, %v100
  %v1141 = vmul.f32 %v1126, %v101
  %v1142 = vmul.f32 %v1130, %v102
  %v1143 = vmul.f32 %v1134, %v103
  %v1144 = vadd.f32 %v1096, %v1136
  %v1145 = vadd.f32 %v1097, %v1137
  %v1146 = vadd.f32 %v1098, %v1138
  %v1147 = vadd.f32 %v1099, %v1139
  %v1148 = vadd.f32 %v1100, %v1140
  %v1149 = vadd.f32 %v1101, %v1141
  %v1150 = vadd.f32 %v1102, %v1142
  %v1151 = vadd.f32 %v1103, %v1143
  %1152 = vset.pattern.permute.xlu0 13
  %1153 = vperm.xlu0 %1152, %v474
  %v1154 = vpop.permute.xlu0 %1153
  %1156 = vset.pattern.permute.xlu0 13
  %1157 = vperm.xlu0 %1156, %v477
  %v1158 = vpop.permute.xlu0 %1157
  %1160 = vset.pattern.permute.xlu0 13
  %1161 = vperm.xlu0 %1160, %v482
  %v1162 = vpop.permute.xlu0 %1161
  %1164 = vset.pattern.permute.xlu0 13
  %1165 = vperm.xlu0 %1164, %v485
  %v1166 = vpop.permute.xlu0 %1165
  %1168 = vset.pattern.permute.xlu0 13
  %1169 = vperm.xlu0 %1168, %v490
  %v1170 = vpop.permute.xlu0 %1169
  %1172 = vset.pattern.permute.xlu0 13
  %1173 = vperm.xlu0 %1172, %v493
  %v1174 = vpop.permute.xlu0 %1173
  %1176 = vset.pattern.permute.xlu0 13
  %1177 = vperm.xlu0 %1176, %v498
  %v1178 = vpop.permute.xlu0 %1177
  %1180 = vset.pattern.permute.xlu0 13
  %1181 = vperm.xlu0 %1180, %v501
  %v1182 = vpop.permute.xlu0 %1181
  %v1184 = vmul.f32 %v1154, %v104
  %v1185 = vmul.f32 %v1158, %v105
  %v1186 = vmul.f32 %v1162, %v106
  %v1187 = vmul.f32 %v1166, %v107
  %v1188 = vmul.f32 %v1170, %v108
  %v1189 = vmul.f32 %v1174, %v109
  %v1190 = vmul.f32 %v1178, %v110
  %v1191 = vmul.f32 %v1182, %v111
  %v1192 = vadd.f32 %v1144, %v1184
  %v1193 = vadd.f32 %v1145, %v1185
  %v1194 = vadd.f32 %v1146, %v1186
  %v1195 = vadd.f32 %v1147, %v1187
  %v1196 = vadd.f32 %v1148, %v1188
  %v1197 = vadd.f32 %v1149, %v1189
  %v1198 = vadd.f32 %v1150, %v1190
  %v1199 = vadd.f32 %v1151, %v1191
  %1200 = vset.pattern.permute.xlu0 14
  %1201 = vperm.xlu0 %1200, %v474
  %v1202 = vpop.permute.xlu0 %1201
  %1204 = vset.pattern.permute.xlu0 14
  %1205 = vperm.xlu0 %1204, %v477
  %v1206 = vpop.permute.xlu0 %1205
  %1208 = vset.pattern.permute.xlu0 14
  %1209 = vperm.xlu0 %1208, %v482
  %v1210 = vpop.permute.xlu0 %1209
  %1212 = vset.pattern.permute.xlu0 14
  %1213 = vperm.xlu0 %1212, %v485
  %v1214 = vpop.permute.xlu0 %1213
  %1216 = vset.pattern.permute.xlu0 14
  %1217 = vperm.xlu0 %1216, %v490
  %v1218 = vpop.permute.xlu0 %1217
  %1220 = vset.pattern.permute.xlu0 14
  %1221 = vperm.xlu0 %1220, %v493
  %v1222 = vpop.permute.xlu0 %1221
  %1224 = vset.pattern.permute.xlu0 14
  %1225 = vperm.xlu0 %1224, %v498
  %v1226 = vpop.permute.xlu0 %1225
  %1228 = vset.pattern.permute.xlu0 14
  %1229 = vperm.xlu0 %1228, %v501
  %v1230 = vpop.permute.xlu0 %1229
  %v1232 = vmul.f32 %v1202, %v112
  %v1233 = vmul.f32 %v1206, %v113
  %v1234 = vmul.f32 %v1210, %v114
  %v1235 = vmul.f32 %v1214, %v115
  %v1236 = vmul.f32 %v1218, %v116
  %v1237 = vmul.f32 %v1222, %v117
  %v1238 = vmul.f32 %v1226, %v118
  %v1239 = vmul.f32 %v1230, %v119
  %v1240 = vadd.f32 %v1192, %v1232
  %v1241 = vadd.f32 %v1193, %v1233
  %v1242 = vadd.f32 %v1194, %v1234
  %v1243 = vadd.f32 %v1195, %v1235
  %v1244 = vadd.f32 %v1196, %v1236
  %v1245 = vadd.f32 %v1197, %v1237
  %v1246 = vadd.f32 %v1198, %v1238
  %v1247 = vadd.f32 %v1199, %v1239
  %1248 = vset.pattern.permute.xlu0 15
  %1249 = vperm.xlu0 %1248, %v474
  %v1250 = vpop.permute.xlu0 %1249
  %1252 = vset.pattern.permute.xlu0 15
  %1253 = vperm.xlu0 %1252, %v477
  %v1254 = vpop.permute.xlu0 %1253
  %1256 = vset.pattern.permute.xlu0 15
  %1257 = vperm.xlu0 %1256, %v482
  %v1258 = vpop.permute.xlu0 %1257
  %1260 = vset.pattern.permute.xlu0 15
  %1261 = vperm.xlu0 %1260, %v485
  %v1262 = vpop.permute.xlu0 %1261
  %1264 = vset.pattern.permute.xlu0 15
  %1265 = vperm.xlu0 %1264, %v490
  %v1266 = vpop.permute.xlu0 %1265
  %1268 = vset.pattern.permute.xlu0 15
  %1269 = vperm.xlu0 %1268, %v493
  %v1270 = vpop.permute.xlu0 %1269
  %1272 = vset.pattern.permute.xlu0 15
  %1273 = vperm.xlu0 %1272, %v498
  %v1274 = vpop.permute.xlu0 %1273
  %1276 = vset.pattern.permute.xlu0 15
  %1277 = vperm.xlu0 %1276, %v501
  %v1278 = vpop.permute.xlu0 %1277
  %v1280 = vmul.f32 %v1250, %v120
  %v1281 = vmul.f32 %v1254, %v121
  %v1282 = vmul.f32 %v1258, %v122
  %v1283 = vmul.f32 %v1262, %v123
  %v1284 = vmul.f32 %v1266, %v124
  %v1285 = vmul.f32 %v1270, %v125
  %v1286 = vmul.f32 %v1274, %v126
  %v1287 = vmul.f32 %v1278, %v127
  %v1288 = vadd.f32 %v1240, %v1280
  %v1289 = vadd.f32 %v1241, %v1281
  %v1290 = vadd.f32 %v1242, %v1282
  %v1291 = vadd.f32 %v1243, %v1283
  %v1292 = vadd.f32 %v1244, %v1284
  %v1293 = vadd.f32 %v1245, %v1285
  %v1294 = vadd.f32 %v1246, %v1286
  %v1295 = vadd.f32 %v1247, %v1287
  %1296 = vset.pattern.permute.xlu0 16
  %1297 = vperm.xlu0 %1296, %v474
  %v1298 = vpop.permute.xlu0 %1297
  %1300 = vset.pattern.permute.xlu0 16
  %1301 = vperm.xlu0 %1300, %v477
  %v1302 = vpop.permute.xlu0 %1301
  %1304 = vset.pattern.permute.xlu0 16
  %1305 = vperm.xlu0 %1304, %v482
  %v1306 = vpop.permute.xlu0 %1305
  %1308 = vset.pattern.permute.xlu0 16
  %1309 = vperm.xlu0 %1308, %v485
  %v1310 = vpop.permute.xlu0 %1309
  %1312 = vset.pattern.permute.xlu0 16
  %1313 = vperm.xlu0 %1312, %v490
  %v1314 = vpop.permute.xlu0 %1313
  %1316 = vset.pattern.permute.xlu0 16
  %1317 = vperm.xlu0 %1316, %v493
  %v1318 = vpop.permute.xlu0 %1317
  %1320 = vset.pattern.permute.xlu0 16
  %1321 = vperm.xlu0 %1320, %v498
  %v1322 = vpop.permute.xlu0 %1321
  %1324 = vset.pattern.permute.xlu0 16
  %1325 = vperm.xlu0 %1324, %v501
  %v1326 = vpop.permute.xlu0 %1325
  %v1328 = vmul.f32 %v1298, %v64
  %v1329 = vmul.f32 %v1302, %v65
  %v1330 = vmul.f32 %v1306, %v66
  %v1331 = vmul.f32 %v1310, %v67
  %v1332 = vmul.f32 %v1314, %v68
  %v1333 = vmul.f32 %v1318, %v69
  %v1334 = vmul.f32 %v1322, %v70
  %v1335 = vmul.f32 %v1326, %v71
  %1336 = vset.pattern.permute.xlu0 17
  %1337 = vperm.xlu0 %1336, %v474
  %v1338 = vpop.permute.xlu0 %1337
  %1340 = vset.pattern.permute.xlu0 17
  %1341 = vperm.xlu0 %1340, %v477
  %v1342 = vpop.permute.xlu0 %1341
  %1344 = vset.pattern.permute.xlu0 17
  %1345 = vperm.xlu0 %1344, %v482
  %v1346 = vpop.permute.xlu0 %1345
  %1348 = vset.pattern.permute.xlu0 17
  %1349 = vperm.xlu0 %1348, %v485
  %v1350 = vpop.permute.xlu0 %1349
  %1352 = vset.pattern.permute.xlu0 17
  %1353 = vperm.xlu0 %1352, %v490
  %v1354 = vpop.permute.xlu0 %1353
  %1356 = vset.pattern.permute.xlu0 17
  %1357 = vperm.xlu0 %1356, %v493
  %v1358 = vpop.permute.xlu0 %1357
  %1360 = vset.pattern.permute.xlu0 17
  %1361 = vperm.xlu0 %1360, %v498
  %v1362 = vpop.permute.xlu0 %1361
  %1364 = vset.pattern.permute.xlu0 17
  %1365 = vperm.xlu0 %1364, %v501
  %v1366 = vpop.permute.xlu0 %1365
  %v1368 = vmul.f32 %v1338, %v72
  %v1369 = vmul.f32 %v1342, %v73
  %v1370 = vmul.f32 %v1346, %v74
  %v1371 = vmul.f32 %v1350, %v75
  %v1372 = vmul.f32 %v1354, %v76
  %v1373 = vmul.f32 %v1358, %v77
  %v1374 = vmul.f32 %v1362, %v78
  %v1375 = vmul.f32 %v1366, %v79
  %v1376 = vadd.f32 %v1328, %v1368
  %v1377 = vadd.f32 %v1329, %v1369
  %v1378 = vadd.f32 %v1330, %v1370
  %v1379 = vadd.f32 %v1331, %v1371
  %v1380 = vadd.f32 %v1332, %v1372
  %v1381 = vadd.f32 %v1333, %v1373
  %v1382 = vadd.f32 %v1334, %v1374
  %v1383 = vadd.f32 %v1335, %v1375
  %1384 = vset.pattern.permute.xlu0 18
  %1385 = vperm.xlu0 %1384, %v474
  %v1386 = vpop.permute.xlu0 %1385
  %1388 = vset.pattern.permute.xlu0 18
  %1389 = vperm.xlu0 %1388, %v477
  %v1390 = vpop.permute.xlu0 %1389
  %1392 = vset.pattern.permute.xlu0 18
  %1393 = vperm.xlu0 %1392, %v482
  %v1394 = vpop.permute.xlu0 %1393
  %1396 = vset.pattern.permute.xlu0 18
  %1397 = vperm.xlu0 %1396, %v485
  %v1398 = vpop.permute.xlu0 %1397
  %1400 = vset.pattern.permute.xlu0 18
  %1401 = vperm.xlu0 %1400, %v490
  %v1402 = vpop.permute.xlu0 %1401
  %1404 = vset.pattern.permute.xlu0 18
  %1405 = vperm.xlu0 %1404, %v493
  %v1406 = vpop.permute.xlu0 %1405
  %1408 = vset.pattern.permute.xlu0 18
  %1409 = vperm.xlu0 %1408, %v498
  %v1410 = vpop.permute.xlu0 %1409
  %1412 = vset.pattern.permute.xlu0 18
  %1413 = vperm.xlu0 %1412, %v501
  %v1414 = vpop.permute.xlu0 %1413
  %v1416 = vmul.f32 %v1386, %v80
  %v1417 = vmul.f32 %v1390, %v81
  %v1418 = vmul.f32 %v1394, %v82
  %v1419 = vmul.f32 %v1398, %v83
  %v1420 = vmul.f32 %v1402, %v84
  %v1421 = vmul.f32 %v1406, %v85
  %v1422 = vmul.f32 %v1410, %v86
  %v1423 = vmul.f32 %v1414, %v87
  %v1424 = vadd.f32 %v1376, %v1416
  %v1425 = vadd.f32 %v1377, %v1417
  %v1426 = vadd.f32 %v1378, %v1418
  %v1427 = vadd.f32 %v1379, %v1419
  %v1428 = vadd.f32 %v1380, %v1420
  %v1429 = vadd.f32 %v1381, %v1421
  %v1430 = vadd.f32 %v1382, %v1422
  %v1431 = vadd.f32 %v1383, %v1423
  %1432 = vset.pattern.permute.xlu0 19
  %1433 = vperm.xlu0 %1432, %v474
  %v1434 = vpop.permute.xlu0 %1433
  %1436 = vset.pattern.permute.xlu0 19
  %1437 = vperm.xlu0 %1436, %v477
  %v1438 = vpop.permute.xlu0 %1437
  %1440 = vset.pattern.permute.xlu0 19
  %1441 = vperm.xlu0 %1440, %v482
  %v1442 = vpop.permute.xlu0 %1441
  %1444 = vset.pattern.permute.xlu0 19
  %1445 = vperm.xlu0 %1444, %v485
  %v1446 = vpop.permute.xlu0 %1445
  %1448 = vset.pattern.permute.xlu0 19
  %1449 = vperm.xlu0 %1448, %v490
  %v1450 = vpop.permute.xlu0 %1449
  %1452 = vset.pattern.permute.xlu0 19
  %1453 = vperm.xlu0 %1452, %v493
  %v1454 = vpop.permute.xlu0 %1453
  %1456 = vset.pattern.permute.xlu0 19
  %1457 = vperm.xlu0 %1456, %v498
  %v1458 = vpop.permute.xlu0 %1457
  %1460 = vset.pattern.permute.xlu0 19
  %1461 = vperm.xlu0 %1460, %v501
  %v1462 = vpop.permute.xlu0 %1461
  %v1464 = vmul.f32 %v1434, %v88
  %v1465 = vmul.f32 %v1438, %v89
  %v1466 = vmul.f32 %v1442, %v90
  %v1467 = vmul.f32 %v1446, %v91
  %v1468 = vmul.f32 %v1450, %v92
  %v1469 = vmul.f32 %v1454, %v93
  %v1470 = vmul.f32 %v1458, %v94
  %v1471 = vmul.f32 %v1462, %v95
  %v1472 = vadd.f32 %v1424, %v1464
  %v1473 = vadd.f32 %v1425, %v1465
  %v1474 = vadd.f32 %v1426, %v1466
  %v1475 = vadd.f32 %v1427, %v1467
  %v1476 = vadd.f32 %v1428, %v1468
  %v1477 = vadd.f32 %v1429, %v1469
  %v1478 = vadd.f32 %v1430, %v1470
  %v1479 = vadd.f32 %v1431, %v1471
  %1480 = vset.pattern.permute.xlu0 20
  %1481 = vperm.xlu0 %1480, %v474
  %v1482 = vpop.permute.xlu0 %1481
  %1484 = vset.pattern.permute.xlu0 20
  %1485 = vperm.xlu0 %1484, %v477
  %v1486 = vpop.permute.xlu0 %1485
  %1488 = vset.pattern.permute.xlu0 20
  %1489 = vperm.xlu0 %1488, %v482
  %v1490 = vpop.permute.xlu0 %1489
  %1492 = vset.pattern.permute.xlu0 20
  %1493 = vperm.xlu0 %1492, %v485
  %v1494 = vpop.permute.xlu0 %1493
  %1496 = vset.pattern.permute.xlu0 20
  %1497 = vperm.xlu0 %1496, %v490
  %v1498 = vpop.permute.xlu0 %1497
  %1500 = vset.pattern.permute.xlu0 20
  %1501 = vperm.xlu0 %1500, %v493
  %v1502 = vpop.permute.xlu0 %1501
  %1504 = vset.pattern.permute.xlu0 20
  %1505 = vperm.xlu0 %1504, %v498
  %v1506 = vpop.permute.xlu0 %1505
  %1508 = vset.pattern.permute.xlu0 20
  %1509 = vperm.xlu0 %1508, %v501
  %v1510 = vpop.permute.xlu0 %1509
  %v1512 = vmul.f32 %v1482, %v96
  %v1513 = vmul.f32 %v1486, %v97
  %v1514 = vmul.f32 %v1490, %v98
  %v1515 = vmul.f32 %v1494, %v99
  %v1516 = vmul.f32 %v1498, %v100
  %v1517 = vmul.f32 %v1502, %v101
  %v1518 = vmul.f32 %v1506, %v102
  %v1519 = vmul.f32 %v1510, %v103
  %v1520 = vadd.f32 %v1472, %v1512
  %v1521 = vadd.f32 %v1473, %v1513
  %v1522 = vadd.f32 %v1474, %v1514
  %v1523 = vadd.f32 %v1475, %v1515
  %v1524 = vadd.f32 %v1476, %v1516
  %v1525 = vadd.f32 %v1477, %v1517
  %v1526 = vadd.f32 %v1478, %v1518
  %v1527 = vadd.f32 %v1479, %v1519
  %1528 = vset.pattern.permute.xlu0 21
  %1529 = vperm.xlu0 %1528, %v474
  %v1530 = vpop.permute.xlu0 %1529
  %1532 = vset.pattern.permute.xlu0 21
  %1533 = vperm.xlu0 %1532, %v477
  %v1534 = vpop.permute.xlu0 %1533
  %1536 = vset.pattern.permute.xlu0 21
  %1537 = vperm.xlu0 %1536, %v482
  %v1538 = vpop.permute.xlu0 %1537
  %1540 = vset.pattern.permute.xlu0 21
  %1541 = vperm.xlu0 %1540, %v485
  %v1542 = vpop.permute.xlu0 %1541
  %1544 = vset.pattern.permute.xlu0 21
  %1545 = vperm.xlu0 %1544, %v490
  %v1546 = vpop.permute.xlu0 %1545
  %1548 = vset.pattern.permute.xlu0 21
  %1549 = vperm.xlu0 %1548, %v493
  %v1550 = vpop.permute.xlu0 %1549
  %1552 = vset.pattern.permute.xlu0 21
  %1553 = vperm.xlu0 %1552, %v498
  %v1554 = vpop.permute.xlu0 %1553
  %1556 = vset.pattern.permute.xlu0 21
  %1557 = vperm.xlu0 %1556, %v501
  %v1558 = vpop.permute.xlu0 %1557
  %v1560 = vmul.f32 %v1530, %v104
  %v1561 = vmul.f32 %v1534, %v105
  %v1562 = vmul.f32 %v1538, %v106
  %v1563 = vmul.f32 %v1542, %v107
  %v1564 = vmul.f32 %v1546, %v108
  %v1565 = vmul.f32 %v1550, %v109
  %v1566 = vmul.f32 %v1554, %v110
  %v1567 = vmul.f32 %v1558, %v111
  %v1568 = vadd.f32 %v1520, %v1560
  %v1569 = vadd.f32 %v1521, %v1561
  %v1570 = vadd.f32 %v1522, %v1562
  %v1571 = vadd.f32 %v1523, %v1563
  %v1572 = vadd.f32 %v1524, %v1564
  %v1573 = vadd.f32 %v1525, %v1565
  %v1574 = vadd.f32 %v1526, %v1566
  %v1575 = vadd.f32 %v1527, %v1567
  %1576 = vset.pattern.permute.xlu0 22
  %1577 = vperm.xlu0 %1576, %v474
  %v1578 = vpop.permute.xlu0 %1577
  %1580 = vset.pattern.permute.xlu0 22
  %1581 = vperm.xlu0 %1580, %v477
  %v1582 = vpop.permute.xlu0 %1581
  %1584 = vset.pattern.permute.xlu0 22
  %1585 = vperm.xlu0 %1584, %v482
  %v1586 = vpop.permute.xlu0 %1585
  %1588 = vset.pattern.permute.xlu0 22
  %1589 = vperm.xlu0 %1588, %v485
  %v1590 = vpop.permute.xlu0 %1589
  %1592 = vset.pattern.permute.xlu0 22
  %1593 = vperm.xlu0 %1592, %v490
  %v1594 = vpop.permute.xlu0 %1593
  %1596 = vset.pattern.permute.xlu0 22
  %1597 = vperm.xlu0 %1596, %v493
  %v1598 = vpop.permute.xlu0 %1597
  %1600 = vset.pattern.permute.xlu0 22
  %1601 = vperm.xlu0 %1600, %v498
  %v1602 = vpop.permute.xlu0 %1601
  %1604 = vset.pattern.permute.xlu0 22
  %1605 = vperm.xlu0 %1604, %v501
  %v1606 = vpop.permute.xlu0 %1605
  %v1608 = vmul.f32 %v1578, %v112
  %v1609 = vmul.f32 %v1582, %v113
  %v1610 = vmul.f32 %v1586, %v114
  %v1611 = vmul.f32 %v1590, %v115
  %v1612 = vmul.f32 %v1594, %v116
  %v1613 = vmul.f32 %v1598, %v117
  %v1614 = vmul.f32 %v1602, %v118
  %v1615 = vmul.f32 %v1606, %v119
  %v1616 = vadd.f32 %v1568, %v1608
  %v1617 = vadd.f32 %v1569, %v1609
  %v1618 = vadd.f32 %v1570, %v1610
  %v1619 = vadd.f32 %v1571, %v1611
  %v1620 = vadd.f32 %v1572, %v1612
  %v1621 = vadd.f32 %v1573, %v1613
  %v1622 = vadd.f32 %v1574, %v1614
  %v1623 = vadd.f32 %v1575, %v1615
  %1624 = vset.pattern.permute.xlu0 23
  %1625 = vperm.xlu0 %1624, %v474
  %v1626 = vpop.permute.xlu0 %1625
  %1628 = vset.pattern.permute.xlu0 23
  %1629 = vperm.xlu0 %1628, %v477
  %v1630 = vpop.permute.xlu0 %1629
  %1632 = vset.pattern.permute.xlu0 23
  %1633 = vperm.xlu0 %1632, %v482
  %v1634 = vpop.permute.xlu0 %1633
  %1636 = vset.pattern.permute.xlu0 23
  %1637 = vperm.xlu0 %1636, %v485
  %v1638 = vpop.permute.xlu0 %1637
  %1640 = vset.pattern.permute.xlu0 23
  %1641 = vperm.xlu0 %1640, %v490
  %v1642 = vpop.permute.xlu0 %1641
  %1644 = vset.pattern.permute.xlu0 23
  %1645 = vperm.xlu0 %1644, %v493
  %v1646 = vpop.permute.xlu0 %1645
  %1648 = vset.pattern.permute.xlu0 23
  %1649 = vperm.xlu0 %1648, %v498
  %v1650 = vpop.permute.xlu0 %1649
  %1652 = vset.pattern.permute.xlu0 23
  %1653 = vperm.xlu0 %1652, %v501
  %v1654 = vpop.permute.xlu0 %1653
  %v1656 = vmul.f32 %v1626, %v120
  %v1657 = vmul.f32 %v1630, %v121
  %v1658 = vmul.f32 %v1634, %v122
  %v1659 = vmul.f32 %v1638, %v123
  %v1660 = vmul.f32 %v1642, %v124
  %v1661 = vmul.f32 %v1646, %v125
  %v1662 = vmul.f32 %v1650, %v126
  %v1663 = vmul.f32 %v1654, %v127
  %v1664 = vadd.f32 %v1616, %v1656
  %v1665 = vadd.f32 %v1617, %v1657
  %v1666 = vadd.f32 %v1618, %v1658
  %v1667 = vadd.f32 %v1619, %v1659
  %v1668 = vadd.f32 %v1620, %v1660
  %v1669 = vadd.f32 %v1621, %v1661
  %v1670 = vadd.f32 %v1622, %v1662
  %v1671 = vadd.f32 %v1623, %v1663
  %1672 = vset.pattern.permute.xlu0 24
  %1673 = vperm.xlu0 %1672, %v474
  %v1674 = vpop.permute.xlu0 %1673
  %1676 = vset.pattern.permute.xlu0 24
  %1677 = vperm.xlu0 %1676, %v477
  %v1678 = vpop.permute.xlu0 %1677
  %1680 = vset.pattern.permute.xlu0 24
  %1681 = vperm.xlu0 %1680, %v482
  %v1682 = vpop.permute.xlu0 %1681
  %1684 = vset.pattern.permute.xlu0 24
  %1685 = vperm.xlu0 %1684, %v485
  %v1686 = vpop.permute.xlu0 %1685
  %1688 = vset.pattern.permute.xlu0 24
  %1689 = vperm.xlu0 %1688, %v490
  %v1690 = vpop.permute.xlu0 %1689
  %1692 = vset.pattern.permute.xlu0 24
  %1693 = vperm.xlu0 %1692, %v493
  %v1694 = vpop.permute.xlu0 %1693
  %1696 = vset.pattern.permute.xlu0 24
  %1697 = vperm.xlu0 %1696, %v498
  %v1698 = vpop.permute.xlu0 %1697
  %1700 = vset.pattern.permute.xlu0 24
  %1701 = vperm.xlu0 %1700, %v501
  %v1702 = vpop.permute.xlu0 %1701
  %v1704 = vmul.f32 %v1674, %v64
  %v1705 = vmul.f32 %v1678, %v65
  %v1706 = vmul.f32 %v1682, %v66
  %v1707 = vmul.f32 %v1686, %v67
  %v1708 = vmul.f32 %v1690, %v68
  %v1709 = vmul.f32 %v1694, %v69
  %v1710 = vmul.f32 %v1698, %v70
  %v1711 = vmul.f32 %v1702, %v71
  %1712 = vset.pattern.permute.xlu0 25
  %1713 = vperm.xlu0 %1712, %v474
  %v1714 = vpop.permute.xlu0 %1713
  %1716 = vset.pattern.permute.xlu0 25
  %1717 = vperm.xlu0 %1716, %v477
  %v1718 = vpop.permute.xlu0 %1717
  %1720 = vset.pattern.permute.xlu0 25
  %1721 = vperm.xlu0 %1720, %v482
  %v1722 = vpop.permute.xlu0 %1721
  %1724 = vset.pattern.permute.xlu0 25
  %1725 = vperm.xlu0 %1724, %v485
  %v1726 = vpop.permute.xlu0 %1725
  %1728 = vset.pattern.permute.xlu0 25
  %1729 = vperm.xlu0 %1728, %v490
  %v1730 = vpop.permute.xlu0 %1729
  %1732 = vset.pattern.permute.xlu0 25
  %1733 = vperm.xlu0 %1732, %v493
  %v1734 = vpop.permute.xlu0 %1733
  %1736 = vset.pattern.permute.xlu0 25
  %1737 = vperm.xlu0 %1736, %v498
  %v1738 = vpop.permute.xlu0 %1737
  %1740 = vset.pattern.permute.xlu0 25
  %1741 = vperm.xlu0 %1740, %v501
  %v1742 = vpop.permute.xlu0 %1741
  %v1744 = vmul.f32 %v1714, %v72
  %v1745 = vmul.f32 %v1718, %v73
  %v1746 = vmul.f32 %v1722, %v74
  %v1747 = vmul.f32 %v1726, %v75
  %v1748 = vmul.f32 %v1730, %v76
  %v1749 = vmul.f32 %v1734, %v77
  %v1750 = vmul.f32 %v1738, %v78
  %v1751 = vmul.f32 %v1742, %v79
  %v1752 = vadd.f32 %v1704, %v1744
  %v1753 = vadd.f32 %v1705, %v1745
  %v1754 = vadd.f32 %v1706, %v1746
  %v1755 = vadd.f32 %v1707, %v1747
  %v1756 = vadd.f32 %v1708, %v1748
  %v1757 = vadd.f32 %v1709, %v1749
  %v1758 = vadd.f32 %v1710, %v1750
  %v1759 = vadd.f32 %v1711, %v1751
  %1760 = vset.pattern.permute.xlu0 26
  %1761 = vperm.xlu0 %1760, %v474
  %v1762 = vpop.permute.xlu0 %1761
  %1764 = vset.pattern.permute.xlu0 26
  %1765 = vperm.xlu0 %1764, %v477
  %v1766 = vpop.permute.xlu0 %1765
  %1768 = vset.pattern.permute.xlu0 26
  %1769 = vperm.xlu0 %1768, %v482
  %v1770 = vpop.permute.xlu0 %1769
  %1772 = vset.pattern.permute.xlu0 26
  %1773 = vperm.xlu0 %1772, %v485
  %v1774 = vpop.permute.xlu0 %1773
  %1776 = vset.pattern.permute.xlu0 26
  %1777 = vperm.xlu0 %1776, %v490
  %v1778 = vpop.permute.xlu0 %1777
  %1780 = vset.pattern.permute.xlu0 26
  %1781 = vperm.xlu0 %1780, %v493
  %v1782 = vpop.permute.xlu0 %1781
  %1784 = vset.pattern.permute.xlu0 26
  %1785 = vperm.xlu0 %1784, %v498
  %v1786 = vpop.permute.xlu0 %1785
  %1788 = vset.pattern.permute.xlu0 26
  %1789 = vperm.xlu0 %1788, %v501
  %v1790 = vpop.permute.xlu0 %1789
  %v1792 = vmul.f32 %v1762, %v80
  %v1793 = vmul.f32 %v1766, %v81
  %v1794 = vmul.f32 %v1770, %v82
  %v1795 = vmul.f32 %v1774, %v83
  %v1796 = vmul.f32 %v1778, %v84
  %v1797 = vmul.f32 %v1782, %v85
  %v1798 = vmul.f32 %v1786, %v86
  %v1799 = vmul.f32 %v1790, %v87
  %v1800 = vadd.f32 %v1752, %v1792
  %v1801 = vadd.f32 %v1753, %v1793
  %v1802 = vadd.f32 %v1754, %v1794
  %v1803 = vadd.f32 %v1755, %v1795
  %v1804 = vadd.f32 %v1756, %v1796
  %v1805 = vadd.f32 %v1757, %v1797
  %v1806 = vadd.f32 %v1758, %v1798
  %v1807 = vadd.f32 %v1759, %v1799
  %1808 = vset.pattern.permute.xlu0 27
  %1809 = vperm.xlu0 %1808, %v474
  %v1810 = vpop.permute.xlu0 %1809
  %1812 = vset.pattern.permute.xlu0 27
  %1813 = vperm.xlu0 %1812, %v477
  %v1814 = vpop.permute.xlu0 %1813
  %1816 = vset.pattern.permute.xlu0 27
  %1817 = vperm.xlu0 %1816, %v482
  %v1818 = vpop.permute.xlu0 %1817
  %1820 = vset.pattern.permute.xlu0 27
  %1821 = vperm.xlu0 %1820, %v485
  %v1822 = vpop.permute.xlu0 %1821
  %1824 = vset.pattern.permute.xlu0 27
  %1825 = vperm.xlu0 %1824, %v490
  %v1826 = vpop.permute.xlu0 %1825
  %1828 = vset.pattern.permute.xlu0 27
  %1829 = vperm.xlu0 %1828, %v493
  %v1830 = vpop.permute.xlu0 %1829
  %1832 = vset.pattern.permute.xlu0 27
  %1833 = vperm.xlu0 %1832, %v498
  %v1834 = vpop.permute.xlu0 %1833
  %1836 = vset.pattern.permute.xlu0 27
  %1837 = vperm.xlu0 %1836, %v501
  %v1838 = vpop.permute.xlu0 %1837
  %v1840 = vmul.f32 %v1810, %v88
  %v1841 = vmul.f32 %v1814, %v89
  %v1842 = vmul.f32 %v1818, %v90
  %v1843 = vmul.f32 %v1822, %v91
  %v1844 = vmul.f32 %v1826, %v92
  %v1845 = vmul.f32 %v1830, %v93
  %v1846 = vmul.f32 %v1834, %v94
  %v1847 = vmul.f32 %v1838, %v95
  %v1848 = vadd.f32 %v1800, %v1840
  %v1849 = vadd.f32 %v1801, %v1841
  %v1850 = vadd.f32 %v1802, %v1842
  %v1851 = vadd.f32 %v1803, %v1843
  %v1852 = vadd.f32 %v1804, %v1844
  %v1853 = vadd.f32 %v1805, %v1845
  %v1854 = vadd.f32 %v1806, %v1846
  %v1855 = vadd.f32 %v1807, %v1847
  %1856 = vset.pattern.permute.xlu0 28
  %1857 = vperm.xlu0 %1856, %v474
  %v1858 = vpop.permute.xlu0 %1857
  %1860 = vset.pattern.permute.xlu0 28
  %1861 = vperm.xlu0 %1860, %v477
  %v1862 = vpop.permute.xlu0 %1861
  %1864 = vset.pattern.permute.xlu0 28
  %1865 = vperm.xlu0 %1864, %v482
  %v1866 = vpop.permute.xlu0 %1865
  %1868 = vset.pattern.permute.xlu0 28
  %1869 = vperm.xlu0 %1868, %v485
  %v1870 = vpop.permute.xlu0 %1869
  %1872 = vset.pattern.permute.xlu0 28
  %1873 = vperm.xlu0 %1872, %v490
  %v1874 = vpop.permute.xlu0 %1873
  %1876 = vset.pattern.permute.xlu0 28
  %1877 = vperm.xlu0 %1876, %v493
  %v1878 = vpop.permute.xlu0 %1877
  %1880 = vset.pattern.permute.xlu0 28
  %1881 = vperm.xlu0 %1880, %v498
  %v1882 = vpop.permute.xlu0 %1881
  %1884 = vset.pattern.permute.xlu0 28
  %1885 = vperm.xlu0 %1884, %v501
  %v1886 = vpop.permute.xlu0 %1885
  %v1888 = vmul.f32 %v1858, %v96
  %v1889 = vmul.f32 %v1862, %v97
  %v1890 = vmul.f32 %v1866, %v98
  %v1891 = vmul.f32 %v1870, %v99
  %v1892 = vmul.f32 %v1874, %v100
  %v1893 = vmul.f32 %v1878, %v101
  %v1894 = vmul.f32 %v1882, %v102
  %v1895 = vmul.f32 %v1886, %v103
  %v1896 = vadd.f32 %v1848, %v1888
  %v1897 = vadd.f32 %v1849, %v1889
  %v1898 = vadd.f32 %v1850, %v1890
  %v1899 = vadd.f32 %v1851, %v1891
  %v1900 = vadd.f32 %v1852, %v1892
  %v1901 = vadd.f32 %v1853, %v1893
  %v1902 = vadd.f32 %v1854, %v1894
  %v1903 = vadd.f32 %v1855, %v1895
  %1904 = vset.pattern.permute.xlu0 29
  %1905 = vperm.xlu0 %1904, %v474
  %v1906 = vpop.permute.xlu0 %1905
  %1908 = vset.pattern.permute.xlu0 29
  %1909 = vperm.xlu0 %1908, %v477
  %v1910 = vpop.permute.xlu0 %1909
  %1912 = vset.pattern.permute.xlu0 29
  %1913 = vperm.xlu0 %1912, %v482
  %v1914 = vpop.permute.xlu0 %1913
  %1916 = vset.pattern.permute.xlu0 29
  %1917 = vperm.xlu0 %1916, %v485
  %v1918 = vpop.permute.xlu0 %1917
  %1920 = vset.pattern.permute.xlu0 29
  %1921 = vperm.xlu0 %1920, %v490
  %v1922 = vpop.permute.xlu0 %1921
  %1924 = vset.pattern.permute.xlu0 29
  %1925 = vperm.xlu0 %1924, %v493
  %v1926 = vpop.permute.xlu0 %1925
  %1928 = vset.pattern.permute.xlu0 29
  %1929 = vperm.xlu0 %1928, %v498
  %v1930 = vpop.permute.xlu0 %1929
  %1932 = vset.pattern.permute.xlu0 29
  %1933 = vperm.xlu0 %1932, %v501
  %v1934 = vpop.permute.xlu0 %1933
  %v1936 = vmul.f32 %v1906, %v104
  %v1937 = vmul.f32 %v1910, %v105
  %v1938 = vmul.f32 %v1914, %v106
  %v1939 = vmul.f32 %v1918, %v107
  %v1940 = vmul.f32 %v1922, %v108
  %v1941 = vmul.f32 %v1926, %v109
  %v1942 = vmul.f32 %v1930, %v110
  %v1943 = vmul.f32 %v1934, %v111
  %v1944 = vadd.f32 %v1896, %v1936
  %v1945 = vadd.f32 %v1897, %v1937
  %v1946 = vadd.f32 %v1898, %v1938
  %v1947 = vadd.f32 %v1899, %v1939
  %v1948 = vadd.f32 %v1900, %v1940
  %v1949 = vadd.f32 %v1901, %v1941
  %v1950 = vadd.f32 %v1902, %v1942
  %v1951 = vadd.f32 %v1903, %v1943
  %1952 = vset.pattern.permute.xlu0 30
  %1953 = vperm.xlu0 %1952, %v474
  %v1954 = vpop.permute.xlu0 %1953
  %1956 = vset.pattern.permute.xlu0 30
  %1957 = vperm.xlu0 %1956, %v477
  %v1958 = vpop.permute.xlu0 %1957
  %1960 = vset.pattern.permute.xlu0 30
  %1961 = vperm.xlu0 %1960, %v482
  %v1962 = vpop.permute.xlu0 %1961
  %1964 = vset.pattern.permute.xlu0 30
  %1965 = vperm.xlu0 %1964, %v485
  %v1966 = vpop.permute.xlu0 %1965
  %1968 = vset.pattern.permute.xlu0 30
  %1969 = vperm.xlu0 %1968, %v490
  %v1970 = vpop.permute.xlu0 %1969
  %1972 = vset.pattern.permute.xlu0 30
  %1973 = vperm.xlu0 %1972, %v493
  %v1974 = vpop.permute.xlu0 %1973
  %1976 = vset.pattern.permute.xlu0 30
  %1977 = vperm.xlu0 %1976, %v498
  %v1978 = vpop.permute.xlu0 %1977
  %1980 = vset.pattern.permute.xlu0 30
  %1981 = vperm.xlu0 %1980, %v501
  %v1982 = vpop.permute.xlu0 %1981
  %v1984 = vmul.f32 %v1954, %v112
  %v1985 = vmul.f32 %v1958, %v113
  %v1986 = vmul.f32 %v1962, %v114
  %v1987 = vmul.f32 %v1966, %v115
  %v1988 = vmul.f32 %v1970, %v116
  %v1989 = vmul.f32 %v1974, %v117
  %v1990 = vmul.f32 %v1978, %v118
  %v1991 = vmul.f32 %v1982, %v119
  %v1992 = vadd.f32 %v1944, %v1984
  %v1993 = vadd.f32 %v1945, %v1985
  %v1994 = vadd.f32 %v1946, %v1986
  %v1995 = vadd.f32 %v1947, %v1987
  %v1996 = vadd.f32 %v1948, %v1988
  %v1997 = vadd.f32 %v1949, %v1989
  %v1998 = vadd.f32 %v1950, %v1990
  %v1999 = vadd.f32 %v1951, %v1991
  %2000 = vset.pattern.permute.xlu0 31
  %2001 = vperm.xlu0 %2000, %v474
  %v2002 = vpop.permute.xlu0 %2001
  %2004 = vset.pattern.permute.xlu0 31
  %2005 = vperm.xlu0 %2004, %v477
  %v2006 = vpop.permute.xlu0 %2005
  %2008 = vset.pattern.permute.xlu0 31
  %2009 = vperm.xlu0 %2008, %v482
  %v2010 = vpop.permute.xlu0 %2009
  %2012 = vset.pattern.permute.xlu0 31
  %2013 = vperm.xlu0 %2012, %v485
  %v2014 = vpop.permute.xlu0 %2013
  %2016 = vset.pattern.permute.xlu0 31
  %2017 = vperm.xlu0 %2016, %v490
  %v2018 = vpop.permute.xlu0 %2017
  %2020 = vset.pattern.permute.xlu0 31
  %2021 = vperm.xlu0 %2020, %v493
  %v2022 = vpop.permute.xlu0 %2021
  %2024 = vset.pattern.permute.xlu0 31
  %2025 = vperm.xlu0 %2024, %v498
  %v2026 = vpop.permute.xlu0 %2025
  %2028 = vset.pattern.permute.xlu0 31
  %2029 = vperm.xlu0 %2028, %v501
  %v2030 = vpop.permute.xlu0 %2029
  %v2032 = vmul.f32 %v2002, %v120
  %v2033 = vmul.f32 %v2006, %v121
  %v2034 = vmul.f32 %v2010, %v122
  %v2035 = vmul.f32 %v2014, %v123
  %v2036 = vmul.f32 %v2018, %v124
  %v2037 = vmul.f32 %v2022, %v125
  %v2038 = vmul.f32 %v2026, %v126
  %v2039 = vmul.f32 %v2030, %v127
  %v2040 = vadd.f32 %v1992, %v2032
  %v2041 = vadd.f32 %v1993, %v2033
  %v2042 = vadd.f32 %v1994, %v2034
  %v2043 = vadd.f32 %v1995, %v2035
  %v2044 = vadd.f32 %v1996, %v2036
  %v2045 = vadd.f32 %v1997, %v2037
  %v2046 = vadd.f32 %v1998, %v2038
  %v2047 = vadd.f32 %v1999, %v2039
  %2049 = vset.pattern.permute.xlu0 0
  %2050 = vperm.xlu0 %2049, %v506
  %v2051 = vpop.permute.xlu0 %2050
  %2054 = vset.pattern.permute.xlu0 0
  %2055 = vperm.xlu0 %2054, %v509
  %v2056 = vpop.permute.xlu0 %2055
  %2059 = vset.pattern.permute.xlu0 0
  %2060 = vperm.xlu0 %2059, %v514
  %v2061 = vpop.permute.xlu0 %2060
  %2064 = vset.pattern.permute.xlu0 0
  %2065 = vperm.xlu0 %2064, %v517
  %v2066 = vpop.permute.xlu0 %2065
  %2069 = vset.pattern.permute.xlu0 0
  %2070 = vperm.xlu0 %2069, %v522
  %v2071 = vpop.permute.xlu0 %2070
  %2074 = vset.pattern.permute.xlu0 0
  %2075 = vperm.xlu0 %2074, %v525
  %v2076 = vpop.permute.xlu0 %2075
  %2079 = vset.pattern.permute.xlu0 0
  %2080 = vperm.xlu0 %2079, %v530
  %v2081 = vpop.permute.xlu0 %2080
  %2084 = vset.pattern.permute.xlu0 0
  %2085 = vperm.xlu0 %2084, %v533
  %v2086 = vpop.permute.xlu0 %2085
  %v2088 = vmul.f32 %v2051, %v64
  %v2089 = vmul.f32 %v2056, %v65
  %v2090 = vmul.f32 %v2061, %v66
  %v2091 = vmul.f32 %v2066, %v67
  %v2092 = vmul.f32 %v2071, %v68
  %v2093 = vmul.f32 %v2076, %v69
  %v2094 = vmul.f32 %v2081, %v70
  %v2095 = vmul.f32 %v2086, %v71
  %2096 = vset.pattern.permute.xlu0 1
  %2097 = vperm.xlu0 %2096, %v506
  %v2098 = vpop.permute.xlu0 %2097
  %2100 = vset.pattern.permute.xlu0 1
  %2101 = vperm.xlu0 %2100, %v509
  %v2102 = vpop.permute.xlu0 %2101
  %2104 = vset.pattern.permute.xlu0 1
  %2105 = vperm.xlu0 %2104, %v514
  %v2106 = vpop.permute.xlu0 %2105
  %2108 = vset.pattern.permute.xlu0 1
  %2109 = vperm.xlu0 %2108, %v517
  %v2110 = vpop.permute.xlu0 %2109
  %2112 = vset.pattern.permute.xlu0 1
  %2113 = vperm.xlu0 %2112, %v522
  %v2114 = vpop.permute.xlu0 %2113
  %2116 = vset.pattern.permute.xlu0 1
  %2117 = vperm.xlu0 %2116, %v525
  %v2118 = vpop.permute.xlu0 %2117
  %2120 = vset.pattern.permute.xlu0 1
  %2121 = vperm.xlu0 %2120, %v530
  %v2122 = vpop.permute.xlu0 %2121
  %2124 = vset.pattern.permute.xlu0 1
  %2125 = vperm.xlu0 %2124, %v533
  %v2126 = vpop.permute.xlu0 %2125
  %v2128 = vmul.f32 %v2098, %v72
  %v2129 = vmul.f32 %v2102, %v73
  %v2130 = vmul.f32 %v2106, %v74
  %v2131 = vmul.f32 %v2110, %v75
  %v2132 = vmul.f32 %v2114, %v76
  %v2133 = vmul.f32 %v2118, %v77
  %v2134 = vmul.f32 %v2122, %v78
  %v2135 = vmul.f32 %v2126, %v79
  %v2136 = vadd.f32 %v2088, %v2128
  %v2137 = vadd.f32 %v2089, %v2129
  %v2138 = vadd.f32 %v2090, %v2130
  %v2139 = vadd.f32 %v2091, %v2131
  %v2140 = vadd.f32 %v2092, %v2132
  %v2141 = vadd.f32 %v2093, %v2133
  %v2142 = vadd.f32 %v2094, %v2134
  %v2143 = vadd.f32 %v2095, %v2135
  %2144 = vset.pattern.permute.xlu0 2
  %2145 = vperm.xlu0 %2144, %v506
  %v2146 = vpop.permute.xlu0 %2145
  %2148 = vset.pattern.permute.xlu0 2
  %2149 = vperm.xlu0 %2148, %v509
  %v2150 = vpop.permute.xlu0 %2149
  %2152 = vset.pattern.permute.xlu0 2
  %2153 = vperm.xlu0 %2152, %v514
  %v2154 = vpop.permute.xlu0 %2153
  %2156 = vset.pattern.permute.xlu0 2
  %2157 = vperm.xlu0 %2156, %v517
  %v2158 = vpop.permute.xlu0 %2157
  %2160 = vset.pattern.permute.xlu0 2
  %2161 = vperm.xlu0 %2160, %v522
  %v2162 = vpop.permute.xlu0 %2161
  %2164 = vset.pattern.permute.xlu0 2
  %2165 = vperm.xlu0 %2164, %v525
  %v2166 = vpop.permute.xlu0 %2165
  %2168 = vset.pattern.permute.xlu0 2
  %2169 = vperm.xlu0 %2168, %v530
  %v2170 = vpop.permute.xlu0 %2169
  %2172 = vset.pattern.permute.xlu0 2
  %2173 = vperm.xlu0 %2172, %v533
  %v2174 = vpop.permute.xlu0 %2173
  %v2176 = vmul.f32 %v2146, %v80
  %v2177 = vmul.f32 %v2150, %v81
  %v2178 = vmul.f32 %v2154, %v82
  %v2179 = vmul.f32 %v2158, %v83
  %v2180 = vmul.f32 %v2162, %v84
  %v2181 = vmul.f32 %v2166, %v85
  %v2182 = vmul.f32 %v2170, %v86
  %v2183 = vmul.f32 %v2174, %v87
  %v2184 = vadd.f32 %v2136, %v2176
  %v2185 = vadd.f32 %v2137, %v2177
  %v2186 = vadd.f32 %v2138, %v2178
  %v2187 = vadd.f32 %v2139, %v2179
  %v2188 = vadd.f32 %v2140, %v2180
  %v2189 = vadd.f32 %v2141, %v2181
  %v2190 = vadd.f32 %v2142, %v2182
  %v2191 = vadd.f32 %v2143, %v2183
  %2192 = vset.pattern.permute.xlu0 3
  %2193 = vperm.xlu0 %2192, %v506
  %v2194 = vpop.permute.xlu0 %2193
  %2196 = vset.pattern.permute.xlu0 3
  %2197 = vperm.xlu0 %2196, %v509
  %v2198 = vpop.permute.xlu0 %2197
  %2200 = vset.pattern.permute.xlu0 3
  %2201 = vperm.xlu0 %2200, %v514
  %v2202 = vpop.permute.xlu0 %2201
  %2204 = vset.pattern.permute.xlu0 3
  %2205 = vperm.xlu0 %2204, %v517
  %v2206 = vpop.permute.xlu0 %2205
  %2208 = vset.pattern.permute.xlu0 3
  %2209 = vperm.xlu0 %2208, %v522
  %v2210 = vpop.permute.xlu0 %2209
  %2212 = vset.pattern.permute.xlu0 3
  %2213 = vperm.xlu0 %2212, %v525
  %v2214 = vpop.permute.xlu0 %2213
  %2216 = vset.pattern.permute.xlu0 3
  %2217 = vperm.xlu0 %2216, %v530
  %v2218 = vpop.permute.xlu0 %2217
  %2220 = vset.pattern.permute.xlu0 3
  %2221 = vperm.xlu0 %2220, %v533
  %v2222 = vpop.permute.xlu0 %2221
  %v2224 = vmul.f32 %v2194, %v88
  %v2225 = vmul.f32 %v2198, %v89
  %v2226 = vmul.f32 %v2202, %v90
  %v2227 = vmul.f32 %v2206, %v91
  %v2228 = vmul.f32 %v2210, %v92
  %v2229 = vmul.f32 %v2214, %v93
  %v2230 = vmul.f32 %v2218, %v94
  %v2231 = vmul.f32 %v2222, %v95
  %v2232 = vadd.f32 %v2184, %v2224
  %v2233 = vadd.f32 %v2185, %v2225
  %v2234 = vadd.f32 %v2186, %v2226
  %v2235 = vadd.f32 %v2187, %v2227
  %v2236 = vadd.f32 %v2188, %v2228
  %v2237 = vadd.f32 %v2189, %v2229
  %v2238 = vadd.f32 %v2190, %v2230
  %v2239 = vadd.f32 %v2191, %v2231
  %2240 = vset.pattern.permute.xlu0 4
  %2241 = vperm.xlu0 %2240, %v506
  %v2242 = vpop.permute.xlu0 %2241
  %2244 = vset.pattern.permute.xlu0 4
  %2245 = vperm.xlu0 %2244, %v509
  %v2246 = vpop.permute.xlu0 %2245
  %2248 = vset.pattern.permute.xlu0 4
  %2249 = vperm.xlu0 %2248, %v514
  %v2250 = vpop.permute.xlu0 %2249
  %2252 = vset.pattern.permute.xlu0 4
  %2253 = vperm.xlu0 %2252, %v517
  %v2254 = vpop.permute.xlu0 %2253
  %2256 = vset.pattern.permute.xlu0 4
  %2257 = vperm.xlu0 %2256, %v522
  %v2258 = vpop.permute.xlu0 %2257
  %2260 = vset.pattern.permute.xlu0 4
  %2261 = vperm.xlu0 %2260, %v525
  %v2262 = vpop.permute.xlu0 %2261
  %2264 = vset.pattern.permute.xlu0 4
  %2265 = vperm.xlu0 %2264, %v530
  %v2266 = vpop.permute.xlu0 %2265
  %2268 = vset.pattern.permute.xlu0 4
  %2269 = vperm.xlu0 %2268, %v533
  %v2270 = vpop.permute.xlu0 %2269
  %v2272 = vmul.f32 %v2242, %v96
  %v2273 = vmul.f32 %v2246, %v97
  %v2274 = vmul.f32 %v2250, %v98
  %v2275 = vmul.f32 %v2254, %v99
  %v2276 = vmul.f32 %v2258, %v100
  %v2277 = vmul.f32 %v2262, %v101
  %v2278 = vmul.f32 %v2266, %v102
  %v2279 = vmul.f32 %v2270, %v103
  %v2280 = vadd.f32 %v2232, %v2272
  %v2281 = vadd.f32 %v2233, %v2273
  %v2282 = vadd.f32 %v2234, %v2274
  %v2283 = vadd.f32 %v2235, %v2275
  %v2284 = vadd.f32 %v2236, %v2276
  %v2285 = vadd.f32 %v2237, %v2277
  %v2286 = vadd.f32 %v2238, %v2278
  %v2287 = vadd.f32 %v2239, %v2279
  %2288 = vset.pattern.permute.xlu0 5
  %2289 = vperm.xlu0 %2288, %v506
  %v2290 = vpop.permute.xlu0 %2289
  %2292 = vset.pattern.permute.xlu0 5
  %2293 = vperm.xlu0 %2292, %v509
  %v2294 = vpop.permute.xlu0 %2293
  %2296 = vset.pattern.permute.xlu0 5
  %2297 = vperm.xlu0 %2296, %v514
  %v2298 = vpop.permute.xlu0 %2297
  %2300 = vset.pattern.permute.xlu0 5
  %2301 = vperm.xlu0 %2300, %v517
  %v2302 = vpop.permute.xlu0 %2301
  %2304 = vset.pattern.permute.xlu0 5
  %2305 = vperm.xlu0 %2304, %v522
  %v2306 = vpop.permute.xlu0 %2305
  %2308 = vset.pattern.permute.xlu0 5
  %2309 = vperm.xlu0 %2308, %v525
  %v2310 = vpop.permute.xlu0 %2309
  %2312 = vset.pattern.permute.xlu0 5
  %2313 = vperm.xlu0 %2312, %v530
  %v2314 = vpop.permute.xlu0 %2313
  %2316 = vset.pattern.permute.xlu0 5
  %2317 = vperm.xlu0 %2316, %v533
  %v2318 = vpop.permute.xlu0 %2317
  %v2320 = vmul.f32 %v2290, %v104
  %v2321 = vmul.f32 %v2294, %v105
  %v2322 = vmul.f32 %v2298, %v106
  %v2323 = vmul.f32 %v2302, %v107
  %v2324 = vmul.f32 %v2306, %v108
  %v2325 = vmul.f32 %v2310, %v109
  %v2326 = vmul.f32 %v2314, %v110
  %v2327 = vmul.f32 %v2318, %v111
  %v2328 = vadd.f32 %v2280, %v2320
  %v2329 = vadd.f32 %v2281, %v2321
  %v2330 = vadd.f32 %v2282, %v2322
  %v2331 = vadd.f32 %v2283, %v2323
  %v2332 = vadd.f32 %v2284, %v2324
  %v2333 = vadd.f32 %v2285, %v2325
  %v2334 = vadd.f32 %v2286, %v2326
  %v2335 = vadd.f32 %v2287, %v2327
  %2336 = vset.pattern.permute.xlu0 6
  %2337 = vperm.xlu0 %2336, %v506
  %v2338 = vpop.permute.xlu0 %2337
  %2340 = vset.pattern.permute.xlu0 6
  %2341 = vperm.xlu0 %2340, %v509
  %v2342 = vpop.permute.xlu0 %2341
  %2344 = vset.pattern.permute.xlu0 6
  %2345 = vperm.xlu0 %2344, %v514
  %v2346 = vpop.permute.xlu0 %2345
  %2348 = vset.pattern.permute.xlu0 6
  %2349 = vperm.xlu0 %2348, %v517
  %v2350 = vpop.permute.xlu0 %2349
  %2352 = vset.pattern.permute.xlu0 6
  %2353 = vperm.xlu0 %2352, %v522
  %v2354 = vpop.permute.xlu0 %2353
  %2356 = vset.pattern.permute.xlu0 6
  %2357 = vperm.xlu0 %2356, %v525
  %v2358 = vpop.permute.xlu0 %2357
  %2360 = vset.pattern.permute.xlu0 6
  %2361 = vperm.xlu0 %2360, %v530
  %v2362 = vpop.permute.xlu0 %2361
  %2364 = vset.pattern.permute.xlu0 6
  %2365 = vperm.xlu0 %2364, %v533
  %v2366 = vpop.permute.xlu0 %2365
  %v2368 = vmul.f32 %v2338, %v112
  %v2369 = vmul.f32 %v2342, %v113
  %v2370 = vmul.f32 %v2346, %v114
  %v2371 = vmul.f32 %v2350, %v115
  %v2372 = vmul.f32 %v2354, %v116
  %v2373 = vmul.f32 %v2358, %v117
  %v2374 = vmul.f32 %v2362, %v118
  %v2375 = vmul.f32 %v2366, %v119
  %v2376 = vadd.f32 %v2328, %v2368
  %v2377 = vadd.f32 %v2329, %v2369
  %v2378 = vadd.f32 %v2330, %v2370
  %v2379 = vadd.f32 %v2331, %v2371
  %v2380 = vadd.f32 %v2332, %v2372
  %v2381 = vadd.f32 %v2333, %v2373
  %v2382 = vadd.f32 %v2334, %v2374
  %v2383 = vadd.f32 %v2335, %v2375
  %2384 = vset.pattern.permute.xlu0 7
  %2385 = vperm.xlu0 %2384, %v506
  %v2386 = vpop.permute.xlu0 %2385
  %2388 = vset.pattern.permute.xlu0 7
  %2389 = vperm.xlu0 %2388, %v509
  %v2390 = vpop.permute.xlu0 %2389
  %2392 = vset.pattern.permute.xlu0 7
  %2393 = vperm.xlu0 %2392, %v514
  %v2394 = vpop.permute.xlu0 %2393
  %2396 = vset.pattern.permute.xlu0 7
  %2397 = vperm.xlu0 %2396, %v517
  %v2398 = vpop.permute.xlu0 %2397
  %2400 = vset.pattern.permute.xlu0 7
  %2401 = vperm.xlu0 %2400, %v522
  %v2402 = vpop.permute.xlu0 %2401
  %2404 = vset.pattern.permute.xlu0 7
  %2405 = vperm.xlu0 %2404, %v525
  %v2406 = vpop.permute.xlu0 %2405
  %2408 = vset.pattern.permute.xlu0 7
  %2409 = vperm.xlu0 %2408, %v530
  %v2410 = vpop.permute.xlu0 %2409
  %2412 = vset.pattern.permute.xlu0 7
  %2413 = vperm.xlu0 %2412, %v533
  %v2414 = vpop.permute.xlu0 %2413
  %v2416 = vmul.f32 %v2386, %v120
  %v2417 = vmul.f32 %v2390, %v121
  %v2418 = vmul.f32 %v2394, %v122
  %v2419 = vmul.f32 %v2398, %v123
  %v2420 = vmul.f32 %v2402, %v124
  %v2421 = vmul.f32 %v2406, %v125
  %v2422 = vmul.f32 %v2410, %v126
  %v2423 = vmul.f32 %v2414, %v127
  %v2424 = vadd.f32 %v2376, %v2416
  %v2425 = vadd.f32 %v2377, %v2417
  %v2426 = vadd.f32 %v2378, %v2418
  %v2427 = vadd.f32 %v2379, %v2419
  %v2428 = vadd.f32 %v2380, %v2420
  %v2429 = vadd.f32 %v2381, %v2421
  %v2430 = vadd.f32 %v2382, %v2422
  %v2431 = vadd.f32 %v2383, %v2423
  %2432 = vset.pattern.permute.xlu0 8
  %2433 = vperm.xlu0 %2432, %v506
  %v2434 = vpop.permute.xlu0 %2433
  %2436 = vset.pattern.permute.xlu0 8
  %2437 = vperm.xlu0 %2436, %v509
  %v2438 = vpop.permute.xlu0 %2437
  %2440 = vset.pattern.permute.xlu0 8
  %2441 = vperm.xlu0 %2440, %v514
  %v2442 = vpop.permute.xlu0 %2441
  %2444 = vset.pattern.permute.xlu0 8
  %2445 = vperm.xlu0 %2444, %v517
  %v2446 = vpop.permute.xlu0 %2445
  %2448 = vset.pattern.permute.xlu0 8
  %2449 = vperm.xlu0 %2448, %v522
  %v2450 = vpop.permute.xlu0 %2449
  %2452 = vset.pattern.permute.xlu0 8
  %2453 = vperm.xlu0 %2452, %v525
  %v2454 = vpop.permute.xlu0 %2453
  %2456 = vset.pattern.permute.xlu0 8
  %2457 = vperm.xlu0 %2456, %v530
  %v2458 = vpop.permute.xlu0 %2457
  %2460 = vset.pattern.permute.xlu0 8
  %2461 = vperm.xlu0 %2460, %v533
  %v2462 = vpop.permute.xlu0 %2461
  %v2464 = vmul.f32 %v2434, %v64
  %v2465 = vmul.f32 %v2438, %v65
  %v2466 = vmul.f32 %v2442, %v66
  %v2467 = vmul.f32 %v2446, %v67
  %v2468 = vmul.f32 %v2450, %v68
  %v2469 = vmul.f32 %v2454, %v69
  %v2470 = vmul.f32 %v2458, %v70
  %v2471 = vmul.f32 %v2462, %v71
  %2472 = vset.pattern.permute.xlu0 9
  %2473 = vperm.xlu0 %2472, %v506
  %v2474 = vpop.permute.xlu0 %2473
  %2476 = vset.pattern.permute.xlu0 9
  %2477 = vperm.xlu0 %2476, %v509
  %v2478 = vpop.permute.xlu0 %2477
  %2480 = vset.pattern.permute.xlu0 9
  %2481 = vperm.xlu0 %2480, %v514
  %v2482 = vpop.permute.xlu0 %2481
  %2484 = vset.pattern.permute.xlu0 9
  %2485 = vperm.xlu0 %2484, %v517
  %v2486 = vpop.permute.xlu0 %2485
  %2488 = vset.pattern.permute.xlu0 9
  %2489 = vperm.xlu0 %2488, %v522
  %v2490 = vpop.permute.xlu0 %2489
  %2492 = vset.pattern.permute.xlu0 9
  %2493 = vperm.xlu0 %2492, %v525
  %v2494 = vpop.permute.xlu0 %2493
  %2496 = vset.pattern.permute.xlu0 9
  %2497 = vperm.xlu0 %2496, %v530
  %v2498 = vpop.permute.xlu0 %2497
  %2500 = vset.pattern.permute.xlu0 9
  %2501 = vperm.xlu0 %2500, %v533
  %v2502 = vpop.permute.xlu0 %2501
  %v2504 = vmul.f32 %v2474, %v72
  %v2505 = vmul.f32 %v2478, %v73
  %v2506 = vmul.f32 %v2482, %v74
  %v2507 = vmul.f32 %v2486, %v75
  %v2508 = vmul.f32 %v2490, %v76
  %v2509 = vmul.f32 %v2494, %v77
  %v2510 = vmul.f32 %v2498, %v78
  %v2511 = vmul.f32 %v2502, %v79
  %v2512 = vadd.f32 %v2464, %v2504
  %v2513 = vadd.f32 %v2465, %v2505
  %v2514 = vadd.f32 %v2466, %v2506
  %v2515 = vadd.f32 %v2467, %v2507
  %v2516 = vadd.f32 %v2468, %v2508
  %v2517 = vadd.f32 %v2469, %v2509
  %v2518 = vadd.f32 %v2470, %v2510
  %v2519 = vadd.f32 %v2471, %v2511
  %2520 = vset.pattern.permute.xlu0 10
  %2521 = vperm.xlu0 %2520, %v506
  %v2522 = vpop.permute.xlu0 %2521
  %2524 = vset.pattern.permute.xlu0 10
  %2525 = vperm.xlu0 %2524, %v509
  %v2526 = vpop.permute.xlu0 %2525
  %2528 = vset.pattern.permute.xlu0 10
  %2529 = vperm.xlu0 %2528, %v514
  %v2530 = vpop.permute.xlu0 %2529
  %2532 = vset.pattern.permute.xlu0 10
  %2533 = vperm.xlu0 %2532, %v517
  %v2534 = vpop.permute.xlu0 %2533
  %2536 = vset.pattern.permute.xlu0 10
  %2537 = vperm.xlu0 %2536, %v522
  %v2538 = vpop.permute.xlu0 %2537
  %2540 = vset.pattern.permute.xlu0 10
  %2541 = vperm.xlu0 %2540, %v525
  %v2542 = vpop.permute.xlu0 %2541
  %2544 = vset.pattern.permute.xlu0 10
  %2545 = vperm.xlu0 %2544, %v530
  %v2546 = vpop.permute.xlu0 %2545
  %2548 = vset.pattern.permute.xlu0 10
  %2549 = vperm.xlu0 %2548, %v533
  %v2550 = vpop.permute.xlu0 %2549
  %v2552 = vmul.f32 %v2522, %v80
  %v2553 = vmul.f32 %v2526, %v81
  %v2554 = vmul.f32 %v2530, %v82
  %v2555 = vmul.f32 %v2534, %v83
  %v2556 = vmul.f32 %v2538, %v84
  %v2557 = vmul.f32 %v2542, %v85
  %v2558 = vmul.f32 %v2546, %v86
  %v2559 = vmul.f32 %v2550, %v87
  %v2560 = vadd.f32 %v2512, %v2552
  %v2561 = vadd.f32 %v2513, %v2553
  %v2562 = vadd.f32 %v2514, %v2554
  %v2563 = vadd.f32 %v2515, %v2555
  %v2564 = vadd.f32 %v2516, %v2556
  %v2565 = vadd.f32 %v2517, %v2557
  %v2566 = vadd.f32 %v2518, %v2558
  %v2567 = vadd.f32 %v2519, %v2559
  %2568 = vset.pattern.permute.xlu0 11
  %2569 = vperm.xlu0 %2568, %v506
  %v2570 = vpop.permute.xlu0 %2569
  %2572 = vset.pattern.permute.xlu0 11
  %2573 = vperm.xlu0 %2572, %v509
  %v2574 = vpop.permute.xlu0 %2573
  %2576 = vset.pattern.permute.xlu0 11
  %2577 = vperm.xlu0 %2576, %v514
  %v2578 = vpop.permute.xlu0 %2577
  %2580 = vset.pattern.permute.xlu0 11
  %2581 = vperm.xlu0 %2580, %v517
  %v2582 = vpop.permute.xlu0 %2581
  %2584 = vset.pattern.permute.xlu0 11
  %2585 = vperm.xlu0 %2584, %v522
  %v2586 = vpop.permute.xlu0 %2585
  %2588 = vset.pattern.permute.xlu0 11
  %2589 = vperm.xlu0 %2588, %v525
  %v2590 = vpop.permute.xlu0 %2589
  %2592 = vset.pattern.permute.xlu0 11
  %2593 = vperm.xlu0 %2592, %v530
  %v2594 = vpop.permute.xlu0 %2593
  %2596 = vset.pattern.permute.xlu0 11
  %2597 = vperm.xlu0 %2596, %v533
  %v2598 = vpop.permute.xlu0 %2597
  %v2600 = vmul.f32 %v2570, %v88
  %v2601 = vmul.f32 %v2574, %v89
  %v2602 = vmul.f32 %v2578, %v90
  %v2603 = vmul.f32 %v2582, %v91
  %v2604 = vmul.f32 %v2586, %v92
  %v2605 = vmul.f32 %v2590, %v93
  %v2606 = vmul.f32 %v2594, %v94
  %v2607 = vmul.f32 %v2598, %v95
  %v2608 = vadd.f32 %v2560, %v2600
  %v2609 = vadd.f32 %v2561, %v2601
  %v2610 = vadd.f32 %v2562, %v2602
  %v2611 = vadd.f32 %v2563, %v2603
  %v2612 = vadd.f32 %v2564, %v2604
  %v2613 = vadd.f32 %v2565, %v2605
  %v2614 = vadd.f32 %v2566, %v2606
  %v2615 = vadd.f32 %v2567, %v2607
  %2616 = vset.pattern.permute.xlu0 12
  %2617 = vperm.xlu0 %2616, %v506
  %v2618 = vpop.permute.xlu0 %2617
  %2620 = vset.pattern.permute.xlu0 12
  %2621 = vperm.xlu0 %2620, %v509
  %v2622 = vpop.permute.xlu0 %2621
  %2624 = vset.pattern.permute.xlu0 12
  %2625 = vperm.xlu0 %2624, %v514
  %v2626 = vpop.permute.xlu0 %2625
  %2628 = vset.pattern.permute.xlu0 12
  %2629 = vperm.xlu0 %2628, %v517
  %v2630 = vpop.permute.xlu0 %2629
  %2632 = vset.pattern.permute.xlu0 12
  %2633 = vperm.xlu0 %2632, %v522
  %v2634 = vpop.permute.xlu0 %2633
  %2636 = vset.pattern.permute.xlu0 12
  %2637 = vperm.xlu0 %2636, %v525
  %v2638 = vpop.permute.xlu0 %2637
  %2640 = vset.pattern.permute.xlu0 12
  %2641 = vperm.xlu0 %2640, %v530
  %v2642 = vpop.permute.xlu0 %2641
  %2644 = vset.pattern.permute.xlu0 12
  %2645 = vperm.xlu0 %2644, %v533
  %v2646 = vpop.permute.xlu0 %2645
  %v2648 = vmul.f32 %v2618, %v96
  %v2649 = vmul.f32 %v2622, %v97
  %v2650 = vmul.f32 %v2626, %v98
  %v2651 = vmul.f32 %v2630, %v99
  %v2652 = vmul.f32 %v2634, %v100
  %v2653 = vmul.f32 %v2638, %v101
  %v2654 = vmul.f32 %v2642, %v102
  %v2655 = vmul.f32 %v2646, %v103
  %v2656 = vadd.f32 %v2608, %v2648
  %v2657 = vadd.f32 %v2609, %v2649
  %v2658 = vadd.f32 %v2610, %v2650
  %v2659 = vadd.f32 %v2611, %v2651
  %v2660 = vadd.f32 %v2612, %v2652
  %v2661 = vadd.f32 %v2613, %v2653
  %v2662 = vadd.f32 %v2614, %v2654
  %v2663 = vadd.f32 %v2615, %v2655
  %2664 = vset.pattern.permute.xlu0 13
  %2665 = vperm.xlu0 %2664, %v506
  %v2666 = vpop.permute.xlu0 %2665
  %2668 = vset.pattern.permute.xlu0 13
  %2669 = vperm.xlu0 %2668, %v509
  %v2670 = vpop.permute.xlu0 %2669
  %2672 = vset.pattern.permute.xlu0 13
  %2673 = vperm.xlu0 %2672, %v514
  %v2674 = vpop.permute.xlu0 %2673
  %2676 = vset.pattern.permute.xlu0 13
  %2677 = vperm.xlu0 %2676, %v517
  %v2678 = vpop.permute.xlu0 %2677
  %2680 = vset.pattern.permute.xlu0 13
  %2681 = vperm.xlu0 %2680, %v522
  %v2682 = vpop.permute.xlu0 %2681
  %2684 = vset.pattern.permute.xlu0 13
  %2685 = vperm.xlu0 %2684, %v525
  %v2686 = vpop.permute.xlu0 %2685
  %2688 = vset.pattern.permute.xlu0 13
  %2689 = vperm.xlu0 %2688, %v530
  %v2690 = vpop.permute.xlu0 %2689
  %2692 = vset.pattern.permute.xlu0 13
  %2693 = vperm.xlu0 %2692, %v533
  %v2694 = vpop.permute.xlu0 %2693
  %v2696 = vmul.f32 %v2666, %v104
  %v2697 = vmul.f32 %v2670, %v105
  %v2698 = vmul.f32 %v2674, %v106
  %v2699 = vmul.f32 %v2678, %v107
  %v2700 = vmul.f32 %v2682, %v108
  %v2701 = vmul.f32 %v2686, %v109
  %v2702 = vmul.f32 %v2690, %v110
  %v2703 = vmul.f32 %v2694, %v111
  %v2704 = vadd.f32 %v2656, %v2696
  %v2705 = vadd.f32 %v2657, %v2697
  %v2706 = vadd.f32 %v2658, %v2698
  %v2707 = vadd.f32 %v2659, %v2699
  %v2708 = vadd.f32 %v2660, %v2700
  %v2709 = vadd.f32 %v2661, %v2701
  %v2710 = vadd.f32 %v2662, %v2702
  %v2711 = vadd.f32 %v2663, %v2703
  %2712 = vset.pattern.permute.xlu0 14
  %2713 = vperm.xlu0 %2712, %v506
  %v2714 = vpop.permute.xlu0 %2713
  %2716 = vset.pattern.permute.xlu0 14
  %2717 = vperm.xlu0 %2716, %v509
  %v2718 = vpop.permute.xlu0 %2717
  %2720 = vset.pattern.permute.xlu0 14
  %2721 = vperm.xlu0 %2720, %v514
  %v2722 = vpop.permute.xlu0 %2721
  %2724 = vset.pattern.permute.xlu0 14
  %2725 = vperm.xlu0 %2724, %v517
  %v2726 = vpop.permute.xlu0 %2725
  %2728 = vset.pattern.permute.xlu0 14
  %2729 = vperm.xlu0 %2728, %v522
  %v2730 = vpop.permute.xlu0 %2729
  %2732 = vset.pattern.permute.xlu0 14
  %2733 = vperm.xlu0 %2732, %v525
  %v2734 = vpop.permute.xlu0 %2733
  %2736 = vset.pattern.permute.xlu0 14
  %2737 = vperm.xlu0 %2736, %v530
  %v2738 = vpop.permute.xlu0 %2737
  %2740 = vset.pattern.permute.xlu0 14
  %2741 = vperm.xlu0 %2740, %v533
  %v2742 = vpop.permute.xlu0 %2741
  %v2744 = vmul.f32 %v2714, %v112
  %v2745 = vmul.f32 %v2718, %v113
  %v2746 = vmul.f32 %v2722, %v114
  %v2747 = vmul.f32 %v2726, %v115
  %v2748 = vmul.f32 %v2730, %v116
  %v2749 = vmul.f32 %v2734, %v117
  %v2750 = vmul.f32 %v2738, %v118
  %v2751 = vmul.f32 %v2742, %v119
  %v2752 = vadd.f32 %v2704, %v2744
  %v2753 = vadd.f32 %v2705, %v2745
  %v2754 = vadd.f32 %v2706, %v2746
  %v2755 = vadd.f32 %v2707, %v2747
  %v2756 = vadd.f32 %v2708, %v2748
  %v2757 = vadd.f32 %v2709, %v2749
  %v2758 = vadd.f32 %v2710, %v2750
  %v2759 = vadd.f32 %v2711, %v2751
  %2760 = vset.pattern.permute.xlu0 15
  %2761 = vperm.xlu0 %2760, %v506
  %v2762 = vpop.permute.xlu0 %2761
  %2764 = vset.pattern.permute.xlu0 15
  %2765 = vperm.xlu0 %2764, %v509
  %v2766 = vpop.permute.xlu0 %2765
  %2768 = vset.pattern.permute.xlu0 15
  %2769 = vperm.xlu0 %2768, %v514
  %v2770 = vpop.permute.xlu0 %2769
  %2772 = vset.pattern.permute.xlu0 15
  %2773 = vperm.xlu0 %2772, %v517
  %v2774 = vpop.permute.xlu0 %2773
  %2776 = vset.pattern.permute.xlu0 15
  %2777 = vperm.xlu0 %2776, %v522
  %v2778 = vpop.permute.xlu0 %2777
  %2780 = vset.pattern.permute.xlu0 15
  %2781 = vperm.xlu0 %2780, %v525
  %v2782 = vpop.permute.xlu0 %2781
  %2784 = vset.pattern.permute.xlu0 15
  %2785 = vperm.xlu0 %2784, %v530
  %v2786 = vpop.permute.xlu0 %2785
  %2788 = vset.pattern.permute.xlu0 15
  %2789 = vperm.xlu0 %2788, %v533
  %v2790 = vpop.permute.xlu0 %2789
  %v2792 = vmul.f32 %v2762, %v120
  %v2793 = vmul.f32 %v2766, %v121
  %v2794 = vmul.f32 %v2770, %v122
  %v2795 = vmul.f32 %v2774, %v123
  %v2796 = vmul.f32 %v2778, %v124
  %v2797 = vmul.f32 %v2782, %v125
  %v2798 = vmul.f32 %v2786, %v126
  %v2799 = vmul.f32 %v2790, %v127
  %v2800 = vadd.f32 %v2752, %v2792
  %v2801 = vadd.f32 %v2753, %v2793
  %v2802 = vadd.f32 %v2754, %v2794
  %v2803 = vadd.f32 %v2755, %v2795
  %v2804 = vadd.f32 %v2756, %v2796
  %v2805 = vadd.f32 %v2757, %v2797
  %v2806 = vadd.f32 %v2758, %v2798
  %v2807 = vadd.f32 %v2759, %v2799
  %2808 = vset.pattern.permute.xlu0 16
  %2809 = vperm.xlu0 %2808, %v506
  %v2810 = vpop.permute.xlu0 %2809
  %2812 = vset.pattern.permute.xlu0 16
  %2813 = vperm.xlu0 %2812, %v509
  %v2814 = vpop.permute.xlu0 %2813
  %2816 = vset.pattern.permute.xlu0 16
  %2817 = vperm.xlu0 %2816, %v514
  %v2818 = vpop.permute.xlu0 %2817
  %2820 = vset.pattern.permute.xlu0 16
  %2821 = vperm.xlu0 %2820, %v517
  %v2822 = vpop.permute.xlu0 %2821
  %2824 = vset.pattern.permute.xlu0 16
  %2825 = vperm.xlu0 %2824, %v522
  %v2826 = vpop.permute.xlu0 %2825
  %2828 = vset.pattern.permute.xlu0 16
  %2829 = vperm.xlu0 %2828, %v525
  %v2830 = vpop.permute.xlu0 %2829
  %2832 = vset.pattern.permute.xlu0 16
  %2833 = vperm.xlu0 %2832, %v530
  %v2834 = vpop.permute.xlu0 %2833
  %2836 = vset.pattern.permute.xlu0 16
  %2837 = vperm.xlu0 %2836, %v533
  %v2838 = vpop.permute.xlu0 %2837
  %v2840 = vmul.f32 %v2810, %v64
  %v2841 = vmul.f32 %v2814, %v65
  %v2842 = vmul.f32 %v2818, %v66
  %v2843 = vmul.f32 %v2822, %v67
  %v2844 = vmul.f32 %v2826, %v68
  %v2845 = vmul.f32 %v2830, %v69
  %v2846 = vmul.f32 %v2834, %v70
  %v2847 = vmul.f32 %v2838, %v71
  %2848 = vset.pattern.permute.xlu0 17
  %2849 = vperm.xlu0 %2848, %v506
  %v2850 = vpop.permute.xlu0 %2849
  %2852 = vset.pattern.permute.xlu0 17
  %2853 = vperm.xlu0 %2852, %v509
  %v2854 = vpop.permute.xlu0 %2853
  %2856 = vset.pattern.permute.xlu0 17
  %2857 = vperm.xlu0 %2856, %v514
  %v2858 = vpop.permute.xlu0 %2857
  %2860 = vset.pattern.permute.xlu0 17
  %2861 = vperm.xlu0 %2860, %v517
  %v2862 = vpop.permute.xlu0 %2861
  %2864 = vset.pattern.permute.xlu0 17
  %2865 = vperm.xlu0 %2864, %v522
  %v2866 = vpop.permute.xlu0 %2865
  %2868 = vset.pattern.permute.xlu0 17
  %2869 = vperm.xlu0 %2868, %v525
  %v2870 = vpop.permute.xlu0 %2869
  %2872 = vset.pattern.permute.xlu0 17
  %2873 = vperm.xlu0 %2872, %v530
  %v2874 = vpop.permute.xlu0 %2873
  %2876 = vset.pattern.permute.xlu0 17
  %2877 = vperm.xlu0 %2876, %v533
  %v2878 = vpop.permute.xlu0 %2877
  %v2880 = vmul.f32 %v2850, %v72
  %v2881 = vmul.f32 %v2854, %v73
  %v2882 = vmul.f32 %v2858, %v74
  %v2883 = vmul.f32 %v2862, %v75
  %v2884 = vmul.f32 %v2866, %v76
  %v2885 = vmul.f32 %v2870, %v77
  %v2886 = vmul.f32 %v2874, %v78
  %v2887 = vmul.f32 %v2878, %v79
  %v2888 = vadd.f32 %v2840, %v2880
  %v2889 = vadd.f32 %v2841, %v2881
  %v2890 = vadd.f32 %v2842, %v2882
  %v2891 = vadd.f32 %v2843, %v2883
  %v2892 = vadd.f32 %v2844, %v2884
  %v2893 = vadd.f32 %v2845, %v2885
  %v2894 = vadd.f32 %v2846, %v2886
  %v2895 = vadd.f32 %v2847, %v2887
  %2896 = vset.pattern.permute.xlu0 18
  %2897 = vperm.xlu0 %2896, %v506
  %v2898 = vpop.permute.xlu0 %2897
  %2900 = vset.pattern.permute.xlu0 18
  %2901 = vperm.xlu0 %2900, %v509
  %v2902 = vpop.permute.xlu0 %2901
  %2904 = vset.pattern.permute.xlu0 18
  %2905 = vperm.xlu0 %2904, %v514
  %v2906 = vpop.permute.xlu0 %2905
  %2908 = vset.pattern.permute.xlu0 18
  %2909 = vperm.xlu0 %2908, %v517
  %v2910 = vpop.permute.xlu0 %2909
  %2912 = vset.pattern.permute.xlu0 18
  %2913 = vperm.xlu0 %2912, %v522
  %v2914 = vpop.permute.xlu0 %2913
  %2916 = vset.pattern.permute.xlu0 18
  %2917 = vperm.xlu0 %2916, %v525
  %v2918 = vpop.permute.xlu0 %2917
  %2920 = vset.pattern.permute.xlu0 18
  %2921 = vperm.xlu0 %2920, %v530
  %v2922 = vpop.permute.xlu0 %2921
  %2924 = vset.pattern.permute.xlu0 18
  %2925 = vperm.xlu0 %2924, %v533
  %v2926 = vpop.permute.xlu0 %2925
  %v2928 = vmul.f32 %v2898, %v80
  %v2929 = vmul.f32 %v2902, %v81
  %v2930 = vmul.f32 %v2906, %v82
  %v2931 = vmul.f32 %v2910, %v83
  %v2932 = vmul.f32 %v2914, %v84
  %v2933 = vmul.f32 %v2918, %v85
  %v2934 = vmul.f32 %v2922, %v86
  %v2935 = vmul.f32 %v2926, %v87
  %v2936 = vadd.f32 %v2888, %v2928
  %v2937 = vadd.f32 %v2889, %v2929
  %v2938 = vadd.f32 %v2890, %v2930
  %v2939 = vadd.f32 %v2891, %v2931
  %v2940 = vadd.f32 %v2892, %v2932
  %v2941 = vadd.f32 %v2893, %v2933
  %v2942 = vadd.f32 %v2894, %v2934
  %v2943 = vadd.f32 %v2895, %v2935
  %2944 = vset.pattern.permute.xlu0 19
  %2945 = vperm.xlu0 %2944, %v506
  %v2946 = vpop.permute.xlu0 %2945
  %2948 = vset.pattern.permute.xlu0 19
  %2949 = vperm.xlu0 %2948, %v509
  %v2950 = vpop.permute.xlu0 %2949
  %2952 = vset.pattern.permute.xlu0 19
  %2953 = vperm.xlu0 %2952, %v514
  %v2954 = vpop.permute.xlu0 %2953
  %2956 = vset.pattern.permute.xlu0 19
  %2957 = vperm.xlu0 %2956, %v517
  %v2958 = vpop.permute.xlu0 %2957
  %2960 = vset.pattern.permute.xlu0 19
  %2961 = vperm.xlu0 %2960, %v522
  %v2962 = vpop.permute.xlu0 %2961
  %2964 = vset.pattern.permute.xlu0 19
  %2965 = vperm.xlu0 %2964, %v525
  %v2966 = vpop.permute.xlu0 %2965
  %2968 = vset.pattern.permute.xlu0 19
  %2969 = vperm.xlu0 %2968, %v530
  %v2970 = vpop.permute.xlu0 %2969
  %2972 = vset.pattern.permute.xlu0 19
  %2973 = vperm.xlu0 %2972, %v533
  %v2974 = vpop.permute.xlu0 %2973
  %v2976 = vmul.f32 %v2946, %v88
  %v2977 = vmul.f32 %v2950, %v89
  %v2978 = vmul.f32 %v2954, %v90
  %v2979 = vmul.f32 %v2958, %v91
  %v2980 = vmul.f32 %v2962, %v92
  %v2981 = vmul.f32 %v2966, %v93
  %v2982 = vmul.f32 %v2970, %v94
  %v2983 = vmul.f32 %v2974, %v95
  %v2984 = vadd.f32 %v2936, %v2976
  %v2985 = vadd.f32 %v2937, %v2977
  %v2986 = vadd.f32 %v2938, %v2978
  %v2987 = vadd.f32 %v2939, %v2979
  %v2988 = vadd.f32 %v2940, %v2980
  %v2989 = vadd.f32 %v2941, %v2981
  %v2990 = vadd.f32 %v2942, %v2982
  %v2991 = vadd.f32 %v2943, %v2983
  %2992 = vset.pattern.permute.xlu0 20
  %2993 = vperm.xlu0 %2992, %v506
  %v2994 = vpop.permute.xlu0 %2993
  %2996 = vset.pattern.permute.xlu0 20
  %2997 = vperm.xlu0 %2996, %v509
  %v2998 = vpop.permute.xlu0 %2997
  %3000 = vset.pattern.permute.xlu0 20
  %3001 = vperm.xlu0 %3000, %v514
  %v3002 = vpop.permute.xlu0 %3001
  %3004 = vset.pattern.permute.xlu0 20
  %3005 = vperm.xlu0 %3004, %v517
  %v3006 = vpop.permute.xlu0 %3005
  %3008 = vset.pattern.permute.xlu0 20
  %3009 = vperm.xlu0 %3008, %v522
  %v3010 = vpop.permute.xlu0 %3009
  %3012 = vset.pattern.permute.xlu0 20
  %3013 = vperm.xlu0 %3012, %v525
  %v3014 = vpop.permute.xlu0 %3013
  %3016 = vset.pattern.permute.xlu0 20
  %3017 = vperm.xlu0 %3016, %v530
  %v3018 = vpop.permute.xlu0 %3017
  %3020 = vset.pattern.permute.xlu0 20
  %3021 = vperm.xlu0 %3020, %v533
  %v3022 = vpop.permute.xlu0 %3021
  %v3024 = vmul.f32 %v2994, %v96
  %v3025 = vmul.f32 %v2998, %v97
  %v3026 = vmul.f32 %v3002, %v98
  %v3027 = vmul.f32 %v3006, %v99
  %v3028 = vmul.f32 %v3010, %v100
  %v3029 = vmul.f32 %v3014, %v101
  %v3030 = vmul.f32 %v3018, %v102
  %v3031 = vmul.f32 %v3022, %v103
  %v3032 = vadd.f32 %v2984, %v3024
  %v3033 = vadd.f32 %v2985, %v3025
  %v3034 = vadd.f32 %v2986, %v3026
  %v3035 = vadd.f32 %v2987, %v3027
  %v3036 = vadd.f32 %v2988, %v3028
  %v3037 = vadd.f32 %v2989, %v3029
  %v3038 = vadd.f32 %v2990, %v3030
  %v3039 = vadd.f32 %v2991, %v3031
  %3040 = vset.pattern.permute.xlu0 21
  %3041 = vperm.xlu0 %3040, %v506
  %v3042 = vpop.permute.xlu0 %3041
  %3044 = vset.pattern.permute.xlu0 21
  %3045 = vperm.xlu0 %3044, %v509
  %v3046 = vpop.permute.xlu0 %3045
  %3048 = vset.pattern.permute.xlu0 21
  %3049 = vperm.xlu0 %3048, %v514
  %v3050 = vpop.permute.xlu0 %3049
  %3052 = vset.pattern.permute.xlu0 21
  %3053 = vperm.xlu0 %3052, %v517
  %v3054 = vpop.permute.xlu0 %3053
  %3056 = vset.pattern.permute.xlu0 21
  %3057 = vperm.xlu0 %3056, %v522
  %v3058 = vpop.permute.xlu0 %3057
  %3060 = vset.pattern.permute.xlu0 21
  %3061 = vperm.xlu0 %3060, %v525
  %v3062 = vpop.permute.xlu0 %3061
  %3064 = vset.pattern.permute.xlu0 21
  %3065 = vperm.xlu0 %3064, %v530
  %v3066 = vpop.permute.xlu0 %3065
  %3068 = vset.pattern.permute.xlu0 21
  %3069 = vperm.xlu0 %3068, %v533
  %v3070 = vpop.permute.xlu0 %3069
  %v3072 = vmul.f32 %v3042, %v104
  %v3073 = vmul.f32 %v3046, %v105
  %v3074 = vmul.f32 %v3050, %v106
  %v3075 = vmul.f32 %v3054, %v107
  %v3076 = vmul.f32 %v3058, %v108
  %v3077 = vmul.f32 %v3062, %v109
  %v3078 = vmul.f32 %v3066, %v110
  %v3079 = vmul.f32 %v3070, %v111
  %v3080 = vadd.f32 %v3032, %v3072
  %v3081 = vadd.f32 %v3033, %v3073
  %v3082 = vadd.f32 %v3034, %v3074
  %v3083 = vadd.f32 %v3035, %v3075
  %v3084 = vadd.f32 %v3036, %v3076
  %v3085 = vadd.f32 %v3037, %v3077
  %v3086 = vadd.f32 %v3038, %v3078
  %v3087 = vadd.f32 %v3039, %v3079
  %3088 = vset.pattern.permute.xlu0 22
  %3089 = vperm.xlu0 %3088, %v506
  %v3090 = vpop.permute.xlu0 %3089
  %3092 = vset.pattern.permute.xlu0 22
  %3093 = vperm.xlu0 %3092, %v509
  %v3094 = vpop.permute.xlu0 %3093
  %3096 = vset.pattern.permute.xlu0 22
  %3097 = vperm.xlu0 %3096, %v514
  %v3098 = vpop.permute.xlu0 %3097
  %3100 = vset.pattern.permute.xlu0 22
  %3101 = vperm.xlu0 %3100, %v517
  %v3102 = vpop.permute.xlu0 %3101
  %3104 = vset.pattern.permute.xlu0 22
  %3105 = vperm.xlu0 %3104, %v522
  %v3106 = vpop.permute.xlu0 %3105
  %3108 = vset.pattern.permute.xlu0 22
  %3109 = vperm.xlu0 %3108, %v525
  %v3110 = vpop.permute.xlu0 %3109
  %3112 = vset.pattern.permute.xlu0 22
  %3113 = vperm.xlu0 %3112, %v530
  %v3114 = vpop.permute.xlu0 %3113
  %3116 = vset.pattern.permute.xlu0 22
  %3117 = vperm.xlu0 %3116, %v533
  %v3118 = vpop.permute.xlu0 %3117
  %v3120 = vmul.f32 %v3090, %v112
  %v3121 = vmul.f32 %v3094, %v113
  %v3122 = vmul.f32 %v3098, %v114
  %v3123 = vmul.f32 %v3102, %v115
  %v3124 = vmul.f32 %v3106, %v116
  %v3125 = vmul.f32 %v3110, %v117
  %v3126 = vmul.f32 %v3114, %v118
  %v3127 = vmul.f32 %v3118, %v119
  %v3128 = vadd.f32 %v3080, %v3120
  %v3129 = vadd.f32 %v3081, %v3121
  %v3130 = vadd.f32 %v3082, %v3122
  %v3131 = vadd.f32 %v3083, %v3123
  %v3132 = vadd.f32 %v3084, %v3124
  %v3133 = vadd.f32 %v3085, %v3125
  %v3134 = vadd.f32 %v3086, %v3126
  %v3135 = vadd.f32 %v3087, %v3127
  %3136 = vset.pattern.permute.xlu0 23
  %3137 = vperm.xlu0 %3136, %v506
  %v3138 = vpop.permute.xlu0 %3137
  %3140 = vset.pattern.permute.xlu0 23
  %3141 = vperm.xlu0 %3140, %v509
  %v3142 = vpop.permute.xlu0 %3141
  %3144 = vset.pattern.permute.xlu0 23
  %3145 = vperm.xlu0 %3144, %v514
  %v3146 = vpop.permute.xlu0 %3145
  %3148 = vset.pattern.permute.xlu0 23
  %3149 = vperm.xlu0 %3148, %v517
  %v3150 = vpop.permute.xlu0 %3149
  %3152 = vset.pattern.permute.xlu0 23
  %3153 = vperm.xlu0 %3152, %v522
  %v3154 = vpop.permute.xlu0 %3153
  %3156 = vset.pattern.permute.xlu0 23
  %3157 = vperm.xlu0 %3156, %v525
  %v3158 = vpop.permute.xlu0 %3157
  %3160 = vset.pattern.permute.xlu0 23
  %3161 = vperm.xlu0 %3160, %v530
  %v3162 = vpop.permute.xlu0 %3161
  %3164 = vset.pattern.permute.xlu0 23
  %3165 = vperm.xlu0 %3164, %v533
  %v3166 = vpop.permute.xlu0 %3165
  %v3168 = vmul.f32 %v3138, %v120
  %v3169 = vmul.f32 %v3142, %v121
  %v3170 = vmul.f32 %v3146, %v122
  %v3171 = vmul.f32 %v3150, %v123
  %v3172 = vmul.f32 %v3154, %v124
  %v3173 = vmul.f32 %v3158, %v125
  %v3174 = vmul.f32 %v3162, %v126
  %v3175 = vmul.f32 %v3166, %v127
  %v3176 = vadd.f32 %v3128, %v3168
  %v3177 = vadd.f32 %v3129, %v3169
  %v3178 = vadd.f32 %v3130, %v3170
  %v3179 = vadd.f32 %v3131, %v3171
  %v3180 = vadd.f32 %v3132, %v3172
  %v3181 = vadd.f32 %v3133, %v3173
  %v3182 = vadd.f32 %v3134, %v3174
  %v3183 = vadd.f32 %v3135, %v3175
  %3184 = vset.pattern.permute.xlu0 24
  %3185 = vperm.xlu0 %3184, %v506
  %v3186 = vpop.permute.xlu0 %3185
  %3188 = vset.pattern.permute.xlu0 24
  %3189 = vperm.xlu0 %3188, %v509
  %v3190 = vpop.permute.xlu0 %3189
  %3192 = vset.pattern.permute.xlu0 24
  %3193 = vperm.xlu0 %3192, %v514
  %v3194 = vpop.permute.xlu0 %3193
  %3196 = vset.pattern.permute.xlu0 24
  %3197 = vperm.xlu0 %3196, %v517
  %v3198 = vpop.permute.xlu0 %3197
  %3200 = vset.pattern.permute.xlu0 24
  %3201 = vperm.xlu0 %3200, %v522
  %v3202 = vpop.permute.xlu0 %3201
  %3204 = vset.pattern.permute.xlu0 24
  %3205 = vperm.xlu0 %3204, %v525
  %v3206 = vpop.permute.xlu0 %3205
  %3208 = vset.pattern.permute.xlu0 24
  %3209 = vperm.xlu0 %3208, %v530
  %v3210 = vpop.permute.xlu0 %3209
  %3212 = vset.pattern.permute.xlu0 24
  %3213 = vperm.xlu0 %3212, %v533
  %v3214 = vpop.permute.xlu0 %3213
  %v3216 = vmul.f32 %v3186, %v64
  %v3217 = vmul.f32 %v3190, %v65
  %v3218 = vmul.f32 %v3194, %v66
  %v3219 = vmul.f32 %v3198, %v67
  %v3220 = vmul.f32 %v3202, %v68
  %v3221 = vmul.f32 %v3206, %v69
  %v3222 = vmul.f32 %v3210, %v70
  %v3223 = vmul.f32 %v3214, %v71
  %3224 = vset.pattern.permute.xlu0 25
  %3225 = vperm.xlu0 %3224, %v506
  %v3226 = vpop.permute.xlu0 %3225
  %3228 = vset.pattern.permute.xlu0 25
  %3229 = vperm.xlu0 %3228, %v509
  %v3230 = vpop.permute.xlu0 %3229
  %3232 = vset.pattern.permute.xlu0 25
  %3233 = vperm.xlu0 %3232, %v514
  %v3234 = vpop.permute.xlu0 %3233
  %3236 = vset.pattern.permute.xlu0 25
  %3237 = vperm.xlu0 %3236, %v517
  %v3238 = vpop.permute.xlu0 %3237
  %3240 = vset.pattern.permute.xlu0 25
  %3241 = vperm.xlu0 %3240, %v522
  %v3242 = vpop.permute.xlu0 %3241
  %3244 = vset.pattern.permute.xlu0 25
  %3245 = vperm.xlu0 %3244, %v525
  %v3246 = vpop.permute.xlu0 %3245
  %3248 = vset.pattern.permute.xlu0 25
  %3249 = vperm.xlu0 %3248, %v530
  %v3250 = vpop.permute.xlu0 %3249
  %3252 = vset.pattern.permute.xlu0 25
  %3253 = vperm.xlu0 %3252, %v533
  %v3254 = vpop.permute.xlu0 %3253
  %v3256 = vmul.f32 %v3226, %v72
  %v3257 = vmul.f32 %v3230, %v73
  %v3258 = vmul.f32 %v3234, %v74
  %v3259 = vmul.f32 %v3238, %v75
  %v3260 = vmul.f32 %v3242, %v76
  %v3261 = vmul.f32 %v3246, %v77
  %v3262 = vmul.f32 %v3250, %v78
  %v3263 = vmul.f32 %v3254, %v79
  %v3264 = vadd.f32 %v3216, %v3256
  %v3265 = vadd.f32 %v3217, %v3257
  %v3266 = vadd.f32 %v3218, %v3258
  %v3267 = vadd.f32 %v3219, %v3259
  %v3268 = vadd.f32 %v3220, %v3260
  %v3269 = vadd.f32 %v3221, %v3261
  %v3270 = vadd.f32 %v3222, %v3262
  %v3271 = vadd.f32 %v3223, %v3263
  %3272 = vset.pattern.permute.xlu0 26
  %3273 = vperm.xlu0 %3272, %v506
  %v3274 = vpop.permute.xlu0 %3273
  %3276 = vset.pattern.permute.xlu0 26
  %3277 = vperm.xlu0 %3276, %v509
  %v3278 = vpop.permute.xlu0 %3277
  %3280 = vset.pattern.permute.xlu0 26
  %3281 = vperm.xlu0 %3280, %v514
  %v3282 = vpop.permute.xlu0 %3281
  %3284 = vset.pattern.permute.xlu0 26
  %3285 = vperm.xlu0 %3284, %v517
  %v3286 = vpop.permute.xlu0 %3285
  %3288 = vset.pattern.permute.xlu0 26
  %3289 = vperm.xlu0 %3288, %v522
  %v3290 = vpop.permute.xlu0 %3289
  %3292 = vset.pattern.permute.xlu0 26
  %3293 = vperm.xlu0 %3292, %v525
  %v3294 = vpop.permute.xlu0 %3293
  %3296 = vset.pattern.permute.xlu0 26
  %3297 = vperm.xlu0 %3296, %v530
  %v3298 = vpop.permute.xlu0 %3297
  %3300 = vset.pattern.permute.xlu0 26
  %3301 = vperm.xlu0 %3300, %v533
  %v3302 = vpop.permute.xlu0 %3301
  %v3304 = vmul.f32 %v3274, %v80
  %v3305 = vmul.f32 %v3278, %v81
  %v3306 = vmul.f32 %v3282, %v82
  %v3307 = vmul.f32 %v3286, %v83
  %v3308 = vmul.f32 %v3290, %v84
  %v3309 = vmul.f32 %v3294, %v85
  %v3310 = vmul.f32 %v3298, %v86
  %v3311 = vmul.f32 %v3302, %v87
  %v3312 = vadd.f32 %v3264, %v3304
  %v3313 = vadd.f32 %v3265, %v3305
  %v3314 = vadd.f32 %v3266, %v3306
  %v3315 = vadd.f32 %v3267, %v3307
  %v3316 = vadd.f32 %v3268, %v3308
  %v3317 = vadd.f32 %v3269, %v3309
  %v3318 = vadd.f32 %v3270, %v3310
  %v3319 = vadd.f32 %v3271, %v3311
  %3320 = vset.pattern.permute.xlu0 27
  %3321 = vperm.xlu0 %3320, %v506
  %v3322 = vpop.permute.xlu0 %3321
  %3324 = vset.pattern.permute.xlu0 27
  %3325 = vperm.xlu0 %3324, %v509
  %v3326 = vpop.permute.xlu0 %3325
  %3328 = vset.pattern.permute.xlu0 27
  %3329 = vperm.xlu0 %3328, %v514
  %v3330 = vpop.permute.xlu0 %3329
  %3332 = vset.pattern.permute.xlu0 27
  %3333 = vperm.xlu0 %3332, %v517
  %v3334 = vpop.permute.xlu0 %3333
  %3336 = vset.pattern.permute.xlu0 27
  %3337 = vperm.xlu0 %3336, %v522
  %v3338 = vpop.permute.xlu0 %3337
  %3340 = vset.pattern.permute.xlu0 27
  %3341 = vperm.xlu0 %3340, %v525
  %v3342 = vpop.permute.xlu0 %3341
  %3344 = vset.pattern.permute.xlu0 27
  %3345 = vperm.xlu0 %3344, %v530
  %v3346 = vpop.permute.xlu0 %3345
  %3348 = vset.pattern.permute.xlu0 27
  %3349 = vperm.xlu0 %3348, %v533
  %v3350 = vpop.permute.xlu0 %3349
  %v3352 = vmul.f32 %v3322, %v88
  %v3353 = vmul.f32 %v3326, %v89
  %v3354 = vmul.f32 %v3330, %v90
  %v3355 = vmul.f32 %v3334, %v91
  %v3356 = vmul.f32 %v3338, %v92
  %v3357 = vmul.f32 %v3342, %v93
  %v3358 = vmul.f32 %v3346, %v94
  %v3359 = vmul.f32 %v3350, %v95
  %v3360 = vadd.f32 %v3312, %v3352
  %v3361 = vadd.f32 %v3313, %v3353
  %v3362 = vadd.f32 %v3314, %v3354
  %v3363 = vadd.f32 %v3315, %v3355
  %v3364 = vadd.f32 %v3316, %v3356
  %v3365 = vadd.f32 %v3317, %v3357
  %v3366 = vadd.f32 %v3318, %v3358
  %v3367 = vadd.f32 %v3319, %v3359
  %3368 = vset.pattern.permute.xlu0 28
  %3369 = vperm.xlu0 %3368, %v506
  %v3370 = vpop.permute.xlu0 %3369
  %3372 = vset.pattern.permute.xlu0 28
  %3373 = vperm.xlu0 %3372, %v509
  %v3374 = vpop.permute.xlu0 %3373
  %3376 = vset.pattern.permute.xlu0 28
  %3377 = vperm.xlu0 %3376, %v514
  %v3378 = vpop.permute.xlu0 %3377
  %3380 = vset.pattern.permute.xlu0 28
  %3381 = vperm.xlu0 %3380, %v517
  %v3382 = vpop.permute.xlu0 %3381
  %3384 = vset.pattern.permute.xlu0 28
  %3385 = vperm.xlu0 %3384, %v522
  %v3386 = vpop.permute.xlu0 %3385
  %3388 = vset.pattern.permute.xlu0 28
  %3389 = vperm.xlu0 %3388, %v525
  %v3390 = vpop.permute.xlu0 %3389
  %3392 = vset.pattern.permute.xlu0 28
  %3393 = vperm.xlu0 %3392, %v530
  %v3394 = vpop.permute.xlu0 %3393
  %3396 = vset.pattern.permute.xlu0 28
  %3397 = vperm.xlu0 %3396, %v533
  %v3398 = vpop.permute.xlu0 %3397
  %v3400 = vmul.f32 %v3370, %v96
  %v3401 = vmul.f32 %v3374, %v97
  %v3402 = vmul.f32 %v3378, %v98
  %v3403 = vmul.f32 %v3382, %v99
  %v3404 = vmul.f32 %v3386, %v100
  %v3405 = vmul.f32 %v3390, %v101
  %v3406 = vmul.f32 %v3394, %v102
  %v3407 = vmul.f32 %v3398, %v103
  %v3408 = vadd.f32 %v3360, %v3400
  %v3409 = vadd.f32 %v3361, %v3401
  %v3410 = vadd.f32 %v3362, %v3402
  %v3411 = vadd.f32 %v3363, %v3403
  %v3412 = vadd.f32 %v3364, %v3404
  %v3413 = vadd.f32 %v3365, %v3405
  %v3414 = vadd.f32 %v3366, %v3406
  %v3415 = vadd.f32 %v3367, %v3407
  %3416 = vset.pattern.permute.xlu0 29
  %3417 = vperm.xlu0 %3416, %v506
  %v3418 = vpop.permute.xlu0 %3417
  %3420 = vset.pattern.permute.xlu0 29
  %3421 = vperm.xlu0 %3420, %v509
  %v3422 = vpop.permute.xlu0 %3421
  %3424 = vset.pattern.permute.xlu0 29
  %3425 = vperm.xlu0 %3424, %v514
  %v3426 = vpop.permute.xlu0 %3425
  %3428 = vset.pattern.permute.xlu0 29
  %3429 = vperm.xlu0 %3428, %v517
  %v3430 = vpop.permute.xlu0 %3429
  %3432 = vset.pattern.permute.xlu0 29
  %3433 = vperm.xlu0 %3432, %v522
  %v3434 = vpop.permute.xlu0 %3433
  %3436 = vset.pattern.permute.xlu0 29
  %3437 = vperm.xlu0 %3436, %v525
  %v3438 = vpop.permute.xlu0 %3437
  %3440 = vset.pattern.permute.xlu0 29
  %3441 = vperm.xlu0 %3440, %v530
  %v3442 = vpop.permute.xlu0 %3441
  %3444 = vset.pattern.permute.xlu0 29
  %3445 = vperm.xlu0 %3444, %v533
  %v3446 = vpop.permute.xlu0 %3445
  %v3448 = vmul.f32 %v3418, %v104
  %v3449 = vmul.f32 %v3422, %v105
  %v3450 = vmul.f32 %v3426, %v106
  %v3451 = vmul.f32 %v3430, %v107
  %v3452 = vmul.f32 %v3434, %v108
  %v3453 = vmul.f32 %v3438, %v109
  %v3454 = vmul.f32 %v3442, %v110
  %v3455 = vmul.f32 %v3446, %v111
  %v3456 = vadd.f32 %v3408, %v3448
  %v3457 = vadd.f32 %v3409, %v3449
  %v3458 = vadd.f32 %v3410, %v3450
  %v3459 = vadd.f32 %v3411, %v3451
  %v3460 = vadd.f32 %v3412, %v3452
  %v3461 = vadd.f32 %v3413, %v3453
  %v3462 = vadd.f32 %v3414, %v3454
  %v3463 = vadd.f32 %v3415, %v3455
  %3464 = vset.pattern.permute.xlu0 30
  %3465 = vperm.xlu0 %3464, %v506
  %v3466 = vpop.permute.xlu0 %3465
  %3468 = vset.pattern.permute.xlu0 30
  %3469 = vperm.xlu0 %3468, %v509
  %v3470 = vpop.permute.xlu0 %3469
  %3472 = vset.pattern.permute.xlu0 30
  %3473 = vperm.xlu0 %3472, %v514
  %v3474 = vpop.permute.xlu0 %3473
  %3476 = vset.pattern.permute.xlu0 30
  %3477 = vperm.xlu0 %3476, %v517
  %v3478 = vpop.permute.xlu0 %3477
  %3480 = vset.pattern.permute.xlu0 30
  %3481 = vperm.xlu0 %3480, %v522
  %v3482 = vpop.permute.xlu0 %3481
  %3484 = vset.pattern.permute.xlu0 30
  %3485 = vperm.xlu0 %3484, %v525
  %v3486 = vpop.permute.xlu0 %3485
  %3488 = vset.pattern.permute.xlu0 30
  %3489 = vperm.xlu0 %3488, %v530
  %v3490 = vpop.permute.xlu0 %3489
  %3492 = vset.pattern.permute.xlu0 30
  %3493 = vperm.xlu0 %3492, %v533
  %v3494 = vpop.permute.xlu0 %3493
  %v3496 = vmul.f32 %v3466, %v112
  %v3497 = vmul.f32 %v3470, %v113
  %v3498 = vmul.f32 %v3474, %v114
  %v3499 = vmul.f32 %v3478, %v115
  %v3500 = vmul.f32 %v3482, %v116
  %v3501 = vmul.f32 %v3486, %v117
  %v3502 = vmul.f32 %v3490, %v118
  %v3503 = vmul.f32 %v3494, %v119
  %v3504 = vadd.f32 %v3456, %v3496
  %v3505 = vadd.f32 %v3457, %v3497
  %v3506 = vadd.f32 %v3458, %v3498
  %v3507 = vadd.f32 %v3459, %v3499
  %v3508 = vadd.f32 %v3460, %v3500
  %v3509 = vadd.f32 %v3461, %v3501
  %v3510 = vadd.f32 %v3462, %v3502
  %v3511 = vadd.f32 %v3463, %v3503
  %3512 = vset.pattern.permute.xlu0 31
  %3513 = vperm.xlu0 %3512, %v506
  %v3514 = vpop.permute.xlu0 %3513
  %3516 = vset.pattern.permute.xlu0 31
  %3517 = vperm.xlu0 %3516, %v509
  %v3518 = vpop.permute.xlu0 %3517
  %3520 = vset.pattern.permute.xlu0 31
  %3521 = vperm.xlu0 %3520, %v514
  %v3522 = vpop.permute.xlu0 %3521
  %3524 = vset.pattern.permute.xlu0 31
  %3525 = vperm.xlu0 %3524, %v517
  %v3526 = vpop.permute.xlu0 %3525
  %3528 = vset.pattern.permute.xlu0 31
  %3529 = vperm.xlu0 %3528, %v522
  %v3530 = vpop.permute.xlu0 %3529
  %3532 = vset.pattern.permute.xlu0 31
  %3533 = vperm.xlu0 %3532, %v525
  %v3534 = vpop.permute.xlu0 %3533
  %3536 = vset.pattern.permute.xlu0 31
  %3537 = vperm.xlu0 %3536, %v530
  %v3538 = vpop.permute.xlu0 %3537
  %3540 = vset.pattern.permute.xlu0 31
  %3541 = vperm.xlu0 %3540, %v533
  %v3542 = vpop.permute.xlu0 %3541
  %v3544 = vmul.f32 %v3514, %v120
  %v3545 = vmul.f32 %v3518, %v121
  %v3546 = vmul.f32 %v3522, %v122
  %v3547 = vmul.f32 %v3526, %v123
  %v3548 = vmul.f32 %v3530, %v124
  %v3549 = vmul.f32 %v3534, %v125
  %v3550 = vmul.f32 %v3538, %v126
  %v3551 = vmul.f32 %v3542, %v127
  %v3552 = vadd.f32 %v3504, %v3544
  %v3553 = vadd.f32 %v3505, %v3545
  %v3554 = vadd.f32 %v3506, %v3546
  %v3555 = vadd.f32 %v3507, %v3547
  %v3556 = vadd.f32 %v3508, %v3548
  %v3557 = vadd.f32 %v3509, %v3549
  %v3558 = vadd.f32 %v3510, %v3550
  %v3559 = vadd.f32 %v3511, %v3551
  %3560 = vrot.lane.b32.xlu0 %v474, 120
  %v3561 = vpop.permute.xlu0 %3560
  %3562 = vrot.lane.b32.xlu0 %v477, 120
  %v3563 = vpop.permute.xlu0 %3562
  %3564 = vrot.lane.b32.xlu0 %v482, 120
  %v3565 = vpop.permute.xlu0 %3564
  %3566 = vrot.lane.b32.xlu0 %v485, 120
  %v3567 = vpop.permute.xlu0 %3566
  %3568 = vrot.lane.b32.xlu0 %v490, 120
  %v3569 = vpop.permute.xlu0 %3568
  %3570 = vrot.lane.b32.xlu0 %v493, 120
  %v3571 = vpop.permute.xlu0 %3570
  %3572 = vrot.lane.b32.xlu0 %v498, 120
  %v3573 = vpop.permute.xlu0 %3572
  %3574 = vrot.lane.b32.xlu0 %v501, 120
  %v3575 = vpop.permute.xlu0 %3574
  %3584 = vrot.lane.b32.xlu0 %v474, 112
  %v3585 = vpop.permute.xlu0 %3584
  %3586 = vrot.lane.b32.xlu0 %v477, 112
  %v3587 = vpop.permute.xlu0 %3586
  %3588 = vrot.lane.b32.xlu0 %v482, 112
  %v3589 = vpop.permute.xlu0 %3588
  %3590 = vrot.lane.b32.xlu0 %v485, 112
  %v3591 = vpop.permute.xlu0 %3590
  %3592 = vrot.lane.b32.xlu0 %v490, 112
  %v3593 = vpop.permute.xlu0 %3592
  %3594 = vrot.lane.b32.xlu0 %v493, 112
  %v3595 = vpop.permute.xlu0 %3594
  %3596 = vrot.lane.b32.xlu0 %v498, 112
  %v3597 = vpop.permute.xlu0 %3596
  %3598 = vrot.lane.b32.xlu0 %v501, 112
  %v3599 = vpop.permute.xlu0 %3598
  %3608 = vrot.lane.b32.xlu0 %v474, 104
  %v3609 = vpop.permute.xlu0 %3608
  %3610 = vrot.lane.b32.xlu0 %v477, 104
  %v3611 = vpop.permute.xlu0 %3610
  %3612 = vrot.lane.b32.xlu0 %v482, 104
  %v3613 = vpop.permute.xlu0 %3612
  %3614 = vrot.lane.b32.xlu0 %v485, 104
  %v3615 = vpop.permute.xlu0 %3614
  %3616 = vrot.lane.b32.xlu0 %v490, 104
  %v3617 = vpop.permute.xlu0 %3616
  %3618 = vrot.lane.b32.xlu0 %v493, 104
  %v3619 = vpop.permute.xlu0 %3618
  %3620 = vrot.lane.b32.xlu0 %v498, 104
  %v3621 = vpop.permute.xlu0 %3620
  %3622 = vrot.lane.b32.xlu0 %v501, 104
  %v3623 = vpop.permute.xlu0 %3622
  %3632 = vrot.lane.b32.xlu0 %v506, 120
  %v3633 = vpop.permute.xlu0 %3632
  %3634 = vrot.lane.b32.xlu0 %v509, 120
  %v3635 = vpop.permute.xlu0 %3634
  %3636 = vrot.lane.b32.xlu0 %v514, 120
  %v3637 = vpop.permute.xlu0 %3636
  %3638 = vrot.lane.b32.xlu0 %v517, 120
  %v3639 = vpop.permute.xlu0 %3638
  %3640 = vrot.lane.b32.xlu0 %v522, 120
  %v3641 = vpop.permute.xlu0 %3640
  %3642 = vrot.lane.b32.xlu0 %v525, 120
  %v3643 = vpop.permute.xlu0 %3642
  %3644 = vrot.lane.b32.xlu0 %v530, 120
  %v3645 = vpop.permute.xlu0 %3644
  %3646 = vrot.lane.b32.xlu0 %v533, 120
  %v3647 = vpop.permute.xlu0 %3646
  %3656 = vrot.lane.b32.xlu0 %v506, 112
  %v3657 = vpop.permute.xlu0 %3656
  %3658 = vrot.lane.b32.xlu0 %v509, 112
  %v3659 = vpop.permute.xlu0 %3658
  %3660 = vrot.lane.b32.xlu0 %v514, 112
  %v3661 = vpop.permute.xlu0 %3660
  %3662 = vrot.lane.b32.xlu0 %v517, 112
  %v3663 = vpop.permute.xlu0 %3662
  %3664 = vrot.lane.b32.xlu0 %v522, 112
  %v3665 = vpop.permute.xlu0 %3664
  %3666 = vrot.lane.b32.xlu0 %v525, 112
  %v3667 = vpop.permute.xlu0 %3666
  %3668 = vrot.lane.b32.xlu0 %v530, 112
  %v3669 = vpop.permute.xlu0 %3668
  %3670 = vrot.lane.b32.xlu0 %v533, 112
  %v3671 = vpop.permute.xlu0 %3670
  %3680 = vrot.lane.b32.xlu0 %v506, 104
  %v3681 = vpop.permute.xlu0 %3680
  %3682 = vrot.lane.b32.xlu0 %v509, 104
  %v3683 = vpop.permute.xlu0 %3682
  %3684 = vrot.lane.b32.xlu0 %v514, 104
  %v3685 = vpop.permute.xlu0 %3684
  %3686 = vrot.lane.b32.xlu0 %v517, 104
  %v3687 = vpop.permute.xlu0 %3686
  %3688 = vrot.lane.b32.xlu0 %v522, 104
  %v3689 = vpop.permute.xlu0 %3688
  %3690 = vrot.lane.b32.xlu0 %v525, 104
  %v3691 = vpop.permute.xlu0 %3690
  %3692 = vrot.lane.b32.xlu0 %v530, 104
  %v3693 = vpop.permute.xlu0 %3692
  %3694 = vrot.lane.b32.xlu0 %v533, 104
  %v3695 = vpop.permute.xlu0 %3694
  %v3704 = vmul.f32 %v474, 0.35355338
  %v3705 = vmul.f32 %v477, 0.35355338
  %v3706 = vmul.f32 %v482, 0.35355338
  %v3707 = vmul.f32 %v485, 0.35355338
  %v3708 = vmul.f32 %v490, 0.35355338
  %v3709 = vmul.f32 %v493, 0.35355338
  %v3710 = vmul.f32 %v498, 0.35355338
  %v3711 = vmul.f32 %v501, 0.35355338
  %v3712 = vmul.f32 %v3561, 0.35355338
  %v3713 = vmul.f32 %v3563, 0.35355338
  %v3714 = vmul.f32 %v3565, 0.35355338
  %v3715 = vmul.f32 %v3567, 0.35355338
  %v3716 = vmul.f32 %v3569, 0.35355338
  %v3717 = vmul.f32 %v3571, 0.35355338
  %v3718 = vmul.f32 %v3573, 0.35355338
  %v3719 = vmul.f32 %v3575, 0.35355338
  %v3720 = vmul.f32 %v3585, 0.35355338
  %v3721 = vmul.f32 %v3587, 0.35355338
  %v3722 = vmul.f32 %v3589, 0.35355338
  %v3723 = vmul.f32 %v3591, 0.35355338
  %v3724 = vmul.f32 %v3593, 0.35355338
  %v3725 = vmul.f32 %v3595, 0.35355338
  %v3726 = vmul.f32 %v3597, 0.35355338
  %v3727 = vmul.f32 %v3599, 0.35355338
  %v3728 = vmul.f32 %v3609, 0.35355338
  %v3729 = vmul.f32 %v3611, 0.35355338
  %v3730 = vmul.f32 %v3613, 0.35355338
  %v3731 = vmul.f32 %v3615, 0.35355338
  %v3732 = vmul.f32 %v3617, 0.35355338
  %v3733 = vmul.f32 %v3619, 0.35355338
  %v3734 = vmul.f32 %v3621, 0.35355338
  %v3735 = vmul.f32 %v3623, 0.35355338
  %v3736 = vmul.f32 %v506, 0.35355338
  %v3737 = vmul.f32 %v509, 0.35355338
  %v3738 = vmul.f32 %v514, 0.35355338
  %v3739 = vmul.f32 %v517, 0.35355338
  %v3740 = vmul.f32 %v522, 0.35355338
  %v3741 = vmul.f32 %v525, 0.35355338
  %v3742 = vmul.f32 %v530, 0.35355338
  %v3743 = vmul.f32 %v533, 0.35355338
  %v3744 = vmul.f32 %v3633, 0.35355338
  %v3745 = vmul.f32 %v3635, 0.35355338
  %v3746 = vmul.f32 %v3637, 0.35355338
  %v3747 = vmul.f32 %v3639, 0.35355338
  %v3748 = vmul.f32 %v3641, 0.35355338
  %v3749 = vmul.f32 %v3643, 0.35355338
  %v3750 = vmul.f32 %v3645, 0.35355338
  %v3751 = vmul.f32 %v3647, 0.35355338
  %v3752 = vmul.f32 %v3657, 0.35355338
  %v3753 = vmul.f32 %v3659, 0.35355338
  %v3754 = vmul.f32 %v3661, 0.35355338
  %v3755 = vmul.f32 %v3663, 0.35355338
  %v3756 = vmul.f32 %v3665, 0.35355338
  %v3757 = vmul.f32 %v3667, 0.35355338
  %v3758 = vmul.f32 %v3669, 0.35355338
  %v3759 = vmul.f32 %v3671, 0.35355338
  %v3760 = vmul.f32 %v3681, 0.35355338
  %v3761 = vmul.f32 %v3683, 0.35355338
  %v3762 = vmul.f32 %v3685, 0.35355338
  %v3763 = vmul.f32 %v3687, 0.35355338
  %v3764 = vmul.f32 %v3689, 0.35355338
  %v3765 = vmul.f32 %v3691, 0.35355338
  %v3766 = vmul.f32 %v3693, 0.35355338
  %v3767 = vmul.f32 %v3695, 0.35355338
  %v3768 = vpack.c.bf16 %v3705, %v3704
  %v3769 = vpack.c.bf16 %v3707, %v3706
  %v3770 = vpack.c.bf16 %v3709, %v3708
  %v3771 = vpack.c.bf16 %v3711, %v3710
  %v3772 = vpack.c.bf16 %v3713, %v3712
  %v3773 = vpack.c.bf16 %v3715, %v3714
  %v3774 = vpack.c.bf16 %v3717, %v3716
  %v3775 = vpack.c.bf16 %v3719, %v3718
  %v3776 = vpack.c.bf16 %v3721, %v3720
  %v3777 = vpack.c.bf16 %v3723, %v3722
  %v3778 = vpack.c.bf16 %v3725, %v3724
  %v3779 = vpack.c.bf16 %v3727, %v3726
  %v3780 = vpack.c.bf16 %v3729, %v3728
  %v3781 = vpack.c.bf16 %v3731, %v3730
  %v3782 = vpack.c.bf16 %v3733, %v3732
  %v3783 = vpack.c.bf16 %v3735, %v3734
  %v3784 = vpack.c.bf16 %v3737, %v3736
  %v3785 = vpack.c.bf16 %v3739, %v3738
  %v3786 = vpack.c.bf16 %v3741, %v3740
  %v3787 = vpack.c.bf16 %v3743, %v3742
  %v3788 = vpack.c.bf16 %v3745, %v3744
  %v3789 = vpack.c.bf16 %v3747, %v3746
  %v3790 = vpack.c.bf16 %v3749, %v3748
  %v3791 = vpack.c.bf16 %v3751, %v3750
  %v3792 = vpack.c.bf16 %v3753, %v3752
  %v3793 = vpack.c.bf16 %v3755, %v3754
  %v3794 = vpack.c.bf16 %v3757, %v3756
  %v3795 = vpack.c.bf16 %v3759, %v3758
  %v3796 = vpack.c.bf16 %v3761, %v3760
  %v3797 = vpack.c.bf16 %v3763, %v3762
  %v3798 = vpack.c.bf16 %v3765, %v3764
  %v3799 = vpack.c.bf16 %v3767, %v3766
  %v3800 = vpack.c.bf16 %v477, %v474
  %v3801 = vpack.c.bf16 %v485, %v482
  %v3802 = vpack.c.bf16 %v493, %v490
  %v3803 = vpack.c.bf16 %v501, %v498
  %v3804 = vpack.c.bf16 %v3563, %v3561
  %v3805 = vpack.c.bf16 %v3567, %v3565
  %v3806 = vpack.c.bf16 %v3571, %v3569
  %v3807 = vpack.c.bf16 %v3575, %v3573
  %v3808 = vpack.c.bf16 %v3587, %v3585
  %v3809 = vpack.c.bf16 %v3591, %v3589
  %v3810 = vpack.c.bf16 %v3595, %v3593
  %v3811 = vpack.c.bf16 %v3599, %v3597
  %v3812 = vpack.c.bf16 %v3611, %v3609
  %v3813 = vpack.c.bf16 %v3615, %v3613
  %v3814 = vpack.c.bf16 %v3619, %v3617
  %v3815 = vpack.c.bf16 %v3623, %v3621
  %v3816 = vpack.c.bf16 %v509, %v506
  %v3817 = vpack.c.bf16 %v517, %v514
  %v3818 = vpack.c.bf16 %v525, %v522
  %v3819 = vpack.c.bf16 %v533, %v530
  %v3820 = vpack.c.bf16 %v3635, %v3633
  %v3821 = vpack.c.bf16 %v3639, %v3637
  %v3822 = vpack.c.bf16 %v3643, %v3641
  %v3823 = vpack.c.bf16 %v3647, %v3645
  %v3824 = vpack.c.bf16 %v3659, %v3657
  %v3825 = vpack.c.bf16 %v3663, %v3661
  %v3826 = vpack.c.bf16 %v3667, %v3665
  %v3827 = vpack.c.bf16 %v3671, %v3669
  %v3828 = vpack.c.bf16 %v3683, %v3681
  %v3829 = vpack.c.bf16 %v3687, %v3685
  %v3830 = vpack.c.bf16 %v3691, %v3689
  %v3831 = vpack.c.bf16 %v3695, %v3693
  %3836 = vrot.lane.b32.xlu0 %v3800, 96
  %v3837 = vpop.permute.xlu0 %3836
  %3838 = vrot.lane.b32.xlu0 %v3801, 96
  %v3839 = vpop.permute.xlu0 %3838
  %3840 = vrot.lane.b32.xlu0 %v3802, 96
  %v3841 = vpop.permute.xlu0 %3840
  %3842 = vrot.lane.b32.xlu0 %v3803, 96
  %v3843 = vpop.permute.xlu0 %3842
  %vm3844 = vcmask 64512
  %v3846 = vsel %vm3844, %v3768, 0
  %v3849 = vsel %vm3844, %v3769, 0
  %v3852 = vsel %vm3844, %v3770, 0
  %v3855 = vsel %vm3844, %v3771, 0
  %v3858 = vsel %vm3844, %v3837, 0
  %v3861 = vsel %vm3844, %v3839, 0
  %v3864 = vsel %vm3844, %v3841, 0
  %v3867 = vsel %vm3844, %v3843, 0
  %3869 = vmatprep.subr.bf16.mxu0 0
  %3870 = vmatpush1.bf16.xpose.msra.mxu0 %v3858
  %3871 = vmatprep.subr.bf16.mxu0 0
  %3872 = vmatpush1.bf16.xpose.msra.mxu0 %v3861
  %3873 = vmatprep.subr.bf16.mxu0 0
  %3874 = vmatpush1.bf16.xpose.msra.mxu0 %v3864
  %3875 = vmatprep.subr.bf16.mxu0 0
  %3876 = vmatpush1.bf16.xpose.msra.mxu0 %v3867
  %3877 = vmatprep.subr.bf16.mxu0 0
  %3878 = vmatpush1.bf16.xpose.msra.mxu0 0
  %3879 = vmatprep.subr.bf16.mxu0 0
  %3880 = vmatpush1.bf16.xpose.msra.mxu0 0
  %3881 = vmatprep.subr.bf16.mxu0 0
  %3882 = vmatpush1.bf16.xpose.msra.mxu0 0
  %3883 = vmatprep.subr.bf16.mxu0 0
  %3884 = vmatpush1.bf16.xpose.msra.mxu0 0
  %3885 = vmatprep.subr.bf16.mxu0 0
  %3886 = vmatpush1.bf16.xpose.msra.mxu0 0
  %3887 = vmatprep.subr.bf16.mxu0 0
  %3888 = vmatpush1.bf16.xpose.msra.mxu0 0
  %3889 = vmatprep.subr.bf16.mxu0 0
  %3890 = vmatpush1.bf16.xpose.msra.mxu0 0
  %3891 = vmatprep.subr.bf16.mxu0 0
  %3892 = vmatpush1.bf16.xpose.msra.mxu0 0
  %3893 = vmatprep.subr.bf16.mxu0 0
  %3894 = vmatpush1.bf16.xpose.msra.mxu0 0
  %3895 = vmatprep.subr.bf16.mxu0 0
  %3896 = vmatpush1.bf16.xpose.msra.mxu0 0
  %3897 = vmatprep.subr.bf16.mxu0 0
  %3898 = vmatpush1.bf16.xpose.msra.mxu0 0
  %3899 = vmatprep.subr.bf16.mxu0 0
  %3900 = vmatpush1.bf16.xpose.msra.mxu0 0
  %3901 = vmatprep.mubr.bf16.mxu0 0
  %3902 = vmatmul.mubr.bf16.gmra.mrb[0].mxu0 %v3846
  %v3903 = vpop.f32.mrb[0].mxu0
  %v3904 = vadd.f32 %v912, %v3903
  %v3905 = vpop.f32.mrb[0].mxu0
  %v3906 = vpop.f32.mrb[0].mxu0
  %v3907 = vadd.f32 %v913, %v3906
  %v3908 = vpop.f32.mrb[0].mxu0
  %3909 = vmatprep.mubr.bf16.mxu0 0
  %3910 = vmatmul.mubr.bf16.gmra.mrb[0].mxu0 %v3849
  %v3911 = vpop.f32.mrb[0].mxu0
  %v3912 = vadd.f32 %v914, %v3911
  %v3913 = vpop.f32.mrb[0].mxu0
  %v3914 = vpop.f32.mrb[0].mxu0
  %v3915 = vadd.f32 %v915, %v3914
  %v3916 = vpop.f32.mrb[0].mxu0
  %3917 = vmatprep.mubr.bf16.mxu0 0
  %3918 = vmatmul.mubr.bf16.gmra.mrb[0].mxu0 %v3852
  %v3919 = vpop.f32.mrb[0].mxu0
  %v3920 = vadd.f32 %v916, %v3919
  %v3921 = vpop.f32.mrb[0].mxu0
  %v3922 = vpop.f32.mrb[0].mxu0
  %v3923 = vadd.f32 %v917, %v3922
  %v3924 = vpop.f32.mrb[0].mxu0
  %3925 = vmatprep.mubr.bf16.mxu0 0
  %3926 = vmatmul.mubr.bf16.gmra.mrb[0].mxu0 %v3855
  %v3927 = vpop.f32.mrb[0].mxu0
  %v3928 = vadd.f32 %v918, %v3927
  %v3929 = vpop.f32.mrb[0].mxu0
  %v3930 = vpop.f32.mrb[0].mxu0
  %v3931 = vadd.f32 %v919, %v3930
  %v3932 = vpop.f32.mrb[0].mxu0
  %3933 = vdwg.mxu0
  %3938 = vrot.lane.b32.xlu0 %v3804, 96
  %v3939 = vpop.permute.xlu0 %3938
  %3940 = vrot.lane.b32.xlu0 %v3805, 96
  %v3941 = vpop.permute.xlu0 %3940
  %3942 = vrot.lane.b32.xlu0 %v3806, 96
  %v3943 = vpop.permute.xlu0 %3942
  %3944 = vrot.lane.b32.xlu0 %v3807, 96
  %v3945 = vpop.permute.xlu0 %3944
  %v3947 = vsel %vm3844, %v3772, 0
  %v3950 = vsel %vm3844, %v3773, 0
  %v3953 = vsel %vm3844, %v3774, 0
  %v3956 = vsel %vm3844, %v3775, 0
  %v3959 = vsel %vm3844, %v3939, 0
  %v3962 = vsel %vm3844, %v3941, 0
  %v3965 = vsel %vm3844, %v3943, 0
  %v3968 = vsel %vm3844, %v3945, 0
  %3970 = vmatprep.subr.bf16.mxu0 0
  %3971 = vmatpush1.bf16.xpose.msra.mxu0 %v3959
  %3972 = vmatprep.subr.bf16.mxu0 0
  %3973 = vmatpush1.bf16.xpose.msra.mxu0 %v3962
  %3974 = vmatprep.subr.bf16.mxu0 0
  %3975 = vmatpush1.bf16.xpose.msra.mxu0 %v3965
  %3976 = vmatprep.subr.bf16.mxu0 0
  %3977 = vmatpush1.bf16.xpose.msra.mxu0 %v3968
  %3978 = vmatprep.subr.bf16.mxu0 0
  %3979 = vmatpush1.bf16.xpose.msra.mxu0 0
  %3980 = vmatprep.subr.bf16.mxu0 0
  %3981 = vmatpush1.bf16.xpose.msra.mxu0 0
  %3982 = vmatprep.subr.bf16.mxu0 0
  %3983 = vmatpush1.bf16.xpose.msra.mxu0 0
  %3984 = vmatprep.subr.bf16.mxu0 0
  %3985 = vmatpush1.bf16.xpose.msra.mxu0 0
  %3986 = vmatprep.subr.bf16.mxu0 0
  %3987 = vmatpush1.bf16.xpose.msra.mxu0 0
  %3988 = vmatprep.subr.bf16.mxu0 0
  %3989 = vmatpush1.bf16.xpose.msra.mxu0 0
  %3990 = vmatprep.subr.bf16.mxu0 0
  %3991 = vmatpush1.bf16.xpose.msra.mxu0 0
  %3992 = vmatprep.subr.bf16.mxu0 0
  %3993 = vmatpush1.bf16.xpose.msra.mxu0 0
  %3994 = vmatprep.subr.bf16.mxu0 0
  %3995 = vmatpush1.bf16.xpose.msra.mxu0 0
  %3996 = vmatprep.subr.bf16.mxu0 0
  %3997 = vmatpush1.bf16.xpose.msra.mxu0 0
  %3998 = vmatprep.subr.bf16.mxu0 0
  %3999 = vmatpush1.bf16.xpose.msra.mxu0 0
  %4000 = vmatprep.subr.bf16.mxu0 0
  %4001 = vmatpush1.bf16.xpose.msra.mxu0 0
  %4002 = vmatprep.mubr.bf16.mxu0 0
  %4003 = vmatmul.mubr.bf16.gmra.mrb[0].mxu0 %v3947
  %v4004 = vpop.f32.mrb[0].mxu0
  %v4005 = vadd.f32 %v1288, %v4004
  %v4006 = vpop.f32.mrb[0].mxu0
  %v4007 = vpop.f32.mrb[0].mxu0
  %v4008 = vadd.f32 %v1289, %v4007
  %v4009 = vpop.f32.mrb[0].mxu0
  %4010 = vmatprep.mubr.bf16.mxu0 0
  %4011 = vmatmul.mubr.bf16.gmra.mrb[0].mxu0 %v3950
  %v4012 = vpop.f32.mrb[0].mxu0
  %v4013 = vadd.f32 %v1290, %v4012
  %v4014 = vpop.f32.mrb[0].mxu0
  %v4015 = vpop.f32.mrb[0].mxu0
  %v4016 = vadd.f32 %v1291, %v4015
  %v4017 = vpop.f32.mrb[0].mxu0
  %4018 = vmatprep.mubr.bf16.mxu0 0
  %4019 = vmatmul.mubr.bf16.gmra.mrb[0].mxu0 %v3953
  %v4020 = vpop.f32.mrb[0].mxu0
  %v4021 = vadd.f32 %v1292, %v4020
  %v4022 = vpop.f32.mrb[0].mxu0
  %v4023 = vpop.f32.mrb[0].mxu0
  %v4024 = vadd.f32 %v1293, %v4023
  %v4025 = vpop.f32.mrb[0].mxu0
  %4026 = vmatprep.mubr.bf16.mxu0 0
  %4027 = vmatmul.mubr.bf16.gmra.mrb[0].mxu0 %v3956
  %v4028 = vpop.f32.mrb[0].mxu0
  %v4029 = vadd.f32 %v1294, %v4028
  %v4030 = vpop.f32.mrb[0].mxu0
  %v4031 = vpop.f32.mrb[0].mxu0
  %v4032 = vadd.f32 %v1295, %v4031
  %v4033 = vpop.f32.mrb[0].mxu0
  %4034 = vdwg.mxu0
  %4039 = vrot.lane.b32.xlu0 %v3808, 96
  %v4040 = vpop.permute.xlu0 %4039
  %4041 = vrot.lane.b32.xlu0 %v3809, 96
  %v4042 = vpop.permute.xlu0 %4041
  %4043 = vrot.lane.b32.xlu0 %v3810, 96
  %v4044 = vpop.permute.xlu0 %4043
  %4045 = vrot.lane.b32.xlu0 %v3811, 96
  %v4046 = vpop.permute.xlu0 %4045
  %v4048 = vsel %vm3844, %v3776, 0
  %v4051 = vsel %vm3844, %v3777, 0
  %v4054 = vsel %vm3844, %v3778, 0
  %v4057 = vsel %vm3844, %v3779, 0
  %v4060 = vsel %vm3844, %v4040, 0
  %v4063 = vsel %vm3844, %v4042, 0
  %v4066 = vsel %vm3844, %v4044, 0
  %v4069 = vsel %vm3844, %v4046, 0
  %4071 = vmatprep.subr.bf16.mxu0 0
  %4072 = vmatpush1.bf16.xpose.msra.mxu0 %v4060
  %4073 = vmatprep.subr.bf16.mxu0 0
  %4074 = vmatpush1.bf16.xpose.msra.mxu0 %v4063
  %4075 = vmatprep.subr.bf16.mxu0 0
  %4076 = vmatpush1.bf16.xpose.msra.mxu0 %v4066
  %4077 = vmatprep.subr.bf16.mxu0 0
  %4078 = vmatpush1.bf16.xpose.msra.mxu0 %v4069
  %4079 = vmatprep.subr.bf16.mxu0 0
  %4080 = vmatpush1.bf16.xpose.msra.mxu0 0
  %4081 = vmatprep.subr.bf16.mxu0 0
  %4082 = vmatpush1.bf16.xpose.msra.mxu0 0
  %4083 = vmatprep.subr.bf16.mxu0 0
  %4084 = vmatpush1.bf16.xpose.msra.mxu0 0
  %4085 = vmatprep.subr.bf16.mxu0 0
  %4086 = vmatpush1.bf16.xpose.msra.mxu0 0
  %4087 = vmatprep.subr.bf16.mxu0 0
  %4088 = vmatpush1.bf16.xpose.msra.mxu0 0
  %4089 = vmatprep.subr.bf16.mxu0 0
  %4090 = vmatpush1.bf16.xpose.msra.mxu0 0
  %4091 = vmatprep.subr.bf16.mxu0 0
  %4092 = vmatpush1.bf16.xpose.msra.mxu0 0
  %4093 = vmatprep.subr.bf16.mxu0 0
  %4094 = vmatpush1.bf16.xpose.msra.mxu0 0
  %4095 = vmatprep.subr.bf16.mxu0 0
  %4096 = vmatpush1.bf16.xpose.msra.mxu0 0
  %4097 = vmatprep.subr.bf16.mxu0 0
  %4098 = vmatpush1.bf16.xpose.msra.mxu0 0
  %4099 = vmatprep.subr.bf16.mxu0 0
  %4100 = vmatpush1.bf16.xpose.msra.mxu0 0
  %4101 = vmatprep.subr.bf16.mxu0 0
  %4102 = vmatpush1.bf16.xpose.msra.mxu0 0
  %4103 = vmatprep.mubr.bf16.mxu0 0
  %4104 = vmatmul.mubr.bf16.gmra.mrb[0].mxu0 %v4048
  %v4105 = vpop.f32.mrb[0].mxu0
  %v4106 = vadd.f32 %v1664, %v4105
  %v4107 = vpop.f32.mrb[0].mxu0
  %v4108 = vpop.f32.mrb[0].mxu0
  %v4109 = vadd.f32 %v1665, %v4108
  %v4110 = vpop.f32.mrb[0].mxu0
  %4111 = vmatprep.mubr.bf16.mxu0 0
  %4112 = vmatmul.mubr.bf16.gmra.mrb[0].mxu0 %v4051
  %v4113 = vpop.f32.mrb[0].mxu0
  %v4114 = vadd.f32 %v1666, %v4113
  %v4115 = vpop.f32.mrb[0].mxu0
  %v4116 = vpop.f32.mrb[0].mxu0
  %v4117 = vadd.f32 %v1667, %v4116
  %v4118 = vpop.f32.mrb[0].mxu0
  %4119 = vmatprep.mubr.bf16.mxu0 0
  %4120 = vmatmul.mubr.bf16.gmra.mrb[0].mxu0 %v4054
  %v4121 = vpop.f32.mrb[0].mxu0
  %v4122 = vadd.f32 %v1668, %v4121
  %v4123 = vpop.f32.mrb[0].mxu0
  %v4124 = vpop.f32.mrb[0].mxu0
  %v4125 = vadd.f32 %v1669, %v4124
  %v4126 = vpop.f32.mrb[0].mxu0
  %4127 = vmatprep.mubr.bf16.mxu0 0
  %4128 = vmatmul.mubr.bf16.gmra.mrb[0].mxu0 %v4057
  %v4129 = vpop.f32.mrb[0].mxu0
  %v4130 = vadd.f32 %v1670, %v4129
  %v4131 = vpop.f32.mrb[0].mxu0
  %v4132 = vpop.f32.mrb[0].mxu0
  %v4133 = vadd.f32 %v1671, %v4132
  %v4134 = vpop.f32.mrb[0].mxu0
  %4135 = vdwg.mxu0
  %4140 = vrot.lane.b32.xlu0 %v3812, 96
  %v4141 = vpop.permute.xlu0 %4140
  %4142 = vrot.lane.b32.xlu0 %v3813, 96
  %v4143 = vpop.permute.xlu0 %4142
  %4144 = vrot.lane.b32.xlu0 %v3814, 96
  %v4145 = vpop.permute.xlu0 %4144
  %4146 = vrot.lane.b32.xlu0 %v3815, 96
  %v4147 = vpop.permute.xlu0 %4146
  %v4149 = vsel %vm3844, %v3780, 0
  %v4152 = vsel %vm3844, %v3781, 0
  %v4155 = vsel %vm3844, %v3782, 0
  %v4158 = vsel %vm3844, %v3783, 0
  %v4161 = vsel %vm3844, %v4141, 0
  %v4164 = vsel %vm3844, %v4143, 0
  %v4167 = vsel %vm3844, %v4145, 0
  %v4170 = vsel %vm3844, %v4147, 0
  %4172 = vmatprep.subr.bf16.mxu0 0
  %4173 = vmatpush1.bf16.xpose.msra.mxu0 %v4161
  %4174 = vmatprep.subr.bf16.mxu0 0
  %4175 = vmatpush1.bf16.xpose.msra.mxu0 %v4164
  %4176 = vmatprep.subr.bf16.mxu0 0
  %4177 = vmatpush1.bf16.xpose.msra.mxu0 %v4167
  %4178 = vmatprep.subr.bf16.mxu0 0
  %4179 = vmatpush1.bf16.xpose.msra.mxu0 %v4170
  %4180 = vmatprep.subr.bf16.mxu0 0
  %4181 = vmatpush1.bf16.xpose.msra.mxu0 0
  %4182 = vmatprep.subr.bf16.mxu0 0
  %4183 = vmatpush1.bf16.xpose.msra.mxu0 0
  %4184 = vmatprep.subr.bf16.mxu0 0
  %4185 = vmatpush1.bf16.xpose.msra.mxu0 0
  %4186 = vmatprep.subr.bf16.mxu0 0
  %4187 = vmatpush1.bf16.xpose.msra.mxu0 0
  %4188 = vmatprep.subr.bf16.mxu0 0
  %4189 = vmatpush1.bf16.xpose.msra.mxu0 0
  %4190 = vmatprep.subr.bf16.mxu0 0
  %4191 = vmatpush1.bf16.xpose.msra.mxu0 0
  %4192 = vmatprep.subr.bf16.mxu0 0
  %4193 = vmatpush1.bf16.xpose.msra.mxu0 0
  %4194 = vmatprep.subr.bf16.mxu0 0
  %4195 = vmatpush1.bf16.xpose.msra.mxu0 0
  %4196 = vmatprep.subr.bf16.mxu0 0
  %4197 = vmatpush1.bf16.xpose.msra.mxu0 0
  %4198 = vmatprep.subr.bf16.mxu0 0
  %4199 = vmatpush1.bf16.xpose.msra.mxu0 0
  %4200 = vmatprep.subr.bf16.mxu0 0
  %4201 = vmatpush1.bf16.xpose.msra.mxu0 0
  %4202 = vmatprep.subr.bf16.mxu0 0
  %4203 = vmatpush1.bf16.xpose.msra.mxu0 0
  %4204 = vmatprep.mubr.bf16.mxu0 0
  %4205 = vmatmul.mubr.bf16.gmra.mrb[0].mxu0 %v4149
  %v4206 = vpop.f32.mrb[0].mxu0
  %v4207 = vadd.f32 %v2040, %v4206
  %v4208 = vpop.f32.mrb[0].mxu0
  %v4209 = vpop.f32.mrb[0].mxu0
  %v4210 = vadd.f32 %v2041, %v4209
  %v4211 = vpop.f32.mrb[0].mxu0
  %4212 = vmatprep.mubr.bf16.mxu0 0
  %4213 = vmatmul.mubr.bf16.gmra.mrb[0].mxu0 %v4152
  %v4214 = vpop.f32.mrb[0].mxu0
  %v4215 = vadd.f32 %v2042, %v4214
  %v4216 = vpop.f32.mrb[0].mxu0
  %v4217 = vpop.f32.mrb[0].mxu0
  %v4218 = vadd.f32 %v2043, %v4217
  %v4219 = vpop.f32.mrb[0].mxu0
  %4220 = vmatprep.mubr.bf16.mxu0 0
  %4221 = vmatmul.mubr.bf16.gmra.mrb[0].mxu0 %v4155
  %v4222 = vpop.f32.mrb[0].mxu0
  %v4223 = vadd.f32 %v2044, %v4222
  %v4224 = vpop.f32.mrb[0].mxu0
  %v4225 = vpop.f32.mrb[0].mxu0
  %v4226 = vadd.f32 %v2045, %v4225
  %v4227 = vpop.f32.mrb[0].mxu0
  %4228 = vmatprep.mubr.bf16.mxu0 0
  %4229 = vmatmul.mubr.bf16.gmra.mrb[0].mxu0 %v4158
  %v4230 = vpop.f32.mrb[0].mxu0
  %v4231 = vadd.f32 %v2046, %v4230
  %v4232 = vpop.f32.mrb[0].mxu0
  %v4233 = vpop.f32.mrb[0].mxu0
  %v4234 = vadd.f32 %v2047, %v4233
  %v4235 = vpop.f32.mrb[0].mxu0
  %4236 = vdwg.mxu0
  %4241 = vrot.lane.b32.xlu0 %v3816, 96
  %v4242 = vpop.permute.xlu0 %4241
  %4243 = vrot.lane.b32.xlu0 %v3817, 96
  %v4244 = vpop.permute.xlu0 %4243
  %4245 = vrot.lane.b32.xlu0 %v3818, 96
  %v4246 = vpop.permute.xlu0 %4245
  %4247 = vrot.lane.b32.xlu0 %v3819, 96
  %v4248 = vpop.permute.xlu0 %4247
  %v4250 = vsel %vm3844, %v3784, 0
  %v4253 = vsel %vm3844, %v3785, 0
  %v4256 = vsel %vm3844, %v3786, 0
  %v4259 = vsel %vm3844, %v3787, 0
  %v4262 = vsel %vm3844, %v4242, 0
  %v4265 = vsel %vm3844, %v4244, 0
  %v4268 = vsel %vm3844, %v4246, 0
  %v4271 = vsel %vm3844, %v4248, 0
  %4273 = vmatprep.subr.bf16.mxu0 0
  %4274 = vmatpush1.bf16.xpose.msra.mxu0 %v4262
  %4275 = vmatprep.subr.bf16.mxu0 0
  %4276 = vmatpush1.bf16.xpose.msra.mxu0 %v4265
  %4277 = vmatprep.subr.bf16.mxu0 0
  %4278 = vmatpush1.bf16.xpose.msra.mxu0 %v4268
  %4279 = vmatprep.subr.bf16.mxu0 0
  %4280 = vmatpush1.bf16.xpose.msra.mxu0 %v4271
  %4281 = vmatprep.subr.bf16.mxu0 0
  %4282 = vmatpush1.bf16.xpose.msra.mxu0 0
  %4283 = vmatprep.subr.bf16.mxu0 0
  %4284 = vmatpush1.bf16.xpose.msra.mxu0 0
  %4285 = vmatprep.subr.bf16.mxu0 0
  %4286 = vmatpush1.bf16.xpose.msra.mxu0 0
  %4287 = vmatprep.subr.bf16.mxu0 0
  %4288 = vmatpush1.bf16.xpose.msra.mxu0 0
  %4289 = vmatprep.subr.bf16.mxu0 0
  %4290 = vmatpush1.bf16.xpose.msra.mxu0 0
  %4291 = vmatprep.subr.bf16.mxu0 0
  %4292 = vmatpush1.bf16.xpose.msra.mxu0 0
  %4293 = vmatprep.subr.bf16.mxu0 0
  %4294 = vmatpush1.bf16.xpose.msra.mxu0 0
  %4295 = vmatprep.subr.bf16.mxu0 0
  %4296 = vmatpush1.bf16.xpose.msra.mxu0 0
  %4297 = vmatprep.subr.bf16.mxu0 0
  %4298 = vmatpush1.bf16.xpose.msra.mxu0 0
  %4299 = vmatprep.subr.bf16.mxu0 0
  %4300 = vmatpush1.bf16.xpose.msra.mxu0 0
  %4301 = vmatprep.subr.bf16.mxu0 0
  %4302 = vmatpush1.bf16.xpose.msra.mxu0 0
  %4303 = vmatprep.subr.bf16.mxu0 0
  %4304 = vmatpush1.bf16.xpose.msra.mxu0 0
  %4305 = vmatprep.mubr.bf16.mxu0 0
  %4306 = vmatmul.mubr.bf16.gmra.mrb[0].mxu0 %v4250
  %v4307 = vpop.f32.mrb[0].mxu0
  %v4308 = vadd.f32 %v2424, %v4307
  %v4309 = vpop.f32.mrb[0].mxu0
  %v4310 = vpop.f32.mrb[0].mxu0
  %v4311 = vadd.f32 %v2425, %v4310
  %v4312 = vpop.f32.mrb[0].mxu0
  %4313 = vmatprep.mubr.bf16.mxu0 0
  %4314 = vmatmul.mubr.bf16.gmra.mrb[0].mxu0 %v4253
  %v4315 = vpop.f32.mrb[0].mxu0
  %v4316 = vadd.f32 %v2426, %v4315
  %v4317 = vpop.f32.mrb[0].mxu0
  %v4318 = vpop.f32.mrb[0].mxu0
  %v4319 = vadd.f32 %v2427, %v4318
  %v4320 = vpop.f32.mrb[0].mxu0
  %4321 = vmatprep.mubr.bf16.mxu0 0
  %4322 = vmatmul.mubr.bf16.gmra.mrb[0].mxu0 %v4256
  %v4323 = vpop.f32.mrb[0].mxu0
  %v4324 = vadd.f32 %v2428, %v4323
  %v4325 = vpop.f32.mrb[0].mxu0
  %v4326 = vpop.f32.mrb[0].mxu0
  %v4327 = vadd.f32 %v2429, %v4326
  %v4328 = vpop.f32.mrb[0].mxu0
  %4329 = vmatprep.mubr.bf16.mxu0 0
  %4330 = vmatmul.mubr.bf16.gmra.mrb[0].mxu0 %v4259
  %v4331 = vpop.f32.mrb[0].mxu0
  %v4332 = vadd.f32 %v2430, %v4331
  %v4333 = vpop.f32.mrb[0].mxu0
  %v4334 = vpop.f32.mrb[0].mxu0
  %v4335 = vadd.f32 %v2431, %v4334
  %v4336 = vpop.f32.mrb[0].mxu0
  %4337 = vdwg.mxu0
  %4342 = vrot.lane.b32.xlu0 %v3820, 96
  %v4343 = vpop.permute.xlu0 %4342
  %4344 = vrot.lane.b32.xlu0 %v3821, 96
  %v4345 = vpop.permute.xlu0 %4344
  %4346 = vrot.lane.b32.xlu0 %v3822, 96
  %v4347 = vpop.permute.xlu0 %4346
  %4348 = vrot.lane.b32.xlu0 %v3823, 96
  %v4349 = vpop.permute.xlu0 %4348
  %v4351 = vsel %vm3844, %v3788, 0
  %v4354 = vsel %vm3844, %v3789, 0
  %v4357 = vsel %vm3844, %v3790, 0
  %v4360 = vsel %vm3844, %v3791, 0
  %v4363 = vsel %vm3844, %v4343, 0
  %v4366 = vsel %vm3844, %v4345, 0
  %v4369 = vsel %vm3844, %v4347, 0
  %v4372 = vsel %vm3844, %v4349, 0
  %4374 = vmatprep.subr.bf16.mxu0 0
  %4375 = vmatpush1.bf16.xpose.msra.mxu0 %v4363
  %4376 = vmatprep.subr.bf16.mxu0 0
  %4377 = vmatpush1.bf16.xpose.msra.mxu0 %v4366
  %4378 = vmatprep.subr.bf16.mxu0 0
  %4379 = vmatpush1.bf16.xpose.msra.mxu0 %v4369
  %4380 = vmatprep.subr.bf16.mxu0 0
  %4381 = vmatpush1.bf16.xpose.msra.mxu0 %v4372
  %4382 = vmatprep.subr.bf16.mxu0 0
  %4383 = vmatpush1.bf16.xpose.msra.mxu0 0
  %4384 = vmatprep.subr.bf16.mxu0 0
  %4385 = vmatpush1.bf16.xpose.msra.mxu0 0
  %4386 = vmatprep.subr.bf16.mxu0 0
  %4387 = vmatpush1.bf16.xpose.msra.mxu0 0
  %4388 = vmatprep.subr.bf16.mxu0 0
  %4389 = vmatpush1.bf16.xpose.msra.mxu0 0
  %4390 = vmatprep.subr.bf16.mxu0 0
  %4391 = vmatpush1.bf16.xpose.msra.mxu0 0
  %4392 = vmatprep.subr.bf16.mxu0 0
  %4393 = vmatpush1.bf16.xpose.msra.mxu0 0
  %4394 = vmatprep.subr.bf16.mxu0 0
  %4395 = vmatpush1.bf16.xpose.msra.mxu0 0
  %4396 = vmatprep.subr.bf16.mxu0 0
  %4397 = vmatpush1.bf16.xpose.msra.mxu0 0
  %4398 = vmatprep.subr.bf16.mxu0 0
  %4399 = vmatpush1.bf16.xpose.msra.mxu0 0
  %4400 = vmatprep.subr.bf16.mxu0 0
  %4401 = vmatpush1.bf16.xpose.msra.mxu0 0
  %4402 = vmatprep.subr.bf16.mxu0 0
  %4403 = vmatpush1.bf16.xpose.msra.mxu0 0
  %4404 = vmatprep.subr.bf16.mxu0 0
  %4405 = vmatpush1.bf16.xpose.msra.mxu0 0
  %4406 = vmatprep.mubr.bf16.mxu0 0
  %4407 = vmatmul.mubr.bf16.gmra.mrb[0].mxu0 %v4351
  %v4408 = vpop.f32.mrb[0].mxu0
  %v4409 = vadd.f32 %v2800, %v4408
  %v4410 = vpop.f32.mrb[0].mxu0
  %v4411 = vpop.f32.mrb[0].mxu0
  %v4412 = vadd.f32 %v2801, %v4411
  %v4413 = vpop.f32.mrb[0].mxu0
  %4414 = vmatprep.mubr.bf16.mxu0 0
  %4415 = vmatmul.mubr.bf16.gmra.mrb[0].mxu0 %v4354
  %v4416 = vpop.f32.mrb[0].mxu0
  %v4417 = vadd.f32 %v2802, %v4416
  %v4418 = vpop.f32.mrb[0].mxu0
  %v4419 = vpop.f32.mrb[0].mxu0
  %v4420 = vadd.f32 %v2803, %v4419
  %v4421 = vpop.f32.mrb[0].mxu0
  %4422 = vmatprep.mubr.bf16.mxu0 0
  %4423 = vmatmul.mubr.bf16.gmra.mrb[0].mxu0 %v4357
  %v4424 = vpop.f32.mrb[0].mxu0
  %v4425 = vadd.f32 %v2804, %v4424
  %v4426 = vpop.f32.mrb[0].mxu0
  %v4427 = vpop.f32.mrb[0].mxu0
  %v4428 = vadd.f32 %v2805, %v4427
  %v4429 = vpop.f32.mrb[0].mxu0
  %4430 = vmatprep.mubr.bf16.mxu0 0
  %4431 = vmatmul.mubr.bf16.gmra.mrb[0].mxu0 %v4360
  %v4432 = vpop.f32.mrb[0].mxu0
  %v4433 = vadd.f32 %v2806, %v4432
  %v4434 = vpop.f32.mrb[0].mxu0
  %v4435 = vpop.f32.mrb[0].mxu0
  %v4436 = vadd.f32 %v2807, %v4435
  %v4437 = vpop.f32.mrb[0].mxu0
  %4438 = vdwg.mxu0
  %4443 = vrot.lane.b32.xlu0 %v3824, 96
  %v4444 = vpop.permute.xlu0 %4443
  %4445 = vrot.lane.b32.xlu0 %v3825, 96
  %v4446 = vpop.permute.xlu0 %4445
  %4447 = vrot.lane.b32.xlu0 %v3826, 96
  %v4448 = vpop.permute.xlu0 %4447
  %4449 = vrot.lane.b32.xlu0 %v3827, 96
  %v4450 = vpop.permute.xlu0 %4449
  %v4452 = vsel %vm3844, %v3792, 0
  %v4455 = vsel %vm3844, %v3793, 0
  %v4458 = vsel %vm3844, %v3794, 0
  %v4461 = vsel %vm3844, %v3795, 0
  %v4464 = vsel %vm3844, %v4444, 0
  %v4467 = vsel %vm3844, %v4446, 0
  %v4470 = vsel %vm3844, %v4448, 0
  %v4473 = vsel %vm3844, %v4450, 0
  %4475 = vmatprep.subr.bf16.mxu0 0
  %4476 = vmatpush1.bf16.xpose.msra.mxu0 %v4464
  %4477 = vmatprep.subr.bf16.mxu0 0
  %4478 = vmatpush1.bf16.xpose.msra.mxu0 %v4467
  %4479 = vmatprep.subr.bf16.mxu0 0
  %4480 = vmatpush1.bf16.xpose.msra.mxu0 %v4470
  %4481 = vmatprep.subr.bf16.mxu0 0
  %4482 = vmatpush1.bf16.xpose.msra.mxu0 %v4473
  %4483 = vmatprep.subr.bf16.mxu0 0
  %4484 = vmatpush1.bf16.xpose.msra.mxu0 0
  %4485 = vmatprep.subr.bf16.mxu0 0
  %4486 = vmatpush1.bf16.xpose.msra.mxu0 0
  %4487 = vmatprep.subr.bf16.mxu0 0
  %4488 = vmatpush1.bf16.xpose.msra.mxu0 0
  %4489 = vmatprep.subr.bf16.mxu0 0
  %4490 = vmatpush1.bf16.xpose.msra.mxu0 0
  %4491 = vmatprep.subr.bf16.mxu0 0
  %4492 = vmatpush1.bf16.xpose.msra.mxu0 0
  %4493 = vmatprep.subr.bf16.mxu0 0
  %4494 = vmatpush1.bf16.xpose.msra.mxu0 0
  %4495 = vmatprep.subr.bf16.mxu0 0
  %4496 = vmatpush1.bf16.xpose.msra.mxu0 0
  %4497 = vmatprep.subr.bf16.mxu0 0
  %4498 = vmatpush1.bf16.xpose.msra.mxu0 0
  %4499 = vmatprep.subr.bf16.mxu0 0
  %4500 = vmatpush1.bf16.xpose.msra.mxu0 0
  %4501 = vmatprep.subr.bf16.mxu0 0
  %4502 = vmatpush1.bf16.xpose.msra.mxu0 0
  %4503 = vmatprep.subr.bf16.mxu0 0
  %4504 = vmatpush1.bf16.xpose.msra.mxu0 0
  %4505 = vmatprep.subr.bf16.mxu0 0
  %4506 = vmatpush1.bf16.xpose.msra.mxu0 0
  %4507 = vmatprep.mubr.bf16.mxu0 0
  %4508 = vmatmul.mubr.bf16.gmra.mrb[0].mxu0 %v4452
  %v4509 = vpop.f32.mrb[0].mxu0
  %v4510 = vadd.f32 %v3176, %v4509
  %v4511 = vpop.f32.mrb[0].mxu0
  %v4512 = vpop.f32.mrb[0].mxu0
  %v4513 = vadd.f32 %v3177, %v4512
  %v4514 = vpop.f32.mrb[0].mxu0
  %4515 = vmatprep.mubr.bf16.mxu0 0
  %4516 = vmatmul.mubr.bf16.gmra.mrb[0].mxu0 %v4455
  %v4517 = vpop.f32.mrb[0].mxu0
  %v4518 = vadd.f32 %v3178, %v4517
  %v4519 = vpop.f32.mrb[0].mxu0
  %v4520 = vpop.f32.mrb[0].mxu0
  %v4521 = vadd.f32 %v3179, %v4520
  %v4522 = vpop.f32.mrb[0].mxu0
  %4523 = vmatprep.mubr.bf16.mxu0 0
  %4524 = vmatmul.mubr.bf16.gmra.mrb[0].mxu0 %v4458
  %v4525 = vpop.f32.mrb[0].mxu0
  %v4526 = vadd.f32 %v3180, %v4525
  %v4527 = vpop.f32.mrb[0].mxu0
  %v4528 = vpop.f32.mrb[0].mxu0
  %v4529 = vadd.f32 %v3181, %v4528
  %v4530 = vpop.f32.mrb[0].mxu0
  %4531 = vmatprep.mubr.bf16.mxu0 0
  %4532 = vmatmul.mubr.bf16.gmra.mrb[0].mxu0 %v4461
  %v4533 = vpop.f32.mrb[0].mxu0
  %v4534 = vadd.f32 %v3182, %v4533
  %v4535 = vpop.f32.mrb[0].mxu0
  %v4536 = vpop.f32.mrb[0].mxu0
  %v4537 = vadd.f32 %v3183, %v4536
  %v4538 = vpop.f32.mrb[0].mxu0
  %4539 = vdwg.mxu0
  %4544 = vrot.lane.b32.xlu0 %v3828, 96
  %v4545 = vpop.permute.xlu0 %4544
  %4546 = vrot.lane.b32.xlu0 %v3829, 96
  %v4547 = vpop.permute.xlu0 %4546
  %4548 = vrot.lane.b32.xlu0 %v3830, 96
  %v4549 = vpop.permute.xlu0 %4548
  %4550 = vrot.lane.b32.xlu0 %v3831, 96
  %v4551 = vpop.permute.xlu0 %4550
  %v4553 = vsel %vm3844, %v3796, 0
  %v4556 = vsel %vm3844, %v3797, 0
  %v4559 = vsel %vm3844, %v3798, 0
  %v4562 = vsel %vm3844, %v3799, 0
  %v4565 = vsel %vm3844, %v4545, 0
  %v4568 = vsel %vm3844, %v4547, 0
  %v4571 = vsel %vm3844, %v4549, 0
  %v4574 = vsel %vm3844, %v4551, 0
  %4576 = vmatprep.subr.bf16.mxu0 0
  %4577 = vmatpush1.bf16.xpose.msra.mxu0 %v4565
  %4578 = vmatprep.subr.bf16.mxu0 0
  %4579 = vmatpush1.bf16.xpose.msra.mxu0 %v4568
  %4580 = vmatprep.subr.bf16.mxu0 0
  %4581 = vmatpush1.bf16.xpose.msra.mxu0 %v4571
  %4582 = vmatprep.subr.bf16.mxu0 0
  %4583 = vmatpush1.bf16.xpose.msra.mxu0 %v4574
  %4584 = vmatprep.subr.bf16.mxu0 0
  %4585 = vmatpush1.bf16.xpose.msra.mxu0 0
  %4586 = vmatprep.subr.bf16.mxu0 0
  %4587 = vmatpush1.bf16.xpose.msra.mxu0 0
  %4588 = vmatprep.subr.bf16.mxu0 0
  %4589 = vmatpush1.bf16.xpose.msra.mxu0 0
  %4590 = vmatprep.subr.bf16.mxu0 0
  %4591 = vmatpush1.bf16.xpose.msra.mxu0 0
  %4592 = vmatprep.subr.bf16.mxu0 0
  %4593 = vmatpush1.bf16.xpose.msra.mxu0 0
  %4594 = vmatprep.subr.bf16.mxu0 0
  %4595 = vmatpush1.bf16.xpose.msra.mxu0 0
  %4596 = vmatprep.subr.bf16.mxu0 0
  %4597 = vmatpush1.bf16.xpose.msra.mxu0 0
  %4598 = vmatprep.subr.bf16.mxu0 0
  %4599 = vmatpush1.bf16.xpose.msra.mxu0 0
  %4600 = vmatprep.subr.bf16.mxu0 0
  %4601 = vmatpush1.bf16.xpose.msra.mxu0 0
  %4602 = vmatprep.subr.bf16.mxu0 0
  %4603 = vmatpush1.bf16.xpose.msra.mxu0 0
  %4604 = vmatprep.subr.bf16.mxu0 0
  %4605 = vmatpush1.bf16.xpose.msra.mxu0 0
  %4606 = vmatprep.subr.bf16.mxu0 0
  %4607 = vmatpush1.bf16.xpose.msra.mxu0 0
  %4608 = vmatprep.mubr.bf16.mxu0 0
  %4609 = vmatmul.mubr.bf16.gmra.mrb[0].mxu0 %v4553
  %v4610 = vpop.f32.mrb[0].mxu0
  %v4611 = vadd.f32 %v3552, %v4610
  %v4612 = vpop.f32.mrb[0].mxu0
  %v4613 = vpop.f32.mrb[0].mxu0
  %v4614 = vadd.f32 %v3553, %v4613
  %v4615 = vpop.f32.mrb[0].mxu0
  %4616 = vmatprep.mubr.bf16.mxu0 0
  %4617 = vmatmul.mubr.bf16.gmra.mrb[0].mxu0 %v4556
  %v4618 = vpop.f32.mrb[0].mxu0
  %v4619 = vadd.f32 %v3554, %v4618
  %v4620 = vpop.f32.mrb[0].mxu0
  %v4621 = vpop.f32.mrb[0].mxu0
  %v4622 = vadd.f32 %v3555, %v4621
  %v4623 = vpop.f32.mrb[0].mxu0
  %4624 = vmatprep.mubr.bf16.mxu0 0
  %4625 = vmatmul.mubr.bf16.gmra.mrb[0].mxu0 %v4559
  %v4626 = vpop.f32.mrb[0].mxu0
  %v4627 = vadd.f32 %v3556, %v4626
  %v4628 = vpop.f32.mrb[0].mxu0
  %v4629 = vpop.f32.mrb[0].mxu0
  %v4630 = vadd.f32 %v3557, %v4629
  %v4631 = vpop.f32.mrb[0].mxu0
  %4632 = vmatprep.mubr.bf16.mxu0 0
  %4633 = vmatmul.mubr.bf16.gmra.mrb[0].mxu0 %v4562
  %v4634 = vpop.f32.mrb[0].mxu0
  %v4635 = vadd.f32 %v3558, %v4634
  %v4636 = vpop.f32.mrb[0].mxu0
  %v4637 = vpop.f32.mrb[0].mxu0
  %v4638 = vadd.f32 %v3559, %v4637
  %v4639 = vpop.f32.mrb[0].mxu0
  %4640 = vdwg.mxu0
  %vm4641 = vcmask 523264
  %v4642 = vsel %vm4641, %v3904, -inf
  %4643 = vmax.xlane.f32.xlu0 %v4642
  %v4644 = vpop.xlane.xlu0 %4643
  %v4645 = vsel %vm4641, %v3907, -inf
  %4646 = vmax.xlane.f32.xlu0 %v4645
  %v4647 = vpop.xlane.xlu0 %4646
  %v4648 = vsel %vm4641, %v3912, -inf
  %4649 = vmax.xlane.f32.xlu0 %v4648
  %v4650 = vpop.xlane.xlu0 %4649
  %v4651 = vsel %vm4641, %v3915, -inf
  %4652 = vmax.xlane.f32.xlu0 %v4651
  %v4653 = vpop.xlane.xlu0 %4652
  %v4654 = vsel %vm4641, %v3920, -inf
  %4655 = vmax.xlane.f32.xlu0 %v4654
  %v4656 = vpop.xlane.xlu0 %4655
  %v4657 = vsel %vm4641, %v3923, -inf
  %4658 = vmax.xlane.f32.xlu0 %v4657
  %v4659 = vpop.xlane.xlu0 %4658
  %v4660 = vsel %vm4641, %v3928, -inf
  %4661 = vmax.xlane.f32.xlu0 %v4660
  %v4662 = vpop.xlane.xlu0 %4661
  %v4663 = vsel %vm4641, %v3931, -inf
  %4664 = vmax.xlane.f32.xlu0 %v4663
  %v4665 = vpop.xlane.xlu0 %4664
  %v4666 = vsel %vm4641, %v4005, -inf
  %4667 = vmax.xlane.f32.xlu0 %v4666
  %v4668 = vpop.xlane.xlu0 %4667
  %v4669 = vsel %vm4641, %v4008, -inf
  %4670 = vmax.xlane.f32.xlu0 %v4669
  %v4671 = vpop.xlane.xlu0 %4670
  %v4672 = vsel %vm4641, %v4013, -inf
  %4673 = vmax.xlane.f32.xlu0 %v4672
  %v4674 = vpop.xlane.xlu0 %4673
  %v4675 = vsel %vm4641, %v4016, -inf
  %4676 = vmax.xlane.f32.xlu0 %v4675
  %v4677 = vpop.xlane.xlu0 %4676
  %v4678 = vsel %vm4641, %v4021, -inf
  %4679 = vmax.xlane.f32.xlu0 %v4678
  %v4680 = vpop.xlane.xlu0 %4679
  %v4681 = vsel %vm4641, %v4024, -inf
  %4682 = vmax.xlane.f32.xlu0 %v4681
  %v4683 = vpop.xlane.xlu0 %4682
  %v4684 = vsel %vm4641, %v4029, -inf
  %4685 = vmax.xlane.f32.xlu0 %v4684
  %v4686 = vpop.xlane.xlu0 %4685
  %v4687 = vsel %vm4641, %v4032, -inf
  %4688 = vmax.xlane.f32.xlu0 %v4687
  %v4689 = vpop.xlane.xlu0 %4688
  %v4690 = vsel %vm4641, %v4106, -inf
  %4691 = vmax.xlane.f32.xlu0 %v4690
  %v4692 = vpop.xlane.xlu0 %4691
  %v4693 = vsel %vm4641, %v4109, -inf
  %4694 = vmax.xlane.f32.xlu0 %v4693
  %v4695 = vpop.xlane.xlu0 %4694
  %v4696 = vsel %vm4641, %v4114, -inf
  %4697 = vmax.xlane.f32.xlu0 %v4696
  %v4698 = vpop.xlane.xlu0 %4697
  %v4699 = vsel %vm4641, %v4117, -inf
  %4700 = vmax.xlane.f32.xlu0 %v4699
  %v4701 = vpop.xlane.xlu0 %4700
  %v4702 = vsel %vm4641, %v4122, -inf
  %4703 = vmax.xlane.f32.xlu0 %v4702
  %v4704 = vpop.xlane.xlu0 %4703
  %v4705 = vsel %vm4641, %v4125, -inf
  %4706 = vmax.xlane.f32.xlu0 %v4705
  %v4707 = vpop.xlane.xlu0 %4706
  %v4708 = vsel %vm4641, %v4130, -inf
  %4709 = vmax.xlane.f32.xlu0 %v4708
  %v4710 = vpop.xlane.xlu0 %4709
  %v4711 = vsel %vm4641, %v4133, -inf
  %4712 = vmax.xlane.f32.xlu0 %v4711
  %v4713 = vpop.xlane.xlu0 %4712
  %v4714 = vsel %vm4641, %v4207, -inf
  %4715 = vmax.xlane.f32.xlu0 %v4714
  %v4716 = vpop.xlane.xlu0 %4715
  %v4717 = vsel %vm4641, %v4210, -inf
  %4718 = vmax.xlane.f32.xlu0 %v4717
  %v4719 = vpop.xlane.xlu0 %4718
  %v4720 = vsel %vm4641, %v4215, -inf
  %4721 = vmax.xlane.f32.xlu0 %v4720
  %v4722 = vpop.xlane.xlu0 %4721
  %v4723 = vsel %vm4641, %v4218, -inf
  %4724 = vmax.xlane.f32.xlu0 %v4723
  %v4725 = vpop.xlane.xlu0 %4724
  %v4726 = vsel %vm4641, %v4223, -inf
  %4727 = vmax.xlane.f32.xlu0 %v4726
  %v4728 = vpop.xlane.xlu0 %4727
  %v4729 = vsel %vm4641, %v4226, -inf
  %4730 = vmax.xlane.f32.xlu0 %v4729
  %v4731 = vpop.xlane.xlu0 %4730
  %v4732 = vsel %vm4641, %v4231, -inf
  %4733 = vmax.xlane.f32.xlu0 %v4732
  %v4734 = vpop.xlane.xlu0 %4733
  %v4735 = vsel %vm4641, %v4234, -inf
  %4736 = vmax.xlane.f32.xlu0 %v4735
  %v4737 = vpop.xlane.xlu0 %4736
  %v4738 = vsel %vm4641, %v4308, -inf
  %4739 = vmax.xlane.f32.xlu0 %v4738
  %v4740 = vpop.xlane.xlu0 %4739
  %v4741 = vsel %vm4641, %v4311, -inf
  %4742 = vmax.xlane.f32.xlu0 %v4741
  %v4743 = vpop.xlane.xlu0 %4742
  %v4744 = vsel %vm4641, %v4316, -inf
  %4745 = vmax.xlane.f32.xlu0 %v4744
  %v4746 = vpop.xlane.xlu0 %4745
  %v4747 = vsel %vm4641, %v4319, -inf
  %4748 = vmax.xlane.f32.xlu0 %v4747
  %v4749 = vpop.xlane.xlu0 %4748
  %v4750 = vsel %vm4641, %v4324, -inf
  %4751 = vmax.xlane.f32.xlu0 %v4750
  %v4752 = vpop.xlane.xlu0 %4751
  %v4753 = vsel %vm4641, %v4327, -inf
  %4754 = vmax.xlane.f32.xlu0 %v4753
  %v4755 = vpop.xlane.xlu0 %4754
  %v4756 = vsel %vm4641, %v4332, -inf
  %4757 = vmax.xlane.f32.xlu0 %v4756
  %v4758 = vpop.xlane.xlu0 %4757
  %v4759 = vsel %vm4641, %v4335, -inf
  %4760 = vmax.xlane.f32.xlu0 %v4759
  %v4761 = vpop.xlane.xlu0 %4760
  %v4762 = vsel %vm4641, %v4409, -inf
  %4763 = vmax.xlane.f32.xlu0 %v4762
  %v4764 = vpop.xlane.xlu0 %4763
  %v4765 = vsel %vm4641, %v4412, -inf
  %4766 = vmax.xlane.f32.xlu0 %v4765
  %v4767 = vpop.xlane.xlu0 %4766
  %v4768 = vsel %vm4641, %v4417, -inf
  %4769 = vmax.xlane.f32.xlu0 %v4768
  %v4770 = vpop.xlane.xlu0 %4769
  %v4771 = vsel %vm4641, %v4420, -inf
  %4772 = vmax.xlane.f32.xlu0 %v4771
  %v4773 = vpop.xlane.xlu0 %4772
  %v4774 = vsel %vm4641, %v4425, -inf
  %4775 = vmax.xlane.f32.xlu0 %v4774
  %v4776 = vpop.xlane.xlu0 %4775
  %v4777 = vsel %vm4641, %v4428, -inf
  %4778 = vmax.xlane.f32.xlu0 %v4777
  %v4779 = vpop.xlane.xlu0 %4778
  %v4780 = vsel %vm4641, %v4433, -inf
  %4781 = vmax.xlane.f32.xlu0 %v4780
  %v4782 = vpop.xlane.xlu0 %4781
  %v4783 = vsel %vm4641, %v4436, -inf
  %4784 = vmax.xlane.f32.xlu0 %v4783
  %v4785 = vpop.xlane.xlu0 %4784
  %v4786 = vsel %vm4641, %v4510, -inf
  %4787 = vmax.xlane.f32.xlu0 %v4786
  %v4788 = vpop.xlane.xlu0 %4787
  %v4789 = vsel %vm4641, %v4513, -inf
  %4790 = vmax.xlane.f32.xlu0 %v4789
  %v4791 = vpop.xlane.xlu0 %4790
  %v4792 = vsel %vm4641, %v4518, -inf
  %4793 = vmax.xlane.f32.xlu0 %v4792
  %v4794 = vpop.xlane.xlu0 %4793
  %v4795 = vsel %vm4641, %v4521, -inf
  %4796 = vmax.xlane.f32.xlu0 %v4795
  %v4797 = vpop.xlane.xlu0 %4796
  %v4798 = vsel %vm4641, %v4526, -inf
  %4799 = vmax.xlane.f32.xlu0 %v4798
  %v4800 = vpop.xlane.xlu0 %4799
  %v4801 = vsel %vm4641, %v4529, -inf
  %4802 = vmax.xlane.f32.xlu0 %v4801
  %v4803 = vpop.xlane.xlu0 %4802
  %v4804 = vsel %vm4641, %v4534, -inf
  %4805 = vmax.xlane.f32.xlu0 %v4804
  %v4806 = vpop.xlane.xlu0 %4805
  %v4807 = vsel %vm4641, %v4537, -inf
  %4808 = vmax.xlane.f32.xlu0 %v4807
  %v4809 = vpop.xlane.xlu0 %4808
  %v4810 = vsel %vm4641, %v4611, -inf
  %4811 = vmax.xlane.f32.xlu0 %v4810
  %v4812 = vpop.xlane.xlu0 %4811
  %v4813 = vsel %vm4641, %v4614, -inf
  %4814 = vmax.xlane.f32.xlu0 %v4813
  %v4815 = vpop.xlane.xlu0 %4814
  %v4816 = vsel %vm4641, %v4619, -inf
  %4817 = vmax.xlane.f32.xlu0 %v4816
  %v4818 = vpop.xlane.xlu0 %4817
  %v4819 = vsel %vm4641, %v4622, -inf
  %4820 = vmax.xlane.f32.xlu0 %v4819
  %v4821 = vpop.xlane.xlu0 %4820
  %v4822 = vsel %vm4641, %v4627, -inf
  %4823 = vmax.xlane.f32.xlu0 %v4822
  %v4824 = vpop.xlane.xlu0 %4823
  %v4825 = vsel %vm4641, %v4630, -inf
  %4826 = vmax.xlane.f32.xlu0 %v4825
  %v4827 = vpop.xlane.xlu0 %4826
  %v4828 = vsel %vm4641, %v4635, -inf
  %4829 = vmax.xlane.f32.xlu0 %v4828
  %v4830 = vpop.xlane.xlu0 %4829
  %v4831 = vsel %vm4641, %v4638, -inf
  %4832 = vmax.xlane.f32.xlu0 %v4831
  %v4833 = vpop.xlane.xlu0 %4832
  %v4834 = vsub.f32 %v3904, %v4644
  %v4835 = vsub.f32 %v3907, %v4647
  %v4836 = vsub.f32 %v3912, %v4650
  %v4837 = vsub.f32 %v3915, %v4653
  %v4838 = vsub.f32 %v3920, %v4656
  %v4839 = vsub.f32 %v3923, %v4659
  %v4840 = vsub.f32 %v3928, %v4662
  %v4841 = vsub.f32 %v3931, %v4665
  %v4842 = vsub.f32 %v4005, %v4668
  %v4843 = vsub.f32 %v4008, %v4671
  %v4844 = vsub.f32 %v4013, %v4674
  %v4845 = vsub.f32 %v4016, %v4677
  %v4846 = vsub.f32 %v4021, %v4680
  %v4847 = vsub.f32 %v4024, %v4683
  %v4848 = vsub.f32 %v4029, %v4686
  %v4849 = vsub.f32 %v4032, %v4689
  %v4850 = vsub.f32 %v4106, %v4692
  %v4851 = vsub.f32 %v4109, %v4695
  %v4852 = vsub.f32 %v4114, %v4698
  %v4853 = vsub.f32 %v4117, %v4701
  %v4854 = vsub.f32 %v4122, %v4704
  %v4855 = vsub.f32 %v4125, %v4707
  %v4856 = vsub.f32 %v4130, %v4710
  %v4857 = vsub.f32 %v4133, %v4713
  %v4858 = vsub.f32 %v4207, %v4716
  %v4859 = vsub.f32 %v4210, %v4719
  %v4860 = vsub.f32 %v4215, %v4722
  %v4861 = vsub.f32 %v4218, %v4725
  %v4862 = vsub.f32 %v4223, %v4728
  %v4863 = vsub.f32 %v4226, %v4731
  %v4864 = vsub.f32 %v4231, %v4734
  %v4865 = vsub.f32 %v4234, %v4737
  %v4866 = vsub.f32 %v4308, %v4740
  %v4867 = vsub.f32 %v4311, %v4743
  %v4868 = vsub.f32 %v4316, %v4746
  %v4869 = vsub.f32 %v4319, %v4749
  %v4870 = vsub.f32 %v4324, %v4752
  %v4871 = vsub.f32 %v4327, %v4755
  %v4872 = vsub.f32 %v4332, %v4758
  %v4873 = vsub.f32 %v4335, %v4761
  %v4874 = vsub.f32 %v4409, %v4764
  %v4875 = vsub.f32 %v4412, %v4767
  %v4876 = vsub.f32 %v4417, %v4770
  %v4877 = vsub.f32 %v4420, %v4773
  %v4878 = vsub.f32 %v4425, %v4776
  %v4879 = vsub.f32 %v4428, %v4779
  %v4880 = vsub.f32 %v4433, %v4782
  %v4881 = vsub.f32 %v4436, %v4785
  %v4882 = vsub.f32 %v4510, %v4788
  %v4883 = vsub.f32 %v4513, %v4791
  %v4884 = vsub.f32 %v4518, %v4794
  %v4885 = vsub.f32 %v4521, %v4797
  %v4886 = vsub.f32 %v4526, %v4800
  %v4887 = vsub.f32 %v4529, %v4803
  %v4888 = vsub.f32 %v4534, %v4806
  %v4889 = vsub.f32 %v4537, %v4809
  %v4890 = vsub.f32 %v4611, %v4812
  %v4891 = vsub.f32 %v4614, %v4815
  %v4892 = vsub.f32 %v4619, %v4818
  %v4893 = vsub.f32 %v4622, %v4821
  %v4894 = vsub.f32 %v4627, %v4824
  %v4895 = vsub.f32 %v4630, %v4827
  %v4896 = vsub.f32 %v4635, %v4830
  %v4897 = vsub.f32 %v4638, %v4833
  %v4898 = vmul.f32 %v4834, 1.442695
  %v4899 = vpow.pop %v4898
  %v4900 = vmul.f32 %v4835, 1.442695
  %v4901 = vpow.pop %v4900
  %v4902 = vmul.f32 %v4836, 1.442695
  %v4903 = vpow.pop %v4902
  %v4904 = vmul.f32 %v4837, 1.442695
  %v4905 = vpow.pop %v4904
  %v4906 = vmul.f32 %v4838, 1.442695
  %v4907 = vpow.pop %v4906
  %v4908 = vmul.f32 %v4839, 1.442695
  %v4909 = vpow.pop %v4908
  %v4910 = vmul.f32 %v4840, 1.442695
  %v4911 = vpow.pop %v4910
  %v4912 = vmul.f32 %v4841, 1.442695
  %v4913 = vpow.pop %v4912
  %v4914 = vmul.f32 %v4842, 1.442695
  %v4915 = vpow.pop %v4914
  %v4916 = vmul.f32 %v4843, 1.442695
  %v4917 = vpow.pop %v4916
  %v4918 = vmul.f32 %v4844, 1.442695
  %v4919 = vpow.pop %v4918
  %v4920 = vmul.f32 %v4845, 1.442695
  %v4921 = vpow.pop %v4920
  %v4922 = vmul.f32 %v4846, 1.442695
  %v4923 = vpow.pop %v4922
  %v4924 = vmul.f32 %v4847, 1.442695
  %v4925 = vpow.pop %v4924
  %v4926 = vmul.f32 %v4848, 1.442695
  %v4927 = vpow.pop %v4926
  %v4928 = vmul.f32 %v4849, 1.442695
  %v4929 = vpow.pop %v4928
  %v4930 = vmul.f32 %v4850, 1.442695
  %v4931 = vpow.pop %v4930
  %v4932 = vmul.f32 %v4851, 1.442695
  %v4933 = vpow.pop %v4932
  %v4934 = vmul.f32 %v4852, 1.442695
  %v4935 = vpow.pop %v4934
  %v4936 = vmul.f32 %v4853, 1.442695
  %v4937 = vpow.pop %v4936
  %v4938 = vmul.f32 %v4854, 1.442695
  %v4939 = vpow.pop %v4938
  %v4940 = vmul.f32 %v4855, 1.442695
  %v4941 = vpow.pop %v4940
  %v4942 = vmul.f32 %v4856, 1.442695
  %v4943 = vpow.pop %v4942
  %v4944 = vmul.f32 %v4857, 1.442695
  %v4945 = vpow.pop %v4944
  %v4946 = vmul.f32 %v4858, 1.442695
  %v4947 = vpow.pop %v4946
  %v4948 = vmul.f32 %v4859, 1.442695
  %v4949 = vpow.pop %v4948
  %v4950 = vmul.f32 %v4860, 1.442695
  %v4951 = vpow.pop %v4950
  %v4952 = vmul.f32 %v4861, 1.442695
  %v4953 = vpow.pop %v4952
  %v4954 = vmul.f32 %v4862, 1.442695
  %v4955 = vpow.pop %v4954
  %v4956 = vmul.f32 %v4863, 1.442695
  %v4957 = vpow.pop %v4956
  %v4958 = vmul.f32 %v4864, 1.442695
  %v4959 = vpow.pop %v4958
  %v4960 = vmul.f32 %v4865, 1.442695
  %v4961 = vpow.pop %v4960
  %v4962 = vmul.f32 %v4866, 1.442695
  %v4963 = vpow.pop %v4962
  %v4964 = vmul.f32 %v4867, 1.442695
  %v4965 = vpow.pop %v4964
  %v4966 = vmul.f32 %v4868, 1.442695
  %v4967 = vpow.pop %v4966
  %v4968 = vmul.f32 %v4869, 1.442695
  %v4969 = vpow.pop %v4968
  %v4970 = vmul.f32 %v4870, 1.442695
  %v4971 = vpow.pop %v4970
  %v4972 = vmul.f32 %v4871, 1.442695
  %v4973 = vpow.pop %v4972
  %v4974 = vmul.f32 %v4872, 1.442695
  %v4975 = vpow.pop %v4974
  %v4976 = vmul.f32 %v4873, 1.442695
  %v4977 = vpow.pop %v4976
  %v4978 = vmul.f32 %v4874, 1.442695
  %v4979 = vpow.pop %v4978
  %v4980 = vmul.f32 %v4875, 1.442695
  %v4981 = vpow.pop %v4980
  %v4982 = vmul.f32 %v4876, 1.442695
  %v4983 = vpow.pop %v4982
  %v4984 = vmul.f32 %v4877, 1.442695
  %v4985 = vpow.pop %v4984
  %v4986 = vmul.f32 %v4878, 1.442695
  %v4987 = vpow.pop %v4986
  %v4988 = vmul.f32 %v4879, 1.442695
  %v4989 = vpow.pop %v4988
  %v4990 = vmul.f32 %v4880, 1.442695
  %v4991 = vpow.pop %v4990
  %v4992 = vmul.f32 %v4881, 1.442695
  %v4993 = vpow.pop %v4992
  %v4994 = vmul.f32 %v4882, 1.442695
  %v4995 = vpow.pop %v4994
  %v4996 = vmul.f32 %v4883, 1.442695
  %v4997 = vpow.pop %v4996
  %v4998 = vmul.f32 %v4884, 1.442695
  %v4999 = vpow.pop %v4998
  %v5000 = vmul.f32 %v4885, 1.442695
  %v5001 = vpow.pop %v5000
  %v5002 = vmul.f32 %v4886, 1.442695
  %v5003 = vpow.pop %v5002
  %v5004 = vmul.f32 %v4887, 1.442695
  %v5005 = vpow.pop %v5004
  %v5006 = vmul.f32 %v4888, 1.442695
  %v5007 = vpow.pop %v5006
  %v5008 = vmul.f32 %v4889, 1.442695
  %v5009 = vpow.pop %v5008
  %v5010 = vmul.f32 %v4890, 1.442695
  %v5011 = vpow.pop %v5010
  %v5012 = vmul.f32 %v4891, 1.442695
  %v5013 = vpow.pop %v5012
  %v5014 = vmul.f32 %v4892, 1.442695
  %v5015 = vpow.pop %v5014
  %v5016 = vmul.f32 %v4893, 1.442695
  %v5017 = vpow.pop %v5016
  %v5018 = vmul.f32 %v4894, 1.442695
  %v5019 = vpow.pop %v5018
  %v5020 = vmul.f32 %v4895, 1.442695
  %v5021 = vpow.pop %v5020
  %v5022 = vmul.f32 %v4896, 1.442695
  %v5023 = vpow.pop %v5022
  %v5024 = vmul.f32 %v4897, 1.442695
  %v5025 = vpow.pop %v5024
  %v5026 = vsel %vm4641, %v4899, 0.0
  %5027 = vadd.xlane.f32.xlu0 %v5026
  %v5028 = vpop.xlane.xlu0 %5027
  %v5029 = vsel %vm4641, %v4901, 0.0
  %5030 = vadd.xlane.f32.xlu0 %v5029
  %v5031 = vpop.xlane.xlu0 %5030
  %v5032 = vsel %vm4641, %v4903, 0.0
  %5033 = vadd.xlane.f32.xlu0 %v5032
  %v5034 = vpop.xlane.xlu0 %5033
  %v5035 = vsel %vm4641, %v4905, 0.0
  %5036 = vadd.xlane.f32.xlu0 %v5035
  %v5037 = vpop.xlane.xlu0 %5036
  %v5038 = vsel %vm4641, %v4907, 0.0
  %5039 = vadd.xlane.f32.xlu0 %v5038
  %v5040 = vpop.xlane.xlu0 %5039
  %v5041 = vsel %vm4641, %v4909, 0.0
  %5042 = vadd.xlane.f32.xlu0 %v5041
  %v5043 = vpop.xlane.xlu0 %5042
  %v5044 = vsel %vm4641, %v4911, 0.0
  %5045 = vadd.xlane.f32.xlu0 %v5044
  %v5046 = vpop.xlane.xlu0 %5045
  %v5047 = vsel %vm4641, %v4913, 0.0
  %5048 = vadd.xlane.f32.xlu0 %v5047
  %v5049 = vpop.xlane.xlu0 %5048
  %v5050 = vsel %vm4641, %v4915, 0.0
  %5051 = vadd.xlane.f32.xlu0 %v5050
  %v5052 = vpop.xlane.xlu0 %5051
  %v5053 = vsel %vm4641, %v4917, 0.0
  %5054 = vadd.xlane.f32.xlu0 %v5053
  %v5055 = vpop.xlane.xlu0 %5054
  %v5056 = vsel %vm4641, %v4919, 0.0
  %5057 = vadd.xlane.f32.xlu0 %v5056
  %v5058 = vpop.xlane.xlu0 %5057
  %v5059 = vsel %vm4641, %v4921, 0.0
  %5060 = vadd.xlane.f32.xlu0 %v5059
  %v5061 = vpop.xlane.xlu0 %5060
  %v5062 = vsel %vm4641, %v4923, 0.0
  %5063 = vadd.xlane.f32.xlu0 %v5062
  %v5064 = vpop.xlane.xlu0 %5063
  %v5065 = vsel %vm4641, %v4925, 0.0
  %5066 = vadd.xlane.f32.xlu0 %v5065
  %v5067 = vpop.xlane.xlu0 %5066
  %v5068 = vsel %vm4641, %v4927, 0.0
  %5069 = vadd.xlane.f32.xlu0 %v5068
  %v5070 = vpop.xlane.xlu0 %5069
  %v5071 = vsel %vm4641, %v4929, 0.0
  %5072 = vadd.xlane.f32.xlu0 %v5071
  %v5073 = vpop.xlane.xlu0 %5072
  %v5074 = vsel %vm4641, %v4931, 0.0
  %5075 = vadd.xlane.f32.xlu0 %v5074
  %v5076 = vpop.xlane.xlu0 %5075
  %v5077 = vsel %vm4641, %v4933, 0.0
  %5078 = vadd.xlane.f32.xlu0 %v5077
  %v5079 = vpop.xlane.xlu0 %5078
  %v5080 = vsel %vm4641, %v4935, 0.0
  %5081 = vadd.xlane.f32.xlu0 %v5080
  %v5082 = vpop.xlane.xlu0 %5081
  %v5083 = vsel %vm4641, %v4937, 0.0
  %5084 = vadd.xlane.f32.xlu0 %v5083
  %v5085 = vpop.xlane.xlu0 %5084
  %v5086 = vsel %vm4641, %v4939, 0.0
  %5087 = vadd.xlane.f32.xlu0 %v5086
  %v5088 = vpop.xlane.xlu0 %5087
  %v5089 = vsel %vm4641, %v4941, 0.0
  %5090 = vadd.xlane.f32.xlu0 %v5089
  %v5091 = vpop.xlane.xlu0 %5090
  %v5092 = vsel %vm4641, %v4943, 0.0
  %5093 = vadd.xlane.f32.xlu0 %v5092
  %v5094 = vpop.xlane.xlu0 %5093
  %v5095 = vsel %vm4641, %v4945, 0.0
  %5096 = vadd.xlane.f32.xlu0 %v5095
  %v5097 = vpop.xlane.xlu0 %5096
  %v5098 = vsel %vm4641, %v4947, 0.0
  %5099 = vadd.xlane.f32.xlu0 %v5098
  %v5100 = vpop.xlane.xlu0 %5099
  %v5101 = vsel %vm4641, %v4949, 0.0
  %5102 = vadd.xlane.f32.xlu0 %v5101
  %v5103 = vpop.xlane.xlu0 %5102
  %v5104 = vsel %vm4641, %v4951, 0.0
  %5105 = vadd.xlane.f32.xlu0 %v5104
  %v5106 = vpop.xlane.xlu0 %5105
  %v5107 = vsel %vm4641, %v4953, 0.0
  %5108 = vadd.xlane.f32.xlu0 %v5107
  %v5109 = vpop.xlane.xlu0 %5108
  %v5110 = vsel %vm4641, %v4955, 0.0
  %5111 = vadd.xlane.f32.xlu0 %v5110
  %v5112 = vpop.xlane.xlu0 %5111
  %v5113 = vsel %vm4641, %v4957, 0.0
  %5114 = vadd.xlane.f32.xlu0 %v5113
  %v5115 = vpop.xlane.xlu0 %5114
  %v5116 = vsel %vm4641, %v4959, 0.0
  %5117 = vadd.xlane.f32.xlu0 %v5116
  %v5118 = vpop.xlane.xlu0 %5117
  %v5119 = vsel %vm4641, %v4961, 0.0
  %5120 = vadd.xlane.f32.xlu0 %v5119
  %v5121 = vpop.xlane.xlu0 %5120
  %v5122 = vsel %vm4641, %v4963, 0.0
  %5123 = vadd.xlane.f32.xlu0 %v5122
  %v5124 = vpop.xlane.xlu0 %5123
  %v5125 = vsel %vm4641, %v4965, 0.0
  %5126 = vadd.xlane.f32.xlu0 %v5125
  %v5127 = vpop.xlane.xlu0 %5126
  %v5128 = vsel %vm4641, %v4967, 0.0
  %5129 = vadd.xlane.f32.xlu0 %v5128
  %v5130 = vpop.xlane.xlu0 %5129
  %v5131 = vsel %vm4641, %v4969, 0.0
  %5132 = vadd.xlane.f32.xlu0 %v5131
  %v5133 = vpop.xlane.xlu0 %5132
  %v5134 = vsel %vm4641, %v4971, 0.0
  %5135 = vadd.xlane.f32.xlu0 %v5134
  %v5136 = vpop.xlane.xlu0 %5135
  %v5137 = vsel %vm4641, %v4973, 0.0
  %5138 = vadd.xlane.f32.xlu0 %v5137
  %v5139 = vpop.xlane.xlu0 %5138
  %v5140 = vsel %vm4641, %v4975, 0.0
  %5141 = vadd.xlane.f32.xlu0 %v5140
  %v5142 = vpop.xlane.xlu0 %5141
  %v5143 = vsel %vm4641, %v4977, 0.0
  %5144 = vadd.xlane.f32.xlu0 %v5143
  %v5145 = vpop.xlane.xlu0 %5144
  %v5146 = vsel %vm4641, %v4979, 0.0
  %5147 = vadd.xlane.f32.xlu0 %v5146
  %v5148 = vpop.xlane.xlu0 %5147
  %v5149 = vsel %vm4641, %v4981, 0.0
  %5150 = vadd.xlane.f32.xlu0 %v5149
  %v5151 = vpop.xlane.xlu0 %5150
  %v5152 = vsel %vm4641, %v4983, 0.0
  %5153 = vadd.xlane.f32.xlu0 %v5152
  %v5154 = vpop.xlane.xlu0 %5153
  %v5155 = vsel %vm4641, %v4985, 0.0
  %5156 = vadd.xlane.f32.xlu0 %v5155
  %v5157 = vpop.xlane.xlu0 %5156
  %v5158 = vsel %vm4641, %v4987, 0.0
  %5159 = vadd.xlane.f32.xlu0 %v5158
  %v5160 = vpop.xlane.xlu0 %5159
  %v5161 = vsel %vm4641, %v4989, 0.0
  %5162 = vadd.xlane.f32.xlu0 %v5161
  %v5163 = vpop.xlane.xlu0 %5162
  %v5164 = vsel %vm4641, %v4991, 0.0
  %5165 = vadd.xlane.f32.xlu0 %v5164
  %v5166 = vpop.xlane.xlu0 %5165
  %v5167 = vsel %vm4641, %v4993, 0.0
  %5168 = vadd.xlane.f32.xlu0 %v5167
  %v5169 = vpop.xlane.xlu0 %5168
  %v5170 = vsel %vm4641, %v4995, 0.0
  %5171 = vadd.xlane.f32.xlu0 %v5170
  %v5172 = vpop.xlane.xlu0 %5171
  %v5173 = vsel %vm4641, %v4997, 0.0
  %5174 = vadd.xlane.f32.xlu0 %v5173
  %v5175 = vpop.xlane.xlu0 %5174
  %v5176 = vsel %vm4641, %v4999, 0.0
  %5177 = vadd.xlane.f32.xlu0 %v5176
  %v5178 = vpop.xlane.xlu0 %5177
  %v5179 = vsel %vm4641, %v5001, 0.0
  %5180 = vadd.xlane.f32.xlu0 %v5179
  %v5181 = vpop.xlane.xlu0 %5180
  %v5182 = vsel %vm4641, %v5003, 0.0
  %5183 = vadd.xlane.f32.xlu0 %v5182
  %v5184 = vpop.xlane.xlu0 %5183
  %v5185 = vsel %vm4641, %v5005, 0.0
  %5186 = vadd.xlane.f32.xlu0 %v5185
  %v5187 = vpop.xlane.xlu0 %5186
  %v5188 = vsel %vm4641, %v5007, 0.0
  %5189 = vadd.xlane.f32.xlu0 %v5188
  %v5190 = vpop.xlane.xlu0 %5189
  %v5191 = vsel %vm4641, %v5009, 0.0
  %5192 = vadd.xlane.f32.xlu0 %v5191
  %v5193 = vpop.xlane.xlu0 %5192
  %v5194 = vsel %vm4641, %v5011, 0.0
  %5195 = vadd.xlane.f32.xlu0 %v5194
  %v5196 = vpop.xlane.xlu0 %5195
  %v5197 = vsel %vm4641, %v5013, 0.0
  %5198 = vadd.xlane.f32.xlu0 %v5197
  %v5199 = vpop.xlane.xlu0 %5198
  %v5200 = vsel %vm4641, %v5015, 0.0
  %5201 = vadd.xlane.f32.xlu0 %v5200
  %v5202 = vpop.xlane.xlu0 %5201
  %v5203 = vsel %vm4641, %v5017, 0.0
  %5204 = vadd.xlane.f32.xlu0 %v5203
  %v5205 = vpop.xlane.xlu0 %5204
  %v5206 = vsel %vm4641, %v5019, 0.0
  %5207 = vadd.xlane.f32.xlu0 %v5206
  %v5208 = vpop.xlane.xlu0 %5207
  %v5209 = vsel %vm4641, %v5021, 0.0
  %5210 = vadd.xlane.f32.xlu0 %v5209
  %v5211 = vpop.xlane.xlu0 %5210
  %v5212 = vsel %vm4641, %v5023, 0.0
  %5213 = vadd.xlane.f32.xlu0 %v5212
  %v5214 = vpop.xlane.xlu0 %5213
  %v5215 = vsel %vm4641, %v5025, 0.0
  %5216 = vadd.xlane.f32.xlu0 %v5215
  %v5217 = vpop.xlane.xlu0 %5216
  %v5218 = vrcp.pop %v5028
  %v5219 = vrcp.pop %v5031
  %v5220 = vrcp.pop %v5034
  %v5221 = vrcp.pop %v5037
  %v5222 = vrcp.pop %v5040
  %v5223 = vrcp.pop %v5043
  %v5224 = vrcp.pop %v5046
  %v5225 = vrcp.pop %v5049
  %v5226 = vrcp.pop %v5052
  %v5227 = vrcp.pop %v5055
  %v5228 = vrcp.pop %v5058
  %v5229 = vrcp.pop %v5061
  %v5230 = vrcp.pop %v5064
  %v5231 = vrcp.pop %v5067
  %v5232 = vrcp.pop %v5070
  %v5233 = vrcp.pop %v5073
  %v5234 = vrcp.pop %v5076
  %v5235 = vrcp.pop %v5079
  %v5236 = vrcp.pop %v5082
  %v5237 = vrcp.pop %v5085
  %v5238 = vrcp.pop %v5088
  %v5239 = vrcp.pop %v5091
  %v5240 = vrcp.pop %v5094
  %v5241 = vrcp.pop %v5097
  %v5242 = vrcp.pop %v5100
  %v5243 = vrcp.pop %v5103
  %v5244 = vrcp.pop %v5106
  %v5245 = vrcp.pop %v5109
  %v5246 = vrcp.pop %v5112
  %v5247 = vrcp.pop %v5115
  %v5248 = vrcp.pop %v5118
  %v5249 = vrcp.pop %v5121
  %v5250 = vrcp.pop %v5124
  %v5251 = vrcp.pop %v5127
  %v5252 = vrcp.pop %v5130
  %v5253 = vrcp.pop %v5133
  %v5254 = vrcp.pop %v5136
  %v5255 = vrcp.pop %v5139
  %v5256 = vrcp.pop %v5142
  %v5257 = vrcp.pop %v5145
  %v5258 = vrcp.pop %v5148
  %v5259 = vrcp.pop %v5151
  %v5260 = vrcp.pop %v5154
  %v5261 = vrcp.pop %v5157
  %v5262 = vrcp.pop %v5160
  %v5263 = vrcp.pop %v5163
  %v5264 = vrcp.pop %v5166
  %v5265 = vrcp.pop %v5169
  %v5266 = vrcp.pop %v5172
  %v5267 = vrcp.pop %v5175
  %v5268 = vrcp.pop %v5178
  %v5269 = vrcp.pop %v5181
  %v5270 = vrcp.pop %v5184
  %v5271 = vrcp.pop %v5187
  %v5272 = vrcp.pop %v5190
  %v5273 = vrcp.pop %v5193
  %v5274 = vrcp.pop %v5196
  %v5275 = vrcp.pop %v5199
  %v5276 = vrcp.pop %v5202
  %v5277 = vrcp.pop %v5205
  %v5278 = vrcp.pop %v5208
  %v5279 = vrcp.pop %v5211
  %v5280 = vrcp.pop %v5214
  %v5281 = vrcp.pop %v5217
  %v5282 = vmul.f32 %v4899, %v5218
  %v5283 = vmul.f32 %v4901, %v5219
  %v5284 = vmul.f32 %v4903, %v5220
  %v5285 = vmul.f32 %v4905, %v5221
  %v5286 = vmul.f32 %v4907, %v5222
  %v5287 = vmul.f32 %v4909, %v5223
  %v5288 = vmul.f32 %v4911, %v5224
  %v5289 = vmul.f32 %v4913, %v5225
  %v5290 = vmul.f32 %v4915, %v5226
  %v5291 = vmul.f32 %v4917, %v5227
  %v5292 = vmul.f32 %v4919, %v5228
  %v5293 = vmul.f32 %v4921, %v5229
  %v5294 = vmul.f32 %v4923, %v5230
  %v5295 = vmul.f32 %v4925, %v5231
  %v5296 = vmul.f32 %v4927, %v5232
  %v5297 = vmul.f32 %v4929, %v5233
  %v5298 = vmul.f32 %v4931, %v5234
  %v5299 = vmul.f32 %v4933, %v5235
  %v5300 = vmul.f32 %v4935, %v5236
  %v5301 = vmul.f32 %v4937, %v5237
  %v5302 = vmul.f32 %v4939, %v5238
  %v5303 = vmul.f32 %v4941, %v5239
  %v5304 = vmul.f32 %v4943, %v5240
  %v5305 = vmul.f32 %v4945, %v5241
  %v5306 = vmul.f32 %v4947, %v5242
  %v5307 = vmul.f32 %v4949, %v5243
  %v5308 = vmul.f32 %v4951, %v5244
  %v5309 = vmul.f32 %v4953, %v5245
  %v5310 = vmul.f32 %v4955, %v5246
  %v5311 = vmul.f32 %v4957, %v5247
  %v5312 = vmul.f32 %v4959, %v5248
  %v5313 = vmul.f32 %v4961, %v5249
  %v5314 = vmul.f32 %v4963, %v5250
  %v5315 = vmul.f32 %v4965, %v5251
  %v5316 = vmul.f32 %v4967, %v5252
  %v5317 = vmul.f32 %v4969, %v5253
  %v5318 = vmul.f32 %v4971, %v5254
  %v5319 = vmul.f32 %v4973, %v5255
  %v5320 = vmul.f32 %v4975, %v5256
  %v5321 = vmul.f32 %v4977, %v5257
  %v5322 = vmul.f32 %v4979, %v5258
  %v5323 = vmul.f32 %v4981, %v5259
  %v5324 = vmul.f32 %v4983, %v5260
  %v5325 = vmul.f32 %v4985, %v5261
  %v5326 = vmul.f32 %v4987, %v5262
  %v5327 = vmul.f32 %v4989, %v5263
  %v5328 = vmul.f32 %v4991, %v5264
  %v5329 = vmul.f32 %v4993, %v5265
  %v5330 = vmul.f32 %v4995, %v5266
  %v5331 = vmul.f32 %v4997, %v5267
  %v5332 = vmul.f32 %v4999, %v5268
  %v5333 = vmul.f32 %v5001, %v5269
  %v5334 = vmul.f32 %v5003, %v5270
  %v5335 = vmul.f32 %v5005, %v5271
  %v5336 = vmul.f32 %v5007, %v5272
  %v5337 = vmul.f32 %v5009, %v5273
  %v5338 = vmul.f32 %v5011, %v5274
  %v5339 = vmul.f32 %v5013, %v5275
  %v5340 = vmul.f32 %v5015, %v5276
  %v5341 = vmul.f32 %v5017, %v5277
  %v5342 = vmul.f32 %v5019, %v5278
  %v5343 = vmul.f32 %v5021, %v5279
  %v5344 = vmul.f32 %v5023, %v5280
  %v5345 = vmul.f32 %v5025, %v5281
  %v5346 = vpack.c.bf16 %v5283, %v5282
  %v5347 = vpack.c.bf16 %v5285, %v5284
  %v5348 = vpack.c.bf16 %v5287, %v5286
  %v5349 = vpack.c.bf16 %v5289, %v5288
  %v5350 = vpack.c.bf16 %v5291, %v5290
  %v5351 = vpack.c.bf16 %v5293, %v5292
  %v5352 = vpack.c.bf16 %v5295, %v5294
  %v5353 = vpack.c.bf16 %v5297, %v5296
  %v5354 = vpack.c.bf16 %v5299, %v5298
  %v5355 = vpack.c.bf16 %v5301, %v5300
  %v5356 = vpack.c.bf16 %v5303, %v5302
  %v5357 = vpack.c.bf16 %v5305, %v5304
  %v5358 = vpack.c.bf16 %v5307, %v5306
  %v5359 = vpack.c.bf16 %v5309, %v5308
  %v5360 = vpack.c.bf16 %v5311, %v5310
  %v5361 = vpack.c.bf16 %v5313, %v5312
  %v5362 = vpack.c.bf16 %v5315, %v5314
  %v5363 = vpack.c.bf16 %v5317, %v5316
  %v5364 = vpack.c.bf16 %v5319, %v5318
  %v5365 = vpack.c.bf16 %v5321, %v5320
  %v5366 = vpack.c.bf16 %v5323, %v5322
  %v5367 = vpack.c.bf16 %v5325, %v5324
  %v5368 = vpack.c.bf16 %v5327, %v5326
  %v5369 = vpack.c.bf16 %v5329, %v5328
  %v5370 = vpack.c.bf16 %v5331, %v5330
  %v5371 = vpack.c.bf16 %v5333, %v5332
  %v5372 = vpack.c.bf16 %v5335, %v5334
  %v5373 = vpack.c.bf16 %v5337, %v5336
  %v5374 = vpack.c.bf16 %v5339, %v5338
  %v5375 = vpack.c.bf16 %v5341, %v5340
  %v5376 = vpack.c.bf16 %v5343, %v5342
  %v5377 = vpack.c.bf16 %v5345, %v5344
  %5378 = vrot.lane.b32.xlu0 %v3800, 64
  %v5379 = vpop.permute.xlu0 %5378
  %5380 = vrot.lane.b32.xlu0 %v3801, 64
  %v5381 = vpop.permute.xlu0 %5380
  %5382 = vrot.lane.b32.xlu0 %v3802, 64
  %v5383 = vpop.permute.xlu0 %5382
  %5384 = vrot.lane.b32.xlu0 %v3803, 64
  %v5385 = vpop.permute.xlu0 %5384
  %v5391 = vsel %vm4641, %v5346, 0
  %v5394 = vsel %vm4641, %v5347, 0
  %v5397 = vsel %vm4641, %v5348, 0
  %v5400 = vsel %vm4641, %v5349, 0
  %5402 = vmatprep.subr.bf16.mxu0 0
  %5403 = vmatpush1.bf16.msra.mxu0 %v5379
  %5404 = vmatprep.subr.bf16.mxu0 0
  %5405 = vmatpush1.bf16.msra.mxu0 %v5381
  %5406 = vmatprep.subr.bf16.mxu0 0
  %5407 = vmatpush1.bf16.msra.mxu0 %v5383
  %5408 = vmatprep.subr.bf16.mxu0 0
  %5409 = vmatpush1.bf16.msra.mxu0 %v5385
  %5410 = vmatprep.subr.bf16.mxu0 0
  %5411 = vmatpush1.bf16.msra.mxu0 0
  %5412 = vmatprep.subr.bf16.mxu0 0
  %5413 = vmatpush1.bf16.msra.mxu0 0
  %5414 = vmatprep.subr.bf16.mxu0 0
  %5415 = vmatpush1.bf16.msra.mxu0 0
  %5416 = vmatprep.subr.bf16.mxu0 0
  %5417 = vmatpush1.bf16.msra.mxu0 0
  %5418 = vmatprep.subr.bf16.mxu0 0
  %5419 = vmatpush1.bf16.msra.mxu0 0
  %5420 = vmatprep.subr.bf16.mxu0 0
  %5421 = vmatpush1.bf16.msra.mxu0 0
  %5422 = vmatprep.subr.bf16.mxu0 0
  %5423 = vmatpush1.bf16.msra.mxu0 0
  %5424 = vmatprep.subr.bf16.mxu0 0
  %5425 = vmatpush1.bf16.msra.mxu0 0
  %5426 = vmatprep.subr.bf16.mxu0 0
  %5427 = vmatpush1.bf16.msra.mxu0 0
  %5428 = vmatprep.subr.bf16.mxu0 0
  %5429 = vmatpush1.bf16.msra.mxu0 0
  %5430 = vmatprep.subr.bf16.mxu0 0
  %5431 = vmatpush1.bf16.msra.mxu0 0
  %5432 = vmatprep.subr.bf16.mxu0 0
  %5433 = vmatpush1.bf16.msra.mxu0 0
  %5434 = vmatprep.mubr.bf16.mxu0 0
  %5435 = vmatmul.mubr.bf16.gmra.mrb[0].mxu0 %v5391
  %v5436 = vpop.f32.mrb[0].mxu0
  %v5437 = vadd.f32 0.0, %v5436
  %v5438 = vpop.f32.mrb[0].mxu0
  %v5439 = vpop.f32.mrb[0].mxu0
  %v5440 = vadd.f32 0.0, %v5439
  %v5441 = vpop.f32.mrb[0].mxu0
  %5442 = vmatprep.mubr.bf16.mxu0 0
  %5443 = vmatmul.mubr.bf16.gmra.mrb[0].mxu0 %v5394
  %v5444 = vpop.f32.mrb[0].mxu0
  %v5445 = vadd.f32 0.0, %v5444
  %v5446 = vpop.f32.mrb[0].mxu0
  %v5447 = vpop.f32.mrb[0].mxu0
  %v5448 = vadd.f32 0.0, %v5447
  %v5449 = vpop.f32.mrb[0].mxu0
  %5450 = vmatprep.mubr.bf16.mxu0 0
  %5451 = vmatmul.mubr.bf16.gmra.mrb[0].mxu0 %v5397
  %v5452 = vpop.f32.mrb[0].mxu0
  %v5453 = vadd.f32 0.0, %v5452
  %v5454 = vpop.f32.mrb[0].mxu0
  %v5455 = vpop.f32.mrb[0].mxu0
  %v5456 = vadd.f32 0.0, %v5455
  %v5457 = vpop.f32.mrb[0].mxu0
  %5458 = vmatprep.mubr.bf16.mxu0 0
  %5459 = vmatmul.mubr.bf16.gmra.mrb[0].mxu0 %v5400
  %v5460 = vpop.f32.mrb[0].mxu0
  %v5461 = vadd.f32 0.0, %v5460
  %v5462 = vpop.f32.mrb[0].mxu0
  %v5463 = vpop.f32.mrb[0].mxu0
  %v5464 = vadd.f32 0.0, %v5463
  %v5465 = vpop.f32.mrb[0].mxu0
  %5466 = vdwg.mxu0
  %5467 = vrot.lane.b32.xlu0 %v3804, 64
  %v5468 = vpop.permute.xlu0 %5467
  %5469 = vrot.lane.b32.xlu0 %v3805, 64
  %v5470 = vpop.permute.xlu0 %5469
  %5471 = vrot.lane.b32.xlu0 %v3806, 64
  %v5472 = vpop.permute.xlu0 %5471
  %5473 = vrot.lane.b32.xlu0 %v3807, 64
  %v5474 = vpop.permute.xlu0 %5473
  %v5480 = vsel %vm4641, %v5350, 0
  %v5483 = vsel %vm4641, %v5351, 0
  %v5486 = vsel %vm4641, %v5352, 0
  %v5489 = vsel %vm4641, %v5353, 0
  %5491 = vmatprep.subr.bf16.mxu0 0
  %5492 = vmatpush1.bf16.msra.mxu0 %v5468
  %5493 = vmatprep.subr.bf16.mxu0 0
  %5494 = vmatpush1.bf16.msra.mxu0 %v5470
  %5495 = vmatprep.subr.bf16.mxu0 0
  %5496 = vmatpush1.bf16.msra.mxu0 %v5472
  %5497 = vmatprep.subr.bf16.mxu0 0
  %5498 = vmatpush1.bf16.msra.mxu0 %v5474
  %5499 = vmatprep.subr.bf16.mxu0 0
  %5500 = vmatpush1.bf16.msra.mxu0 0
  %5501 = vmatprep.subr.bf16.mxu0 0
  %5502 = vmatpush1.bf16.msra.mxu0 0
  %5503 = vmatprep.subr.bf16.mxu0 0
  %5504 = vmatpush1.bf16.msra.mxu0 0
  %5505 = vmatprep.subr.bf16.mxu0 0
  %5506 = vmatpush1.bf16.msra.mxu0 0
  %5507 = vmatprep.subr.bf16.mxu0 0
  %5508 = vmatpush1.bf16.msra.mxu0 0
  %5509 = vmatprep.subr.bf16.mxu0 0
  %5510 = vmatpush1.bf16.msra.mxu0 0
  %5511 = vmatprep.subr.bf16.mxu0 0
  %5512 = vmatpush1.bf16.msra.mxu0 0
  %5513 = vmatprep.subr.bf16.mxu0 0
  %5514 = vmatpush1.bf16.msra.mxu0 0
  %5515 = vmatprep.subr.bf16.mxu0 0
  %5516 = vmatpush1.bf16.msra.mxu0 0
  %5517 = vmatprep.subr.bf16.mxu0 0
  %5518 = vmatpush1.bf16.msra.mxu0 0
  %5519 = vmatprep.subr.bf16.mxu0 0
  %5520 = vmatpush1.bf16.msra.mxu0 0
  %5521 = vmatprep.subr.bf16.mxu0 0
  %5522 = vmatpush1.bf16.msra.mxu0 0
  %5523 = vmatprep.mubr.bf16.mxu0 0
  %5524 = vmatmul.mubr.bf16.gmra.mrb[0].mxu0 %v5480
  %v5525 = vpop.f32.mrb[0].mxu0
  %v5526 = vadd.f32 0.0, %v5525
  %v5527 = vpop.f32.mrb[0].mxu0
  %v5528 = vpop.f32.mrb[0].mxu0
  %v5529 = vadd.f32 0.0, %v5528
  %v5530 = vpop.f32.mrb[0].mxu0
  %5531 = vmatprep.mubr.bf16.mxu0 0
  %5532 = vmatmul.mubr.bf16.gmra.mrb[0].mxu0 %v5483
  %v5533 = vpop.f32.mrb[0].mxu0
  %v5534 = vadd.f32 0.0, %v5533
  %v5535 = vpop.f32.mrb[0].mxu0
  %v5536 = vpop.f32.mrb[0].mxu0
  %v5537 = vadd.f32 0.0, %v5536
  %v5538 = vpop.f32.mrb[0].mxu0
  %5539 = vmatprep.mubr.bf16.mxu0 0
  %5540 = vmatmul.mubr.bf16.gmra.mrb[0].mxu0 %v5486
  %v5541 = vpop.f32.mrb[0].mxu0
  %v5542 = vadd.f32 0.0, %v5541
  %v5543 = vpop.f32.mrb[0].mxu0
  %v5544 = vpop.f32.mrb[0].mxu0
  %v5545 = vadd.f32 0.0, %v5544
  %v5546 = vpop.f32.mrb[0].mxu0
  %5547 = vmatprep.mubr.bf16.mxu0 0
  %5548 = vmatmul.mubr.bf16.gmra.mrb[0].mxu0 %v5489
  %v5549 = vpop.f32.mrb[0].mxu0
  %v5550 = vadd.f32 0.0, %v5549
  %v5551 = vpop.f32.mrb[0].mxu0
  %v5552 = vpop.f32.mrb[0].mxu0
  %v5553 = vadd.f32 0.0, %v5552
  %v5554 = vpop.f32.mrb[0].mxu0
  %5555 = vdwg.mxu0
  %5556 = vrot.lane.b32.xlu0 %v3808, 64
  %v5557 = vpop.permute.xlu0 %5556
  %5558 = vrot.lane.b32.xlu0 %v3809, 64
  %v5559 = vpop.permute.xlu0 %5558
  %5560 = vrot.lane.b32.xlu0 %v3810, 64
  %v5561 = vpop.permute.xlu0 %5560
  %5562 = vrot.lane.b32.xlu0 %v3811, 64
  %v5563 = vpop.permute.xlu0 %5562
  %v5569 = vsel %vm4641, %v5354, 0
  %v5572 = vsel %vm4641, %v5355, 0
  %v5575 = vsel %vm4641, %v5356, 0
  %v5578 = vsel %vm4641, %v5357, 0
  %5580 = vmatprep.subr.bf16.mxu0 0
  %5581 = vmatpush1.bf16.msra.mxu0 %v5557
  %5582 = vmatprep.subr.bf16.mxu0 0
  %5583 = vmatpush1.bf16.msra.mxu0 %v5559
  %5584 = vmatprep.subr.bf16.mxu0 0
  %5585 = vmatpush1.bf16.msra.mxu0 %v5561
  %5586 = vmatprep.subr.bf16.mxu0 0
  %5587 = vmatpush1.bf16.msra.mxu0 %v5563
  %5588 = vmatprep.subr.bf16.mxu0 0
  %5589 = vmatpush1.bf16.msra.mxu0 0
  %5590 = vmatprep.subr.bf16.mxu0 0
  %5591 = vmatpush1.bf16.msra.mxu0 0
  %5592 = vmatprep.subr.bf16.mxu0 0
  %5593 = vmatpush1.bf16.msra.mxu0 0
  %5594 = vmatprep.subr.bf16.mxu0 0
  %5595 = vmatpush1.bf16.msra.mxu0 0
  %5596 = vmatprep.subr.bf16.mxu0 0
  %5597 = vmatpush1.bf16.msra.mxu0 0
  %5598 = vmatprep.subr.bf16.mxu0 0
  %5599 = vmatpush1.bf16.msra.mxu0 0
  %5600 = vmatprep.subr.bf16.mxu0 0
  %5601 = vmatpush1.bf16.msra.mxu0 0
  %5602 = vmatprep.subr.bf16.mxu0 0
  %5603 = vmatpush1.bf16.msra.mxu0 0
  %5604 = vmatprep.subr.bf16.mxu0 0
  %5605 = vmatpush1.bf16.msra.mxu0 0
  %5606 = vmatprep.subr.bf16.mxu0 0
  %5607 = vmatpush1.bf16.msra.mxu0 0
  %5608 = vmatprep.subr.bf16.mxu0 0
  %5609 = vmatpush1.bf16.msra.mxu0 0
  %5610 = vmatprep.subr.bf16.mxu0 0
  %5611 = vmatpush1.bf16.msra.mxu0 0
  %5612 = vmatprep.mubr.bf16.mxu0 0
  %5613 = vmatmul.mubr.bf16.gmra.mrb[0].mxu0 %v5569
  %v5614 = vpop.f32.mrb[0].mxu0
  %v5615 = vadd.f32 0.0, %v5614
  %v5616 = vpop.f32.mrb[0].mxu0
  %v5617 = vpop.f32.mrb[0].mxu0
  %v5618 = vadd.f32 0.0, %v5617
  %v5619 = vpop.f32.mrb[0].mxu0
  %5620 = vmatprep.mubr.bf16.mxu0 0
  %5621 = vmatmul.mubr.bf16.gmra.mrb[0].mxu0 %v5572
  %v5622 = vpop.f32.mrb[0].mxu0
  %v5623 = vadd.f32 0.0, %v5622
  %v5624 = vpop.f32.mrb[0].mxu0
  %v5625 = vpop.f32.mrb[0].mxu0
  %v5626 = vadd.f32 0.0, %v5625
  %v5627 = vpop.f32.mrb[0].mxu0
  %5628 = vmatprep.mubr.bf16.mxu0 0
  %5629 = vmatmul.mubr.bf16.gmra.mrb[0].mxu0 %v5575
  %v5630 = vpop.f32.mrb[0].mxu0
  %v5631 = vadd.f32 0.0, %v5630
  %v5632 = vpop.f32.mrb[0].mxu0
  %v5633 = vpop.f32.mrb[0].mxu0
  %v5634 = vadd.f32 0.0, %v5633
  %v5635 = vpop.f32.mrb[0].mxu0
  %5636 = vmatprep.mubr.bf16.mxu0 0
  %5637 = vmatmul.mubr.bf16.gmra.mrb[0].mxu0 %v5578
  %v5638 = vpop.f32.mrb[0].mxu0
  %v5639 = vadd.f32 0.0, %v5638
  %v5640 = vpop.f32.mrb[0].mxu0
  %v5641 = vpop.f32.mrb[0].mxu0
  %v5642 = vadd.f32 0.0, %v5641
  %v5643 = vpop.f32.mrb[0].mxu0
  %5644 = vdwg.mxu0
  %5645 = vrot.lane.b32.xlu0 %v3812, 64
  %v5646 = vpop.permute.xlu0 %5645
  %5647 = vrot.lane.b32.xlu0 %v3813, 64
  %v5648 = vpop.permute.xlu0 %5647
  %5649 = vrot.lane.b32.xlu0 %v3814, 64
  %v5650 = vpop.permute.xlu0 %5649
  %5651 = vrot.lane.b32.xlu0 %v3815, 64
  %v5652 = vpop.permute.xlu0 %5651
  %v5658 = vsel %vm4641, %v5358, 0
  %v5661 = vsel %vm4641, %v5359, 0
  %v5664 = vsel %vm4641, %v5360, 0
  %v5667 = vsel %vm4641, %v5361, 0
  %5669 = vmatprep.subr.bf16.mxu0 0
  %5670 = vmatpush1.bf16.msra.mxu0 %v5646
  %5671 = vmatprep.subr.bf16.mxu0 0
  %5672 = vmatpush1.bf16.msra.mxu0 %v5648
  %5673 = vmatprep.subr.bf16.mxu0 0
  %5674 = vmatpush1.bf16.msra.mxu0 %v5650
  %5675 = vmatprep.subr.bf16.mxu0 0
  %5676 = vmatpush1.bf16.msra.mxu0 %v5652
  %5677 = vmatprep.subr.bf16.mxu0 0
  %5678 = vmatpush1.bf16.msra.mxu0 0
  %5679 = vmatprep.subr.bf16.mxu0 0
  %5680 = vmatpush1.bf16.msra.mxu0 0
  %5681 = vmatprep.subr.bf16.mxu0 0
  %5682 = vmatpush1.bf16.msra.mxu0 0
  %5683 = vmatprep.subr.bf16.mxu0 0
  %5684 = vmatpush1.bf16.msra.mxu0 0
  %5685 = vmatprep.subr.bf16.mxu0 0
  %5686 = vmatpush1.bf16.msra.mxu0 0
  %5687 = vmatprep.subr.bf16.mxu0 0
  %5688 = vmatpush1.bf16.msra.mxu0 0
  %5689 = vmatprep.subr.bf16.mxu0 0
  %5690 = vmatpush1.bf16.msra.mxu0 0
  %5691 = vmatprep.subr.bf16.mxu0 0
  %5692 = vmatpush1.bf16.msra.mxu0 0
  %5693 = vmatprep.subr.bf16.mxu0 0
  %5694 = vmatpush1.bf16.msra.mxu0 0
  %5695 = vmatprep.subr.bf16.mxu0 0
  %5696 = vmatpush1.bf16.msra.mxu0 0
  %5697 = vmatprep.subr.bf16.mxu0 0
  %5698 = vmatpush1.bf16.msra.mxu0 0
  %5699 = vmatprep.subr.bf16.mxu0 0
  %5700 = vmatpush1.bf16.msra.mxu0 0
  %5701 = vmatprep.mubr.bf16.mxu0 0
  %5702 = vmatmul.mubr.bf16.gmra.mrb[0].mxu0 %v5658
  %v5703 = vpop.f32.mrb[0].mxu0
  %v5704 = vadd.f32 0.0, %v5703
  %v5705 = vpop.f32.mrb[0].mxu0
  %v5706 = vpop.f32.mrb[0].mxu0
  %v5707 = vadd.f32 0.0, %v5706
  %v5708 = vpop.f32.mrb[0].mxu0
  %5709 = vmatprep.mubr.bf16.mxu0 0
  %5710 = vmatmul.mubr.bf16.gmra.mrb[0].mxu0 %v5661
  %v5711 = vpop.f32.mrb[0].mxu0
  %v5712 = vadd.f32 0.0, %v5711
  %v5713 = vpop.f32.mrb[0].mxu0
  %v5714 = vpop.f32.mrb[0].mxu0
  %v5715 = vadd.f32 0.0, %v5714
  %v5716 = vpop.f32.mrb[0].mxu0
  %5717 = vmatprep.mubr.bf16.mxu0 0
  %5718 = vmatmul.mubr.bf16.gmra.mrb[0].mxu0 %v5664
  %v5719 = vpop.f32.mrb[0].mxu0
  %v5720 = vadd.f32 0.0, %v5719
  %v5721 = vpop.f32.mrb[0].mxu0
  %v5722 = vpop.f32.mrb[0].mxu0
  %v5723 = vadd.f32 0.0, %v5722
  %v5724 = vpop.f32.mrb[0].mxu0
  %5725 = vmatprep.mubr.bf16.mxu0 0
  %5726 = vmatmul.mubr.bf16.gmra.mrb[0].mxu0 %v5667
  %v5727 = vpop.f32.mrb[0].mxu0
  %v5728 = vadd.f32 0.0, %v5727
  %v5729 = vpop.f32.mrb[0].mxu0
  %v5730 = vpop.f32.mrb[0].mxu0
  %v5731 = vadd.f32 0.0, %v5730
  %v5732 = vpop.f32.mrb[0].mxu0
  %5733 = vdwg.mxu0
  %5734 = vrot.lane.b32.xlu0 %v3816, 64
  %v5735 = vpop.permute.xlu0 %5734
  %5736 = vrot.lane.b32.xlu0 %v3817, 64
  %v5737 = vpop.permute.xlu0 %5736
  %5738 = vrot.lane.b32.xlu0 %v3818, 64
  %v5739 = vpop.permute.xlu0 %5738
  %5740 = vrot.lane.b32.xlu0 %v3819, 64
  %v5741 = vpop.permute.xlu0 %5740
  %v5747 = vsel %vm4641, %v5362, 0
  %v5750 = vsel %vm4641, %v5363, 0
  %v5753 = vsel %vm4641, %v5364, 0
  %v5756 = vsel %vm4641, %v5365, 0
  %5758 = vmatprep.subr.bf16.mxu0 0
  %5759 = vmatpush1.bf16.msra.mxu0 %v5735
  %5760 = vmatprep.subr.bf16.mxu0 0
  %5761 = vmatpush1.bf16.msra.mxu0 %v5737
  %5762 = vmatprep.subr.bf16.mxu0 0
  %5763 = vmatpush1.bf16.msra.mxu0 %v5739
  %5764 = vmatprep.subr.bf16.mxu0 0
  %5765 = vmatpush1.bf16.msra.mxu0 %v5741
  %5766 = vmatprep.subr.bf16.mxu0 0
  %5767 = vmatpush1.bf16.msra.mxu0 0
  %5768 = vmatprep.subr.bf16.mxu0 0
  %5769 = vmatpush1.bf16.msra.mxu0 0
  %5770 = vmatprep.subr.bf16.mxu0 0
  %5771 = vmatpush1.bf16.msra.mxu0 0
  %5772 = vmatprep.subr.bf16.mxu0 0
  %5773 = vmatpush1.bf16.msra.mxu0 0
  %5774 = vmatprep.subr.bf16.mxu0 0
  %5775 = vmatpush1.bf16.msra.mxu0 0
  %5776 = vmatprep.subr.bf16.mxu0 0
  %5777 = vmatpush1.bf16.msra.mxu0 0
  %5778 = vmatprep.subr.bf16.mxu0 0
  %5779 = vmatpush1.bf16.msra.mxu0 0
  %5780 = vmatprep.subr.bf16.mxu0 0
  %5781 = vmatpush1.bf16.msra.mxu0 0
  %5782 = vmatprep.subr.bf16.mxu0 0
  %5783 = vmatpush1.bf16.msra.mxu0 0
  %5784 = vmatprep.subr.bf16.mxu0 0
  %5785 = vmatpush1.bf16.msra.mxu0 0
  %5786 = vmatprep.subr.bf16.mxu0 0
  %5787 = vmatpush1.bf16.msra.mxu0 0
  %5788 = vmatprep.subr.bf16.mxu0 0
  %5789 = vmatpush1.bf16.msra.mxu0 0
  %5790 = vmatprep.mubr.bf16.mxu0 0
  %5791 = vmatmul.mubr.bf16.gmra.mrb[0].mxu0 %v5747
  %v5792 = vpop.f32.mrb[0].mxu0
  %v5793 = vadd.f32 0.0, %v5792
  %v5794 = vpop.f32.mrb[0].mxu0
  %v5795 = vpop.f32.mrb[0].mxu0
  %v5796 = vadd.f32 0.0, %v5795
  %v5797 = vpop.f32.mrb[0].mxu0
  %5798 = vmatprep.mubr.bf16.mxu0 0
  %5799 = vmatmul.mubr.bf16.gmra.mrb[0].mxu0 %v5750
  %v5800 = vpop.f32.mrb[0].mxu0
  %v5801 = vadd.f32 0.0, %v5800
  %v5802 = vpop.f32.mrb[0].mxu0
  %v5803 = vpop.f32.mrb[0].mxu0
  %v5804 = vadd.f32 0.0, %v5803
  %v5805 = vpop.f32.mrb[0].mxu0
  %5806 = vmatprep.mubr.bf16.mxu0 0
  %5807 = vmatmul.mubr.bf16.gmra.mrb[0].mxu0 %v5753
  %v5808 = vpop.f32.mrb[0].mxu0
  %v5809 = vadd.f32 0.0, %v5808
  %v5810 = vpop.f32.mrb[0].mxu0
  %v5811 = vpop.f32.mrb[0].mxu0
  %v5812 = vadd.f32 0.0, %v5811
  %v5813 = vpop.f32.mrb[0].mxu0
  %5814 = vmatprep.mubr.bf16.mxu0 0
  %5815 = vmatmul.mubr.bf16.gmra.mrb[0].mxu0 %v5756
  %v5816 = vpop.f32.mrb[0].mxu0
  %v5817 = vadd.f32 0.0, %v5816
  %v5818 = vpop.f32.mrb[0].mxu0
  %v5819 = vpop.f32.mrb[0].mxu0
  %v5820 = vadd.f32 0.0, %v5819
  %v5821 = vpop.f32.mrb[0].mxu0
  %5822 = vdwg.mxu0
  %5823 = vrot.lane.b32.xlu0 %v3820, 64
  %v5824 = vpop.permute.xlu0 %5823
  %5825 = vrot.lane.b32.xlu0 %v3821, 64
  %v5826 = vpop.permute.xlu0 %5825
  %5827 = vrot.lane.b32.xlu0 %v3822, 64
  %v5828 = vpop.permute.xlu0 %5827
  %5829 = vrot.lane.b32.xlu0 %v3823, 64
  %v5830 = vpop.permute.xlu0 %5829
  %v5836 = vsel %vm4641, %v5366, 0
  %v5839 = vsel %vm4641, %v5367, 0
  %v5842 = vsel %vm4641, %v5368, 0
  %v5845 = vsel %vm4641, %v5369, 0
  %5847 = vmatprep.subr.bf16.mxu0 0
  %5848 = vmatpush1.bf16.msra.mxu0 %v5824
  %5849 = vmatprep.subr.bf16.mxu0 0
  %5850 = vmatpush1.bf16.msra.mxu0 %v5826
  %5851 = vmatprep.subr.bf16.mxu0 0
  %5852 = vmatpush1.bf16.msra.mxu0 %v5828
  %5853 = vmatprep.subr.bf16.mxu0 0
  %5854 = vmatpush1.bf16.msra.mxu0 %v5830
  %5855 = vmatprep.subr.bf16.mxu0 0
  %5856 = vmatpush1.bf16.msra.mxu0 0
  %5857 = vmatprep.subr.bf16.mxu0 0
  %5858 = vmatpush1.bf16.msra.mxu0 0
  %5859 = vmatprep.subr.bf16.mxu0 0
  %5860 = vmatpush1.bf16.msra.mxu0 0
  %5861 = vmatprep.subr.bf16.mxu0 0
  %5862 = vmatpush1.bf16.msra.mxu0 0
  %5863 = vmatprep.subr.bf16.mxu0 0
  %5864 = vmatpush1.bf16.msra.mxu0 0
  %5865 = vmatprep.subr.bf16.mxu0 0
  %5866 = vmatpush1.bf16.msra.mxu0 0
  %5867 = vmatprep.subr.bf16.mxu0 0
  %5868 = vmatpush1.bf16.msra.mxu0 0
  %5869 = vmatprep.subr.bf16.mxu0 0
  %5870 = vmatpush1.bf16.msra.mxu0 0
  %5871 = vmatprep.subr.bf16.mxu0 0
  %5872 = vmatpush1.bf16.msra.mxu0 0
  %5873 = vmatprep.subr.bf16.mxu0 0
  %5874 = vmatpush1.bf16.msra.mxu0 0
  %5875 = vmatprep.subr.bf16.mxu0 0
  %5876 = vmatpush1.bf16.msra.mxu0 0
  %5877 = vmatprep.subr.bf16.mxu0 0
  %5878 = vmatpush1.bf16.msra.mxu0 0
  %5879 = vmatprep.mubr.bf16.mxu0 0
  %5880 = vmatmul.mubr.bf16.gmra.mrb[0].mxu0 %v5836
  %v5881 = vpop.f32.mrb[0].mxu0
  %v5882 = vadd.f32 0.0, %v5881
  %v5883 = vpop.f32.mrb[0].mxu0
  %v5884 = vpop.f32.mrb[0].mxu0
  %v5885 = vadd.f32 0.0, %v5884
  %v5886 = vpop.f32.mrb[0].mxu0
  %5887 = vmatprep.mubr.bf16.mxu0 0
  %5888 = vmatmul.mubr.bf16.gmra.mrb[0].mxu0 %v5839
  %v5889 = vpop.f32.mrb[0].mxu0
  %v5890 = vadd.f32 0.0, %v5889
  %v5891 = vpop.f32.mrb[0].mxu0
  %v5892 = vpop.f32.mrb[0].mxu0
  %v5893 = vadd.f32 0.0, %v5892
  %v5894 = vpop.f32.mrb[0].mxu0
  %5895 = vmatprep.mubr.bf16.mxu0 0
  %5896 = vmatmul.mubr.bf16.gmra.mrb[0].mxu0 %v5842
  %v5897 = vpop.f32.mrb[0].mxu0
  %v5898 = vadd.f32 0.0, %v5897
  %v5899 = vpop.f32.mrb[0].mxu0
  %v5900 = vpop.f32.mrb[0].mxu0
  %v5901 = vadd.f32 0.0, %v5900
  %v5902 = vpop.f32.mrb[0].mxu0
  %5903 = vmatprep.mubr.bf16.mxu0 0
  %5904 = vmatmul.mubr.bf16.gmra.mrb[0].mxu0 %v5845
  %v5905 = vpop.f32.mrb[0].mxu0
  %v5906 = vadd.f32 0.0, %v5905
  %v5907 = vpop.f32.mrb[0].mxu0
  %v5908 = vpop.f32.mrb[0].mxu0
  %v5909 = vadd.f32 0.0, %v5908
  %v5910 = vpop.f32.mrb[0].mxu0
  %5911 = vdwg.mxu0
  %5912 = vrot.lane.b32.xlu0 %v3824, 64
  %v5913 = vpop.permute.xlu0 %5912
  %5914 = vrot.lane.b32.xlu0 %v3825, 64
  %v5915 = vpop.permute.xlu0 %5914
  %5916 = vrot.lane.b32.xlu0 %v3826, 64
  %v5917 = vpop.permute.xlu0 %5916
  %5918 = vrot.lane.b32.xlu0 %v3827, 64
  %v5919 = vpop.permute.xlu0 %5918
  %v5925 = vsel %vm4641, %v5370, 0
  %v5928 = vsel %vm4641, %v5371, 0
  %v5931 = vsel %vm4641, %v5372, 0
  %v5934 = vsel %vm4641, %v5373, 0
  %5936 = vmatprep.subr.bf16.mxu0 0
  %5937 = vmatpush1.bf16.msra.mxu0 %v5913
  %5938 = vmatprep.subr.bf16.mxu0 0
  %5939 = vmatpush1.bf16.msra.mxu0 %v5915
  %5940 = vmatprep.subr.bf16.mxu0 0
  %5941 = vmatpush1.bf16.msra.mxu0 %v5917
  %5942 = vmatprep.subr.bf16.mxu0 0
  %5943 = vmatpush1.bf16.msra.mxu0 %v5919
  %5944 = vmatprep.subr.bf16.mxu0 0
  %5945 = vmatpush1.bf16.msra.mxu0 0
  %5946 = vmatprep.subr.bf16.mxu0 0
  %5947 = vmatpush1.bf16.msra.mxu0 0
  %5948 = vmatprep.subr.bf16.mxu0 0
  %5949 = vmatpush1.bf16.msra.mxu0 0
  %5950 = vmatprep.subr.bf16.mxu0 0
  %5951 = vmatpush1.bf16.msra.mxu0 0
  %5952 = vmatprep.subr.bf16.mxu0 0
  %5953 = vmatpush1.bf16.msra.mxu0 0
  %5954 = vmatprep.subr.bf16.mxu0 0
  %5955 = vmatpush1.bf16.msra.mxu0 0
  %5956 = vmatprep.subr.bf16.mxu0 0
  %5957 = vmatpush1.bf16.msra.mxu0 0
  %5958 = vmatprep.subr.bf16.mxu0 0
  %5959 = vmatpush1.bf16.msra.mxu0 0
  %5960 = vmatprep.subr.bf16.mxu0 0
  %5961 = vmatpush1.bf16.msra.mxu0 0
  %5962 = vmatprep.subr.bf16.mxu0 0
  %5963 = vmatpush1.bf16.msra.mxu0 0
  %5964 = vmatprep.subr.bf16.mxu0 0
  %5965 = vmatpush1.bf16.msra.mxu0 0
  %5966 = vmatprep.subr.bf16.mxu0 0
  %5967 = vmatpush1.bf16.msra.mxu0 0
  %5968 = vmatprep.mubr.bf16.mxu0 0
  %5969 = vmatmul.mubr.bf16.gmra.mrb[0].mxu0 %v5925
  %v5970 = vpop.f32.mrb[0].mxu0
  %v5971 = vadd.f32 0.0, %v5970
  %v5972 = vpop.f32.mrb[0].mxu0
  %v5973 = vpop.f32.mrb[0].mxu0
  %v5974 = vadd.f32 0.0, %v5973
  %v5975 = vpop.f32.mrb[0].mxu0
  %5976 = vmatprep.mubr.bf16.mxu0 0
  %5977 = vmatmul.mubr.bf16.gmra.mrb[0].mxu0 %v5928
  %v5978 = vpop.f32.mrb[0].mxu0
  %v5979 = vadd.f32 0.0, %v5978
  %v5980 = vpop.f32.mrb[0].mxu0
  %v5981 = vpop.f32.mrb[0].mxu0
  %v5982 = vadd.f32 0.0, %v5981
  %v5983 = vpop.f32.mrb[0].mxu0
  %5984 = vmatprep.mubr.bf16.mxu0 0
  %5985 = vmatmul.mubr.bf16.gmra.mrb[0].mxu0 %v5931
  %v5986 = vpop.f32.mrb[0].mxu0
  %v5987 = vadd.f32 0.0, %v5986
  %v5988 = vpop.f32.mrb[0].mxu0
  %v5989 = vpop.f32.mrb[0].mxu0
  %v5990 = vadd.f32 0.0, %v5989
  %v5991 = vpop.f32.mrb[0].mxu0
  %5992 = vmatprep.mubr.bf16.mxu0 0
  %5993 = vmatmul.mubr.bf16.gmra.mrb[0].mxu0 %v5934
  %v5994 = vpop.f32.mrb[0].mxu0
  %v5995 = vadd.f32 0.0, %v5994
  %v5996 = vpop.f32.mrb[0].mxu0
  %v5997 = vpop.f32.mrb[0].mxu0
  %v5998 = vadd.f32 0.0, %v5997
  %v5999 = vpop.f32.mrb[0].mxu0
  %6000 = vdwg.mxu0
  %6001 = vrot.lane.b32.xlu0 %v3828, 64
  %v6002 = vpop.permute.xlu0 %6001
  %6003 = vrot.lane.b32.xlu0 %v3829, 64
  %v6004 = vpop.permute.xlu0 %6003
  %6005 = vrot.lane.b32.xlu0 %v3830, 64
  %v6006 = vpop.permute.xlu0 %6005
  %6007 = vrot.lane.b32.xlu0 %v3831, 64
  %v6008 = vpop.permute.xlu0 %6007
  %v6014 = vsel %vm4641, %v5374, 0
  %v6017 = vsel %vm4641, %v5375, 0
  %v6020 = vsel %vm4641, %v5376, 0
  %v6023 = vsel %vm4641, %v5377, 0
  %6025 = vmatprep.subr.bf16.mxu0 0
  %6026 = vmatpush1.bf16.msra.mxu0 %v6002
  %6027 = vmatprep.subr.bf16.mxu0 0
  %6028 = vmatpush1.bf16.msra.mxu0 %v6004
  %6029 = vmatprep.subr.bf16.mxu0 0
  %6030 = vmatpush1.bf16.msra.mxu0 %v6006
  %6031 = vmatprep.subr.bf16.mxu0 0
  %6032 = vmatpush1.bf16.msra.mxu0 %v6008
  %6033 = vmatprep.subr.bf16.mxu0 0
  %6034 = vmatpush1.bf16.msra.mxu0 0
  %6035 = vmatprep.subr.bf16.mxu0 0
  %6036 = vmatpush1.bf16.msra.mxu0 0
  %6037 = vmatprep.subr.bf16.mxu0 0
  %6038 = vmatpush1.bf16.msra.mxu0 0
  %6039 = vmatprep.subr.bf16.mxu0 0
  %6040 = vmatpush1.bf16.msra.mxu0 0
  %6041 = vmatprep.subr.bf16.mxu0 0
  %6042 = vmatpush1.bf16.msra.mxu0 0
  %6043 = vmatprep.subr.bf16.mxu0 0
  %6044 = vmatpush1.bf16.msra.mxu0 0
  %6045 = vmatprep.subr.bf16.mxu0 0
  %6046 = vmatpush1.bf16.msra.mxu0 0
  %6047 = vmatprep.subr.bf16.mxu0 0
  %6048 = vmatpush1.bf16.msra.mxu0 0
  %6049 = vmatprep.subr.bf16.mxu0 0
  %6050 = vmatpush1.bf16.msra.mxu0 0
  %6051 = vmatprep.subr.bf16.mxu0 0
  %6052 = vmatpush1.bf16.msra.mxu0 0
  %6053 = vmatprep.subr.bf16.mxu0 0
  %6054 = vmatpush1.bf16.msra.mxu0 0
  %6055 = vmatprep.subr.bf16.mxu0 0
  %6056 = vmatpush1.bf16.msra.mxu0 0
  %6057 = vmatprep.mubr.bf16.mxu0 0
  %6058 = vmatmul.mubr.bf16.gmra.mrb[0].mxu0 %v6014
  %v6059 = vpop.f32.mrb[0].mxu0
  %v6060 = vadd.f32 0.0, %v6059
  %v6061 = vpop.f32.mrb[0].mxu0
  %v6062 = vpop.f32.mrb[0].mxu0
  %v6063 = vadd.f32 0.0, %v6062
  %v6064 = vpop.f32.mrb[0].mxu0
  %6065 = vmatprep.mubr.bf16.mxu0 0
  %6066 = vmatmul.mubr.bf16.gmra.mrb[0].mxu0 %v6017
  %v6067 = vpop.f32.mrb[0].mxu0
  %v6068 = vadd.f32 0.0, %v6067
  %v6069 = vpop.f32.mrb[0].mxu0
  %v6070 = vpop.f32.mrb[0].mxu0
  %v6071 = vadd.f32 0.0, %v6070
  %v6072 = vpop.f32.mrb[0].mxu0
  %6073 = vmatprep.mubr.bf16.mxu0 0
  %6074 = vmatmul.mubr.bf16.gmra.mrb[0].mxu0 %v6020
  %v6075 = vpop.f32.mrb[0].mxu0
  %v6076 = vadd.f32 0.0, %v6075
  %v6077 = vpop.f32.mrb[0].mxu0
  %v6078 = vpop.f32.mrb[0].mxu0
  %v6079 = vadd.f32 0.0, %v6078
  %v6080 = vpop.f32.mrb[0].mxu0
  %6081 = vmatprep.mubr.bf16.mxu0 0
  %6082 = vmatmul.mubr.bf16.gmra.mrb[0].mxu0 %v6023
  %v6083 = vpop.f32.mrb[0].mxu0
  %v6084 = vadd.f32 0.0, %v6083
  %v6085 = vpop.f32.mrb[0].mxu0
  %v6086 = vpop.f32.mrb[0].mxu0
  %v6087 = vadd.f32 0.0, %v6086
  %v6088 = vpop.f32.mrb[0].mxu0
  %6089 = vdwg.mxu0
  %6098 = vrot.lane.b32.xlu0 %v5526, 8
  %v6099 = vpop.permute.xlu0 %6098
  %6100 = vrot.lane.b32.xlu0 %v5529, 8
  %v6101 = vpop.permute.xlu0 %6100
  %6102 = vrot.lane.b32.xlu0 %v5534, 8
  %v6103 = vpop.permute.xlu0 %6102
  %6104 = vrot.lane.b32.xlu0 %v5537, 8
  %v6105 = vpop.permute.xlu0 %6104
  %6106 = vrot.lane.b32.xlu0 %v5542, 8
  %v6107 = vpop.permute.xlu0 %6106
  %6108 = vrot.lane.b32.xlu0 %v5545, 8
  %v6109 = vpop.permute.xlu0 %6108
  %6110 = vrot.lane.b32.xlu0 %v5550, 8
  %v6111 = vpop.permute.xlu0 %6110
  %6112 = vrot.lane.b32.xlu0 %v5553, 8
  %v6113 = vpop.permute.xlu0 %6112
  %6130 = vrot.lane.b32.xlu0 %v5615, 16
  %v6131 = vpop.permute.xlu0 %6130
  %6132 = vrot.lane.b32.xlu0 %v5618, 16
  %v6133 = vpop.permute.xlu0 %6132
  %6134 = vrot.lane.b32.xlu0 %v5623, 16
  %v6135 = vpop.permute.xlu0 %6134
  %6136 = vrot.lane.b32.xlu0 %v5626, 16
  %v6137 = vpop.permute.xlu0 %6136
  %6138 = vrot.lane.b32.xlu0 %v5631, 16
  %v6139 = vpop.permute.xlu0 %6138
  %6140 = vrot.lane.b32.xlu0 %v5634, 16
  %v6141 = vpop.permute.xlu0 %6140
  %6142 = vrot.lane.b32.xlu0 %v5639, 16
  %v6143 = vpop.permute.xlu0 %6142
  %6144 = vrot.lane.b32.xlu0 %v5642, 16
  %v6145 = vpop.permute.xlu0 %6144
  %6162 = vrot.lane.b32.xlu0 %v5704, 24
  %v6163 = vpop.permute.xlu0 %6162
  %6164 = vrot.lane.b32.xlu0 %v5707, 24
  %v6165 = vpop.permute.xlu0 %6164
  %6166 = vrot.lane.b32.xlu0 %v5712, 24
  %v6167 = vpop.permute.xlu0 %6166
  %6168 = vrot.lane.b32.xlu0 %v5715, 24
  %v6169 = vpop.permute.xlu0 %6168
  %6170 = vrot.lane.b32.xlu0 %v5720, 24
  %v6171 = vpop.permute.xlu0 %6170
  %6172 = vrot.lane.b32.xlu0 %v5723, 24
  %v6173 = vpop.permute.xlu0 %6172
  %6174 = vrot.lane.b32.xlu0 %v5728, 24
  %v6175 = vpop.permute.xlu0 %6174
  %6176 = vrot.lane.b32.xlu0 %v5731, 24
  %v6177 = vpop.permute.xlu0 %6176
  %v6186 = vsel %vm3844, %v5437, %v6099
  %v6187 = vsel %vm3844, %v5440, %v6101
  %v6188 = vsel %vm3844, %v5445, %v6103
  %v6189 = vsel %vm3844, %v5448, %v6105
  %v6190 = vsel %vm3844, %v5453, %v6107
  %v6191 = vsel %vm3844, %v5456, %v6109
  %v6192 = vsel %vm3844, %v5461, %v6111
  %v6193 = vsel %vm3844, %v5464, %v6113
  %vm6194 = vcmask 130048
  %v6195 = vsel %vm6194, %v6186, %v6131
  %v6196 = vsel %vm6194, %v6187, %v6133
  %v6197 = vsel %vm6194, %v6188, %v6135
  %v6198 = vsel %vm6194, %v6189, %v6137
  %v6199 = vsel %vm6194, %v6190, %v6139
  %v6200 = vsel %vm6194, %v6191, %v6141
  %v6201 = vsel %vm6194, %v6192, %v6143
  %v6202 = vsel %vm6194, %v6193, %v6145
  %vm6203 = vcmask 195584
  %v6204 = vsel %vm6203, %v6195, %v6163
  %v6205 = vsel %vm6203, %v6196, %v6165
  %v6206 = vsel %vm6203, %v6197, %v6167
  %v6207 = vsel %vm6203, %v6198, %v6169
  %v6208 = vsel %vm6203, %v6199, %v6171
  %v6209 = vsel %vm6203, %v6200, %v6173
  %v6210 = vsel %vm6203, %v6201, %v6175
  %v6211 = vsel %vm6203, %v6202, %v6177
  %6220 = vrot.lane.b32.xlu0 %v5882, 8
  %v6221 = vpop.permute.xlu0 %6220
  %6222 = vrot.lane.b32.xlu0 %v5885, 8
  %v6223 = vpop.permute.xlu0 %6222
  %6224 = vrot.lane.b32.xlu0 %v5890, 8
  %v6225 = vpop.permute.xlu0 %6224
  %6226 = vrot.lane.b32.xlu0 %v5893, 8
  %v6227 = vpop.permute.xlu0 %6226
  %6228 = vrot.lane.b32.xlu0 %v5898, 8
  %v6229 = vpop.permute.xlu0 %6228
  %6230 = vrot.lane.b32.xlu0 %v5901, 8
  %v6231 = vpop.permute.xlu0 %6230
  %6232 = vrot.lane.b32.xlu0 %v5906, 8
  %v6233 = vpop.permute.xlu0 %6232
  %6234 = vrot.lane.b32.xlu0 %v5909, 8
  %v6235 = vpop.permute.xlu0 %6234
  %6252 = vrot.lane.b32.xlu0 %v5971, 16
  %v6253 = vpop.permute.xlu0 %6252
  %6254 = vrot.lane.b32.xlu0 %v5974, 16
  %v6255 = vpop.permute.xlu0 %6254
  %6256 = vrot.lane.b32.xlu0 %v5979, 16
  %v6257 = vpop.permute.xlu0 %6256
  %6258 = vrot.lane.b32.xlu0 %v5982, 16
  %v6259 = vpop.permute.xlu0 %6258
  %6260 = vrot.lane.b32.xlu0 %v5987, 16
  %v6261 = vpop.permute.xlu0 %6260
  %6262 = vrot.lane.b32.xlu0 %v5990, 16
  %v6263 = vpop.permute.xlu0 %6262
  %6264 = vrot.lane.b32.xlu0 %v5995, 16
  %v6265 = vpop.permute.xlu0 %6264
  %6266 = vrot.lane.b32.xlu0 %v5998, 16
  %v6267 = vpop.permute.xlu0 %6266
  %6284 = vrot.lane.b32.xlu0 %v6060, 24
  %v6285 = vpop.permute.xlu0 %6284
  %6286 = vrot.lane.b32.xlu0 %v6063, 24
  %v6287 = vpop.permute.xlu0 %6286
  %6288 = vrot.lane.b32.xlu0 %v6068, 24
  %v6289 = vpop.permute.xlu0 %6288
  %6290 = vrot.lane.b32.xlu0 %v6071, 24
  %v6291 = vpop.permute.xlu0 %6290
  %6292 = vrot.lane.b32.xlu0 %v6076, 24
  %v6293 = vpop.permute.xlu0 %6292
  %6294 = vrot.lane.b32.xlu0 %v6079, 24
  %v6295 = vpop.permute.xlu0 %6294
  %6296 = vrot.lane.b32.xlu0 %v6084, 24
  %v6297 = vpop.permute.xlu0 %6296
  %6298 = vrot.lane.b32.xlu0 %v6087, 24
  %v6299 = vpop.permute.xlu0 %6298
  %v6308 = vsel %vm3844, %v5793, %v6221
  %v6309 = vsel %vm3844, %v5796, %v6223
  %v6310 = vsel %vm3844, %v5801, %v6225
  %v6311 = vsel %vm3844, %v5804, %v6227
  %v6312 = vsel %vm3844, %v5809, %v6229
  %v6313 = vsel %vm3844, %v5812, %v6231
  %v6314 = vsel %vm3844, %v5817, %v6233
  %v6315 = vsel %vm3844, %v5820, %v6235
  %v6316 = vsel %vm6194, %v6308, %v6253
  %v6317 = vsel %vm6194, %v6309, %v6255
  %v6318 = vsel %vm6194, %v6310, %v6257
  %v6319 = vsel %vm6194, %v6311, %v6259
  %v6320 = vsel %vm6194, %v6312, %v6261
  %v6321 = vsel %vm6194, %v6313, %v6263
  %v6322 = vsel %vm6194, %v6314, %v6265
  %v6323 = vsel %vm6194, %v6315, %v6267
  %v6324 = vsel %vm6203, %v6316, %v6285
  %v6325 = vsel %vm6203, %v6317, %v6287
  %v6326 = vsel %vm6203, %v6318, %v6289
  %v6327 = vsel %vm6203, %v6319, %v6291
  %v6328 = vsel %vm6203, %v6320, %v6293
  %v6329 = vsel %vm6203, %v6321, %v6295
  %v6330 = vsel %vm6203, %v6322, %v6297
  %v6331 = vsel %vm6203, %v6323, %v6299
  %v6332 = vpack.c.bf16 %v6205, %v6204
  %v6333 = vpack.c.bf16 %v6207, %v6206
  %v6334 = vpack.c.bf16 %v6209, %v6208
  %v6335 = vpack.c.bf16 %v6211, %v6210
  %v6336 = vpack.c.bf16 %v6325, %v6324
  %v6337 = vpack.c.bf16 %v6327, %v6326
  %v6338 = vpack.c.bf16 %v6329, %v6328
  %v6339 = vpack.c.bf16 %v6331, %v6330
  %v6340 = vld [vmem:[%s6] sm:$0xf]
  %v6341 = vld [vmem:[%s6 + $0x4] sm:$0xf]
  %v6342 = vld [vmem:[%s6 + $0x8] sm:$0xf]
  %v6343 = vld [vmem:[%s6 + $0xc] sm:$0xf]
  %v6344 = vld [vmem:[%s7] sm:$0x1]
  %v6346 = vlaneseq
  %v6347 = vshrl.u32 %v6346, 7
  %v6348 = vsub.s32 0, %v6347
  %v6349 = vrot.slane %v6344, %v6348
  %v6355 = vunpack.c.l.b16 %v6340
  %v6356 = vunpack.c.l.b16 %v6341
  %v6357 = vunpack.c.l.b16 %v6342
  %v6358 = vunpack.c.l.b16 %v6343
  %v6359 = vpack.c.b16 %v6356, %v6355
  %v6360 = vpack.c.b16 %v6358, %v6357
  %v6364 = vsel %vm130, %v6332, 0
  %v6367 = vsel %vm130, %v6333, 0
  %v6370 = vsel %vm130, %v6334, 0
  %v6373 = vsel %vm130, %v6335, 0
  %v6376 = vsel %vm130, %v6336, 0
  %v6379 = vsel %vm130, %v6337, 0
  %v6382 = vsel %vm130, %v6338, 0
  %v6385 = vsel %vm130, %v6339, 0
  %6387 = vmatprep.subr.bf16.mxu0 0
  %6388 = vmatpush1.bf16.msra.mxu0 %v6359
  %6389 = vmatprep.subr.bf16.mxu0 0
  %6390 = vmatpush1.bf16.msra.mxu0 %v6360
  %6391 = vmatprep.subr.bf16.mxu0 0
  %6392 = vmatpush1.bf16.msra.mxu0 0
  %6393 = vmatprep.subr.bf16.mxu0 0
  %6394 = vmatpush1.bf16.msra.mxu0 0
  %6395 = vmatprep.subr.bf16.mxu0 0
  %6396 = vmatpush1.bf16.msra.mxu0 0
  %6397 = vmatprep.subr.bf16.mxu0 0
  %6398 = vmatpush1.bf16.msra.mxu0 0
  %6399 = vmatprep.subr.bf16.mxu0 0
  %6400 = vmatpush1.bf16.msra.mxu0 0
  %6401 = vmatprep.subr.bf16.mxu0 0
  %6402 = vmatpush1.bf16.msra.mxu0 0
  %6403 = vmatprep.subr.bf16.mxu0 0
  %6404 = vmatpush1.bf16.msra.mxu0 0
  %6405 = vmatprep.subr.bf16.mxu0 0
  %6406 = vmatpush1.bf16.msra.mxu0 0
  %6407 = vmatprep.subr.bf16.mxu0 0
  %6408 = vmatpush1.bf16.msra.mxu0 0
  %6409 = vmatprep.subr.bf16.mxu0 0
  %6410 = vmatpush1.bf16.msra.mxu0 0
  %6411 = vmatprep.subr.bf16.mxu0 0
  %6412 = vmatpush1.bf16.msra.mxu0 0
  %6413 = vmatprep.subr.bf16.mxu0 0
  %6414 = vmatpush1.bf16.msra.mxu0 0
  %6415 = vmatprep.subr.bf16.mxu0 0
  %6416 = vmatpush1.bf16.msra.mxu0 0
  %6417 = vmatprep.subr.bf16.mxu0 0
  %6418 = vmatpush1.bf16.msra.mxu0 0
  %6419 = vmatprep.mubr.bf16.mxu0 0
  %6420 = vmatmul.mubr.bf16.gmra.mrb[0].mxu0 %v6364
  %v6421 = vpop.f32.mrb[0].mxu0
  %v6422 = vadd.f32 %v6349, %v6421
  %v6423 = vpop.f32.mrb[0].mxu0
  %v6424 = vpop.f32.mrb[0].mxu0
  %v6425 = vadd.f32 %v6349, %v6424
  %v6426 = vpop.f32.mrb[0].mxu0
  %6427 = vmatprep.mubr.bf16.mxu0 0
  %6428 = vmatmul.mubr.bf16.gmra.mrb[0].mxu0 %v6367
  %v6429 = vpop.f32.mrb[0].mxu0
  %v6430 = vadd.f32 %v6349, %v6429
  %v6431 = vpop.f32.mrb[0].mxu0
  %v6432 = vpop.f32.mrb[0].mxu0
  %v6433 = vadd.f32 %v6349, %v6432
  %v6434 = vpop.f32.mrb[0].mxu0
  %6435 = vmatprep.mubr.bf16.mxu0 0
  %6436 = vmatmul.mubr.bf16.gmra.mrb[0].mxu0 %v6370
  %v6437 = vpop.f32.mrb[0].mxu0
  %v6438 = vadd.f32 %v6349, %v6437
  %v6439 = vpop.f32.mrb[0].mxu0
  %v6440 = vpop.f32.mrb[0].mxu0
  %v6441 = vadd.f32 %v6349, %v6440
  %v6442 = vpop.f32.mrb[0].mxu0
  %6443 = vmatprep.mubr.bf16.mxu0 0
  %6444 = vmatmul.mubr.bf16.gmra.mrb[0].mxu0 %v6373
  %v6445 = vpop.f32.mrb[0].mxu0
  %v6446 = vadd.f32 %v6349, %v6445
  %v6447 = vpop.f32.mrb[0].mxu0
  %v6448 = vpop.f32.mrb[0].mxu0
  %v6449 = vadd.f32 %v6349, %v6448
  %v6450 = vpop.f32.mrb[0].mxu0
  %6451 = vmatprep.mubr.bf16.mxu0 0
  %6452 = vmatmul.mubr.bf16.gmra.mrb[0].mxu0 %v6376
  %v6453 = vpop.f32.mrb[0].mxu0
  %v6454 = vadd.f32 %v6349, %v6453
  %v6455 = vpop.f32.mrb[0].mxu0
  %v6456 = vpop.f32.mrb[0].mxu0
  %v6457 = vadd.f32 %v6349, %v6456
  %v6458 = vpop.f32.mrb[0].mxu0
  %6459 = vmatprep.mubr.bf16.mxu0 0
  %6460 = vmatmul.mubr.bf16.gmra.mrb[0].mxu0 %v6379
  %v6461 = vpop.f32.mrb[0].mxu0
  %v6462 = vadd.f32 %v6349, %v6461
  %v6463 = vpop.f32.mrb[0].mxu0
  %v6464 = vpop.f32.mrb[0].mxu0
  %v6465 = vadd.f32 %v6349, %v6464
  %v6466 = vpop.f32.mrb[0].mxu0
  %6467 = vmatprep.mubr.bf16.mxu0 0
  %6468 = vmatmul.mubr.bf16.gmra.mrb[0].mxu0 %v6382
  %v6469 = vpop.f32.mrb[0].mxu0
  %v6470 = vadd.f32 %v6349, %v6469
  %v6471 = vpop.f32.mrb[0].mxu0
  %v6472 = vpop.f32.mrb[0].mxu0
  %v6473 = vadd.f32 %v6349, %v6472
  %v6474 = vpop.f32.mrb[0].mxu0
  %6475 = vmatprep.mubr.bf16.mxu0 0
  %6476 = vmatmul.mubr.bf16.gmra.mrb[0].mxu0 %v6385
  %v6477 = vpop.f32.mrb[0].mxu0
  %v6478 = vadd.f32 %v6349, %v6477
  %v6479 = vpop.f32.mrb[0].mxu0
  %v6480 = vpop.f32.mrb[0].mxu0
  %v6481 = vadd.f32 %v6349, %v6480
  %v6482 = vpop.f32.mrb[0].mxu0
  %6483 = vdwg.mxu0
  %v6484 = vadd.f32 %v48, %v6422
  %v6485 = vadd.f32 %v49, %v6425
  %v6486 = vadd.f32 %v50, %v6430
  %v6487 = vadd.f32 %v51, %v6433
  %v6488 = vadd.f32 %v52, %v6438
  %v6489 = vadd.f32 %v53, %v6441
  %v6490 = vadd.f32 %v54, %v6446
  %v6491 = vadd.f32 %v55, %v6449
  %v6492 = vadd.f32 %v56, %v6454
  %v6493 = vadd.f32 %v57, %v6457
  %v6494 = vadd.f32 %v58, %v6462
  %v6495 = vadd.f32 %v59, %v6465
  %v6496 = vadd.f32 %v60, %v6470
  %v6497 = vadd.f32 %v61, %v6473
  %v6498 = vadd.f32 %v62, %v6478
  %v6499 = vadd.f32 %v63, %v6481
  %v6500 = vld [vmem:[%s8] sm:$0x1]
  %v6501 = vld [vmem:[%s9] sm:$0x1]
  %v6502 = vsel %vm130, %v6484, 0.0
  %6503 = vadd.xlane.f32.xlu0 %v6502
  %v6504 = vpop.xlane.xlu0 %6503
  %v6505 = vsel %vm130, %v6485, 0.0
  %6506 = vadd.xlane.f32.xlu0 %v6505
  %v6507 = vpop.xlane.xlu0 %6506
  %v6508 = vsel %vm130, %v6486, 0.0
  %6509 = vadd.xlane.f32.xlu0 %v6508
  %v6510 = vpop.xlane.xlu0 %6509
  %v6511 = vsel %vm130, %v6487, 0.0
  %6512 = vadd.xlane.f32.xlu0 %v6511
  %v6513 = vpop.xlane.xlu0 %6512
  %v6514 = vsel %vm130, %v6488, 0.0
  %6515 = vadd.xlane.f32.xlu0 %v6514
  %v6516 = vpop.xlane.xlu0 %6515
  %v6517 = vsel %vm130, %v6489, 0.0
  %6518 = vadd.xlane.f32.xlu0 %v6517
  %v6519 = vpop.xlane.xlu0 %6518
  %v6520 = vsel %vm130, %v6490, 0.0
  %6521 = vadd.xlane.f32.xlu0 %v6520
  %v6522 = vpop.xlane.xlu0 %6521
  %v6523 = vsel %vm130, %v6491, 0.0
  %6524 = vadd.xlane.f32.xlu0 %v6523
  %v6525 = vpop.xlane.xlu0 %6524
  %v6526 = vsel %vm130, %v6492, 0.0
  %6527 = vadd.xlane.f32.xlu0 %v6526
  %v6528 = vpop.xlane.xlu0 %6527
  %v6529 = vsel %vm130, %v6493, 0.0
  %6530 = vadd.xlane.f32.xlu0 %v6529
  %v6531 = vpop.xlane.xlu0 %6530
  %v6532 = vsel %vm130, %v6494, 0.0
  %6533 = vadd.xlane.f32.xlu0 %v6532
  %v6534 = vpop.xlane.xlu0 %6533
  %v6535 = vsel %vm130, %v6495, 0.0
  %6536 = vadd.xlane.f32.xlu0 %v6535
  %v6537 = vpop.xlane.xlu0 %6536
  %v6538 = vsel %vm130, %v6496, 0.0
  %6539 = vadd.xlane.f32.xlu0 %v6538
  %v6540 = vpop.xlane.xlu0 %6539
  %v6541 = vsel %vm130, %v6497, 0.0
  %6542 = vadd.xlane.f32.xlu0 %v6541
  %v6543 = vpop.xlane.xlu0 %6542
  %v6544 = vsel %vm130, %v6498, 0.0
  %6545 = vadd.xlane.f32.xlu0 %v6544
  %v6546 = vpop.xlane.xlu0 %6545
  %v6547 = vsel %vm130, %v6499, 0.0
  %6548 = vadd.xlane.f32.xlu0 %v6547
  %v6549 = vpop.xlane.xlu0 %6548
  %v6550 = vmul.f32 %v6504, %v179
  %v6551 = vmul.f32 %v6507, %v179
  %v6552 = vmul.f32 %v6510, %v179
  %v6553 = vmul.f32 %v6513, %v179
  %v6554 = vmul.f32 %v6516, %v179
  %v6555 = vmul.f32 %v6519, %v179
  %v6556 = vmul.f32 %v6522, %v179
  %v6557 = vmul.f32 %v6525, %v179
  %v6558 = vmul.f32 %v6528, %v179
  %v6559 = vmul.f32 %v6531, %v179
  %v6560 = vmul.f32 %v6534, %v179
  %v6561 = vmul.f32 %v6537, %v179
  %v6562 = vmul.f32 %v6540, %v179
  %v6563 = vmul.f32 %v6543, %v179
  %v6564 = vmul.f32 %v6546, %v179
  %v6565 = vmul.f32 %v6549, %v179
  %v6566 = vsub.f32 %v6484, %v6550
  %v6567 = vsub.f32 %v6485, %v6551
  %v6568 = vsub.f32 %v6486, %v6552
  %v6569 = vsub.f32 %v6487, %v6553
  %v6570 = vsub.f32 %v6488, %v6554
  %v6571 = vsub.f32 %v6489, %v6555
  %v6572 = vsub.f32 %v6490, %v6556
  %v6573 = vsub.f32 %v6491, %v6557
  %v6574 = vsub.f32 %v6492, %v6558
  %v6575 = vsub.f32 %v6493, %v6559
  %v6576 = vsub.f32 %v6494, %v6560
  %v6577 = vsub.f32 %v6495, %v6561
  %v6578 = vsub.f32 %v6496, %v6562
  %v6579 = vsub.f32 %v6497, %v6563
  %v6580 = vsub.f32 %v6498, %v6564
  %v6581 = vsub.f32 %v6499, %v6565
  %v6582 = vmul.f32 %v6566, %v6566
  %v6583 = vmul.f32 %v6567, %v6567
  %v6584 = vmul.f32 %v6568, %v6568
  %v6585 = vmul.f32 %v6569, %v6569
  %v6586 = vmul.f32 %v6570, %v6570
  %v6587 = vmul.f32 %v6571, %v6571
  %v6588 = vmul.f32 %v6572, %v6572
  %v6589 = vmul.f32 %v6573, %v6573
  %v6590 = vmul.f32 %v6574, %v6574
  %v6591 = vmul.f32 %v6575, %v6575
  %v6592 = vmul.f32 %v6576, %v6576
  %v6593 = vmul.f32 %v6577, %v6577
  %v6594 = vmul.f32 %v6578, %v6578
  %v6595 = vmul.f32 %v6579, %v6579
  %v6596 = vmul.f32 %v6580, %v6580
  %v6597 = vmul.f32 %v6581, %v6581
  %v6598 = vsel %vm130, %v6582, 0.0
  %6599 = vadd.xlane.f32.xlu0 %v6598
  %v6600 = vpop.xlane.xlu0 %6599
  %v6601 = vsel %vm130, %v6583, 0.0
  %6602 = vadd.xlane.f32.xlu0 %v6601
  %v6603 = vpop.xlane.xlu0 %6602
  %v6604 = vsel %vm130, %v6584, 0.0
  %6605 = vadd.xlane.f32.xlu0 %v6604
  %v6606 = vpop.xlane.xlu0 %6605
  %v6607 = vsel %vm130, %v6585, 0.0
  %6608 = vadd.xlane.f32.xlu0 %v6607
  %v6609 = vpop.xlane.xlu0 %6608
  %v6610 = vsel %vm130, %v6586, 0.0
  %6611 = vadd.xlane.f32.xlu0 %v6610
  %v6612 = vpop.xlane.xlu0 %6611
  %v6613 = vsel %vm130, %v6587, 0.0
  %6614 = vadd.xlane.f32.xlu0 %v6613
  %v6615 = vpop.xlane.xlu0 %6614
  %v6616 = vsel %vm130, %v6588, 0.0
  %6617 = vadd.xlane.f32.xlu0 %v6616
  %v6618 = vpop.xlane.xlu0 %6617
  %v6619 = vsel %vm130, %v6589, 0.0
  %6620 = vadd.xlane.f32.xlu0 %v6619
  %v6621 = vpop.xlane.xlu0 %6620
  %v6622 = vsel %vm130, %v6590, 0.0
  %6623 = vadd.xlane.f32.xlu0 %v6622
  %v6624 = vpop.xlane.xlu0 %6623
  %v6625 = vsel %vm130, %v6591, 0.0
  %6626 = vadd.xlane.f32.xlu0 %v6625
  %v6627 = vpop.xlane.xlu0 %6626
  %v6628 = vsel %vm130, %v6592, 0.0
  %6629 = vadd.xlane.f32.xlu0 %v6628
  %v6630 = vpop.xlane.xlu0 %6629
  %v6631 = vsel %vm130, %v6593, 0.0
  %6632 = vadd.xlane.f32.xlu0 %v6631
  %v6633 = vpop.xlane.xlu0 %6632
  %v6634 = vsel %vm130, %v6594, 0.0
  %6635 = vadd.xlane.f32.xlu0 %v6634
  %v6636 = vpop.xlane.xlu0 %6635
  %v6637 = vsel %vm130, %v6595, 0.0
  %6638 = vadd.xlane.f32.xlu0 %v6637
  %v6639 = vpop.xlane.xlu0 %6638
  %v6640 = vsel %vm130, %v6596, 0.0
  %6641 = vadd.xlane.f32.xlu0 %v6640
  %v6642 = vpop.xlane.xlu0 %6641
  %v6643 = vsel %vm130, %v6597, 0.0
  %6644 = vadd.xlane.f32.xlu0 %v6643
  %v6645 = vpop.xlane.xlu0 %6644
  %v6646 = vmul.f32 %v6600, %v179
  %v6647 = vmul.f32 %v6603, %v179
  %v6648 = vmul.f32 %v6606, %v179
  %v6649 = vmul.f32 %v6609, %v179
  %v6650 = vmul.f32 %v6612, %v179
  %v6651 = vmul.f32 %v6615, %v179
  %v6652 = vmul.f32 %v6618, %v179
  %v6653 = vmul.f32 %v6621, %v179
  %v6654 = vmul.f32 %v6624, %v179
  %v6655 = vmul.f32 %v6627, %v179
  %v6656 = vmul.f32 %v6630, %v179
  %v6657 = vmul.f32 %v6633, %v179
  %v6658 = vmul.f32 %v6636, %v179
  %v6659 = vmul.f32 %v6639, %v179
  %v6660 = vmul.f32 %v6642, %v179
  %v6661 = vmul.f32 %v6645, %v179
  %v6662 = vadd.f32 %v6646, 1e-05
  %v6663 = vadd.f32 %v6647, 1e-05
  %v6664 = vadd.f32 %v6648, 1e-05
  %v6665 = vadd.f32 %v6649, 1e-05
  %v6666 = vadd.f32 %v6650, 1e-05
  %v6667 = vadd.f32 %v6651, 1e-05
  %v6668 = vadd.f32 %v6652, 1e-05
  %v6669 = vadd.f32 %v6653, 1e-05
  %v6670 = vadd.f32 %v6654, 1e-05
  %v6671 = vadd.f32 %v6655, 1e-05
  %v6672 = vadd.f32 %v6656, 1e-05
  %v6673 = vadd.f32 %v6657, 1e-05
  %v6674 = vadd.f32 %v6658, 1e-05
  %v6675 = vadd.f32 %v6659, 1e-05
  %v6676 = vadd.f32 %v6660, 1e-05
  %v6677 = vadd.f32 %v6661, 1e-05
  %v6678 = vrsqrt.pop %v6662
  %v6679 = vrsqrt.pop %v6663
  %v6680 = vrsqrt.pop %v6664
  %v6681 = vrsqrt.pop %v6665
  %v6682 = vrsqrt.pop %v6666
  %v6683 = vrsqrt.pop %v6667
  %v6684 = vrsqrt.pop %v6668
  %v6685 = vrsqrt.pop %v6669
  %v6686 = vrsqrt.pop %v6670
  %v6687 = vrsqrt.pop %v6671
  %v6688 = vrsqrt.pop %v6672
  %v6689 = vrsqrt.pop %v6673
  %v6690 = vrsqrt.pop %v6674
  %v6691 = vrsqrt.pop %v6675
  %v6692 = vrsqrt.pop %v6676
  %v6693 = vrsqrt.pop %v6677
  %v6694 = vmul.f32 %v6566, %v6678
  %v6695 = vmul.f32 %v6567, %v6679
  %v6696 = vmul.f32 %v6568, %v6680
  %v6697 = vmul.f32 %v6569, %v6681
  %v6698 = vmul.f32 %v6570, %v6682
  %v6699 = vmul.f32 %v6571, %v6683
  %v6700 = vmul.f32 %v6572, %v6684
  %v6701 = vmul.f32 %v6573, %v6685
  %v6702 = vmul.f32 %v6574, %v6686
  %v6703 = vmul.f32 %v6575, %v6687
  %v6704 = vmul.f32 %v6576, %v6688
  %v6705 = vmul.f32 %v6577, %v6689
  %v6706 = vmul.f32 %v6578, %v6690
  %v6707 = vmul.f32 %v6579, %v6691
  %v6708 = vmul.f32 %v6580, %v6692
  %v6709 = vmul.f32 %v6581, %v6693
  %v6711 = vlaneseq
  %v6712 = vshrl.u32 %v6711, 7
  %v6713 = vsub.s32 0, %v6712
  %v6714 = vrot.slane %v6500, %v6713
  %v6716 = vmul.f32 %v6694, %v6714
  %v6717 = vmul.f32 %v6695, %v6714
  %v6718 = vmul.f32 %v6696, %v6714
  %v6719 = vmul.f32 %v6697, %v6714
  %v6720 = vmul.f32 %v6698, %v6714
  %v6721 = vmul.f32 %v6699, %v6714
  %v6722 = vmul.f32 %v6700, %v6714
  %v6723 = vmul.f32 %v6701, %v6714
  %v6724 = vmul.f32 %v6702, %v6714
  %v6725 = vmul.f32 %v6703, %v6714
  %v6726 = vmul.f32 %v6704, %v6714
  %v6727 = vmul.f32 %v6705, %v6714
  %v6728 = vmul.f32 %v6706, %v6714
  %v6729 = vmul.f32 %v6707, %v6714
  %v6730 = vmul.f32 %v6708, %v6714
  %v6731 = vmul.f32 %v6709, %v6714
  %v6733 = vlaneseq
  %v6734 = vshrl.u32 %v6733, 7
  %v6735 = vsub.s32 0, %v6734
  %v6736 = vrot.slane %v6501, %v6735
  %v6738 = vadd.f32 %v6716, %v6736
  %v6739 = vadd.f32 %v6717, %v6736
  %v6740 = vadd.f32 %v6718, %v6736
  %v6741 = vadd.f32 %v6719, %v6736
  %v6742 = vadd.f32 %v6720, %v6736
  %v6743 = vadd.f32 %v6721, %v6736
  %v6744 = vadd.f32 %v6722, %v6736
  %v6745 = vadd.f32 %v6723, %v6736
  %v6746 = vadd.f32 %v6724, %v6736
  %v6747 = vadd.f32 %v6725, %v6736
  %v6748 = vadd.f32 %v6726, %v6736
  %v6749 = vadd.f32 %v6727, %v6736
  %v6750 = vadd.f32 %v6728, %v6736
  %v6751 = vadd.f32 %v6729, %v6736
  %v6752 = vadd.f32 %v6730, %v6736
  %v6753 = vadd.f32 %v6731, %v6736
  %v6754 = vpack.c.bf16 %v6739, %v6738
  %v6755 = vpack.c.bf16 %v6741, %v6740
  %v6756 = vpack.c.bf16 %v6743, %v6742
  %v6757 = vpack.c.bf16 %v6745, %v6744
  %v6758 = vpack.c.bf16 %v6747, %v6746
  %v6759 = vpack.c.bf16 %v6749, %v6748
  %v6760 = vpack.c.bf16 %v6751, %v6750
  %v6761 = vpack.c.bf16 %v6753, %v6752
  %v6762 = vld [vmem:[%s10] sm:$0xf]
  %v6763 = vld [vmem:[%s10 + $0x4] sm:$0xf]
  %v6764 = vld [vmem:[%s10 + $0x8] sm:$0xf]
  %v6765 = vld [vmem:[%s10 + $0xc] sm:$0xf]
  %v6766 = vld [vmem:[%s11] sm:$0x1]
  %v6768 = vlaneseq
  %v6769 = vshrl.u32 %v6768, 7
  %v6770 = vsub.s32 0, %v6769
  %v6771 = vrot.slane %v6766, %v6770
  %v6777 = vunpack.c.l.b16 %v6762
  %v6778 = vunpack.c.l.b16 %v6763
  %v6779 = vunpack.c.l.b16 %v6764
  %v6780 = vunpack.c.l.b16 %v6765
  %v6781 = vpack.c.b16 %v6778, %v6777
  %v6782 = vpack.c.b16 %v6780, %v6779
  %v6786 = vsel %vm130, %v6754, 0
  %v6789 = vsel %vm130, %v6755, 0
  %v6792 = vsel %vm130, %v6756, 0
  %v6795 = vsel %vm130, %v6757, 0
  %v6798 = vsel %vm130, %v6758, 0
  %v6801 = vsel %vm130, %v6759, 0
  %v6804 = vsel %vm130, %v6760, 0
  %v6807 = vsel %vm130, %v6761, 0
  %6809 = vmatprep.subr.bf16.mxu0 0
  %6810 = vmatpush1.bf16.msra.mxu0 %v6781
  %6811 = vmatprep.subr.bf16.mxu0 0
  %6812 = vmatpush1.bf16.msra.mxu0 %v6782
  %6813 = vmatprep.subr.bf16.mxu0 0
  %6814 = vmatpush1.bf16.msra.mxu0 0
  %6815 = vmatprep.subr.bf16.mxu0 0
  %6816 = vmatpush1.bf16.msra.mxu0 0
  %6817 = vmatprep.subr.bf16.mxu0 0
  %6818 = vmatpush1.bf16.msra.mxu0 0
  %6819 = vmatprep.subr.bf16.mxu0 0
  %6820 = vmatpush1.bf16.msra.mxu0 0
  %6821 = vmatprep.subr.bf16.mxu0 0
  %6822 = vmatpush1.bf16.msra.mxu0 0
  %6823 = vmatprep.subr.bf16.mxu0 0
  %6824 = vmatpush1.bf16.msra.mxu0 0
  %6825 = vmatprep.subr.bf16.mxu0 0
  %6826 = vmatpush1.bf16.msra.mxu0 0
  %6827 = vmatprep.subr.bf16.mxu0 0
  %6828 = vmatpush1.bf16.msra.mxu0 0
  %6829 = vmatprep.subr.bf16.mxu0 0
  %6830 = vmatpush1.bf16.msra.mxu0 0
  %6831 = vmatprep.subr.bf16.mxu0 0
  %6832 = vmatpush1.bf16.msra.mxu0 0
  %6833 = vmatprep.subr.bf16.mxu0 0
  %6834 = vmatpush1.bf16.msra.mxu0 0
  %6835 = vmatprep.subr.bf16.mxu0 0
  %6836 = vmatpush1.bf16.msra.mxu0 0
  %6837 = vmatprep.subr.bf16.mxu0 0
  %6838 = vmatpush1.bf16.msra.mxu0 0
  %6839 = vmatprep.subr.bf16.mxu0 0
  %6840 = vmatpush1.bf16.msra.mxu0 0
  %6841 = vmatprep.mubr.bf16.mxu0 0
  %6842 = vmatmul.mubr.bf16.gmra.mrb[0].mxu0 %v6786
  %v6843 = vpop.f32.mrb[0].mxu0
  %v6844 = vadd.f32 %v6771, %v6843
  %v6845 = vpop.f32.mrb[0].mxu0
  %v6846 = vpop.f32.mrb[0].mxu0
  %v6847 = vadd.f32 %v6771, %v6846
  %v6848 = vpop.f32.mrb[0].mxu0
  %6849 = vmatprep.mubr.bf16.mxu0 0
  %6850 = vmatmul.mubr.bf16.gmra.mrb[0].mxu0 %v6789
  %v6851 = vpop.f32.mrb[0].mxu0
  %v6852 = vadd.f32 %v6771, %v6851
  %v6853 = vpop.f32.mrb[0].mxu0
  %v6854 = vpop.f32.mrb[0].mxu0
  %v6855 = vadd.f32 %v6771, %v6854
  %v6856 = vpop.f32.mrb[0].mxu0
  %6857 = vmatprep.mubr.bf16.mxu0 0
  %6858 = vmatmul.mubr.bf16.gmra.mrb[0].mxu0 %v6792
  %v6859 = vpop.f32.mrb[0].mxu0
  %v6860 = vadd.f32 %v6771, %v6859
  %v6861 = vpop.f32.mrb[0].mxu0
  %v6862 = vpop.f32.mrb[0].mxu0
  %v6863 = vadd.f32 %v6771, %v6862
  %v6864 = vpop.f32.mrb[0].mxu0
  %6865 = vmatprep.mubr.bf16.mxu0 0
  %6866 = vmatmul.mubr.bf16.gmra.mrb[0].mxu0 %v6795
  %v6867 = vpop.f32.mrb[0].mxu0
  %v6868 = vadd.f32 %v6771, %v6867
  %v6869 = vpop.f32.mrb[0].mxu0
  %v6870 = vpop.f32.mrb[0].mxu0
  %v6871 = vadd.f32 %v6771, %v6870
  %v6872 = vpop.f32.mrb[0].mxu0
  %6873 = vmatprep.mubr.bf16.mxu0 0
  %6874 = vmatmul.mubr.bf16.gmra.mrb[0].mxu0 %v6798
  %v6875 = vpop.f32.mrb[0].mxu0
  %v6876 = vadd.f32 %v6771, %v6875
  %v6877 = vpop.f32.mrb[0].mxu0
  %v6878 = vpop.f32.mrb[0].mxu0
  %v6879 = vadd.f32 %v6771, %v6878
  %v6880 = vpop.f32.mrb[0].mxu0
  %6881 = vmatprep.mubr.bf16.mxu0 0
  %6882 = vmatmul.mubr.bf16.gmra.mrb[0].mxu0 %v6801
  %v6883 = vpop.f32.mrb[0].mxu0
  %v6884 = vadd.f32 %v6771, %v6883
  %v6885 = vpop.f32.mrb[0].mxu0
  %v6886 = vpop.f32.mrb[0].mxu0
  %v6887 = vadd.f32 %v6771, %v6886
  %v6888 = vpop.f32.mrb[0].mxu0
  %6889 = vmatprep.mubr.bf16.mxu0 0
  %6890 = vmatmul.mubr.bf16.gmra.mrb[0].mxu0 %v6804
  %v6891 = vpop.f32.mrb[0].mxu0
  %v6892 = vadd.f32 %v6771, %v6891
  %v6893 = vpop.f32.mrb[0].mxu0
  %v6894 = vpop.f32.mrb[0].mxu0
  %v6895 = vadd.f32 %v6771, %v6894
  %v6896 = vpop.f32.mrb[0].mxu0
  %6897 = vmatprep.mubr.bf16.mxu0 0
  %6898 = vmatmul.mubr.bf16.gmra.mrb[0].mxu0 %v6807
  %v6899 = vpop.f32.mrb[0].mxu0
  %v6900 = vadd.f32 %v6771, %v6899
  %v6901 = vpop.f32.mrb[0].mxu0
  %v6902 = vpop.f32.mrb[0].mxu0
  %v6903 = vadd.f32 %v6771, %v6902
  %v6904 = vpop.f32.mrb[0].mxu0
  %6905 = vdwg.mxu0
  %v6906 = vmul.f32 %v6844, 0.5
  %v6907 = vmul.f32 %v6847, 0.5
  %v6908 = vmul.f32 %v6852, 0.5
  %v6909 = vmul.f32 %v6855, 0.5
  %v6910 = vmul.f32 %v6860, 0.5
  %v6911 = vmul.f32 %v6863, 0.5
  %v6912 = vmul.f32 %v6868, 0.5
  %v6913 = vmul.f32 %v6871, 0.5
  %v6914 = vmul.f32 %v6876, 0.5
  %v6915 = vmul.f32 %v6879, 0.5
  %v6916 = vmul.f32 %v6884, 0.5
  %v6917 = vmul.f32 %v6887, 0.5
  %v6918 = vmul.f32 %v6892, 0.5
  %v6919 = vmul.f32 %v6895, 0.5
  %v6920 = vmul.f32 %v6900, 0.5
  %v6921 = vmul.f32 %v6903, 0.5
  %v6922 = vmul.f32 %v6844, 0.70710677
  %v6923 = vmul.f32 %v6847, 0.70710677
  %v6924 = vmul.f32 %v6852, 0.70710677
  %v6925 = vmul.f32 %v6855, 0.70710677
  %v6926 = vmul.f32 %v6860, 0.70710677
  %v6927 = vmul.f32 %v6863, 0.70710677
  %v6928 = vmul.f32 %v6868, 0.70710677
  %v6929 = vmul.f32 %v6871, 0.70710677
  %v6930 = vmul.f32 %v6876, 0.70710677
  %v6931 = vmul.f32 %v6879, 0.70710677
  %v6932 = vmul.f32 %v6884, 0.70710677
  %v6933 = vmul.f32 %v6887, 0.70710677
  %v6934 = vmul.f32 %v6892, 0.70710677
  %v6935 = vmul.f32 %v6895, 0.70710677
  %v6936 = vmul.f32 %v6900, 0.70710677
  %v6937 = vmul.f32 %v6903, 0.70710677
  %v6938 = verf.f32.pop %v6922
  %v6939 = verf.f32.pop %v6923
  %v6940 = verf.f32.pop %v6924
  %v6941 = verf.f32.pop %v6925
  %v6942 = verf.f32.pop %v6926
  %v6943 = verf.f32.pop %v6927
  %v6944 = verf.f32.pop %v6928
  %v6945 = verf.f32.pop %v6929
  %v6946 = verf.f32.pop %v6930
  %v6947 = verf.f32.pop %v6931
  %v6948 = verf.f32.pop %v6932
  %v6949 = verf.f32.pop %v6933
  %v6950 = verf.f32.pop %v6934
  %v6951 = verf.f32.pop %v6935
  %v6952 = verf.f32.pop %v6936
  %v6953 = verf.f32.pop %v6937
  %v6954 = vadd.f32 %v6938, 1.0
  %v6955 = vadd.f32 %v6939, 1.0
  %v6956 = vadd.f32 %v6940, 1.0
  %v6957 = vadd.f32 %v6941, 1.0
  %v6958 = vadd.f32 %v6942, 1.0
  %v6959 = vadd.f32 %v6943, 1.0
  %v6960 = vadd.f32 %v6944, 1.0
  %v6961 = vadd.f32 %v6945, 1.0
  %v6962 = vadd.f32 %v6946, 1.0
  %v6963 = vadd.f32 %v6947, 1.0
  %v6964 = vadd.f32 %v6948, 1.0
  %v6965 = vadd.f32 %v6949, 1.0
  %v6966 = vadd.f32 %v6950, 1.0
  %v6967 = vadd.f32 %v6951, 1.0
  %v6968 = vadd.f32 %v6952, 1.0
  %v6969 = vadd.f32 %v6953, 1.0
  %v6970 = vmul.f32 %v6906, %v6954
  %v6971 = vmul.f32 %v6907, %v6955
  %v6972 = vmul.f32 %v6908, %v6956
  %v6973 = vmul.f32 %v6909, %v6957
  %v6974 = vmul.f32 %v6910, %v6958
  %v6975 = vmul.f32 %v6911, %v6959
  %v6976 = vmul.f32 %v6912, %v6960
  %v6977 = vmul.f32 %v6913, %v6961
  %v6978 = vmul.f32 %v6914, %v6962
  %v6979 = vmul.f32 %v6915, %v6963
  %v6980 = vmul.f32 %v6916, %v6964
  %v6981 = vmul.f32 %v6917, %v6965
  %v6982 = vmul.f32 %v6918, %v6966
  %v6983 = vmul.f32 %v6919, %v6967
  %v6984 = vmul.f32 %v6920, %v6968
  %v6985 = vmul.f32 %v6921, %v6969
  %v6986 = vpack.c.bf16 %v6971, %v6970
  %v6987 = vpack.c.bf16 %v6973, %v6972
  %v6988 = vpack.c.bf16 %v6975, %v6974
  %v6989 = vpack.c.bf16 %v6977, %v6976
  %v6990 = vpack.c.bf16 %v6979, %v6978
  %v6991 = vpack.c.bf16 %v6981, %v6980
  %v6992 = vpack.c.bf16 %v6983, %v6982
  %v6993 = vpack.c.bf16 %v6985, %v6984
  %v6994 = vld [vmem:[%s12] sm:$0xf]
  %v6995 = vld [vmem:[%s12 + $0x4] sm:$0xf]
  %v6996 = vld [vmem:[%s12 + $0x8] sm:$0xf]
  %v6997 = vld [vmem:[%s12 + $0xc] sm:$0xf]
  %v6998 = vld [vmem:[%s12 + $0x10] sm:$0xf]
  %v6999 = vld [vmem:[%s12 + $0x14] sm:$0xf]
  %v7000 = vld [vmem:[%s12 + $0x18] sm:$0xf]
  %v7001 = vld [vmem:[%s12 + $0x1c] sm:$0xf]
  %v7002 = vld [vmem:[%s12 + $0x20] sm:$0xf]
  %v7003 = vld [vmem:[%s12 + $0x24] sm:$0xf]
  %v7004 = vld [vmem:[%s12 + $0x28] sm:$0xf]
  %v7005 = vld [vmem:[%s12 + $0x2c] sm:$0xf]
  %v7006 = vld [vmem:[%s12 + $0x30] sm:$0xf]
  %v7007 = vld [vmem:[%s12 + $0x34] sm:$0xf]
  %v7008 = vld [vmem:[%s12 + $0x38] sm:$0xf]
  %v7009 = vld [vmem:[%s12 + $0x3c] sm:$0xf]
  %v7010 = vld [vmem:[%s13] sm:$0x1]
  %v7012 = vlaneseq
  %v7013 = vshrl.u32 %v7012, 7
  %v7014 = vsub.s32 0, %v7013
  %v7015 = vrot.slane %v7010, %v7014
  %v7033 = vunpack.c.l.b16 %v6994
  %v7034 = vunpack.c.l.b16 %v6995
  %v7035 = vunpack.c.l.b16 %v6996
  %v7036 = vunpack.c.l.b16 %v6997
  %v7037 = vunpack.c.l.b16 %v6998
  %v7038 = vunpack.c.l.b16 %v6999
  %v7039 = vunpack.c.l.b16 %v7000
  %v7040 = vunpack.c.l.b16 %v7001
  %v7041 = vunpack.c.l.b16 %v7002
  %v7042 = vunpack.c.l.b16 %v7003
  %v7043 = vunpack.c.l.b16 %v7004
  %v7044 = vunpack.c.l.b16 %v7005
  %v7045 = vunpack.c.l.b16 %v7006
  %v7046 = vunpack.c.l.b16 %v7007
  %v7047 = vunpack.c.l.b16 %v7008
  %v7048 = vunpack.c.l.b16 %v7009
  %v7049 = vpack.c.b16 %v7034, %v7033
  %v7050 = vpack.c.b16 %v7036, %v7035
  %v7051 = vpack.c.b16 %v7038, %v7037
  %v7052 = vpack.c.b16 %v7040, %v7039
  %v7053 = vpack.c.b16 %v7042, %v7041
  %v7054 = vpack.c.b16 %v7044, %v7043
  %v7055 = vpack.c.b16 %v7046, %v7045
  %v7056 = vpack.c.b16 %v7048, %v7047
  %7065 = vmatprep.subr.bf16.mxu0 0
  %7066 = vmatpush1.bf16.msra.mxu0 %v7049
  %7067 = vmatprep.subr.bf16.mxu0 0
  %7068 = vmatpush1.bf16.msra.mxu0 %v7050
  %7069 = vmatprep.subr.bf16.mxu0 0
  %7070 = vmatpush1.bf16.msra.mxu0 %v7051
  %7071 = vmatprep.subr.bf16.mxu0 0
  %7072 = vmatpush1.bf16.msra.mxu0 %v7052
  %7073 = vmatprep.subr.bf16.mxu0 0
  %7074 = vmatpush1.bf16.msra.mxu0 %v7053
  %7075 = vmatprep.subr.bf16.mxu0 0
  %7076 = vmatpush1.bf16.msra.mxu0 %v7054
  %7077 = vmatprep.subr.bf16.mxu0 0
  %7078 = vmatpush1.bf16.msra.mxu0 %v7055
  %7079 = vmatprep.subr.bf16.mxu0 0
  %7080 = vmatpush1.bf16.msra.mxu0 %v7056
  %7081 = vmatprep.subr.bf16.mxu0 0
  %7082 = vmatpush1.bf16.msra.mxu0 0
  %7083 = vmatprep.subr.bf16.mxu0 0
  %7084 = vmatpush1.bf16.msra.mxu0 0
  %7085 = vmatprep.subr.bf16.mxu0 0
  %7086 = vmatpush1.bf16.msra.mxu0 0
  %7087 = vmatprep.subr.bf16.mxu0 0
  %7088 = vmatpush1.bf16.msra.mxu0 0
  %7089 = vmatprep.subr.bf16.mxu0 0
  %7090 = vmatpush1.bf16.msra.mxu0 0
  %7091 = vmatprep.subr.bf16.mxu0 0
  %7092 = vmatpush1.bf16.msra.mxu0 0
  %7093 = vmatprep.subr.bf16.mxu0 0
  %7094 = vmatpush1.bf16.msra.mxu0 0
  %7095 = vmatprep.subr.bf16.mxu0 0
  %7096 = vmatpush1.bf16.msra.mxu0 0
  %7097 = vmatprep.mubr.bf16.mxu0 0
  %7098 = vmatmul.mubr.bf16.gmra.mrb[0].mxu0 %v6986
  %v7099 = vpop.f32.mrb[0].mxu0
  %v7100 = vadd.f32 %v7015, %v7099
  %v7101 = vpop.f32.mrb[0].mxu0
  %v7102 = vpop.f32.mrb[0].mxu0
  %v7103 = vadd.f32 %v7015, %v7102
  %v7104 = vpop.f32.mrb[0].mxu0
  %7105 = vmatprep.mubr.bf16.mxu0 0
  %7106 = vmatmul.mubr.bf16.gmra.mrb[0].mxu0 %v6987
  %v7107 = vpop.f32.mrb[0].mxu0
  %v7108 = vadd.f32 %v7015, %v7107
  %v7109 = vpop.f32.mrb[0].mxu0
  %v7110 = vpop.f32.mrb[0].mxu0
  %v7111 = vadd.f32 %v7015, %v7110
  %v7112 = vpop.f32.mrb[0].mxu0
  %7113 = vmatprep.mubr.bf16.mxu0 0
  %7114 = vmatmul.mubr.bf16.gmra.mrb[0].mxu0 %v6988
  %v7115 = vpop.f32.mrb[0].mxu0
  %v7116 = vadd.f32 %v7015, %v7115
  %v7117 = vpop.f32.mrb[0].mxu0
  %v7118 = vpop.f32.mrb[0].mxu0
  %v7119 = vadd.f32 %v7015, %v7118
  %v7120 = vpop.f32.mrb[0].mxu0
  %7121 = vmatprep.mubr.bf16.mxu0 0
  %7122 = vmatmul.mubr.bf16.gmra.mrb[0].mxu0 %v6989
  %v7123 = vpop.f32.mrb[0].mxu0
  %v7124 = vadd.f32 %v7015, %v7123
  %v7125 = vpop.f32.mrb[0].mxu0
  %v7126 = vpop.f32.mrb[0].mxu0
  %v7127 = vadd.f32 %v7015, %v7126
  %v7128 = vpop.f32.mrb[0].mxu0
  %7129 = vmatprep.mubr.bf16.mxu0 0
  %7130 = vmatmul.mubr.bf16.gmra.mrb[0].mxu0 %v6990
  %v7131 = vpop.f32.mrb[0].mxu0
  %v7132 = vadd.f32 %v7015, %v7131
  %v7133 = vpop.f32.mrb[0].mxu0
  %v7134 = vpop.f32.mrb[0].mxu0
  %v7135 = vadd.f32 %v7015, %v7134
  %v7136 = vpop.f32.mrb[0].mxu0
  %7137 = vmatprep.mubr.bf16.mxu0 0
  %7138 = vmatmul.mubr.bf16.gmra.mrb[0].mxu0 %v6991
  %v7139 = vpop.f32.mrb[0].mxu0
  %v7140 = vadd.f32 %v7015, %v7139
  %v7141 = vpop.f32.mrb[0].mxu0
  %v7142 = vpop.f32.mrb[0].mxu0
  %v7143 = vadd.f32 %v7015, %v7142
  %v7144 = vpop.f32.mrb[0].mxu0
  %7145 = vmatprep.mubr.bf16.mxu0 0
  %7146 = vmatmul.mubr.bf16.gmra.mrb[0].mxu0 %v6992
  %v7147 = vpop.f32.mrb[0].mxu0
  %v7148 = vadd.f32 %v7015, %v7147
  %v7149 = vpop.f32.mrb[0].mxu0
  %v7150 = vpop.f32.mrb[0].mxu0
  %v7151 = vadd.f32 %v7015, %v7150
  %v7152 = vpop.f32.mrb[0].mxu0
  %7153 = vmatprep.mubr.bf16.mxu0 0
  %7154 = vmatmul.mubr.bf16.gmra.mrb[0].mxu0 %v6993
  %v7155 = vpop.f32.mrb[0].mxu0
  %v7156 = vadd.f32 %v7015, %v7155
  %v7157 = vpop.f32.mrb[0].mxu0
  %v7158 = vpop.f32.mrb[0].mxu0
  %v7159 = vadd.f32 %v7015, %v7158
  %v7160 = vpop.f32.mrb[0].mxu0
  %7161 = vdwg.mxu0
  %v7162 = vadd.f32 %v6484, %v7100
  %v7163 = vadd.f32 %v6485, %v7103
  %v7164 = vadd.f32 %v6486, %v7108
  %v7165 = vadd.f32 %v6487, %v7111
  %v7166 = vadd.f32 %v6488, %v7116
  %v7167 = vadd.f32 %v6489, %v7119
  %v7168 = vadd.f32 %v6490, %v7124
  %v7169 = vadd.f32 %v6491, %v7127
  %v7170 = vadd.f32 %v6492, %v7132
  %v7171 = vadd.f32 %v6493, %v7135
  %v7172 = vadd.f32 %v6494, %v7140
  %v7173 = vadd.f32 %v6495, %v7143
  %v7174 = vadd.f32 %v6496, %v7148
  %v7175 = vadd.f32 %v6497, %v7151
  %v7176 = vadd.f32 %v6498, %v7156
  %v7177 = vadd.f32 %v6499, %v7159
  %7178 = vst.msk [vmem:[%s14] sm:$0xff] %vm130, %v7162
  %7179 = vst.msk [vmem:[%s14 + $0x8] sm:$0xff] %vm130, %v7163
  %7180 = vst.msk [vmem:[%s14 + $0x10] sm:$0xff] %vm130, %v7164
  %7181 = vst.msk [vmem:[%s14 + $0x18] sm:$0xff] %vm130, %v7165
  %7182 = vst.msk [vmem:[%s14 + $0x20] sm:$0xff] %vm130, %v7166
  %7183 = vst.msk [vmem:[%s14 + $0x28] sm:$0xff] %vm130, %v7167
  %7184 = vst.msk [vmem:[%s14 + $0x30] sm:$0xff] %vm130, %v7168
  %7185 = vst.msk [vmem:[%s14 + $0x38] sm:$0xff] %vm130, %v7169
  %7186 = vst.msk [vmem:[%s14 + $0x40] sm:$0xff] %vm130, %v7170
  %7187 = vst.msk [vmem:[%s14 + $0x48] sm:$0xff] %vm130, %v7171
  %7188 = vst.msk [vmem:[%s14 + $0x50] sm:$0xff] %vm130, %v7172
  %7189 = vst.msk [vmem:[%s14 + $0x58] sm:$0xff] %vm130, %v7173
  %7190 = vst.msk [vmem:[%s14 + $0x60] sm:$0xff] %vm130, %v7174
  %7191 = vst.msk [vmem:[%s14 + $0x68] sm:$0xff] %vm130, %v7175
  %7192 = vst.msk [vmem:[%s14 + $0x70] sm:$0xff] %vm130, %v7176
  %7193 = vst.msk [vmem:[%s14 + $0x78] sm:$0xff] %vm130, %v7177
  // Predicated region
  $region58: #{swin_block_forward.1} parent=0 // pred_check
    _
  $region59: #{swin_block_forward.1} parent=0 // pred_check_branch
    %7195 = sbr.rel (0) target = $region61
  $region60: #{swin_block_forward.1} parent=0 // pred_region
    _
  $region61: #{swin_block_forward.1} parent=0 // pred_fallthru
    _
  // Predicated region
  $region62: #{swin_block_forward.1} parent=0 // pred_check
    _
  $region63: #{swin_block_forward.1} parent=0 // pred_check_branch
    %7197 = sbr.rel (0) target = $region65
  $region64: #{swin_block_forward.1} parent=0 // pred_region
    _
  $region65: #{swin_block_forward.1} parent=0 // pred_fallthru
    _

</llo_original>
